<compile_context>
chip_gen: v6e
topology: v6e:2x2x1
jax: 0.10.0
libtpu: 0.0.40
codegen_flags: <defaults>
</compile_context>

<pallas_src>
import functools

import jax
import jax.numpy as jnp
from jax.experimental import pallas as pl
from jax.experimental.pallas import tpu as pltpu


# ---------------------------------------------------------------------------
# Encoder kernel: conv (taps packed into K) + bias + ReLU + 2x2 max-pool.
# Grid = (batch, row-tiles).  The input block is the whole (padded) image of
# one batch element; the output / accumulator are per row tile.
# ---------------------------------------------------------------------------
def _conv_relu_pool_kernel(x_ref, w_ref, b_ref, o_ref, *, TH, W, Cout,
                           offsets, group):
    """x_ref: (1, H(+2), W(+2), Cin) bf16 (whole image),
    w_ref: (len(offsets)*Cin, Cout) bf16 (taps stacked along K),
    b_ref: (1, Cout) f32, o_ref: (1, TH//2, W//2, Cout) bf16."""
    cin = x_ref.shape[-1]
    row0 = pl.program_id(1) * TH
    acc = None
    n_mm = len(offsets) // group
    for g in range(n_mm):
        cols = []
        for (dy, dx) in offsets[g * group:(g + 1) * group]:
            win = x_ref[0, pl.ds(row0 + dy, TH), pl.ds(dx, W), :]
            cols.append(win.reshape(TH * W, cin))
        patch = cols[0] if group == 1 else jnp.concatenate(cols, axis=1)
        part = jnp.dot(patch,
                       w_ref[g * group * cin:(g + 1) * group * cin, :],
                       preferred_element_type=jnp.float32)
        acc = part if acc is None else acc + part
    acc = jnp.maximum(acc + b_ref[...], 0.0)               # bias + ReLU (f32)
    # 2x2 / stride-2 max-pool epilogue: one reshape + three maxima.
    t = acc.reshape(TH // 2, 2, W // 2, 2, Cout)
    pooled = jnp.maximum(jnp.maximum(t[:, 0, :, 0], t[:, 1, :, 0]),
                         jnp.maximum(t[:, 0, :, 1], t[:, 1, :, 1]))
    o_ref[0] = pooled.astype(o_ref.dtype)


def _pick_tile_h(h, w_cols, cout):
    """Even divisor of h; bounds the f32 accumulator to ~2 MiB and prefers
    >= 2 row tiles so the (batch, row-tile) grid feeds both v7x TensorCores."""
    budget_rows = max(2, (2 * 1024 * 1024) // max(1, w_cols * cout * 4))
    cands = [d for d in range(2, h + 1, 2) if h % d == 0]
    if not cands:
        return h
    limit = min(budget_rows, h // 2 if h >= 4 else h)
    ok = [d for d in cands if d <= limit]
    return max(ok) if ok else min(cands)


def conv3x3_relu_pool(x, w, b):
    """x: (N,H,W,Cin) NHWC; w: (Cout,Cin,3,3) torch layout; b: (Cout,).
    Returns maxpool2x2(relu(conv3x3_pad1(x))) as (N, H//2, W//2, Cout) bf16."""
    n, h, ww, cin = x.shape
    cout = w.shape[0]
    # weight rows ordered (dy, dx, cin) so they match the K-packed patches.
    w9 = jnp.transpose(w, (2, 3, 1, 0)).reshape(9 * cin, cout).astype(jnp.bfloat16)
    xb = x.astype(jnp.bfloat16)

    if cin <= 8:
        # Stage 1: tiny channel count -> im2col in the wrapper, single K=9*Cin
        # matmul per row tile (no in-kernel concat).
        xp = jnp.pad(xb, ((0, 0), (1, 1), (1, 1), (0, 0)))
        xin = jnp.concatenate(
            [xp[:, dy:dy + h, dx:dx + ww, :]
             for dy in range(3) for dx in range(3)], axis=-1)   # (N,H,W,9*Cin)
        offsets, group = ((0, 0),), 1
        in_h, in_w = h, ww
    else:
        # Stages 2/3: pad once; pack the 3 dx taps per dy into K=3*Cin
        # in-kernel (3 matmuls instead of 9).
        xin = jnp.pad(xb, ((0, 0), (1, 1), (1, 1), (0, 0)))
        offsets, group = tuple((dy, dx) for dy in range(3) for dx in range(3)), 3
        in_h, in_w = h + 2, ww + 2
    kin = xin.shape[-1]

    th = _pick_tile_h(h, ww, cout)
    kernel = functools.partial(_conv_relu_pool_kernel, TH=th, W=ww, Cout=cout,
                               offsets=offsets, group=group)
    flops = int(2 * n * h * ww * 9 * cin * cout)
    bytes_accessed = int(xin.size * 2 + w9.size * 2 + cout * 4
                         + n * (h // 2) * (ww // 2) * cout * 2)
    return pl.pallas_call(
        kernel,
        out_shape=jax.ShapeDtypeStruct((n, h // 2, ww // 2, cout), jnp.bfloat16),
        grid_spec=pltpu.PrefetchScalarGridSpec(
            num_scalar_prefetch=0,
            grid=(n, h // th),
            in_specs=[
                pl.BlockSpec((1, in_h, in_w, kin), lambda i, j: (i, 0, 0, 0)),
                pl.BlockSpec((9 * cin, cout), lambda i, j: (0, 0)),
                pl.BlockSpec((1, cout), lambda i, j: (0, 0)),
            ],
            out_specs=pl.BlockSpec((1, th // 2, ww // 2, cout),
                                   lambda i, j: (i, j, 0, 0)),
        ),
        compiler_params=pltpu.CompilerParams(
            dimension_semantics=("parallel", "parallel"),
            vmem_limit_bytes=48 * 1024 * 1024),
        cost_estimate=pl.CostEstimate(flops=flops, transcendentals=0,
                                      bytes_accessed=bytes_accessed),
    )(xin, w9, b.reshape(1, cout).astype(jnp.float32))


# ---------------------------------------------------------------------------
# Fused decoder kernel: t1 + ReLU + t2 + ReLU + t3 + ReLU + 1x1 conv, all as a
# chain of matmuls per row tile of bottleneck pixels.  t2/t3/c4 use
# block-diagonal (Kronecker) weights so no in-kernel reshapes are needed and
# intermediates never leave VMEM.
# ---------------------------------------------------------------------------
def _decoder_kernel(z_ref, w1_ref, b1_ref, w2_ref, b2_ref, w3_ref, b3_ref,
                    w4_ref, b4_ref, o_ref):
    h = jnp.dot(z_ref[...], w1_ref[...], preferred_element_type=jnp.float32)
    h = jnp.maximum(h + b1_ref[...], 0.0).astype(jnp.bfloat16)
    h = jnp.dot(h, w2_ref[...], preferred_element_type=jnp.float32)
    h = jnp.maximum(h + b2_ref[...], 0.0).astype(jnp.bfloat16)
    h = jnp.dot(h, w3_ref[...], preferred_element_type=jnp.float32)
    h = jnp.maximum(h + b3_ref[...], 0.0).astype(jnp.bfloat16)
    h = jnp.dot(h, w4_ref[...], preferred_element_type=jnp.float32)
    o_ref[...] = (h + b4_ref[...]).astype(o_ref.dtype)


def _decoder_row_tile(m):
    """16-row-aligned tiles (bf16 sublane packing), capped at 512 rows, and at
    most ceil(m/2) so the grid has >= 2 steps when m is large enough."""
    half = -(-m // 2)
    bm = max(16, min(512, -(-half // 16) * 16))
    mp = -(-m // bm) * bm
    return bm, mp


def decoder_fused(z, w1, b1, w2, b2, w3, b3, w4, b4):
    """z: (M, 128) bf16 bottleneck pixels.  Returns (M, 576) f32 with columns
    ordered (a1, b1, a2, b2, a3, b3, channel)."""
    m, k = z.shape
    n_out = w4.shape[1]
    bm, mp = _decoder_row_tile(m)
    if mp != m:
        z = jnp.pad(z, ((0, mp - m), (0, 0)))

    ws = [w1.astype(jnp.bfloat16), w2.astype(jnp.bfloat16),
          w3.astype(jnp.bfloat16), w4.astype(jnp.bfloat16)]
    bs = [b1.reshape(1, -1).astype(jnp.float32),
          b2.reshape(1, -1).astype(jnp.float32),
          b3.reshape(1, -1).astype(jnp.float32),
          b4.reshape(1, -1).astype(jnp.float32)]

    def full_spec(a):
        return pl.BlockSpec(a.shape, lambda i: (0,) * a.ndim)

    in_specs = [pl.BlockSpec((bm, k), lambda i: (i, 0))]
    operands = [z]
    for w_, b_ in zip(ws, bs):
        in_specs += [full_spec(w_), full_spec(b_)]
        operands += [w_, b_]

    flops = int(2 * mp * sum(w_.shape[0] * w_.shape[1] for w_ in ws))
    bytes_accessed = int(mp * k * 2 + mp * n_out * 4
                         + sum(w_.size * 2 for w_ in ws)
                         + sum(b_.size * 4 for b_ in bs))

    out = pl.pallas_call(
        _decoder_kernel,
        out_shape=jax.ShapeDtypeStruct((mp, n_out), jnp.float32),
        grid_spec=pltpu.PrefetchScalarGridSpec(
            num_scalar_prefetch=0,
            grid=(mp // bm,),
            in_specs=in_specs,
            out_specs=pl.BlockSpec((bm, n_out), lambda i: (i, 0)),
        ),
        compiler_params=pltpu.CompilerParams(
            dimension_semantics=("parallel",),
            vmem_limit_bytes=32 * 1024 * 1024),
        cost_estimate=pl.CostEstimate(flops=flops, transcendentals=0,
                                      bytes_accessed=bytes_accessed),
    )(*operands)
    return out if mp == m else out[:m]


# ---------------------------------------------------------------------------
# Model
# ---------------------------------------------------------------------------
def init_params(key):
    def conv_p(k, cout, cin, kh, kw, scale=0.1):
        kw_, kb_ = jax.random.split(k)
        return (scale * jax.random.normal(kw_, (cout, cin, kh, kw), jnp.float32),
                scale * jax.random.normal(kb_, (cout,), jnp.float32))

    def convt_p(k, cin, cout, kh, kw, scale=0.1):
        kw_, kb_ = jax.random.split(k)
        return (scale * jax.random.normal(kw_, (cin, cout, kh, kw), jnp.float32),
                scale * jax.random.normal(kb_, (cout,), jnp.float32))

    ks = jax.random.split(key, 7)
    p = {}
    p["c1_w"], p["c1_b"] = conv_p(ks[0], 32, 3, 3, 3)
    p["c2_w"], p["c2_b"] = conv_p(ks[1], 64, 32, 3, 3)
    p["c3_w"], p["c3_b"] = conv_p(ks[2], 128, 64, 3, 3)
    p["t1_w"], p["t1_b"] = convt_p(ks[3], 128, 64, 2, 2)
    p["t2_w"], p["t2_b"] = convt_p(ks[4], 64, 32, 2, 2)
    p["t3_w"], p["t3_b"] = convt_p(ks[5], 32, 16, 2, 2)
    p["c4_w"], p["c4_b"] = conv_p(ks[6], 9, 16, 1, 1)
    return p


def cnn_segmentation_forward(p, x_nchw):
    """Matches CNN_Segmentation.forward.  Input/output are NCHW like PyTorch."""
    n, _, h, w = x_nchw.shape
    assert h % 8 == 0 and w % 8 == 0, "spatial dims must be divisible by 8"
    x = jnp.transpose(x_nchw, (0, 2, 3, 1))                 # -> NHWC

    # ---- encoder: three fused conv3x3 + ReLU + maxpool2x2 kernels ----------
    y = conv3x3_relu_pool(x, p["c1_w"], p["c1_b"])          # (N, H/2, W/2, 32)
    y = conv3x3_relu_pool(y, p["c2_w"], p["c2_b"])          # (N, H/4, W/4, 64)
    y = conv3x3_relu_pool(y, p["c3_w"], p["c3_b"])          # (N, H/8, W/8, 128)
    h8, w8 = h // 8, w // 8

    # ---- decoder weight prep: per-pixel matmuls, block-diagonal expansion --
    def convt_mat(wt, bt):
        cin, cout = wt.shape[0], wt.shape[1]
        # columns ordered (kh, kw, cout)
        return (jnp.transpose(wt, (0, 2, 3, 1)).reshape(cin, 4 * cout),
                jnp.tile(bt, 4))

    w1m, b1m = convt_mat(p["t1_w"], p["t1_b"])              # (128, 256)
    w2m, b2m = convt_mat(p["t2_w"], p["t2_b"])              # (64, 128)
    w3m, b3m = convt_mat(p["t3_w"], p["t3_b"])              # (32, 64)
    c4m = p["c4_w"].reshape(9, 16).T                        # (16, 9)

    eye = lambda k_: jnp.eye(k_, dtype=jnp.float32)
    w2k, b2k = jnp.kron(eye(4), w2m), jnp.tile(b2m, 4)      # (256, 512)
    w3k, b3k = jnp.kron(eye(16), w3m), jnp.tile(b3m, 16)    # (512, 1024)
    w4k, b4k = jnp.kron(eye(64), c4m), jnp.tile(p["c4_b"], 64)   # (1024, 576)

    # ---- single fused decoder kernel over bottleneck pixels ----------------
    z = y.reshape(n * h8 * w8, 128)                         # rows: (n, y3, x3)
    z = decoder_fused(z, w1m, b1m, w2k, b2k, w3k, b3k, w4k, b4k)   # (M, 576)

    # ---- combined pixel-interleave + NCHW transpose at the very end --------
    # cols of z: (a1, b1, a2, b2, a3, b3, ch) where a*=height, b*=width offsets
    z = z.reshape(n, h8, w8, 2, 2, 2, 2, 2, 2, 9)
    z = jnp.transpose(z, (0, 9, 1, 3, 5, 7, 2, 4, 6, 8))
    return z.reshape(n, 9, h, w)                            # -> NCHW


if __name__ == "__main__":
    key = jax.random.PRNGKey(0)
    k_x, k_p = jax.random.split(key)
    # batch=2, 3 channels, 16x16 spatial (divisible by 8 -> exact pooling).
    x = jax.random.normal(k_x, (2, 3, 16, 16), jnp.float32)   # NCHW like PyTorch
    params = init_params(k_p)

    fwd = jax.jit(cnn_segmentation_forward)
    out = jax.block_until_ready(fwd(params, x))

    assert out.shape == (2, 9, 16, 16), out.shape
    assert out.dtype == jnp.float32
    assert bool(jnp.all(jnp.isfinite(out)))
    print("KERNEL_OK")
</pallas_src>

<mosaic_0001>
module attributes {stable_mosaic.version = 11 : i64} {
  func.func @_conv_relu_pool_kernel(%arg0: i32, %arg1: i32, %arg2: memref<1x16x16x27xbf16, #tpu.memory_space<vmem>>, %arg3: memref<27x32xbf16, #tpu.memory_space<vmem>>, %arg4: memref<1x32xf32, #tpu.memory_space<vmem>>, %arg5: memref<1x4x8x32xbf16, #tpu.memory_space<vmem>>) attributes {dimension_semantics = [#tpu.dimension_semantics<parallel>, #tpu.dimension_semantics<parallel>], iteration_bounds = array<i64: 2, 2>, scalar_prefetch = 0 : i64, scratch_operands = 0 : i64, tpu.core_type = #tpu.core_type<tc>, window_params = [{transform_indices = @transform_0, window_bounds = array<i64: 1, 16, 16, 27>}, {pipeline_mode = #tpu.pipeline_mode<synchronous>, transform_indices = @transform_1, window_bounds = array<i64: 27, 32>}, {pipeline_mode = #tpu.pipeline_mode<synchronous>, transform_indices = @transform_2, window_bounds = array<i64: 1, 32>}, {transform_indices = @transform_3, window_bounds = array<i64: 1, 4, 8, 32>}]} {
    %c8_i32 = arith.constant 8 : i32
    %0 = arith.muli %arg1, %c8_i32 : i32
    %c0_i32 = arith.constant 0 : i32
    %1 = arith.addi %0, %c0_i32 : i32
    %c0 = arith.constant 0 : index
    %2 = arith.index_cast %1 : i32 to index
    %c0_0 = arith.constant 0 : index
    %c0_1 = arith.constant 0 : index
    %3 = vector.load %arg2[%c0, %2, %c0_0, %c0_1] : memref<1x16x16x27xbf16, #tpu.memory_space<vmem>>, vector<1x8x16x27xbf16>
    %4 = vector.shape_cast %3 : vector<1x8x16x27xbf16> to vector<8x16x27xbf16>
    %5 = vector.shape_cast %4 : vector<8x16x27xbf16> to vector<128x27xbf16>
    %c0_2 = arith.constant 0 : index
    %c0_3 = arith.constant 0 : index
    %6 = vector.load %arg3[%c0_2, %c0_3] : memref<27x32xbf16, #tpu.memory_space<vmem>>, vector<27x32xbf16>
    %cst = arith.constant dense<0.000000e+00> : vector<128x32xf32>
    %7 = tpu.matmul %5, %6, %cst {dimension_numbers = #tpu.dot_dimension_numbers<[1], [0], [0], [1], [0, 0, 1, 1], [], []>} : vector<128x27xbf16>, vector<27x32xbf16>, vector<128x32xf32> -> vector<128x32xf32>
    %c0_4 = arith.constant 0 : index
    %c0_5 = arith.constant 0 : index
    %8 = vector.load %arg4[%c0_4, %c0_5] : memref<1x32xf32, #tpu.memory_space<vmem>>, vector<1x32xf32>
    %9 = vector.broadcast %8 : vector<1x32xf32> to vector<128x32xf32>
    %10 = arith.addf %7, %9 : vector<128x32xf32>
    %cst_6 = arith.constant 0.000000e+00 : f32
    %11 = vector.broadcast %cst_6 : f32 to vector<128x32xf32>
    %12 = arith.maximumf %10, %11 : vector<128x32xf32>
    %13 = vector.shape_cast %12 : vector<128x32xf32> to vector<4x2x8x2x32xf32>
    %14 = vector.extract_strided_slice %13 {offsets = [0, 0, 0, 0, 0], sizes = [4, 1, 8, 1, 32], strides = [1, 1, 1, 1, 1]} : vector<4x2x8x2x32xf32> to vector<4x1x8x1x32xf32>
    %15 = vector.shape_cast %14 : vector<4x1x8x1x32xf32> to vector<4x8x32xf32>
    %16 = vector.extract_strided_slice %13 {offsets = [0, 1, 0, 0, 0], sizes = [4, 1, 8, 1, 32], strides = [1, 1, 1, 1, 1]} : vector<4x2x8x2x32xf32> to vector<4x1x8x1x32xf32>
    %17 = vector.shape_cast %16 : vector<4x1x8x1x32xf32> to vector<4x8x32xf32>
    %18 = arith.maximumf %15, %17 : vector<4x8x32xf32>
    %19 = vector.extract_strided_slice %13 {offsets = [0, 0, 0, 1, 0], sizes = [4, 1, 8, 1, 32], strides = [1, 1, 1, 1, 1]} : vector<4x2x8x2x32xf32> to vector<4x1x8x1x32xf32>
    %20 = vector.shape_cast %19 : vector<4x1x8x1x32xf32> to vector<4x8x32xf32>
    %21 = vector.extract_strided_slice %13 {offsets = [0, 1, 0, 1, 0], sizes = [4, 1, 8, 1, 32], strides = [1, 1, 1, 1, 1]} : vector<4x2x8x2x32xf32> to vector<4x1x8x1x32xf32>
    %22 = vector.shape_cast %21 : vector<4x1x8x1x32xf32> to vector<4x8x32xf32>
    %23 = arith.maximumf %20, %22 : vector<4x8x32xf32>
    %24 = arith.maximumf %18, %23 : vector<4x8x32xf32>
    %25 = arith.truncf %24 : vector<4x8x32xf32> to vector<4x8x32xbf16>
    %c0_7 = arith.constant 0 : index
    %c0_8 = arith.constant 0 : index
    %c0_9 = arith.constant 0 : index
    %c0_10 = arith.constant 0 : index
    %26 = vector.load %arg5[%c0_7, %c0_8, %c0_9, %c0_10] : memref<1x4x8x32xbf16, #tpu.memory_space<vmem>>, vector<1x4x8x32xbf16>
    %27 = vector.shape_cast %26 : vector<1x4x8x32xbf16> to vector<4x8x32xbf16>
    %28 = vector.shape_cast %25 : vector<4x8x32xbf16> to vector<1x4x8x32xbf16>
    tpu.vector_store %arg5[%c0_7, %c0_8, %c0_9, %c0_10], %28 {strides = array<i32>} : memref<1x4x8x32xbf16, #tpu.memory_space<vmem>>, vector<1x4x8x32xbf16>,
    return
  }
  func.func @transform_0(%arg0: i32, %arg1: i32) -> (i32, i32, i32, i32) {
    %c0_i32 = arith.constant 0 : i32
    %c0_i32_0 = arith.constant 0 : i32
    %c0_i32_1 = arith.constant 0 : i32
    %c0_i32_2 = arith.constant 0 : i32
    return %arg0, %c0_i32, %c0_i32_0, %c0_i32_1 : i32, i32, i32, i32
  }
  func.func @transform_1(%arg0: i32, %arg1: i32) -> (i32, i32) {
    %c0_i32 = arith.constant 0 : i32
    %c0_i32_0 = arith.constant 0 : i32
    %c0_i32_1 = arith.constant 0 : i32
    return %c0_i32, %c0_i32_0 : i32, i32
  }
  func.func @transform_2(%arg0: i32, %arg1: i32) -> (i32, i32) {
    %c0_i32 = arith.constant 0 : i32
    %c0_i32_0 = arith.constant 0 : i32
    %c0_i32_1 = arith.constant 0 : i32
    return %c0_i32, %c0_i32_0 : i32, i32
  }
  func.func @transform_3(%arg0: i32, %arg1: i32) -> (i32, i32, i32, i32) {
    %c0_i32 = arith.constant 0 : i32
    %c0_i32_0 = arith.constant 0 : i32
    %c0_i32_1 = arith.constant 0 : i32
    return %arg0, %arg1, %c0_i32, %c0_i32_0 : i32, i32, i32, i32
  }
}

module attributes {stable_mosaic.version = 11 : i64} {
  func.func @_conv_relu_pool_kernel(%arg0: i32, %arg1: i32, %arg2: memref<1x10x10x32xbf16, #tpu.memory_space<vmem>>, %arg3: memref<288x64xbf16, #tpu.memory_space<vmem>>, %arg4: memref<1x64xf32, #tpu.memory_space<vmem>>, %arg5: memref<1x2x4x64xbf16, #tpu.memory_space<vmem>>) attributes {dimension_semantics = [#tpu.dimension_semantics<parallel>, #tpu.dimension_semantics<parallel>], iteration_bounds = array<i64: 2, 2>, scalar_prefetch = 0 : i64, scratch_operands = 0 : i64, tpu.core_type = #tpu.core_type<tc>, window_params = [{transform_indices = @transform_0, window_bounds = array<i64: 1, 10, 10, 32>}, {pipeline_mode = #tpu.pipeline_mode<synchronous>, transform_indices = @transform_1, window_bounds = array<i64: 288, 64>}, {pipeline_mode = #tpu.pipeline_mode<synchronous>, transform_indices = @transform_2, window_bounds = array<i64: 1, 64>}, {transform_indices = @transform_3, window_bounds = array<i64: 1, 2, 4, 64>}]} {
    %c4_i32 = arith.constant 4 : i32
    %0 = arith.muli %arg1, %c4_i32 : i32
    %c0_i32 = arith.constant 0 : i32
    %1 = arith.addi %0, %c0_i32 : i32
    %c0 = arith.constant 0 : index
    %2 = arith.index_cast %1 : i32 to index
    %c0_0 = arith.constant 0 : index
    %c0_1 = arith.constant 0 : index
    %3 = vector.load %arg2[%c0, %2, %c0_0, %c0_1] : memref<1x10x10x32xbf16, #tpu.memory_space<vmem>>, vector<1x4x8x32xbf16>
    %4 = vector.shape_cast %3 : vector<1x4x8x32xbf16> to vector<4x8x32xbf16>
    %5 = vector.shape_cast %4 : vector<4x8x32xbf16> to vector<32x32xbf16>
    %c0_i32_2 = arith.constant 0 : i32
    %6 = arith.addi %0, %c0_i32_2 : i32
    %c0_3 = arith.constant 0 : index
    %7 = arith.index_cast %6 : i32 to index
    %c1 = arith.constant 1 : index
    %c0_4 = arith.constant 0 : index
    %8 = vector.load %arg2[%c0_3, %7, %c1, %c0_4] : memref<1x10x10x32xbf16, #tpu.memory_space<vmem>>, vector<1x4x8x32xbf16>
    %9 = vector.shape_cast %8 : vector<1x4x8x32xbf16> to vector<4x8x32xbf16>
    %10 = vector.shape_cast %9 : vector<4x8x32xbf16> to vector<32x32xbf16>
    %c0_i32_5 = arith.constant 0 : i32
    %11 = arith.addi %0, %c0_i32_5 : i32
    %c0_6 = arith.constant 0 : index
    %12 = arith.index_cast %11 : i32 to index
    %c2 = arith.constant 2 : index
    %c0_7 = arith.constant 0 : index
    %13 = vector.load %arg2[%c0_6, %12, %c2, %c0_7] : memref<1x10x10x32xbf16, #tpu.memory_space<vmem>>, vector<1x4x8x32xbf16>
    %14 = vector.shape_cast %13 : vector<1x4x8x32xbf16> to vector<4x8x32xbf16>
    %15 = vector.shape_cast %14 : vector<4x8x32xbf16> to vector<32x32xbf16>
    %16 = tpu.concatenate %5, %10, %15 in 1 : vector<32x32xbf16>, vector<32x32xbf16>, vector<32x32xbf16> -> vector<32x96xbf16>
    %c0_8 = arith.constant 0 : index
    %c0_9 = arith.constant 0 : index
    %17 = vector.load %arg3[%c0_8, %c0_9] : memref<288x64xbf16, #tpu.memory_space<vmem>>, vector<96x64xbf16>
    %cst = arith.constant dense<0.000000e+00> : vector<32x64xf32>
    %18 = tpu.matmul %16, %17, %cst {dimension_numbers = #tpu.dot_dimension_numbers<[1], [0], [0], [1], [0, 0, 1, 1], [], []>} : vector<32x96xbf16>, vector<96x64xbf16>, vector<32x64xf32> -> vector<32x64xf32>
    %c1_i32 = arith.constant 1 : i32
    %19 = arith.addi %0, %c1_i32 : i32
    %c0_10 = arith.constant 0 : index
    %20 = arith.index_cast %19 : i32 to index
    %c0_11 = arith.constant 0 : index
    %c0_12 = arith.constant 0 : index
    %21 = vector.load %arg2[%c0_10, %20, %c0_11, %c0_12] : memref<1x10x10x32xbf16, #tpu.memory_space<vmem>>, vector<1x4x8x32xbf16>
    %22 = vector.shape_cast %21 : vector<1x4x8x32xbf16> to vector<4x8x32xbf16>
    %23 = vector.shape_cast %22 : vector<4x8x32xbf16> to vector<32x32xbf16>
    %c1_i32_13 = arith.constant 1 : i32
    %24 = arith.addi %0, %c1_i32_13 : i32
    %c0_14 = arith.constant 0 : index
    %25 = arith.index_cast %24 : i32 to index
    %c1_15 = arith.constant 1 : index
    %c0_16 = arith.constant 0 : index
    %26 = vector.load %arg2[%c0_14, %25, %c1_15, %c0_16] : memref<1x10x10x32xbf16, #tpu.memory_space<vmem>>, vector<1x4x8x32xbf16>
    %27 = vector.shape_cast %26 : vector<1x4x8x32xbf16> to vector<4x8x32xbf16>
    %28 = vector.shape_cast %27 : vector<4x8x32xbf16> to vector<32x32xbf16>
    %c1_i32_17 = arith.constant 1 : i32
    %29 = arith.addi %0, %c1_i32_17 : i32
    %c0_18 = arith.constant 0 : index
    %30 = arith.index_cast %29 : i32 to index
    %c2_19 = arith.constant 2 : index
    %c0_20 = arith.constant 0 : index
    %31 = vector.load %arg2[%c0_18, %30, %c2_19, %c0_20] : memref<1x10x10x32xbf16, #tpu.memory_space<vmem>>, vector<1x4x8x32xbf16>
    %32 = vector.shape_cast %31 : vector<1x4x8x32xbf16> to vector<4x8x32xbf16>
    %33 = vector.shape_cast %32 : vector<4x8x32xbf16> to vector<32x32xbf16>
    %34 = tpu.concatenate %23, %28, %33 in 1 : vector<32x32xbf16>, vector<32x32xbf16>, vector<32x32xbf16> -> vector<32x96xbf16>
    %c96 = arith.constant 96 : index
    %c0_21 = arith.constant 0 : index
    %35 = vector.load %arg3[%c96, %c0_21] : memref<288x64xbf16, #tpu.memory_space<vmem>>, vector<96x64xbf16>
    %cst_22 = arith.constant dense<0.000000e+00> : vector<32x64xf32>
    %36 = tpu.matmul %34, %35, %cst_22 {dimension_numbers = #tpu.dot_dimension_numbers<[1], [0], [0], [1], [0, 0, 1, 1], [], []>} : vector<32x96xbf16>, vector<96x64xbf16>, vector<32x64xf32> -> vector<32x64xf32>
    %37 = arith.addf %18, %36 : vector<32x64xf32>
    %c2_i32 = arith.constant 2 : i32
    %38 = arith.addi %0, %c2_i32 : i32
    %c0_23 = arith.constant 0 : index
    %39 = arith.index_cast %38 : i32 to index
    %c0_24 = arith.constant 0 : index
    %c0_25 = arith.constant 0 : index
    %40 = vector.load %arg2[%c0_23, %39, %c0_24, %c0_25] : memref<1x10x10x32xbf16, #tpu.memory_space<vmem>>, vector<1x4x8x32xbf16>
    %41 = vector.shape_cast %40 : vector<1x4x8x32xbf16> to vector<4x8x32xbf16>
    %42 = vector.shape_cast %41 : vector<4x8x32xbf16> to vector<32x32xbf16>
    %c2_i32_26 = arith.constant 2 : i32
    %43 = arith.addi %0, %c2_i32_26 : i32
    %c0_27 = arith.constant 0 : index
    %44 = arith.index_cast %43 : i32 to index
    %c1_28 = arith.constant 1 : index
    %c0_29 = arith.constant 0 : index
    %45 = vector.load %arg2[%c0_27, %44, %c1_28, %c0_29] : memref<1x10x10x32xbf16, #tpu.memory_space<vmem>>, vector<1x4x8x32xbf16>
    %46 = vector.shape_cast %45 : vector<1x4x8x32xbf16> to vector<4x8x32xbf16>
    %47 = vector.shape_cast %46 : vector<4x8x32xbf16> to vector<32x32xbf16>
    %c2_i32_30 = arith.constant 2 : i32
    %48 = arith.addi %0, %c2_i32_30 : i32
    %c0_31 = arith.constant 0 : index
    %49 = arith.index_cast %48 : i32 to index
    %c2_32 = arith.constant 2 : index
    %c0_33 = arith.constant 0 : index
    %50 = vector.load %arg2[%c0_31, %49, %c2_32, %c0_33] : memref<1x10x10x32xbf16, #tpu.memory_space<vmem>>, vector<1x4x8x32xbf16>
    %51 = vector.shape_cast %50 : vector<1x4x8x32xbf16> to vector<4x8x32xbf16>
    %52 = vector.shape_cast %51 : vector<4x8x32xbf16> to vector<32x32xbf16>
    %53 = tpu.concatenate %42, %47, %52 in 1 : vector<32x32xbf16>, vector<32x32xbf16>, vector<32x32xbf16> -> vector<32x96xbf16>
    %c192 = arith.constant 192 : index
    %c0_34 = arith.constant 0 : index
    %54 = vector.load %arg3[%c192, %c0_34] : memref<288x64xbf16, #tpu.memory_space<vmem>>, vector<96x64xbf16>
    %cst_35 = arith.constant dense<0.000000e+00> : vector<32x64xf32>
    %55 = tpu.matmul %53, %54, %cst_35 {dimension_numbers = #tpu.dot_dimension_numbers<[1], [0], [0], [1], [0, 0, 1, 1], [], []>} : vector<32x96xbf16>, vector<96x64xbf16>, vector<32x64xf32> -> vector<32x64xf32>
    %56 = arith.addf %37, %55 : vector<32x64xf32>
    %c0_36 = arith.constant 0 : index
    %c0_37 = arith.constant 0 : index
    %57 = vector.load %arg4[%c0_36, %c0_37] : memref<1x64xf32, #tpu.memory_space<vmem>>, vector<1x64xf32>
    %58 = vector.broadcast %57 : vector<1x64xf32> to vector<32x64xf32>
    %59 = arith.addf %56, %58 : vector<32x64xf32>
    %cst_38 = arith.constant 0.000000e+00 : f32
    %60 = vector.broadcast %cst_38 : f32 to vector<32x64xf32>
    %61 = arith.maximumf %59, %60 : vector<32x64xf32>
    %62 = vector.shape_cast %61 : vector<32x64xf32> to vector<2x2x4x2x64xf32>
    %63 = vector.extract_strided_slice %62 {offsets = [0, 0, 0, 0, 0], sizes = [2, 1, 4, 1, 64], strides = [1, 1, 1, 1, 1]} : vector<2x2x4x2x64xf32> to vector<2x1x4x1x64xf32>
    %64 = vector.shape_cast %63 : vector<2x1x4x1x64xf32> to vector<2x4x64xf32>
    %65 = vector.extract_strided_slice %62 {offsets = [0, 1, 0, 0, 0], sizes = [2, 1, 4, 1, 64], strides = [1, 1, 1, 1, 1]} : vector<2x2x4x2x64xf32> to vector<2x1x4x1x64xf32>
    %66 = vector.shape_cast %65 : vector<2x1x4x1x64xf32> to vector<2x4x64xf32>
    %67 = arith.maximumf %64, %66 : vector<2x4x64xf32>
    %68 = vector.extract_strided_slice %62 {offsets = [0, 0, 0, 1, 0], sizes = [2, 1, 4, 1, 64], strides = [1, 1, 1, 1, 1]} : vector<2x2x4x2x64xf32> to vector<2x1x4x1x64xf32>
    %69 = vector.shape_cast %68 : vector<2x1x4x1x64xf32> to vector<2x4x64xf32>
    %70 = vector.extract_strided_slice %62 {offsets = [0, 1, 0, 1, 0], sizes = [2, 1, 4, 1, 64], strides = [1, 1, 1, 1, 1]} : vector<2x2x4x2x64xf32> to vector<2x1x4x1x64xf32>
    %71 = vector.shape_cast %70 : vector<2x1x4x1x64xf32> to vector<2x4x64xf32>
    %72 = arith.maximumf %69, %71 : vector<2x4x64xf32>
    %73 = arith.maximumf %67, %72 : vector<2x4x64xf32>
    %74 = arith.truncf %73 : vector<2x4x64xf32> to vector<2x4x64xbf16>
    %c0_39 = arith.constant 0 : index
    %c0_40 = arith.constant 0 : index
    %c0_41 = arith.constant 0 : index
    %c0_42 = arith.constant 0 : index
    %75 = vector.load %arg5[%c0_39, %c0_40, %c0_41, %c0_42] : memref<1x2x4x64xbf16, #tpu.memory_space<vmem>>, vector<1x2x4x64xbf16>
    %76 = vector.shape_cast %75 : vector<1x2x4x64xbf16> to vector<2x4x64xbf16>
    %77 = vector.shape_cast %74 : vector<2x4x64xbf16> to vector<1x2x4x64xbf16>
    tpu.vector_store %arg5[%c0_39, %c0_40, %c0_41, %c0_42], %77 {strides = array<i32>} : memref<1x2x4x64xbf16, #tpu.memory_space<vmem>>, vector<1x2x4x64xbf16>,
    return
  }
  func.func @transform_0(%arg0: i32, %arg1: i32) -> (i32, i32, i32, i32) {
    %c0_i32 = arith.constant 0 : i32
    %c0_i32_0 = arith.constant 0 : i32
    %c0_i32_1 = arith.constant 0 : i32
    %c0_i32_2 = arith.constant 0 : i32
    return %arg0, %c0_i32, %c0_i32_0, %c0_i32_1 : i32, i32, i32, i32
  }
  func.func @transform_1(%arg0: i32, %arg1: i32) -> (i32, i32) {
    %c0_i32 = arith.constant 0 : i32
    %c0_i32_0 = arith.constant 0 : i32
    %c0_i32_1 = arith.constant 0 : i32
    return %c0_i32, %c0_i32_0 : i32, i32
  }
  func.func @transform_2(%arg0: i32, %arg1: i32) -> (i32, i32) {
    %c0_i32 = arith.constant 0 : i32
    %c0_i32_0 = arith.constant 0 : i32
    %c0_i32_1 = arith.constant 0 : i32
    return %c0_i32, %c0_i32_0 : i32, i32
  }
  func.func @transform_3(%arg0: i32, %arg1: i32) -> (i32, i32, i32, i32) {
    %c0_i32 = arith.constant 0 : i32
    %c0_i32_0 = arith.constant 0 : i32
    %c0_i32_1 = arith.constant 0 : i32
    return %arg0, %arg1, %c0_i32, %c0_i32_0 : i32, i32, i32, i32
  }
}

module attributes {stable_mosaic.version = 11 : i64} {
  func.func @_conv_relu_pool_kernel(%arg0: i32, %arg1: i32, %arg2: memref<1x6x6x64xbf16, #tpu.memory_space<vmem>>, %arg3: memref<576x128xbf16, #tpu.memory_space<vmem>>, %arg4: memref<1x128xf32, #tpu.memory_space<vmem>>, %arg5: memref<1x1x2x128xbf16, #tpu.memory_space<vmem>>) attributes {dimension_semantics = [#tpu.dimension_semantics<parallel>, #tpu.dimension_semantics<parallel>], iteration_bounds = array<i64: 2, 2>, scalar_prefetch = 0 : i64, scratch_operands = 0 : i64, tpu.core_type = #tpu.core_type<tc>, window_params = [{transform_indices = @transform_0, window_bounds = array<i64: 1, 6, 6, 64>}, {pipeline_mode = #tpu.pipeline_mode<synchronous>, transform_indices = @transform_1, window_bounds = array<i64: 576, 128>}, {pipeline_mode = #tpu.pipeline_mode<synchronous>, transform_indices = @transform_2, window_bounds = array<i64: 1, 128>}, {transform_indices = @transform_3, window_bounds = array<i64: 1, 1, 2, 128>}]} {
    %c2_i32 = arith.constant 2 : i32
    %0 = arith.muli %arg1, %c2_i32 : i32
    %c0_i32 = arith.constant 0 : i32
    %1 = arith.addi %0, %c0_i32 : i32
    %c0 = arith.constant 0 : index
    %2 = arith.index_cast %1 : i32 to index
    %c0_0 = arith.constant 0 : index
    %c0_1 = arith.constant 0 : index
    %3 = vector.load %arg2[%c0, %2, %c0_0, %c0_1] : memref<1x6x6x64xbf16, #tpu.memory_space<vmem>>, vector<1x2x4x64xbf16>
    %4 = vector.shape_cast %3 : vector<1x2x4x64xbf16> to vector<2x4x64xbf16>
    %5 = vector.shape_cast %4 : vector<2x4x64xbf16> to vector<8x64xbf16>
    %c0_i32_2 = arith.constant 0 : i32
    %6 = arith.addi %0, %c0_i32_2 : i32
    %c0_3 = arith.constant 0 : index
    %7 = arith.index_cast %6 : i32 to index
    %c1 = arith.constant 1 : index
    %c0_4 = arith.constant 0 : index
    %8 = vector.load %arg2[%c0_3, %7, %c1, %c0_4] : memref<1x6x6x64xbf16, #tpu.memory_space<vmem>>, vector<1x2x4x64xbf16>
    %9 = vector.shape_cast %8 : vector<1x2x4x64xbf16> to vector<2x4x64xbf16>
    %10 = vector.shape_cast %9 : vector<2x4x64xbf16> to vector<8x64xbf16>
    %c0_i32_5 = arith.constant 0 : i32
    %11 = arith.addi %0, %c0_i32_5 : i32
    %c0_6 = arith.constant 0 : index
    %12 = arith.index_cast %11 : i32 to index
    %c2 = arith.constant 2 : index
    %c0_7 = arith.constant 0 : index
    %13 = vector.load %arg2[%c0_6, %12, %c2, %c0_7] : memref<1x6x6x64xbf16, #tpu.memory_space<vmem>>, vector<1x2x4x64xbf16>
    %14 = vector.shape_cast %13 : vector<1x2x4x64xbf16> to vector<2x4x64xbf16>
    %15 = vector.shape_cast %14 : vector<2x4x64xbf16> to vector<8x64xbf16>
    %16 = tpu.concatenate %5, %10, %15 in 1 : vector<8x64xbf16>, vector<8x64xbf16>, vector<8x64xbf16> -> vector<8x192xbf16>
    %c0_8 = arith.constant 0 : index
    %c0_9 = arith.constant 0 : index
    %17 = vector.load %arg3[%c0_8, %c0_9] : memref<576x128xbf16, #tpu.memory_space<vmem>>, vector<192x128xbf16>
    %cst = arith.constant dense<0.000000e+00> : vector<8x128xf32>
    %18 = tpu.matmul %16, %17, %cst {dimension_numbers = #tpu.dot_dimension_numbers<[1], [0], [0], [1], [0, 0, 1, 1], [], []>} : vector<8x192xbf16>, vector<192x128xbf16>, vector<8x128xf32> -> vector<8x128xf32>
    %c1_i32 = arith.constant 1 : i32
    %19 = arith.addi %0, %c1_i32 : i32
    %c0_10 = arith.constant 0 : index
    %20 = arith.index_cast %19 : i32 to index
    %c0_11 = arith.constant 0 : index
    %c0_12 = arith.constant 0 : index
    %21 = vector.load %arg2[%c0_10, %20, %c0_11, %c0_12] : memref<1x6x6x64xbf16, #tpu.memory_space<vmem>>, vector<1x2x4x64xbf16>
    %22 = vector.shape_cast %21 : vector<1x2x4x64xbf16> to vector<2x4x64xbf16>
    %23 = vector.shape_cast %22 : vector<2x4x64xbf16> to vector<8x64xbf16>
    %c1_i32_13 = arith.constant 1 : i32
    %24 = arith.addi %0, %c1_i32_13 : i32
    %c0_14 = arith.constant 0 : index
    %25 = arith.index_cast %24 : i32 to index
    %c1_15 = arith.constant 1 : index
    %c0_16 = arith.constant 0 : index
    %26 = vector.load %arg2[%c0_14, %25, %c1_15, %c0_16] : memref<1x6x6x64xbf16, #tpu.memory_space<vmem>>, vector<1x2x4x64xbf16>
    %27 = vector.shape_cast %26 : vector<1x2x4x64xbf16> to vector<2x4x64xbf16>
    %28 = vector.shape_cast %27 : vector<2x4x64xbf16> to vector<8x64xbf16>
    %c1_i32_17 = arith.constant 1 : i32
    %29 = arith.addi %0, %c1_i32_17 : i32
    %c0_18 = arith.constant 0 : index
    %30 = arith.index_cast %29 : i32 to index
    %c2_19 = arith.constant 2 : index
    %c0_20 = arith.constant 0 : index
    %31 = vector.load %arg2[%c0_18, %30, %c2_19, %c0_20] : memref<1x6x6x64xbf16, #tpu.memory_space<vmem>>, vector<1x2x4x64xbf16>
    %32 = vector.shape_cast %31 : vector<1x2x4x64xbf16> to vector<2x4x64xbf16>
    %33 = vector.shape_cast %32 : vector<2x4x64xbf16> to vector<8x64xbf16>
    %34 = tpu.concatenate %23, %28, %33 in 1 : vector<8x64xbf16>, vector<8x64xbf16>, vector<8x64xbf16> -> vector<8x192xbf16>
    %c192 = arith.constant 192 : index
    %c0_21 = arith.constant 0 : index
    %35 = vector.load %arg3[%c192, %c0_21] : memref<576x128xbf16, #tpu.memory_space<vmem>>, vector<192x128xbf16>
    %cst_22 = arith.constant dense<0.000000e+00> : vector<8x128xf32>
    %36 = tpu.matmul %34, %35, %cst_22 {dimension_numbers = #tpu.dot_dimension_numbers<[1], [0], [0], [1], [0, 0, 1, 1], [], []>} : vector<8x192xbf16>, vector<192x128xbf16>, vector<8x128xf32> -> vector<8x128xf32>
    %37 = arith.addf %18, %36 : vector<8x128xf32>
    %c2_i32_23 = arith.constant 2 : i32
    %38 = arith.addi %0, %c2_i32_23 : i32
    %c0_24 = arith.constant 0 : index
    %39 = arith.index_cast %38 : i32 to index
    %c0_25 = arith.constant 0 : index
    %c0_26 = arith.constant 0 : index
    %40 = vector.load %arg2[%c0_24, %39, %c0_25, %c0_26] : memref<1x6x6x64xbf16, #tpu.memory_space<vmem>>, vector<1x2x4x64xbf16>
    %41 = vector.shape_cast %40 : vector<1x2x4x64xbf16> to vector<2x4x64xbf16>
    %42 = vector.shape_cast %41 : vector<2x4x64xbf16> to vector<8x64xbf16>
    %c2_i32_27 = arith.constant 2 : i32
    %43 = arith.addi %0, %c2_i32_27 : i32
    %c0_28 = arith.constant 0 : index
    %44 = arith.index_cast %43 : i32 to index
    %c1_29 = arith.constant 1 : index
    %c0_30 = arith.constant 0 : index
    %45 = vector.load %arg2[%c0_28, %44, %c1_29, %c0_30] : memref<1x6x6x64xbf16, #tpu.memory_space<vmem>>, vector<1x2x4x64xbf16>
    %46 = vector.shape_cast %45 : vector<1x2x4x64xbf16> to vector<2x4x64xbf16>
    %47 = vector.shape_cast %46 : vector<2x4x64xbf16> to vector<8x64xbf16>
    %c2_i32_31 = arith.constant 2 : i32
    %48 = arith.addi %0, %c2_i32_31 : i32
    %c0_32 = arith.constant 0 : index
    %49 = arith.index_cast %48 : i32 to index
    %c2_33 = arith.constant 2 : index
    %c0_34 = arith.constant 0 : index
    %50 = vector.load %arg2[%c0_32, %49, %c2_33, %c0_34] : memref<1x6x6x64xbf16, #tpu.memory_space<vmem>>, vector<1x2x4x64xbf16>
    %51 = vector.shape_cast %50 : vector<1x2x4x64xbf16> to vector<2x4x64xbf16>
    %52 = vector.shape_cast %51 : vector<2x4x64xbf16> to vector<8x64xbf16>
    %53 = tpu.concatenate %42, %47, %52 in 1 : vector<8x64xbf16>, vector<8x64xbf16>, vector<8x64xbf16> -> vector<8x192xbf16>
    %c384 = arith.constant 384 : index
    %c0_35 = arith.constant 0 : index
    %54 = vector.load %arg3[%c384, %c0_35] : memref<576x128xbf16, #tpu.memory_space<vmem>>, vector<192x128xbf16>
    %cst_36 = arith.constant dense<0.000000e+00> : vector<8x128xf32>
    %55 = tpu.matmul %53, %54, %cst_36 {dimension_numbers = #tpu.dot_dimension_numbers<[1], [0], [0], [1], [0, 0, 1, 1], [], []>} : vector<8x192xbf16>, vector<192x128xbf16>, vector<8x128xf32> -> vector<8x128xf32>
    %56 = arith.addf %37, %55 : vector<8x128xf32>
    %c0_37 = arith.constant 0 : index
    %c0_38 = arith.constant 0 : index
    %57 = vector.load %arg4[%c0_37, %c0_38] : memref<1x128xf32, #tpu.memory_space<vmem>>, vector<1x128xf32>
    %58 = vector.broadcast %57 : vector<1x128xf32> to vector<8x128xf32>
    %59 = arith.addf %56, %58 : vector<8x128xf32>
    %cst_39 = arith.constant 0.000000e+00 : f32
    %60 = vector.broadcast %cst_39 : f32 to vector<8x128xf32>
    %61 = arith.maximumf %59, %60 : vector<8x128xf32>
    %62 = vector.shape_cast %61 : vector<8x128xf32> to vector<1x2x2x2x128xf32>
    %63 = vector.extract_strided_slice %62 {offsets = [0, 0, 0, 0, 0], sizes = [1, 1, 2, 1, 128], strides = [1, 1, 1, 1, 1]} : vector<1x2x2x2x128xf32> to vector<1x1x2x1x128xf32>
    %64 = vector.shape_cast %63 : vector<1x1x2x1x128xf32> to vector<1x2x128xf32>
    %65 = vector.extract_strided_slice %62 {offsets = [0, 1, 0, 0, 0], sizes = [1, 1, 2, 1, 128], strides = [1, 1, 1, 1, 1]} : vector<1x2x2x2x128xf32> to vector<1x1x2x1x128xf32>
    %66 = vector.shape_cast %65 : vector<1x1x2x1x128xf32> to vector<1x2x128xf32>
    %67 = arith.maximumf %64, %66 : vector<1x2x128xf32>
    %68 = vector.extract_strided_slice %62 {offsets = [0, 0, 0, 1, 0], sizes = [1, 1, 2, 1, 128], strides = [1, 1, 1, 1, 1]} : vector<1x2x2x2x128xf32> to vector<1x1x2x1x128xf32>
    %69 = vector.shape_cast %68 : vector<1x1x2x1x128xf32> to vector<1x2x128xf32>
    %70 = vector.extract_strided_slice %62 {offsets = [0, 1, 0, 1, 0], sizes = [1, 1, 2, 1, 128], strides = [1, 1, 1, 1, 1]} : vector<1x2x2x2x128xf32> to vector<1x1x2x1x128xf32>
    %71 = vector.shape_cast %70 : vector<1x1x2x1x128xf32> to vector<1x2x128xf32>
    %72 = arith.maximumf %69, %71 : vector<1x2x128xf32>
    %73 = arith.maximumf %67, %72 : vector<1x2x128xf32>
    %74 = arith.truncf %73 : vector<1x2x128xf32> to vector<1x2x128xbf16>
    %c0_40 = arith.constant 0 : index
    %c0_41 = arith.constant 0 : index
    %c0_42 = arith.constant 0 : index
    %c0_43 = arith.constant 0 : index
    %75 = vector.load %arg5[%c0_40, %c0_41, %c0_42, %c0_43] : memref<1x1x2x128xbf16, #tpu.memory_space<vmem>>, vector<1x1x2x128xbf16>
    %76 = vector.shape_cast %75 : vector<1x1x2x128xbf16> to vector<1x2x128xbf16>
    %77 = vector.shape_cast %74 : vector<1x2x128xbf16> to vector<1x1x2x128xbf16>
    tpu.vector_store %arg5[%c0_40, %c0_41, %c0_42, %c0_43], %77 {strides = array<i32>} : memref<1x1x2x128xbf16, #tpu.memory_space<vmem>>, vector<1x1x2x128xbf16>,
    return
  }
  func.func @transform_0(%arg0: i32, %arg1: i32) -> (i32, i32, i32, i32) {
    %c0_i32 = arith.constant 0 : i32
    %c0_i32_0 = arith.constant 0 : i32
    %c0_i32_1 = arith.constant 0 : i32
    %c0_i32_2 = arith.constant 0 : i32
    return %arg0, %c0_i32, %c0_i32_0, %c0_i32_1 : i32, i32, i32, i32
  }
  func.func @transform_1(%arg0: i32, %arg1: i32) -> (i32, i32) {
    %c0_i32 = arith.constant 0 : i32
    %c0_i32_0 = arith.constant 0 : i32
    %c0_i32_1 = arith.constant 0 : i32
    return %c0_i32, %c0_i32_0 : i32, i32
  }
  func.func @transform_2(%arg0: i32, %arg1: i32) -> (i32, i32) {
    %c0_i32 = arith.constant 0 : i32
    %c0_i32_0 = arith.constant 0 : i32
    %c0_i32_1 = arith.constant 0 : i32
    return %c0_i32, %c0_i32_0 : i32, i32
  }
  func.func @transform_3(%arg0: i32, %arg1: i32) -> (i32, i32, i32, i32) {
    %c0_i32 = arith.constant 0 : i32
    %c0_i32_0 = arith.constant 0 : i32
    %c0_i32_1 = arith.constant 0 : i32
    return %arg0, %arg1, %c0_i32, %c0_i32_0 : i32, i32, i32, i32
  }
}

module attributes {stable_mosaic.version = 11 : i64} {
  func.func @_decoder_kernel(%arg0: i32, %arg1: memref<16x128xbf16, #tpu.memory_space<vmem>>, %arg2: memref<128x256xbf16, #tpu.memory_space<vmem>>, %arg3: memref<1x256xf32, #tpu.memory_space<vmem>>, %arg4: memref<256x512xbf16, #tpu.memory_space<vmem>>, %arg5: memref<1x512xf32, #tpu.memory_space<vmem>>, %arg6: memref<512x1024xbf16, #tpu.memory_space<vmem>>, %arg7: memref<1x1024xf32, #tpu.memory_space<vmem>>, %arg8: memref<1024x576xbf16, #tpu.memory_space<vmem>>, %arg9: memref<1x576xf32, #tpu.memory_space<vmem>>, %arg10: memref<16x576xf32, #tpu.memory_space<vmem>>) attributes {dimension_semantics = [#tpu.dimension_semantics<parallel>], iteration_bounds = array<i64: 1>, scalar_prefetch = 0 : i64, scratch_operands = 0 : i64, tpu.core_type = #tpu.core_type<tc>, window_params = [{transform_indices = @transform_0, window_bounds = array<i64: 16, 128>}, {pipeline_mode = #tpu.pipeline_mode<synchronous>, transform_indices = @transform_1, window_bounds = array<i64: 128, 256>}, {pipeline_mode = #tpu.pipeline_mode<synchronous>, transform_indices = @transform_2, window_bounds = array<i64: 1, 256>}, {pipeline_mode = #tpu.pipeline_mode<synchronous>, transform_indices = @transform_3, window_bounds = array<i64: 256, 512>}, {pipeline_mode = #tpu.pipeline_mode<synchronous>, transform_indices = @transform_4, window_bounds = array<i64: 1, 512>}, {pipeline_mode = #tpu.pipeline_mode<synchronous>, transform_indices = @transform_5, window_bounds = array<i64: 512, 1024>}, {pipeline_mode = #tpu.pipeline_mode<synchronous>, transform_indices = @transform_6, window_bounds = array<i64: 1, 1024>}, {pipeline_mode = #tpu.pipeline_mode<synchronous>, transform_indices = @transform_7, window_bounds = array<i64: 1024, 576>}, {pipeline_mode = #tpu.pipeline_mode<synchronous>, transform_indices = @transform_8, window_bounds = array<i64: 1, 576>}, {transform_indices = @transform_9, window_bounds = array<i64: 16, 576>}]} {
    %c0 = arith.constant 0 : index
    %c0_0 = arith.constant 0 : index
    %0 = vector.load %arg1[%c0, %c0_0] : memref<16x128xbf16, #tpu.memory_space<vmem>>, vector<16x128xbf16>
    %c0_1 = arith.constant 0 : index
    %c0_2 = arith.constant 0 : index
    %1 = vector.load %arg2[%c0_1, %c0_2] : memref<128x256xbf16, #tpu.memory_space<vmem>>, vector<128x256xbf16>
    %cst = arith.constant dense<0.000000e+00> : vector<16x256xf32>
    %2 = tpu.matmul %0, %1, %cst {dimension_numbers = #tpu.dot_dimension_numbers<[1], [0], [0], [1], [0, 0, 1, 1], [], []>} : vector<16x128xbf16>, vector<128x256xbf16>, vector<16x256xf32> -> vector<16x256xf32>
    %c0_3 = arith.constant 0 : index
    %c0_4 = arith.constant 0 : index
    %3 = vector.load %arg3[%c0_3, %c0_4] : memref<1x256xf32, #tpu.memory_space<vmem>>, vector<1x256xf32>
    %4 = vector.broadcast %3 : vector<1x256xf32> to vector<16x256xf32>
    %5 = arith.addf %2, %4 : vector<16x256xf32>
    %cst_5 = arith.constant 0.000000e+00 : f32
    %6 = vector.broadcast %cst_5 : f32 to vector<16x256xf32>
    %7 = arith.maximumf %5, %6 : vector<16x256xf32>
    %8 = arith.truncf %7 : vector<16x256xf32> to vector<16x256xbf16>
    %c0_6 = arith.constant 0 : index
    %c0_7 = arith.constant 0 : index
    %9 = vector.load %arg4[%c0_6, %c0_7] : memref<256x512xbf16, #tpu.memory_space<vmem>>, vector<256x512xbf16>
    %cst_8 = arith.constant dense<0.000000e+00> : vector<16x512xf32>
    %10 = tpu.matmul %8, %9, %cst_8 {dimension_numbers = #tpu.dot_dimension_numbers<[1], [0], [0], [1], [0, 0, 1, 1], [], []>} : vector<16x256xbf16>, vector<256x512xbf16>, vector<16x512xf32> -> vector<16x512xf32>
    %c0_9 = arith.constant 0 : index
    %c0_10 = arith.constant 0 : index
    %11 = vector.load %arg5[%c0_9, %c0_10] : memref<1x512xf32, #tpu.memory_space<vmem>>, vector<1x512xf32>
    %12 = vector.broadcast %11 : vector<1x512xf32> to vector<16x512xf32>
    %13 = arith.addf %10, %12 : vector<16x512xf32>
    %cst_11 = arith.constant 0.000000e+00 : f32
    %14 = vector.broadcast %cst_11 : f32 to vector<16x512xf32>
    %15 = arith.maximumf %13, %14 : vector<16x512xf32>
    %16 = arith.truncf %15 : vector<16x512xf32> to vector<16x512xbf16>
    %c0_12 = arith.constant 0 : index
    %c0_13 = arith.constant 0 : index
    %17 = vector.load %arg6[%c0_12, %c0_13] : memref<512x1024xbf16, #tpu.memory_space<vmem>>, vector<512x1024xbf16>
    %cst_14 = arith.constant dense<0.000000e+00> : vector<16x1024xf32>
    %18 = tpu.matmul %16, %17, %cst_14 {dimension_numbers = #tpu.dot_dimension_numbers<[1], [0], [0], [1], [0, 0, 1, 1], [], []>} : vector<16x512xbf16>, vector<512x1024xbf16>, vector<16x1024xf32> -> vector<16x1024xf32>
    %c0_15 = arith.constant 0 : index
    %c0_16 = arith.constant 0 : index
    %19 = vector.load %arg7[%c0_15, %c0_16] : memref<1x1024xf32, #tpu.memory_space<vmem>>, vector<1x1024xf32>
    %20 = vector.broadcast %19 : vector<1x1024xf32> to vector<16x1024xf32>
    %21 = arith.addf %18, %20 : vector<16x1024xf32>
    %cst_17 = arith.constant 0.000000e+00 : f32
    %22 = vector.broadcast %cst_17 : f32 to vector<16x1024xf32>
    %23 = arith.maximumf %21, %22 : vector<16x1024xf32>
    %24 = arith.truncf %23 : vector<16x1024xf32> to vector<16x1024xbf16>
    %c0_18 = arith.constant 0 : index
    %c0_19 = arith.constant 0 : index
    %25 = vector.load %arg8[%c0_18, %c0_19] : memref<1024x576xbf16, #tpu.memory_space<vmem>>, vector<1024x576xbf16>
    %cst_20 = arith.constant dense<0.000000e+00> : vector<16x576xf32>
    %26 = tpu.matmul %24, %25, %cst_20 {dimension_numbers = #tpu.dot_dimension_numbers<[1], [0], [0], [1], [0, 0, 1, 1], [], []>} : vector<16x1024xbf16>, vector<1024x576xbf16>, vector<16x576xf32> -> vector<16x576xf32>
    %c0_21 = arith.constant 0 : index
    %c0_22 = arith.constant 0 : index
    %27 = vector.load %arg9[%c0_21, %c0_22] : memref<1x576xf32, #tpu.memory_space<vmem>>, vector<1x576xf32>
    %28 = vector.broadcast %27 : vector<1x576xf32> to vector<16x576xf32>
    %29 = arith.addf %26, %28 : vector<16x576xf32>
    %c0_23 = arith.constant 0 : index
    %c0_24 = arith.constant 0 : index
    %30 = vector.load %arg10[%c0_23, %c0_24] : memref<16x576xf32, #tpu.memory_space<vmem>>, vector<16x576xf32>
    tpu.vector_store %arg10[%c0_23, %c0_24], %29 {strides = array<i32>} : memref<16x576xf32, #tpu.memory_space<vmem>>, vector<16x576xf32>,
    return
  }
  func.func @transform_0(%arg0: i32) -> (i32, i32) {
    %c0_i32 = arith.constant 0 : i32
    %c0_i32_0 = arith.constant 0 : i32
    return %arg0, %c0_i32 : i32, i32
  }
  func.func @transform_1(%arg0: i32) -> (i32, i32) {
    %c0_i32 = arith.constant 0 : i32
    %c0_i32_0 = arith.constant 0 : i32
    %c0_i32_1 = arith.constant 0 : i32
    return %c0_i32, %c0_i32_0 : i32, i32
  }
  func.func @transform_2(%arg0: i32) -> (i32, i32) {
    %c0_i32 = arith.constant 0 : i32
    %c0_i32_0 = arith.constant 0 : i32
    %c0_i32_1 = arith.constant 0 : i32
    return %c0_i32, %c0_i32_0 : i32, i32
  }
  func.func @transform_3(%arg0: i32) -> (i32, i32) {
    %c0_i32 = arith.constant 0 : i32
    %c0_i32_0 = arith.constant 0 : i32
    %c0_i32_1 = arith.constant 0 : i32
    return %c0_i32, %c0_i32_0 : i32, i32
  }
  func.func @transform_4(%arg0: i32) -> (i32, i32) {
    %c0_i32 = arith.constant 0 : i32
    %c0_i32_0 = arith.constant 0 : i32
    %c0_i32_1 = arith.constant 0 : i32
    return %c0_i32, %c0_i32_0 : i32, i32
  }
  func.func @transform_5(%arg0: i32) -> (i32, i32) {
    %c0_i32 = arith.constant 0 : i32
    %c0_i32_0 = arith.constant 0 : i32
    %c0_i32_1 = arith.constant 0 : i32
    return %c0_i32, %c0_i32_0 : i32, i32
  }
  func.func @transform_6(%arg0: i32) -> (i32, i32) {
    %c0_i32 = arith.constant 0 : i32
    %c0_i32_0 = arith.constant 0 : i32
    %c0_i32_1 = arith.constant 0 : i32
    return %c0_i32, %c0_i32_0 : i32, i32
  }
  func.func @transform_7(%arg0: i32) -> (i32, i32) {
    %c0_i32 = arith.constant 0 : i32
    %c0_i32_0 = arith.constant 0 : i32
    %c0_i32_1 = arith.constant 0 : i32
    return %c0_i32, %c0_i32_0 : i32, i32
  }
  func.func @transform_8(%arg0: i32) -> (i32, i32) {
    %c0_i32 = arith.constant 0 : i32
    %c0_i32_0 = arith.constant 0 : i32
    %c0_i32_1 = arith.constant 0 : i32
    return %c0_i32, %c0_i32_0 : i32, i32
  }
  func.func @transform_9(%arg0: i32) -> (i32, i32) {
    %c0_i32 = arith.constant 0 : i32
    %c0_i32_0 = arith.constant 0 : i32
    return %arg0, %c0_i32 : i32, i32
  }
}

</mosaic_0001>

<llo_original>
// kernel: cnn_segmentation_forward.4
$region0: #{cnn_segmentation_forward.4}
  #allocation0 [shape = 'u32[]', space=smem, size = 0x4, offset = 0x4, fixed_abs, tag = 'smem constant byte address 0x4 - core index']
  #allocation1 [shape = 'u32[144,128]{1,0:T(1,128)}', space=vmem, size = 0x12000, scoped, tag = 'internal scratch']
  %s0 = inlined_call_operand.vmem [shape: bf16[2,16,16,27], index: 0, kind: input, shape index: {}]
  %s1 = inlined_call_operand.vmem [shape: bf16[27,32], index: 1, kind: input, shape index: {}]
  %s2 = inlined_call_operand.hbm [shape: f32[1,32], index: 2, kind: input, shape index: {}]
  %s3 = inlined_call_operand.vmem [shape: bf16[2,8,8,32], index: 3, kind: output, shape index: {}]
  %s4 = sld [smem:[#allocation0]]
  $region49: #{cnn_segmentation_forward.4} parent=0
    _
  %s6 = ssub.s32 1, %s4
  %s7 = scalar_select 0, %s6, %s4
  $region1: #{cnn_segmentation_forward.4} parent=0
    #allocation2 [shape = 'u8[512]{0}', space=vmem, size = 0x400, scoped, tag = 'input window, operand 2, single buffered']
    #allocation3 [shape = 's32[2]{0}', space=sflag, size = 0x8, scoped, tag = 'scoped memory for cnn_segmentation_forward.4']
    %8 = vsyncpa [#allocation3], 0
    loop: start=0, step=1, limit=6
    $region2: #{cnn_segmentation_forward.4} parent=1 // loop_pre_header
      _
    $region3: #{cnn_segmentation_forward.4} parent=1 // loop_header
      %s10 = sphi 0, %s14
      %p11 = scmp.ge.s32.totalorder %s10, 6
      %s17 = sphi 0, %s29
      %s18 = sphi 0, %s25
      %s19 = sphi 0, %s17
      %s20 = sphi 0, %s18
      %s21 = sphi 0, %s19
      %s22 = sphi 0, %s20
      %s32 = sphi 0, %s34
      %s35 = sphi 0, %s32
      %s36 = sphi 0, %s35
      %s52 = sphi 0, %s36
      %s56 = sphi 0, %s56
      %s58 = sphi 0, %s56
      %s59 = sphi 0, %s58
      %s73 = sphi 0, %s59
      %s77 = sphi 0, %s77
      %s79 = sphi 0, %s77
      %s80 = sphi 0, %s79
      %s94 = sphi 0, %s80
      %s102 = sphi 0, %s104
      %s105 = sphi 0, %s102
      %s106 = sphi 0, %s105
      %s122 = sphi 0, %s106
    $region4: #{cnn_segmentation_forward.4} parent=1 // loop_header_branch
      %13 = sbr.rel (%p11) target = $region8
    $region5: #{cnn_segmentation_forward.4} parent=1 // loop_body
      %s15 = ssub.s32 %s10, 1
      %s16 = ssub.s32 %s10, 2
      %s23 = sadd.s32 1, %s18
      %p24 = scmp.ge.s32.totalorder %s23, 2
      %s25 = scalar_select %p24, 0, %s23
      %s26 = sadd.s32 1, %s17
      %s27 = scalar_select %p24, %s26, %s17
      %p28 = scmp.ge.s32.totalorder %s27, 2
      %s29 = scalar_select %p28, 0, %s27
      %s30 = ssub.s32 %s17, %s29
      %p31 = scmp.eq.s32.totalorder %s30, 0
      %s33 = sadd.s32 %s32, 1
      %s34 = scalar_select %p31, %s32, %s33
      %p37 = pneg %p31
      %p38 = scmp.eq.s32.totalorder %s10, 3
      %p39 = por %p37, %p38
      %p40 = scmp.ne.s32.totalorder %s32, %s35
      %p41 = scmp.eq.s32.totalorder %s10, 0
      %p42 = por %p40, %p41
      %p43 = scmp.ne.s32.totalorder %s32, %s35
      %p44 = scmp.eq.s32.totalorder %s15, 3
      %p45 = por %p43, %p44
      %p46 = scmp.ne.s32.totalorder %s35, %s36
      %p47 = scmp.eq.s32.totalorder %s15, 0
      %p48 = por %p46, %p47
      %p49 = scmp.ne.s32.totalorder %s35, %s36
      %p50 = scmp.eq.s32.totalorder %s16, 3
      %p51 = por %p49, %p50
      %p53 = scmp.ne.s32.totalorder %s36, %s52
      %p54 = scmp.eq.s32.totalorder %s16, 0
      %p55 = por %p53, %p54
      %s57 = sadd.s32 %s56, 1
      %p60 = scmp.eq.s32.totalorder %s10, 3
      %p61 = scmp.ne.s32.totalorder %s56, %s58
      %p62 = scmp.eq.s32.totalorder %s10, 0
      %p63 = por %p61, %p62
      %p64 = scmp.ne.s32.totalorder %s56, %s58
      %p65 = scmp.eq.s32.totalorder %s15, 3
      %p66 = por %p64, %p65
      %p67 = scmp.ne.s32.totalorder %s58, %s59
      %p68 = scmp.eq.s32.totalorder %s15, 0
      %p69 = por %p67, %p68
      %p70 = scmp.ne.s32.totalorder %s58, %s59
      %p71 = scmp.eq.s32.totalorder %s16, 3
      %p72 = por %p70, %p71
      %p74 = scmp.ne.s32.totalorder %s59, %s73
      %p75 = scmp.eq.s32.totalorder %s16, 0
      %p76 = por %p74, %p75
      %s78 = sadd.s32 %s77, 1
      %p81 = scmp.eq.s32.totalorder %s10, 3
      %p82 = scmp.ne.s32.totalorder %s77, %s79
      %p83 = scmp.eq.s32.totalorder %s10, 0
      %p84 = por %p82, %p83
      %p85 = scmp.ne.s32.totalorder %s77, %s79
      %p86 = scmp.eq.s32.totalorder %s15, 3
      %p87 = por %p85, %p86
      %p88 = scmp.ne.s32.totalorder %s79, %s80
      %p89 = scmp.eq.s32.totalorder %s15, 0
      %p90 = por %p88, %p89
      %p91 = scmp.ne.s32.totalorder %s79, %s80
      %p92 = scmp.eq.s32.totalorder %s16, 3
      %p93 = por %p91, %p92
      %p95 = scmp.ne.s32.totalorder %s80, %s94
      %p96 = scmp.eq.s32.totalorder %s16, 0
      %p97 = por %p95, %p96
      %s98 = ssub.s32 %s17, %s29
      %s99 = ssub.s32 %s18, %s25
      %s100 = sor.u32 %s98, %s99
      %p101 = scmp.eq.s32.totalorder %s100, 0
      %s103 = sadd.s32 %s102, 1
      %s104 = scalar_select %p101, %s102, %s103
      %p107 = pneg %p101
      %p108 = scmp.eq.s32.totalorder %s10, 3
      %p109 = por %p107, %p108
      %p110 = scmp.ne.s32.totalorder %s102, %s105
      %p111 = scmp.eq.s32.totalorder %s10, 0
      %p112 = por %p110, %p111
      %p113 = scmp.ne.s32.totalorder %s102, %s105
      %p114 = scmp.eq.s32.totalorder %s15, 3
      %p115 = por %p113, %p114
      %p116 = scmp.ne.s32.totalorder %s105, %s106
      %p117 = scmp.eq.s32.totalorder %s15, 0
      %p118 = por %p116, %p117
      %p119 = scmp.ne.s32.totalorder %s105, %s106
      %p120 = scmp.eq.s32.totalorder %s16, 3
      %p121 = por %p119, %p120
      %p123 = scmp.ne.s32.totalorder %s106, %s122
      %p124 = scmp.eq.s32.totalorder %s16, 0
      %p125 = por %p123, %p124
      %p126 = scmp.le.s32.totalorder 1, %s10
      %p127 = scmp.lt.s32.totalorder %s10, 5
      %p128 = pnand %p126, %p127
      %p129 = pneg %p128
      // Predicated region
      $region9: #{cnn_segmentation_forward.4} parent=5 // pred_check
        _
      $region10: #{cnn_segmentation_forward.4} parent=5 // pred_check_branch
        %131 = sbr.rel (%p128) target = $region12
      $region11: #{cnn_segmentation_forward.4} parent=5 // pred_region
        %s132 = ssub.s32 %s10, 1
        // Predicated region
        $region13: #{cnn_segmentation_forward.4} parent=11 // pred_check
          %p133 = pneg %p69
        $region14: #{cnn_segmentation_forward.4} parent=11 // pred_check_branch
          %135 = sbr.rel (%p133) target = $region16
        $region15: #{cnn_segmentation_forward.4} parent=11 // pred_region
          _
        $region16: #{cnn_segmentation_forward.4} parent=11 // pred_fallthru
          _
        // Predicated region
        $region17: #{cnn_segmentation_forward.4} parent=11 // pred_check
          %p136 = pneg %p90
        $region18: #{cnn_segmentation_forward.4} parent=11 // pred_check_branch
          %138 = sbr.rel (%p136) target = $region20
        $region19: #{cnn_segmentation_forward.4} parent=11 // pred_region
          %s140 = ssub.s32 16, 16
          %141 = vsyncadd [#allocation3], %s140
          %s143 = sshll.u32 [#allocation2], 4
          %s144 = int_to_ptr.vmem [resolvable:$true] %s143
          %146 = dma.hbm_to_vmem [thread:$0]  %s2, 16, %s144, [#allocation3]
        $region20: #{cnn_segmentation_forward.4} parent=11 // pred_fallthru
          _
      $region12: #{cnn_segmentation_forward.4} parent=5 // pred_fallthru
        _
      %p147 = scmp.lt.s32.totalorder %s10, 4
      // Predicated region
      $region21: #{cnn_segmentation_forward.4} parent=5 // pred_check
        %p148 = pneg %p147
      $region22: #{cnn_segmentation_forward.4} parent=5 // pred_check_branch
        %150 = sbr.rel (%p148) target = $region24
      $region23: #{cnn_segmentation_forward.4} parent=5 // pred_region
        // Predicated region
        $region25: #{cnn_segmentation_forward.4} parent=23 // pred_check
          %p151 = pneg %p42
        $region26: #{cnn_segmentation_forward.4} parent=23 // pred_check_branch
          %153 = sbr.rel (%p151) target = $region28
        $region27: #{cnn_segmentation_forward.4} parent=23 // pred_region
          %p154 = scmp.lt.s32.totalorder %s17, 1
          %s155 = scalar_select %p154, %s17, 1
          %s156 = smul.addr %s155, 32
          %s157 = smul.addr %s156, 4
          %s158 = scalar_lea.vmem %s0, %s157
        $region28: #{cnn_segmentation_forward.4} parent=23 // pred_fallthru
          _
      $region24: #{cnn_segmentation_forward.4} parent=5 // pred_fallthru
        _
      %p159 = scmp.le.s32.totalorder 1, %s10
      %p160 = scmp.lt.s32.totalorder %s10, 5
      %p161 = pnand %p159, %p160
      %p162 = pneg %p161
      // Predicated region
      $region29: #{cnn_segmentation_forward.4} parent=5 // pred_check
        _
      $region30: #{cnn_segmentation_forward.4} parent=5 // pred_check_branch
        %164 = sbr.rel (%p161) target = $region32
      $region31: #{cnn_segmentation_forward.4} parent=5 // pred_region
        %s165 = ssub.s32 %s10, 1
        // Predicated region
        $region33: #{cnn_segmentation_forward.4} parent=31 // pred_check
          %p166 = pneg %p90
        $region34: #{cnn_segmentation_forward.4} parent=31 // pred_check_branch
          %168 = sbr.rel (%p166) target = $region36
        $region35: #{cnn_segmentation_forward.4} parent=31 // pred_region
          %169 = dma.done [#allocation3], 16
        $region36: #{cnn_segmentation_forward.4} parent=31 // pred_fallthru
          _
        %p170 = scmp.lt.s32.totalorder %s19, 1
        %s171 = scalar_select %p170, %s19, 1
        %s172 = smul.addr %s171, 32
        %s173 = smul.addr %s172, 4
        %s174 = scalar_lea.vmem %s0, %s173
        %p175 = pneg %p48
        %p176 = pneg %p45
        %p177 = pneg %p69
        %p178 = pneg %p66
        %p179 = pneg %p90
        %p180 = pneg %p87
        %p181 = pneg %p118
        %p182 = pneg %p115
        %s183 = smul.u32 4, %s20
        %p184 = scmp.lt.s32.totalorder %s19, 1
        %s185 = scalar_select %p184, %s19, 1
        %p186 = scmp.lt.s32.totalorder %s183, 7
        %s187 = scalar_select %p186, %s183, 7
        %s188 = smul.addr %s185, 8
        %s189 = sadd.s32 %s187, %s188
        %s190 = smul.addr %s189, 4
        %s191 = scalar_lea.vmem %s3, %s190
        %p192 = scmp.lt.s32.totalorder %s19, 1
        %s193 = scalar_select %p192, %s19, 1
        %s194 = smul.addr %s193, 32
        %s195 = smul.addr %s194, 4
        %s196 = scalar_lea.vmem %s0, %s195
        %s197 = smul.u32 4, %s20
        %p198 = scmp.lt.s32.totalorder %s19, 1
        %s199 = scalar_select %p198, %s19, 1
        %p200 = scmp.lt.s32.totalorder %s197, 7
        %s201 = scalar_select %p200, %s197, 7
        %s202 = smul.addr %s199, 8
        %s203 = sadd.s32 %s201, %s202
        %s204 = smul.addr %s203, 4
        %s205 = scalar_lea.vmem %s3, %s204
        %s206 = smul.u32 4, %s20
        %s208 = smul.u32 %s20, 8
        %s209 = smul.u32 %s208, 2
        %s210 = smul.addr %s209, 4
        %s211 = scalar_lea.vmem %s196, %s210
        %v212 = vld [vmem:[%s211] sm:$0xf]
        %v213 = vld [vmem:[%s211 + $0x4] sm:$0xf]
        %v214 = vld [vmem:[%s211 + $0x8] sm:$0xf]
        %v215 = vld [vmem:[%s211 + $0xc] sm:$0xf]
        %v216 = vld [vmem:[%s211 + $0x10] sm:$0xf]
        %v217 = vld [vmem:[%s211 + $0x14] sm:$0xf]
        %v218 = vld [vmem:[%s211 + $0x18] sm:$0xf]
        %v219 = vld [vmem:[%s211 + $0x1c] sm:$0xf]
        %v220 = vld [vmem:[%s211 + $0x20] sm:$0xf]
        %v221 = vld [vmem:[%s211 + $0x24] sm:$0xf]
        %v222 = vld [vmem:[%s211 + $0x28] sm:$0xf]
        %v223 = vld [vmem:[%s211 + $0x2c] sm:$0xf]
        %v224 = vld [vmem:[%s211 + $0x30] sm:$0xf]
        %v225 = vld [vmem:[%s211 + $0x34] sm:$0xf]
        %v226 = vld [vmem:[%s211 + $0x38] sm:$0xf]
        %v227 = vld [vmem:[%s211 + $0x3c] sm:$0xf]
        %v228 = vld [vmem:[%s1] sm:$0xf]
        %v229 = vld [vmem:[%s1 + $0x4] sm:$0xf]
        %v230 = vld [vmem:[%s1 + $0x8] sm:$0xf]
        %v231 = vld [vmem:[%s1 + $0xc] sm:$0x3]
        %v232 = vld [vmem:[#allocation2] sm:$0x1]
        %v234 = vlaneseq
        %v235 = vshrl.u32 %v234, 7
        %v236 = vsub.s32 0, %v235
        %v237 = vrot.slane %v232, %v236
        %v255 = vunpack.c.l.b16 %v212
        %v256 = vunpack.c.l.b16 %v213
        %v257 = vunpack.c.l.b16 %v214
        %v258 = vunpack.c.l.b16 %v215
        %v259 = vunpack.c.l.b16 %v216
        %v260 = vunpack.c.l.b16 %v217
        %v261 = vunpack.c.l.b16 %v218
        %v262 = vunpack.c.l.b16 %v219
        %v263 = vunpack.c.l.b16 %v220
        %v264 = vunpack.c.l.b16 %v221
        %v265 = vunpack.c.l.b16 %v222
        %v266 = vunpack.c.l.b16 %v223
        %v267 = vunpack.c.l.b16 %v224
        %v268 = vunpack.c.l.b16 %v225
        %v269 = vunpack.c.l.b16 %v226
        %v270 = vunpack.c.l.b16 %v227
        %v271 = vpack.c.b16 %v256, %v255
        %v272 = vpack.c.b16 %v258, %v257
        %v273 = vpack.c.b16 %v260, %v259
        %v274 = vpack.c.b16 %v262, %v261
        %v275 = vpack.c.b16 %v264, %v263
        %v276 = vpack.c.b16 %v266, %v265
        %v277 = vpack.c.b16 %v268, %v267
        %v278 = vpack.c.b16 %v270, %v269
        %v283 = vunpack.c.l.b16 %v228
        %v284 = vunpack.c.l.b16 %v229
        %v285 = vunpack.c.l.b16 %v230
        %v286 = vunpack.c.l.b16 %v231
        %v287 = vpack.c.b16 %v284, %v283
        %v288 = vpack.c.b16 %v286, %v285
        %vm290 = vcmask 220160
        %v292 = vsel %vm290, %v271, 0
        %v295 = vsel %vm290, %v272, 0
        %v298 = vsel %vm290, %v273, 0
        %v301 = vsel %vm290, %v274, 0
        %v304 = vsel %vm290, %v275, 0
        %v307 = vsel %vm290, %v276, 0
        %v310 = vsel %vm290, %v277, 0
        %v313 = vsel %vm290, %v278, 0
        %vm315 = vcmask 1044480
        %vm316 = vcmask 1045504
        %v317 = vsel %vm315, 4294967295, 65535
        %v318 = vsel %vm316, %v317, 0
        %v320 = vand.u32 %v288, %v318
        %322 = vmatprep.subr.bf16.mxu0 0
        %323 = vmatpush1.bf16.msra.mxu0 0
        %324 = vmatprep.subr.bf16.mxu0 0
        %325 = vmatpush1.bf16.msra.mxu0 0
        %326 = vmatprep.subr.bf16.mxu0 0
        %327 = vmatpush1.bf16.msra.mxu0 0
        %328 = vmatprep.subr.bf16.mxu0 0
        %329 = vmatpush1.bf16.msra.mxu0 0
        %330 = vmatprep.subr.bf16.mxu0 0
        %331 = vmatpush1.bf16.msra.mxu0 0
        %332 = vmatprep.subr.bf16.mxu0 0
        %333 = vmatpush1.bf16.msra.mxu0 0
        %334 = vmatprep.subr.bf16.mxu0 0
        %335 = vmatpush1.bf16.msra.mxu0 %v320
        %336 = vmatprep.subr.bf16.mxu0 0
        %337 = vmatpush1.bf16.msra.mxu0 %v287
        %338 = vmatprep.subr.bf16.mxu0 0
        %339 = vmatpush2.bf16.msra.mxu0 0
        %340 = vmatprep.subr.bf16.mxu0 0
        %341 = vmatpush2.bf16.msra.mxu0 0
        %342 = vmatprep.subr.bf16.mxu0 0
        %343 = vmatpush2.bf16.msra.mxu0 0
        %344 = vmatprep.subr.bf16.mxu0 0
        %345 = vmatpush2.bf16.msra.mxu0 0
        %346 = vmatprep.subr.bf16.mxu0 0
        %347 = vmatpush2.bf16.msra.mxu0 0
        %348 = vmatprep.subr.bf16.mxu0 0
        %349 = vmatpush2.bf16.msra.mxu0 0
        %350 = vmatprep.subr.bf16.mxu0 0
        %351 = vmatpush2.bf16.msra.mxu0 0
        %352 = vmatprep.subr.bf16.mxu0 0
        %353 = vmatpush2.bf16.msra.mxu0 0
        %354 = vmatprep.mubr.bf16.mxu0 0
        %355 = vmatmul.mubr.bf16.gmra.mxu0 %v292
        %v356 = vpop.f32.mrf.mxu0
        %v357 = vadd.f32 %v237, %v356
        %v358 = vpop.f32.mrf.mxu0
        %v359 = vpop.f32.mrf.mxu0
        %v360 = vadd.f32 %v237, %v359
        %v361 = vpop.f32.mrf.mxu0
        %362 = vmatprep.mubr.bf16.mxu0 0
        %363 = vmatmul.mubr.bf16.gmra.mxu0 %v295
        %v364 = vpop.f32.mrf.mxu0
        %v365 = vadd.f32 %v237, %v364
        %v366 = vpop.f32.mrf.mxu0
        %v367 = vpop.f32.mrf.mxu0
        %v368 = vadd.f32 %v237, %v367
        %v369 = vpop.f32.mrf.mxu0
        %370 = vmatprep.mubr.bf16.mxu0 0
        %371 = vmatmul.mubr.bf16.gmra.mxu0 %v298
        %v372 = vpop.f32.mrf.mxu0
        %v373 = vadd.f32 %v237, %v372
        %v374 = vpop.f32.mrf.mxu0
        %v375 = vpop.f32.mrf.mxu0
        %v376 = vadd.f32 %v237, %v375
        %v377 = vpop.f32.mrf.mxu0
        %378 = vmatprep.mubr.bf16.mxu0 0
        %379 = vmatmul.mubr.bf16.gmra.mxu0 %v301
        %v380 = vpop.f32.mrf.mxu0
        %v381 = vadd.f32 %v237, %v380
        %v382 = vpop.f32.mrf.mxu0
        %v383 = vpop.f32.mrf.mxu0
        %v384 = vadd.f32 %v237, %v383
        %v385 = vpop.f32.mrf.mxu0
        %386 = vmatprep.mubr.bf16.mxu0 0
        %387 = vmatmul.mubr.bf16.gmra.mxu0 %v304
        %v388 = vpop.f32.mrf.mxu0
        %v389 = vadd.f32 %v237, %v388
        %v390 = vpop.f32.mrf.mxu0
        %v391 = vpop.f32.mrf.mxu0
        %v392 = vadd.f32 %v237, %v391
        %v393 = vpop.f32.mrf.mxu0
        %394 = vmatprep.mubr.bf16.mxu0 0
        %395 = vmatmul.mubr.bf16.gmra.mxu0 %v307
        %v396 = vpop.f32.mrf.mxu0
        %v397 = vadd.f32 %v237, %v396
        %v398 = vpop.f32.mrf.mxu0
        %v399 = vpop.f32.mrf.mxu0
        %v400 = vadd.f32 %v237, %v399
        %v401 = vpop.f32.mrf.mxu0
        %402 = vmatprep.mubr.bf16.mxu0 0
        %403 = vmatmul.mubr.bf16.gmra.mxu0 %v310
        %v404 = vpop.f32.mrf.mxu0
        %v405 = vadd.f32 %v237, %v404
        %v406 = vpop.f32.mrf.mxu0
        %v407 = vpop.f32.mrf.mxu0
        %v408 = vadd.f32 %v237, %v407
        %v409 = vpop.f32.mrf.mxu0
        %410 = vmatprep.mubr.bf16.mxu0 0
        %411 = vmatmul.mubr.bf16.gmra.mxu0 %v313
        %v412 = vpop.f32.mrf.mxu0
        %v413 = vadd.f32 %v237, %v412
        %v414 = vpop.f32.mrf.mxu0
        %v415 = vpop.f32.mrf.mxu0
        %v416 = vadd.f32 %v237, %v415
        %v417 = vpop.f32.mrf.mxu0
        %418 = vdwg.mxu0
        %v419 = vmax.f32 %v357, 0.0
        %v420 = vmax.f32 %v360, 0.0
        %v421 = vmax.f32 %v365, 0.0
        %v422 = vmax.f32 %v368, 0.0
        %v423 = vmax.f32 %v373, 0.0
        %v424 = vmax.f32 %v376, 0.0
        %v425 = vmax.f32 %v381, 0.0
        %v426 = vmax.f32 %v384, 0.0
        %v427 = vmax.f32 %v389, 0.0
        %v428 = vmax.f32 %v392, 0.0
        %v429 = vmax.f32 %v397, 0.0
        %v430 = vmax.f32 %v400, 0.0
        %v431 = vmax.f32 %v405, 0.0
        %v432 = vmax.f32 %v408, 0.0
        %v433 = vmax.f32 %v413, 0.0
        %v434 = vmax.f32 %v416, 0.0
        %v451 = vcombine.high %v419, %v419
        %v453 = vunpack.c.l.s4 1983009808
        %v454 = vunpack.c.0.s8 %v453
        %v455 = vlaneseq
        %v456 = vshrl.u32 %v455, 7
        %v457 = vsub.s32 %v454, %v456
        %v458 = vrot.slane %v419, %v457
        %v460 = vunpack.c.l.s4 1983009808
        %v461 = vunpack.c.0.s8 %v460
        %v462 = vlaneseq
        %v463 = vshrl.u32 %v462, 7
        %v464 = vsub.s32 %v461, %v463
        %v465 = vrot.slane %v451, %v464
        %v466 = vcombine.high %v458, %v458
        %v467 = vcombine.high %v465, %v465
        %v468 = vcombine.high %v420, %v420
        %v470 = vunpack.c.l.s4 1983009808
        %v471 = vunpack.c.0.s8 %v470
        %v472 = vlaneseq
        %v473 = vshrl.u32 %v472, 7
        %v474 = vsub.s32 %v471, %v473
        %v475 = vrot.slane %v420, %v474
        %v477 = vunpack.c.l.s4 1983009808
        %v478 = vunpack.c.0.s8 %v477
        %v479 = vlaneseq
        %v480 = vshrl.u32 %v479, 7
        %v481 = vsub.s32 %v478, %v480
        %v482 = vrot.slane %v468, %v481
        %v483 = vcombine.high %v475, %v475
        %v484 = vcombine.high %v482, %v482
        %v485 = vcombine.high %v421, %v421
        %v487 = vunpack.c.l.s4 1983009808
        %v488 = vunpack.c.0.s8 %v487
        %v489 = vlaneseq
        %v490 = vshrl.u32 %v489, 7
        %v491 = vsub.s32 %v488, %v490
        %v492 = vrot.slane %v421, %v491
        %v494 = vunpack.c.l.s4 1983009808
        %v495 = vunpack.c.0.s8 %v494
        %v496 = vlaneseq
        %v497 = vshrl.u32 %v496, 7
        %v498 = vsub.s32 %v495, %v497
        %v499 = vrot.slane %v485, %v498
        %v500 = vcombine.high %v492, %v492
        %v501 = vcombine.high %v499, %v499
        %v502 = vcombine.high %v422, %v422
        %v504 = vunpack.c.l.s4 1983009808
        %v505 = vunpack.c.0.s8 %v504
        %v506 = vlaneseq
        %v507 = vshrl.u32 %v506, 7
        %v508 = vsub.s32 %v505, %v507
        %v509 = vrot.slane %v422, %v508
        %v511 = vunpack.c.l.s4 1983009808
        %v512 = vunpack.c.0.s8 %v511
        %v513 = vlaneseq
        %v514 = vshrl.u32 %v513, 7
        %v515 = vsub.s32 %v512, %v514
        %v516 = vrot.slane %v502, %v515
        %v517 = vcombine.high %v509, %v509
        %v518 = vcombine.high %v516, %v516
        %v519 = vcombine.high %v423, %v423
        %v521 = vunpack.c.l.s4 1983009808
        %v522 = vunpack.c.0.s8 %v521
        %v523 = vlaneseq
        %v524 = vshrl.u32 %v523, 7
        %v525 = vsub.s32 %v522, %v524
        %v526 = vrot.slane %v423, %v525
        %v528 = vunpack.c.l.s4 1983009808
        %v529 = vunpack.c.0.s8 %v528
        %v530 = vlaneseq
        %v531 = vshrl.u32 %v530, 7
        %v532 = vsub.s32 %v529, %v531
        %v533 = vrot.slane %v519, %v532
        %v534 = vcombine.high %v526, %v526
        %v535 = vcombine.high %v533, %v533
        %v536 = vcombine.high %v424, %v424
        %v538 = vunpack.c.l.s4 1983009808
        %v539 = vunpack.c.0.s8 %v538
        %v540 = vlaneseq
        %v541 = vshrl.u32 %v540, 7
        %v542 = vsub.s32 %v539, %v541
        %v543 = vrot.slane %v424, %v542
        %v545 = vunpack.c.l.s4 1983009808
        %v546 = vunpack.c.0.s8 %v545
        %v547 = vlaneseq
        %v548 = vshrl.u32 %v547, 7
        %v549 = vsub.s32 %v546, %v548
        %v550 = vrot.slane %v536, %v549
        %v551 = vcombine.high %v543, %v543
        %v552 = vcombine.high %v550, %v550
        %v553 = vcombine.high %v425, %v425
        %v555 = vunpack.c.l.s4 1983009808
        %v556 = vunpack.c.0.s8 %v555
        %v557 = vlaneseq
        %v558 = vshrl.u32 %v557, 7
        %v559 = vsub.s32 %v556, %v558
        %v560 = vrot.slane %v425, %v559
        %v562 = vunpack.c.l.s4 1983009808
        %v563 = vunpack.c.0.s8 %v562
        %v564 = vlaneseq
        %v565 = vshrl.u32 %v564, 7
        %v566 = vsub.s32 %v563, %v565
        %v567 = vrot.slane %v553, %v566
        %v568 = vcombine.high %v560, %v560
        %v569 = vcombine.high %v567, %v567
        %v570 = vcombine.high %v426, %v426
        %v572 = vunpack.c.l.s4 1983009808
        %v573 = vunpack.c.0.s8 %v572
        %v574 = vlaneseq
        %v575 = vshrl.u32 %v574, 7
        %v576 = vsub.s32 %v573, %v575
        %v577 = vrot.slane %v426, %v576
        %v579 = vunpack.c.l.s4 1983009808
        %v580 = vunpack.c.0.s8 %v579
        %v581 = vlaneseq
        %v582 = vshrl.u32 %v581, 7
        %v583 = vsub.s32 %v580, %v582
        %v584 = vrot.slane %v570, %v583
        %v585 = vcombine.high %v577, %v577
        %v586 = vcombine.high %v584, %v584
        %v587 = vcombine.high %v427, %v427
        %v589 = vunpack.c.l.s4 1983009808
        %v590 = vunpack.c.0.s8 %v589
        %v591 = vlaneseq
        %v592 = vshrl.u32 %v591, 7
        %v593 = vsub.s32 %v590, %v592
        %v594 = vrot.slane %v427, %v593
        %v596 = vunpack.c.l.s4 1983009808
        %v597 = vunpack.c.0.s8 %v596
        %v598 = vlaneseq
        %v599 = vshrl.u32 %v598, 7
        %v600 = vsub.s32 %v597, %v599
        %v601 = vrot.slane %v587, %v600
        %v602 = vcombine.high %v594, %v594
        %v603 = vcombine.high %v601, %v601
        %v604 = vcombine.high %v428, %v428
        %v606 = vunpack.c.l.s4 1983009808
        %v607 = vunpack.c.0.s8 %v606
        %v608 = vlaneseq
        %v609 = vshrl.u32 %v608, 7
        %v610 = vsub.s32 %v607, %v609
        %v611 = vrot.slane %v428, %v610
        %v613 = vunpack.c.l.s4 1983009808
        %v614 = vunpack.c.0.s8 %v613
        %v615 = vlaneseq
        %v616 = vshrl.u32 %v615, 7
        %v617 = vsub.s32 %v614, %v616
        %v618 = vrot.slane %v604, %v617
        %v619 = vcombine.high %v611, %v611
        %v620 = vcombine.high %v618, %v618
        %v621 = vcombine.high %v429, %v429
        %v623 = vunpack.c.l.s4 1983009808
        %v624 = vunpack.c.0.s8 %v623
        %v625 = vlaneseq
        %v626 = vshrl.u32 %v625, 7
        %v627 = vsub.s32 %v624, %v626
        %v628 = vrot.slane %v429, %v627
        %v630 = vunpack.c.l.s4 1983009808
        %v631 = vunpack.c.0.s8 %v630
        %v632 = vlaneseq
        %v633 = vshrl.u32 %v632, 7
        %v634 = vsub.s32 %v631, %v633
        %v635 = vrot.slane %v621, %v634
        %v636 = vcombine.high %v628, %v628
        %v637 = vcombine.high %v635, %v635
        %v638 = vcombine.high %v430, %v430
        %v640 = vunpack.c.l.s4 1983009808
        %v641 = vunpack.c.0.s8 %v640
        %v642 = vlaneseq
        %v643 = vshrl.u32 %v642, 7
        %v644 = vsub.s32 %v641, %v643
        %v645 = vrot.slane %v430, %v644
        %v647 = vunpack.c.l.s4 1983009808
        %v648 = vunpack.c.0.s8 %v647
        %v649 = vlaneseq
        %v650 = vshrl.u32 %v649, 7
        %v651 = vsub.s32 %v648, %v650
        %v652 = vrot.slane %v638, %v651
        %v653 = vcombine.high %v645, %v645
        %v654 = vcombine.high %v652, %v652
        %v655 = vcombine.high %v431, %v431
        %v657 = vunpack.c.l.s4 1983009808
        %v658 = vunpack.c.0.s8 %v657
        %v659 = vlaneseq
        %v660 = vshrl.u32 %v659, 7
        %v661 = vsub.s32 %v658, %v660
        %v662 = vrot.slane %v431, %v661
        %v664 = vunpack.c.l.s4 1983009808
        %v665 = vunpack.c.0.s8 %v664
        %v666 = vlaneseq
        %v667 = vshrl.u32 %v666, 7
        %v668 = vsub.s32 %v665, %v667
        %v669 = vrot.slane %v655, %v668
        %v670 = vcombine.high %v662, %v662
        %v671 = vcombine.high %v669, %v669
        %v672 = vcombine.high %v432, %v432
        %v674 = vunpack.c.l.s4 1983009808
        %v675 = vunpack.c.0.s8 %v674
        %v676 = vlaneseq
        %v677 = vshrl.u32 %v676, 7
        %v678 = vsub.s32 %v675, %v677
        %v679 = vrot.slane %v432, %v678
        %v681 = vunpack.c.l.s4 1983009808
        %v682 = vunpack.c.0.s8 %v681
        %v683 = vlaneseq
        %v684 = vshrl.u32 %v683, 7
        %v685 = vsub.s32 %v682, %v684
        %v686 = vrot.slane %v672, %v685
        %v687 = vcombine.high %v679, %v679
        %v688 = vcombine.high %v686, %v686
        %v689 = vcombine.high %v433, %v433
        %v691 = vunpack.c.l.s4 1983009808
        %v692 = vunpack.c.0.s8 %v691
        %v693 = vlaneseq
        %v694 = vshrl.u32 %v693, 7
        %v695 = vsub.s32 %v692, %v694
        %v696 = vrot.slane %v433, %v695
        %v698 = vunpack.c.l.s4 1983009808
        %v699 = vunpack.c.0.s8 %v698
        %v700 = vlaneseq
        %v701 = vshrl.u32 %v700, 7
        %v702 = vsub.s32 %v699, %v701
        %v703 = vrot.slane %v689, %v702
        %v704 = vcombine.high %v696, %v696
        %v705 = vcombine.high %v703, %v703
        %v706 = vcombine.high %v434, %v434
        %v708 = vunpack.c.l.s4 1983009808
        %v709 = vunpack.c.0.s8 %v708
        %v710 = vlaneseq
        %v711 = vshrl.u32 %v710, 7
        %v712 = vsub.s32 %v709, %v711
        %v713 = vrot.slane %v434, %v712
        %v715 = vunpack.c.l.s4 1983009808
        %v716 = vunpack.c.0.s8 %v715
        %v717 = vlaneseq
        %v718 = vshrl.u32 %v717, 7
        %v719 = vsub.s32 %v716, %v718
        %v720 = vrot.slane %v706, %v719
        %v721 = vcombine.high %v713, %v713
        %v722 = vcombine.high %v720, %v720
        %v787 = vmax.f32 %v458, %v492
        %v788 = vmax.f32 %v466, %v500
        %v789 = vmax.f32 %v465, %v499
        %v790 = vmax.f32 %v467, %v501
        %v791 = vmax.f32 %v475, %v509
        %v792 = vmax.f32 %v483, %v517
        %v793 = vmax.f32 %v482, %v516
        %v794 = vmax.f32 %v484, %v518
        %v795 = vmax.f32 %v526, %v560
        %v796 = vmax.f32 %v534, %v568
        %v797 = vmax.f32 %v533, %v567
        %v798 = vmax.f32 %v535, %v569
        %v799 = vmax.f32 %v543, %v577
        %v800 = vmax.f32 %v551, %v585
        %v801 = vmax.f32 %v550, %v584
        %v802 = vmax.f32 %v552, %v586
        %v803 = vmax.f32 %v594, %v628
        %v804 = vmax.f32 %v602, %v636
        %v805 = vmax.f32 %v601, %v635
        %v806 = vmax.f32 %v603, %v637
        %v807 = vmax.f32 %v611, %v645
        %v808 = vmax.f32 %v619, %v653
        %v809 = vmax.f32 %v618, %v652
        %v810 = vmax.f32 %v620, %v654
        %v811 = vmax.f32 %v662, %v696
        %v812 = vmax.f32 %v670, %v704
        %v813 = vmax.f32 %v669, %v703
        %v814 = vmax.f32 %v671, %v705
        %v815 = vmax.f32 %v679, %v713
        %v816 = vmax.f32 %v687, %v721
        %v817 = vmax.f32 %v686, %v720
        %v818 = vmax.f32 %v688, %v722
        %v851 = vrot.slane %v787, 7
        %v852 = vrot.slane %v851, 2
        %v853 = vrot.slane %v788, 7
        %v854 = vrot.slane %v853, 2
        %v855 = vrot.slane %v789, 7
        %v856 = vrot.slane %v855, 2
        %v857 = vrot.slane %v790, 7
        %v858 = vrot.slane %v857, 2
        %v859 = vrot.slane %v791, 7
        %v860 = vrot.slane %v859, 2
        %v861 = vrot.slane %v792, 7
        %v862 = vrot.slane %v861, 2
        %v863 = vrot.slane %v793, 7
        %v864 = vrot.slane %v863, 2
        %v865 = vrot.slane %v794, 7
        %v866 = vrot.slane %v865, 2
        %v867 = vrot.slane %v795, 7
        %v868 = vrot.slane %v867, 2
        %v869 = vrot.slane %v796, 7
        %v870 = vrot.slane %v869, 2
        %v871 = vrot.slane %v797, 7
        %v872 = vrot.slane %v871, 2
        %v873 = vrot.slane %v798, 7
        %v874 = vrot.slane %v873, 2
        %v875 = vrot.slane %v799, 7
        %v876 = vrot.slane %v875, 2
        %v877 = vrot.slane %v800, 7
        %v878 = vrot.slane %v877, 2
        %v879 = vrot.slane %v801, 7
        %v880 = vrot.slane %v879, 2
        %v881 = vrot.slane %v802, 7
        %v882 = vrot.slane %v881, 2
        %v883 = vrot.slane %v803, 7
        %v884 = vrot.slane %v883, 2
        %v885 = vrot.slane %v804, 7
        %v886 = vrot.slane %v885, 2
        %v887 = vrot.slane %v805, 7
        %v888 = vrot.slane %v887, 2
        %v889 = vrot.slane %v806, 7
        %v890 = vrot.slane %v889, 2
        %v891 = vrot.slane %v807, 7
        %v892 = vrot.slane %v891, 2
        %v893 = vrot.slane %v808, 7
        %v894 = vrot.slane %v893, 2
        %v895 = vrot.slane %v809, 7
        %v896 = vrot.slane %v895, 2
        %v897 = vrot.slane %v810, 7
        %v898 = vrot.slane %v897, 2
        %v899 = vrot.slane %v811, 7
        %v900 = vrot.slane %v899, 2
        %v901 = vrot.slane %v812, 7
        %v902 = vrot.slane %v901, 2
        %v903 = vrot.slane %v813, 7
        %v904 = vrot.slane %v903, 2
        %v905 = vrot.slane %v814, 7
        %v906 = vrot.slane %v905, 2
        %v907 = vrot.slane %v815, 7
        %v908 = vrot.slane %v907, 2
        %v909 = vrot.slane %v816, 7
        %v910 = vrot.slane %v909, 2
        %v911 = vrot.slane %v817, 7
        %v912 = vrot.slane %v911, 2
        %v913 = vrot.slane %v818, 7
        %v914 = vrot.slane %v913, 2
        %v947 = vmax.f32 %v787, %v852
        %v948 = vmax.f32 %v788, %v854
        %v949 = vmax.f32 %v789, %v856
        %v950 = vmax.f32 %v790, %v858
        %v951 = vmax.f32 %v791, %v860
        %v952 = vmax.f32 %v792, %v862
        %v953 = vmax.f32 %v793, %v864
        %v954 = vmax.f32 %v794, %v866
        %v955 = vmax.f32 %v795, %v868
        %v956 = vmax.f32 %v796, %v870
        %v957 = vmax.f32 %v797, %v872
        %v958 = vmax.f32 %v798, %v874
        %v959 = vmax.f32 %v799, %v876
        %v960 = vmax.f32 %v800, %v878
        %v961 = vmax.f32 %v801, %v880
        %v962 = vmax.f32 %v802, %v882
        %v963 = vmax.f32 %v803, %v884
        %v964 = vmax.f32 %v804, %v886
        %v965 = vmax.f32 %v805, %v888
        %v966 = vmax.f32 %v806, %v890
        %v967 = vmax.f32 %v807, %v892
        %v968 = vmax.f32 %v808, %v894
        %v969 = vmax.f32 %v809, %v896
        %v970 = vmax.f32 %v810, %v898
        %v971 = vmax.f32 %v811, %v900
        %v972 = vmax.f32 %v812, %v902
        %v973 = vmax.f32 %v813, %v904
        %v974 = vmax.f32 %v814, %v906
        %v975 = vmax.f32 %v815, %v908
        %v976 = vmax.f32 %v816, %v910
        %v977 = vmax.f32 %v817, %v912
        %v978 = vmax.f32 %v818, %v914
        %v979 = vpack.c.bf16 %v947, %v947
        %v980 = vpack.c.bf16 %v948, %v948
        %v981 = vpack.c.bf16 %v949, %v949
        %v982 = vpack.c.bf16 %v950, %v950
        %v983 = vpack.c.bf16 %v951, %v951
        %v984 = vpack.c.bf16 %v952, %v952
        %v985 = vpack.c.bf16 %v953, %v953
        %v986 = vpack.c.bf16 %v954, %v954
        %v987 = vpack.c.bf16 %v955, %v955
        %v988 = vpack.c.bf16 %v956, %v956
        %v989 = vpack.c.bf16 %v957, %v957
        %v990 = vpack.c.bf16 %v958, %v958
        %v991 = vpack.c.bf16 %v959, %v959
        %v992 = vpack.c.bf16 %v960, %v960
        %v993 = vpack.c.bf16 %v961, %v961
        %v994 = vpack.c.bf16 %v962, %v962
        %v995 = vpack.c.bf16 %v963, %v963
        %v996 = vpack.c.bf16 %v964, %v964
        %v997 = vpack.c.bf16 %v965, %v965
        %v998 = vpack.c.bf16 %v966, %v966
        %v999 = vpack.c.bf16 %v967, %v967
        %v1000 = vpack.c.bf16 %v968, %v968
        %v1001 = vpack.c.bf16 %v969, %v969
        %v1002 = vpack.c.bf16 %v970, %v970
        %v1003 = vpack.c.bf16 %v971, %v971
        %v1004 = vpack.c.bf16 %v972, %v972
        %v1005 = vpack.c.bf16 %v973, %v973
        %v1006 = vpack.c.bf16 %v974, %v974
        %v1007 = vpack.c.bf16 %v975, %v975
        %v1008 = vpack.c.bf16 %v976, %v976
        %v1009 = vpack.c.bf16 %v977, %v977
        %v1010 = vpack.c.bf16 %v978, %v978
        %v1043 = vunpack.c.l.b16 %v979
        %v1044 = vunpack.c.l.b16 %v980
        %v1045 = vunpack.c.l.b16 %v981
        %v1046 = vunpack.c.l.b16 %v982
        %v1047 = vunpack.c.l.b16 %v983
        %v1048 = vunpack.c.l.b16 %v984
        %v1049 = vunpack.c.l.b16 %v985
        %v1050 = vunpack.c.l.b16 %v986
        %v1051 = vunpack.c.l.b16 %v987
        %v1052 = vunpack.c.l.b16 %v988
        %v1053 = vunpack.c.l.b16 %v989
        %v1054 = vunpack.c.l.b16 %v990
        %v1055 = vunpack.c.l.b16 %v991
        %v1056 = vunpack.c.l.b16 %v992
        %v1057 = vunpack.c.l.b16 %v993
        %v1058 = vunpack.c.l.b16 %v994
        %v1059 = vunpack.c.l.b16 %v995
        %v1060 = vunpack.c.l.b16 %v996
        %v1061 = vunpack.c.l.b16 %v997
        %v1062 = vunpack.c.l.b16 %v998
        %v1063 = vunpack.c.l.b16 %v999
        %v1064 = vunpack.c.l.b16 %v1000
        %v1065 = vunpack.c.l.b16 %v1001
        %v1066 = vunpack.c.l.b16 %v1002
        %v1067 = vunpack.c.l.b16 %v1003
        %v1068 = vunpack.c.l.b16 %v1004
        %v1069 = vunpack.c.l.b16 %v1005
        %v1070 = vunpack.c.l.b16 %v1006
        %v1071 = vunpack.c.l.b16 %v1007
        %v1072 = vunpack.c.l.b16 %v1008
        %v1073 = vunpack.c.l.b16 %v1009
        %v1074 = vunpack.c.l.b16 %v1010
        %v1075 = vpack.c.b16 %v1043, %v1043
        %v1076 = vpack.c.b16 %v1044, %v1044
        %v1077 = vpack.c.b16 %v1045, %v1045
        %v1078 = vpack.c.b16 %v1046, %v1046
        %v1079 = vpack.c.b16 %v1047, %v1047
        %v1080 = vpack.c.b16 %v1048, %v1048
        %v1081 = vpack.c.b16 %v1049, %v1049
        %v1082 = vpack.c.b16 %v1050, %v1050
        %v1083 = vpack.c.b16 %v1051, %v1051
        %v1084 = vpack.c.b16 %v1052, %v1052
        %v1085 = vpack.c.b16 %v1053, %v1053
        %v1086 = vpack.c.b16 %v1054, %v1054
        %v1087 = vpack.c.b16 %v1055, %v1055
        %v1088 = vpack.c.b16 %v1056, %v1056
        %v1089 = vpack.c.b16 %v1057, %v1057
        %v1090 = vpack.c.b16 %v1058, %v1058
        %v1091 = vpack.c.b16 %v1059, %v1059
        %v1092 = vpack.c.b16 %v1060, %v1060
        %v1093 = vpack.c.b16 %v1061, %v1061
        %v1094 = vpack.c.b16 %v1062, %v1062
        %v1095 = vpack.c.b16 %v1063, %v1063
        %v1096 = vpack.c.b16 %v1064, %v1064
        %v1097 = vpack.c.b16 %v1065, %v1065
        %v1098 = vpack.c.b16 %v1066, %v1066
        %v1099 = vpack.c.b16 %v1067, %v1067
        %v1100 = vpack.c.b16 %v1068, %v1068
        %v1101 = vpack.c.b16 %v1069, %v1069
        %v1102 = vpack.c.b16 %v1070, %v1070
        %v1103 = vpack.c.b16 %v1071, %v1071
        %v1104 = vpack.c.b16 %v1072, %v1072
        %v1105 = vpack.c.b16 %v1073, %v1073
        %v1106 = vpack.c.b16 %v1074, %v1074
        %v1107 = vunpack.c.l.b16 %v1075
        %v1108 = vunpack.c.l.b16 %v1076
        %v1109 = vunpack.c.l.b16 %v1077
        %v1110 = vunpack.c.l.b16 %v1078
        %v1111 = vunpack.c.l.b16 %v1079
        %v1112 = vunpack.c.l.b16 %v1080
        %v1113 = vunpack.c.l.b16 %v1081
        %v1114 = vunpack.c.l.b16 %v1082
        %v1115 = vunpack.c.l.b16 %v1083
        %v1116 = vunpack.c.l.b16 %v1084
        %v1117 = vunpack.c.l.b16 %v1085
        %v1118 = vunpack.c.l.b16 %v1086
        %v1119 = vunpack.c.l.b16 %v1087
        %v1120 = vunpack.c.l.b16 %v1088
        %v1121 = vunpack.c.l.b16 %v1089
        %v1122 = vunpack.c.l.b16 %v1090
        %v1123 = vunpack.c.l.b16 %v1091
        %v1124 = vunpack.c.l.b16 %v1092
        %v1125 = vunpack.c.l.b16 %v1093
        %v1126 = vunpack.c.l.b16 %v1094
        %v1127 = vunpack.c.l.b16 %v1095
        %v1128 = vunpack.c.l.b16 %v1096
        %v1129 = vunpack.c.l.b16 %v1097
        %v1130 = vunpack.c.l.b16 %v1098
        %v1131 = vunpack.c.l.b16 %v1099
        %v1132 = vunpack.c.l.b16 %v1100
        %v1133 = vunpack.c.l.b16 %v1101
        %v1134 = vunpack.c.l.b16 %v1102
        %v1135 = vunpack.c.l.b16 %v1103
        %v1136 = vunpack.c.l.b16 %v1104
        %v1137 = vunpack.c.l.b16 %v1105
        %v1138 = vunpack.c.l.b16 %v1106
        %v1139 = vrot.slane %v1108, 7
        %vm1140 = vcmask 1041409
        %v1141 = vsel %vm1140, %v1139, %v1107
        %v1142 = vrot.slane %v1109, 6
        %vm1143 = vcmask 1042434
        %v1144 = vsel %vm1143, %v1142, %v1141
        %v1145 = vrot.slane %v1110, 5
        %vm1146 = vcmask 1043459
        %v1147 = vsel %vm1146, %v1145, %v1144
        %v1148 = vrot.slane %v1111, 4
        %vm1149 = vcmask 1044484
        %v1150 = vsel %vm1149, %v1148, %v1147
        %v1151 = vrot.slane %v1112, 3
        %vm1152 = vcmask 1045509
        %v1153 = vsel %vm1152, %v1151, %v1150
        %v1154 = vrot.slane %v1113, 2
        %vm1155 = vcmask 1046534
        %v1156 = vsel %vm1155, %v1154, %v1153
        %v1157 = vrot.slane %v1114, 1
        %vm1158 = vcmask 1047559
        %v1159 = vsel %vm1158, %v1157, %v1156
        %v1160 = vrot.slane %v1116, 7
        %v1161 = vsel %vm1140, %v1160, %v1115
        %v1162 = vrot.slane %v1117, 6
        %v1163 = vsel %vm1143, %v1162, %v1161
        %v1164 = vrot.slane %v1118, 5
        %v1165 = vsel %vm1146, %v1164, %v1163
        %v1166 = vrot.slane %v1119, 4
        %v1167 = vsel %vm1149, %v1166, %v1165
        %v1168 = vrot.slane %v1120, 3
        %v1169 = vsel %vm1152, %v1168, %v1167
        %v1170 = vrot.slane %v1121, 2
        %v1171 = vsel %vm1155, %v1170, %v1169
        %v1172 = vrot.slane %v1122, 1
        %v1173 = vsel %vm1158, %v1172, %v1171
        %v1174 = vrot.slane %v1124, 7
        %v1175 = vsel %vm1140, %v1174, %v1123
        %v1176 = vrot.slane %v1125, 6
        %v1177 = vsel %vm1143, %v1176, %v1175
        %v1178 = vrot.slane %v1126, 5
        %v1179 = vsel %vm1146, %v1178, %v1177
        %v1180 = vrot.slane %v1127, 4
        %v1181 = vsel %vm1149, %v1180, %v1179
        %v1182 = vrot.slane %v1128, 3
        %v1183 = vsel %vm1152, %v1182, %v1181
        %v1184 = vrot.slane %v1129, 2
        %v1185 = vsel %vm1155, %v1184, %v1183
        %v1186 = vrot.slane %v1130, 1
        %v1187 = vsel %vm1158, %v1186, %v1185
        %v1188 = vrot.slane %v1132, 7
        %v1189 = vsel %vm1140, %v1188, %v1131
        %v1190 = vrot.slane %v1133, 6
        %v1191 = vsel %vm1143, %v1190, %v1189
        %v1192 = vrot.slane %v1134, 5
        %v1193 = vsel %vm1146, %v1192, %v1191
        %v1194 = vrot.slane %v1135, 4
        %v1195 = vsel %vm1149, %v1194, %v1193
        %v1196 = vrot.slane %v1136, 3
        %v1197 = vsel %vm1152, %v1196, %v1195
        %v1198 = vrot.slane %v1137, 2
        %v1199 = vsel %vm1155, %v1198, %v1197
        %v1200 = vrot.slane %v1138, 1
        %v1201 = vsel %vm1158, %v1200, %v1199
        %v1202 = vpack.c.b16 %v1159, %v1159
        %v1203 = vpack.c.b16 %v1173, %v1173
        %v1204 = vpack.c.b16 %v1187, %v1187
        %v1205 = vpack.c.b16 %v1201, %v1201
        %vm1210 = vcmask 257024
        %1211 = vst.msk [vmem:[%s205] sm:$0xf] %vm1210, %v1202
        %1212 = vst.msk [vmem:[%s205 + $0x4] sm:$0xf] %vm1210, %v1203
        %1213 = vst.msk [vmem:[%s205 + $0x8] sm:$0xf] %vm1210, %v1204
        %1214 = vst.msk [vmem:[%s205 + $0xc] sm:$0xf] %vm1210, %v1205
        %s1215 = smul.u32 4, %s20
        %p1216 = scmp.lt.s32.totalorder %s19, 1
        %s1217 = scalar_select %p1216, %s19, 1
        %p1218 = scmp.lt.s32.totalorder %s1215, 7
        %s1219 = scalar_select %p1218, %s1215, 7
        %s1220 = smul.addr %s1217, 8
        %s1221 = sadd.s32 %s1219, %s1220
        %s1222 = smul.addr %s1221, 4
        %s1223 = scalar_lea.vmem %s3, %s1222
        // Predicated region
        $region37: #{cnn_segmentation_forward.4} parent=31 // pred_check
          %p1224 = pneg %p115
        $region38: #{cnn_segmentation_forward.4} parent=31 // pred_check_branch
          %1226 = sbr.rel (%p1224) target = $region40
        $region39: #{cnn_segmentation_forward.4} parent=31 // pred_region
          %s1227 = smul.u32 4, %s20
        $region40: #{cnn_segmentation_forward.4} parent=31 // pred_fallthru
          _
      $region32: #{cnn_segmentation_forward.4} parent=5 // pred_fallthru
        _
      %p1228 = scmp.le.s32.totalorder 2, %s10
      // Predicated region
      $region41: #{cnn_segmentation_forward.4} parent=5 // pred_check
        %p1229 = pneg %p1228
      $region42: #{cnn_segmentation_forward.4} parent=5 // pred_check_branch
        %1231 = sbr.rel (%p1229) target = $region44
      $region43: #{cnn_segmentation_forward.4} parent=5 // pred_region
        %s1232 = ssub.s32 %s10, 2
        // Predicated region
        $region45: #{cnn_segmentation_forward.4} parent=43 // pred_check
          %p1233 = pneg %p121
        $region46: #{cnn_segmentation_forward.4} parent=43 // pred_check_branch
          %1235 = sbr.rel (%p1233) target = $region48
        $region47: #{cnn_segmentation_forward.4} parent=43 // pred_region
          %s1236 = smul.u32 4, %s22
          %p1237 = scmp.lt.s32.totalorder %s21, 1
          %s1238 = scalar_select %p1237, %s21, 1
          %p1239 = scmp.lt.s32.totalorder %s1236, 7
          %s1240 = scalar_select %p1239, %s1236, 7
          %s1241 = smul.addr %s1238, 8
          %s1242 = sadd.s32 %s1240, %s1241
          %s1243 = smul.addr %s1242, 4
          %s1244 = scalar_lea.vmem %s3, %s1243
        $region48: #{cnn_segmentation_forward.4} parent=43 // pred_fallthru
          _
      $region44: #{cnn_segmentation_forward.4} parent=5 // pred_fallthru
        _
    $region6: #{cnn_segmentation_forward.4} parent=1 // loop_footer
      %s14 = sadd.s32 1, %s10
    $region7: #{cnn_segmentation_forward.4} parent=1 // loop_footer_branch
      %9 = sbr.rel target = $region3
    $region8: #{cnn_segmentation_forward.4} parent=1 // loop_exit
      _
    %1245 = vsyncpa [#allocation3], 1
    %s1246 = scalar_lea.sflag [#allocation3], 1
    %1247 = vsyncpa %s1246, 1

// kernel: cnn_segmentation_forward.5
$region0: #{cnn_segmentation_forward.5}
  #allocation0 [shape = 'u32[]', space=smem, size = 0x4, offset = 0x4, fixed_abs, tag = 'smem constant byte address 0x4 - core index']
  #allocation1 [shape = 'u32[144,128]{1,0:T(1,128)}', space=vmem, size = 0x12000, scoped, tag = 'internal scratch']
  %s0 = inlined_call_operand.vmem [shape: bf16[2,10,10,32], index: 0, kind: input, shape index: {}]
  %s1 = inlined_call_operand.vmem [shape: bf16[288,64], index: 1, kind: input, shape index: {}]
  %s2 = inlined_call_operand.hbm [shape: f32[1,64], index: 2, kind: input, shape index: {}]
  %s3 = inlined_call_operand.vmem [shape: bf16[2,4,4,64], index: 3, kind: output, shape index: {}]
  %s4 = sld [smem:[#allocation0]]
  $region49: #{cnn_segmentation_forward.5} parent=0
    _
  %s6 = ssub.s32 1, %s4
  %s7 = scalar_select 0, %s6, %s4
  $region1: #{cnn_segmentation_forward.5} parent=0
    #allocation2 [shape = 'u8[512]{0}', space=vmem, size = 0x400, scoped, tag = 'input window, operand 2, single buffered']
    #allocation3 [shape = 's32[2]{0}', space=sflag, size = 0x8, scoped, tag = 'scoped memory for cnn_segmentation_forward.5']
    %8 = vsyncpa [#allocation3], 0
    loop: start=0, step=1, limit=6
    $region2: #{cnn_segmentation_forward.5} parent=1 // loop_pre_header
      _
    $region3: #{cnn_segmentation_forward.5} parent=1 // loop_header
      %s10 = sphi 0, %s14
      %p11 = scmp.ge.s32.totalorder %s10, 6
      %s17 = sphi 0, %s29
      %s18 = sphi 0, %s25
      %s19 = sphi 0, %s17
      %s20 = sphi 0, %s18
      %s21 = sphi 0, %s19
      %s22 = sphi 0, %s20
      %s32 = sphi 0, %s34
      %s35 = sphi 0, %s32
      %s36 = sphi 0, %s35
      %s52 = sphi 0, %s36
      %s56 = sphi 0, %s56
      %s58 = sphi 0, %s56
      %s59 = sphi 0, %s58
      %s73 = sphi 0, %s59
      %s77 = sphi 0, %s77
      %s79 = sphi 0, %s77
      %s80 = sphi 0, %s79
      %s94 = sphi 0, %s80
      %s102 = sphi 0, %s104
      %s105 = sphi 0, %s102
      %s106 = sphi 0, %s105
      %s122 = sphi 0, %s106
    $region4: #{cnn_segmentation_forward.5} parent=1 // loop_header_branch
      %13 = sbr.rel (%p11) target = $region8
    $region5: #{cnn_segmentation_forward.5} parent=1 // loop_body
      %s15 = ssub.s32 %s10, 1
      %s16 = ssub.s32 %s10, 2
      %s23 = sadd.s32 1, %s18
      %p24 = scmp.ge.s32.totalorder %s23, 2
      %s25 = scalar_select %p24, 0, %s23
      %s26 = sadd.s32 1, %s17
      %s27 = scalar_select %p24, %s26, %s17
      %p28 = scmp.ge.s32.totalorder %s27, 2
      %s29 = scalar_select %p28, 0, %s27
      %s30 = ssub.s32 %s17, %s29
      %p31 = scmp.eq.s32.totalorder %s30, 0
      %s33 = sadd.s32 %s32, 1
      %s34 = scalar_select %p31, %s32, %s33
      %p37 = pneg %p31
      %p38 = scmp.eq.s32.totalorder %s10, 3
      %p39 = por %p37, %p38
      %p40 = scmp.ne.s32.totalorder %s32, %s35
      %p41 = scmp.eq.s32.totalorder %s10, 0
      %p42 = por %p40, %p41
      %p43 = scmp.ne.s32.totalorder %s32, %s35
      %p44 = scmp.eq.s32.totalorder %s15, 3
      %p45 = por %p43, %p44
      %p46 = scmp.ne.s32.totalorder %s35, %s36
      %p47 = scmp.eq.s32.totalorder %s15, 0
      %p48 = por %p46, %p47
      %p49 = scmp.ne.s32.totalorder %s35, %s36
      %p50 = scmp.eq.s32.totalorder %s16, 3
      %p51 = por %p49, %p50
      %p53 = scmp.ne.s32.totalorder %s36, %s52
      %p54 = scmp.eq.s32.totalorder %s16, 0
      %p55 = por %p53, %p54
      %s57 = sadd.s32 %s56, 1
      %p60 = scmp.eq.s32.totalorder %s10, 3
      %p61 = scmp.ne.s32.totalorder %s56, %s58
      %p62 = scmp.eq.s32.totalorder %s10, 0
      %p63 = por %p61, %p62
      %p64 = scmp.ne.s32.totalorder %s56, %s58
      %p65 = scmp.eq.s32.totalorder %s15, 3
      %p66 = por %p64, %p65
      %p67 = scmp.ne.s32.totalorder %s58, %s59
      %p68 = scmp.eq.s32.totalorder %s15, 0
      %p69 = por %p67, %p68
      %p70 = scmp.ne.s32.totalorder %s58, %s59
      %p71 = scmp.eq.s32.totalorder %s16, 3
      %p72 = por %p70, %p71
      %p74 = scmp.ne.s32.totalorder %s59, %s73
      %p75 = scmp.eq.s32.totalorder %s16, 0
      %p76 = por %p74, %p75
      %s78 = sadd.s32 %s77, 1
      %p81 = scmp.eq.s32.totalorder %s10, 3
      %p82 = scmp.ne.s32.totalorder %s77, %s79
      %p83 = scmp.eq.s32.totalorder %s10, 0
      %p84 = por %p82, %p83
      %p85 = scmp.ne.s32.totalorder %s77, %s79
      %p86 = scmp.eq.s32.totalorder %s15, 3
      %p87 = por %p85, %p86
      %p88 = scmp.ne.s32.totalorder %s79, %s80
      %p89 = scmp.eq.s32.totalorder %s15, 0
      %p90 = por %p88, %p89
      %p91 = scmp.ne.s32.totalorder %s79, %s80
      %p92 = scmp.eq.s32.totalorder %s16, 3
      %p93 = por %p91, %p92
      %p95 = scmp.ne.s32.totalorder %s80, %s94
      %p96 = scmp.eq.s32.totalorder %s16, 0
      %p97 = por %p95, %p96
      %s98 = ssub.s32 %s17, %s29
      %s99 = ssub.s32 %s18, %s25
      %s100 = sor.u32 %s98, %s99
      %p101 = scmp.eq.s32.totalorder %s100, 0
      %s103 = sadd.s32 %s102, 1
      %s104 = scalar_select %p101, %s102, %s103
      %p107 = pneg %p101
      %p108 = scmp.eq.s32.totalorder %s10, 3
      %p109 = por %p107, %p108
      %p110 = scmp.ne.s32.totalorder %s102, %s105
      %p111 = scmp.eq.s32.totalorder %s10, 0
      %p112 = por %p110, %p111
      %p113 = scmp.ne.s32.totalorder %s102, %s105
      %p114 = scmp.eq.s32.totalorder %s15, 3
      %p115 = por %p113, %p114
      %p116 = scmp.ne.s32.totalorder %s105, %s106
      %p117 = scmp.eq.s32.totalorder %s15, 0
      %p118 = por %p116, %p117
      %p119 = scmp.ne.s32.totalorder %s105, %s106
      %p120 = scmp.eq.s32.totalorder %s16, 3
      %p121 = por %p119, %p120
      %p123 = scmp.ne.s32.totalorder %s106, %s122
      %p124 = scmp.eq.s32.totalorder %s16, 0
      %p125 = por %p123, %p124
      %p126 = scmp.le.s32.totalorder 1, %s10
      %p127 = scmp.lt.s32.totalorder %s10, 5
      %p128 = pnand %p126, %p127
      %p129 = pneg %p128
      // Predicated region
      $region9: #{cnn_segmentation_forward.5} parent=5 // pred_check
        _
      $region10: #{cnn_segmentation_forward.5} parent=5 // pred_check_branch
        %131 = sbr.rel (%p128) target = $region12
      $region11: #{cnn_segmentation_forward.5} parent=5 // pred_region
        %s132 = ssub.s32 %s10, 1
        // Predicated region
        $region13: #{cnn_segmentation_forward.5} parent=11 // pred_check
          %p133 = pneg %p69
        $region14: #{cnn_segmentation_forward.5} parent=11 // pred_check_branch
          %135 = sbr.rel (%p133) target = $region16
        $region15: #{cnn_segmentation_forward.5} parent=11 // pred_region
          _
        $region16: #{cnn_segmentation_forward.5} parent=11 // pred_fallthru
          _
        // Predicated region
        $region17: #{cnn_segmentation_forward.5} parent=11 // pred_check
          %p136 = pneg %p90
        $region18: #{cnn_segmentation_forward.5} parent=11 // pred_check_branch
          %138 = sbr.rel (%p136) target = $region20
        $region19: #{cnn_segmentation_forward.5} parent=11 // pred_region
          %s140 = ssub.s32 16, 16
          %141 = vsyncadd [#allocation3], %s140
          %s143 = sshll.u32 [#allocation2], 4
          %s144 = int_to_ptr.vmem [resolvable:$true] %s143
          %146 = dma.hbm_to_vmem [thread:$0]  %s2, 16, %s144, [#allocation3]
        $region20: #{cnn_segmentation_forward.5} parent=11 // pred_fallthru
          _
      $region12: #{cnn_segmentation_forward.5} parent=5 // pred_fallthru
        _
      %p147 = scmp.lt.s32.totalorder %s10, 4
      // Predicated region
      $region21: #{cnn_segmentation_forward.5} parent=5 // pred_check
        %p148 = pneg %p147
      $region22: #{cnn_segmentation_forward.5} parent=5 // pred_check_branch
        %150 = sbr.rel (%p148) target = $region24
      $region23: #{cnn_segmentation_forward.5} parent=5 // pred_region
        // Predicated region
        $region25: #{cnn_segmentation_forward.5} parent=23 // pred_check
          %p151 = pneg %p42
        $region26: #{cnn_segmentation_forward.5} parent=23 // pred_check_branch
          %153 = sbr.rel (%p151) target = $region28
        $region27: #{cnn_segmentation_forward.5} parent=23 // pred_region
          %p154 = scmp.lt.s32.totalorder %s17, 1
          %s155 = scalar_select %p154, %s17, 1
          %s156 = smul.addr %s155, 20
          %s157 = smul.addr %s156, 4
          %s158 = scalar_lea.vmem %s0, %s157
        $region28: #{cnn_segmentation_forward.5} parent=23 // pred_fallthru
          _
      $region24: #{cnn_segmentation_forward.5} parent=5 // pred_fallthru
        _
      %p159 = scmp.le.s32.totalorder 1, %s10
      %p160 = scmp.lt.s32.totalorder %s10, 5
      %p161 = pnand %p159, %p160
      %p162 = pneg %p161
      // Predicated region
      $region29: #{cnn_segmentation_forward.5} parent=5 // pred_check
        _
      $region30: #{cnn_segmentation_forward.5} parent=5 // pred_check_branch
        %164 = sbr.rel (%p161) target = $region32
      $region31: #{cnn_segmentation_forward.5} parent=5 // pred_region
        %s165 = ssub.s32 %s10, 1
        // Predicated region
        $region33: #{cnn_segmentation_forward.5} parent=31 // pred_check
          %p166 = pneg %p90
        $region34: #{cnn_segmentation_forward.5} parent=31 // pred_check_branch
          %168 = sbr.rel (%p166) target = $region36
        $region35: #{cnn_segmentation_forward.5} parent=31 // pred_region
          %169 = dma.done [#allocation3], 16
        $region36: #{cnn_segmentation_forward.5} parent=31 // pred_fallthru
          _
        %p170 = scmp.lt.s32.totalorder %s19, 1
        %s171 = scalar_select %p170, %s19, 1
        %s172 = smul.addr %s171, 20
        %s173 = smul.addr %s172, 4
        %s174 = scalar_lea.vmem %s0, %s173
        %p175 = pneg %p48
        %p176 = pneg %p45
        %p177 = pneg %p69
        %p178 = pneg %p66
        %p179 = pneg %p90
        %p180 = pneg %p87
        %p181 = pneg %p118
        %p182 = pneg %p115
        %s183 = smul.u32 2, %s20
        %p184 = scmp.lt.s32.totalorder %s19, 1
        %s185 = scalar_select %p184, %s19, 1
        %p186 = scmp.lt.s32.totalorder %s183, 3
        %s187 = scalar_select %p186, %s183, 3
        %s188 = smul.addr %s185, 4
        %s189 = sadd.s32 %s187, %s188
        %s190 = smul.addr %s189, 2
        %s191 = scalar_lea.vmem %s3, %s190
        %p192 = scmp.lt.s32.totalorder %s19, 1
        %s193 = scalar_select %p192, %s19, 1
        %s194 = smul.addr %s193, 20
        %s195 = smul.addr %s194, 4
        %s196 = scalar_lea.vmem %s0, %s195
        %s197 = smul.u32 2, %s20
        %p198 = scmp.lt.s32.totalorder %s19, 1
        %s199 = scalar_select %p198, %s19, 1
        %p200 = scmp.lt.s32.totalorder %s197, 3
        %s201 = scalar_select %p200, %s197, 3
        %s202 = smul.addr %s199, 4
        %s203 = sadd.s32 %s201, %s202
        %s204 = smul.addr %s203, 2
        %s205 = scalar_lea.vmem %s3, %s204
        %s206 = smul.u32 2, %s20
        %s208 = smul.u32 %s20, 4
        %s209 = smul.u32 %s208, 2
        %s210 = smul.addr %s209, 4
        %s211 = scalar_lea.vmem %s196, %s210
        %v212 = vld [vmem:[%s211] sm:$0xf]
        %v213 = vld [vmem:[%s211 + $0x8] sm:$0xf]
        %v214 = vld [vmem:[%s211 + $0x10] sm:$0xf]
        %v215 = vld [vmem:[%s211 + $0x18] sm:$0xf]
        %v216 = vld [vmem:[%s211 + $0x4] sm:$0x1]
        %v217 = vld [vmem:[%s211 + $0xc] sm:$0x1]
        %v218 = vld [vmem:[%s211 + $0x14] sm:$0x1]
        %v219 = vld [vmem:[%s211 + $0x1c] sm:$0x1]
        %vm220 = vsmask.f32 3328
        %vm221 = vsmask.f32 7440
        %vm222 = vmor %vm220, %vm221
        %v224 = vshrl.u32 %v212, 16
        %v226 = vrot.slane %v224, 4
        %v227 = vshll.u32 %v212, 16
        %v229 = vrot.slane %v227, 5
        %v230 = vor.u32 %v226, %v229
        %v231 = vrot.slane %v230, 4
        %v233 = vshll.u32 %v216, 16
        %v235 = vrot.slane %v233, 5
        %v236 = vsel %vm222, %v231, %v235
        %v238 = vshrl.u32 %v213, 16
        %v240 = vrot.slane %v238, 4
        %v241 = vshll.u32 %v213, 16
        %v243 = vrot.slane %v241, 5
        %v244 = vor.u32 %v240, %v243
        %v245 = vrot.slane %v244, 4
        %v247 = vshll.u32 %v217, 16
        %v249 = vrot.slane %v247, 5
        %v250 = vsel %vm222, %v245, %v249
        %v252 = vshrl.u32 %v214, 16
        %v254 = vrot.slane %v252, 4
        %v255 = vshll.u32 %v214, 16
        %v257 = vrot.slane %v255, 5
        %v258 = vor.u32 %v254, %v257
        %v259 = vrot.slane %v258, 4
        %v261 = vshll.u32 %v218, 16
        %v263 = vrot.slane %v261, 5
        %v264 = vsel %vm222, %v259, %v263
        %v266 = vshrl.u32 %v215, 16
        %v268 = vrot.slane %v266, 4
        %v269 = vshll.u32 %v215, 16
        %v271 = vrot.slane %v269, 5
        %v272 = vor.u32 %v268, %v271
        %v273 = vrot.slane %v272, 4
        %v275 = vshll.u32 %v219, 16
        %v277 = vrot.slane %v275, 5
        %v278 = vsel %vm222, %v273, %v277
        %v279 = vld [vmem:[%s211] sm:$0xe]
        %v280 = vld [vmem:[%s211 + $0x8] sm:$0xe]
        %v281 = vld [vmem:[%s211 + $0x10] sm:$0xe]
        %v282 = vld [vmem:[%s211 + $0x18] sm:$0xe]
        %vm291 = vcmask 1042432
        %vm292 = vcmask 1046532
        %vm293 = vmor %vm291, %vm292
        %v294 = vrot.slane %v279, 5
        %v295 = vrot.slane %v294, 4
        %v296 = vrot.slane %v216, 5
        %v297 = vsel %vm293, %v295, %v296
        %v298 = vrot.slane %v280, 5
        %v299 = vrot.slane %v298, 4
        %v300 = vrot.slane %v217, 5
        %v301 = vsel %vm293, %v299, %v300
        %v302 = vrot.slane %v281, 5
        %v303 = vrot.slane %v302, 4
        %v304 = vrot.slane %v218, 5
        %v305 = vsel %vm293, %v303, %v304
        %v306 = vrot.slane %v282, 5
        %v307 = vrot.slane %v306, 4
        %v308 = vrot.slane %v219, 5
        %v309 = vsel %vm293, %v307, %v308
        %v314 = vunpack.c.l.b16 %v212
        %v315 = vunpack.c.l.b16 %v213
        %v316 = vunpack.c.l.b16 %v214
        %v317 = vunpack.c.l.b16 %v215
        %v318 = vpack.c.b16 %v315, %v314
        %v319 = vpack.c.b16 %v317, %v316
        %v320 = vunpack.c.l.b16 %v236
        %v321 = vunpack.c.l.b16 %v250
        %v322 = vunpack.c.l.b16 %v264
        %v323 = vunpack.c.l.b16 %v278
        %v324 = vpack.c.b16 %v321, %v320
        %v325 = vpack.c.b16 %v323, %v322
        %326 = vrot.lane.b32.xlu0 %v324, 32
        %v327 = vpop.permute.xlu0 %326
        %328 = vrot.lane.b32.xlu0 %v325, 32
        %v329 = vpop.permute.xlu0 %328
        %v330 = vunpack.c.l.b16 %v297
        %v331 = vunpack.c.l.b16 %v301
        %v332 = vunpack.c.l.b16 %v305
        %v333 = vunpack.c.l.b16 %v309
        %v334 = vpack.c.b16 %v331, %v330
        %v335 = vpack.c.b16 %v333, %v332
        %336 = vrot.lane.b32.xlu0 %v334, 64
        %v337 = vpop.permute.xlu0 %336
        %338 = vrot.lane.b32.xlu0 %v335, 64
        %v339 = vpop.permute.xlu0 %338
        %vm340 = vcmask 261120
        %v343 = vsel %vm340, %v318, %v327
        %v346 = vsel %vm340, %v319, %v329
        %vm347 = vcmask 523264
        %v349 = vsel %vm347, %v343, %v337
        %v351 = vsel %vm347, %v346, %v339
        %v352 = vld [vmem:[%s1] sm:$0xf]
        %v353 = vld [vmem:[%s1 + $0x4] sm:$0xf]
        %v354 = vld [vmem:[%s1 + $0x8] sm:$0xf]
        %v355 = vld [vmem:[%s1 + $0xc] sm:$0xf]
        %v356 = vld [vmem:[%s1 + $0x10] sm:$0xf]
        %v357 = vld [vmem:[%s1 + $0x14] sm:$0xf]
        %v358 = vld [vmem:[%s1 + $0x18] sm:$0xf]
        %v359 = vld [vmem:[%s1 + $0x1c] sm:$0xf]
        %v360 = vld [vmem:[%s1 + $0x20] sm:$0xf]
        %v361 = vld [vmem:[%s1 + $0x24] sm:$0xf]
        %v362 = vld [vmem:[%s1 + $0x28] sm:$0xf]
        %v363 = vld [vmem:[%s1 + $0x2c] sm:$0xf]
        %s364 = sadd.s32 %s208, 1
        %s365 = smul.u32 %s364, 2
        %s366 = smul.addr %s365, 4
        %s367 = scalar_lea.vmem %s196, %s366
        %v368 = vld [vmem:[%s367] sm:$0xf]
        %v369 = vld [vmem:[%s367 + $0x8] sm:$0xf]
        %v370 = vld [vmem:[%s367 + $0x10] sm:$0xf]
        %v371 = vld [vmem:[%s367 + $0x18] sm:$0xf]
        %v372 = vld [vmem:[%s367 + $0x4] sm:$0x1]
        %v373 = vld [vmem:[%s367 + $0xc] sm:$0x1]
        %v374 = vld [vmem:[%s367 + $0x14] sm:$0x1]
        %v375 = vld [vmem:[%s367 + $0x1c] sm:$0x1]
        %v377 = vshrl.u32 %v368, 16
        %v379 = vrot.slane %v377, 4
        %v380 = vshll.u32 %v368, 16
        %v382 = vrot.slane %v380, 5
        %v383 = vor.u32 %v379, %v382
        %v384 = vrot.slane %v383, 4
        %v386 = vshll.u32 %v372, 16
        %v388 = vrot.slane %v386, 5
        %v389 = vsel %vm222, %v384, %v388
        %v391 = vshrl.u32 %v369, 16
        %v393 = vrot.slane %v391, 4
        %v394 = vshll.u32 %v369, 16
        %v396 = vrot.slane %v394, 5
        %v397 = vor.u32 %v393, %v396
        %v398 = vrot.slane %v397, 4
        %v400 = vshll.u32 %v373, 16
        %v402 = vrot.slane %v400, 5
        %v403 = vsel %vm222, %v398, %v402
        %v405 = vshrl.u32 %v370, 16
        %v407 = vrot.slane %v405, 4
        %v408 = vshll.u32 %v370, 16
        %v410 = vrot.slane %v408, 5
        %v411 = vor.u32 %v407, %v410
        %v412 = vrot.slane %v411, 4
        %v414 = vshll.u32 %v374, 16
        %v416 = vrot.slane %v414, 5
        %v417 = vsel %vm222, %v412, %v416
        %v419 = vshrl.u32 %v371, 16
        %v421 = vrot.slane %v419, 4
        %v422 = vshll.u32 %v371, 16
        %v424 = vrot.slane %v422, 5
        %v425 = vor.u32 %v421, %v424
        %v426 = vrot.slane %v425, 4
        %v428 = vshll.u32 %v375, 16
        %v430 = vrot.slane %v428, 5
        %v431 = vsel %vm222, %v426, %v430
        %v432 = vld [vmem:[%s367] sm:$0xe]
        %v433 = vld [vmem:[%s367 + $0x8] sm:$0xe]
        %v434 = vld [vmem:[%s367 + $0x10] sm:$0xe]
        %v435 = vld [vmem:[%s367 + $0x18] sm:$0xe]
        %v444 = vrot.slane %v432, 5
        %v445 = vrot.slane %v444, 4
        %v446 = vrot.slane %v372, 5
        %v447 = vsel %vm293, %v445, %v446
        %v448 = vrot.slane %v433, 5
        %v449 = vrot.slane %v448, 4
        %v450 = vrot.slane %v373, 5
        %v451 = vsel %vm293, %v449, %v450
        %v452 = vrot.slane %v434, 5
        %v453 = vrot.slane %v452, 4
        %v454 = vrot.slane %v374, 5
        %v455 = vsel %vm293, %v453, %v454
        %v456 = vrot.slane %v435, 5
        %v457 = vrot.slane %v456, 4
        %v458 = vrot.slane %v375, 5
        %v459 = vsel %vm293, %v457, %v458
        %v464 = vunpack.c.l.b16 %v368
        %v465 = vunpack.c.l.b16 %v369
        %v466 = vunpack.c.l.b16 %v370
        %v467 = vunpack.c.l.b16 %v371
        %v468 = vpack.c.b16 %v465, %v464
        %v469 = vpack.c.b16 %v467, %v466
        %v470 = vunpack.c.l.b16 %v389
        %v471 = vunpack.c.l.b16 %v403
        %v472 = vunpack.c.l.b16 %v417
        %v473 = vunpack.c.l.b16 %v431
        %v474 = vpack.c.b16 %v471, %v470
        %v475 = vpack.c.b16 %v473, %v472
        %476 = vrot.lane.b32.xlu0 %v474, 32
        %v477 = vpop.permute.xlu0 %476
        %478 = vrot.lane.b32.xlu0 %v475, 32
        %v479 = vpop.permute.xlu0 %478
        %v480 = vunpack.c.l.b16 %v447
        %v481 = vunpack.c.l.b16 %v451
        %v482 = vunpack.c.l.b16 %v455
        %v483 = vunpack.c.l.b16 %v459
        %v484 = vpack.c.b16 %v481, %v480
        %v485 = vpack.c.b16 %v483, %v482
        %486 = vrot.lane.b32.xlu0 %v484, 64
        %v487 = vpop.permute.xlu0 %486
        %488 = vrot.lane.b32.xlu0 %v485, 64
        %v489 = vpop.permute.xlu0 %488
        %v492 = vsel %vm340, %v468, %v477
        %v495 = vsel %vm340, %v469, %v479
        %v497 = vsel %vm347, %v492, %v487
        %v499 = vsel %vm347, %v495, %v489
        %v500 = vld [vmem:[%s1 + $0x30] sm:$0xf]
        %v501 = vld [vmem:[%s1 + $0x34] sm:$0xf]
        %v502 = vld [vmem:[%s1 + $0x38] sm:$0xf]
        %v503 = vld [vmem:[%s1 + $0x3c] sm:$0xf]
        %v504 = vld [vmem:[%s1 + $0x40] sm:$0xf]
        %v505 = vld [vmem:[%s1 + $0x44] sm:$0xf]
        %v506 = vld [vmem:[%s1 + $0x48] sm:$0xf]
        %v507 = vld [vmem:[%s1 + $0x4c] sm:$0xf]
        %v508 = vld [vmem:[%s1 + $0x50] sm:$0xf]
        %v509 = vld [vmem:[%s1 + $0x54] sm:$0xf]
        %v510 = vld [vmem:[%s1 + $0x58] sm:$0xf]
        %v511 = vld [vmem:[%s1 + $0x5c] sm:$0xf]
        %v524 = vunpack.c.l.b16 %v500
        %v525 = vunpack.c.l.b16 %v501
        %v526 = vunpack.c.l.b16 %v502
        %v527 = vunpack.c.l.b16 %v503
        %v528 = vunpack.c.l.b16 %v504
        %v529 = vunpack.c.l.b16 %v505
        %v530 = vunpack.c.l.b16 %v506
        %v531 = vunpack.c.l.b16 %v507
        %v532 = vunpack.c.l.b16 %v508
        %v533 = vunpack.c.l.b16 %v509
        %v534 = vunpack.c.l.b16 %v510
        %v535 = vunpack.c.l.b16 %v511
        %v536 = vpack.c.b16 %v525, %v524
        %v537 = vpack.c.b16 %v527, %v526
        %v538 = vpack.c.b16 %v529, %v528
        %v539 = vpack.c.b16 %v531, %v530
        %v540 = vpack.c.b16 %v533, %v532
        %v541 = vpack.c.b16 %v535, %v534
        %vm548 = vcmask 785408
        %v549 = vsel %vm548, %v497, 0
        %v551 = vsel %vm548, %v499, 0
        %553 = vmatprep.subr.bf16.mxu0 0
        %554 = vmatpush1.bf16.msra.mxu0 0
        %555 = vmatprep.subr.bf16.mxu0 0
        %556 = vmatpush1.bf16.msra.mxu0 0
        %557 = vmatprep.subr.bf16.mxu0 0
        %558 = vmatpush1.bf16.msra.mxu0 %v541
        %559 = vmatprep.subr.bf16.mxu0 0
        %560 = vmatpush1.bf16.msra.mxu0 %v540
        %561 = vmatprep.subr.bf16.mxu0 0
        %562 = vmatpush1.bf16.msra.mxu0 %v539
        %563 = vmatprep.subr.bf16.mxu0 0
        %564 = vmatpush1.bf16.msra.mxu0 %v538
        %565 = vmatprep.subr.bf16.mxu0 0
        %566 = vmatpush1.bf16.msra.mxu0 %v537
        %567 = vmatprep.subr.bf16.mxu0 0
        %568 = vmatpush1.bf16.msra.mxu0 %v536
        %569 = vmatprep.subr.bf16.mxu0 0
        %570 = vmatpush2.bf16.msra.mxu0 0
        %571 = vmatprep.subr.bf16.mxu0 0
        %572 = vmatpush2.bf16.msra.mxu0 0
        %573 = vmatprep.subr.bf16.mxu0 0
        %574 = vmatpush2.bf16.msra.mxu0 0
        %575 = vmatprep.subr.bf16.mxu0 0
        %576 = vmatpush2.bf16.msra.mxu0 0
        %577 = vmatprep.subr.bf16.mxu0 0
        %578 = vmatpush2.bf16.msra.mxu0 0
        %579 = vmatprep.subr.bf16.mxu0 0
        %580 = vmatpush2.bf16.msra.mxu0 0
        %581 = vmatprep.subr.bf16.mxu0 0
        %582 = vmatpush2.bf16.msra.mxu0 0
        %583 = vmatprep.subr.bf16.mxu0 0
        %584 = vmatpush2.bf16.msra.mxu0 0
        %585 = vmatprep.mubr.bf16.mxu0 0
        %586 = vmatmul.mubr.bf16.gmra.mxu0 %v549
        %v587 = vpop.f32.mrf.mxu0
        %v588 = vadd.f32 0.0, %v587
        %v589 = vpop.f32.mrf.mxu0
        %v590 = vpop.f32.mrf.mxu0
        %v591 = vadd.f32 0.0, %v590
        %v592 = vpop.f32.mrf.mxu0
        %593 = vmatprep.mubr.bf16.mxu0 0
        %594 = vmatmul.mubr.bf16.gmra.mxu0 %v551
        %v595 = vpop.f32.mrf.mxu0
        %v596 = vadd.f32 0.0, %v595
        %v597 = vpop.f32.mrf.mxu0
        %v598 = vpop.f32.mrf.mxu0
        %v599 = vadd.f32 0.0, %v598
        %v600 = vpop.f32.mrf.mxu0
        %601 = vdwg.mxu0
        %v614 = vunpack.c.l.b16 %v352
        %v615 = vunpack.c.l.b16 %v353
        %v616 = vunpack.c.l.b16 %v354
        %v617 = vunpack.c.l.b16 %v355
        %v618 = vunpack.c.l.b16 %v356
        %v619 = vunpack.c.l.b16 %v357
        %v620 = vunpack.c.l.b16 %v358
        %v621 = vunpack.c.l.b16 %v359
        %v622 = vunpack.c.l.b16 %v360
        %v623 = vunpack.c.l.b16 %v361
        %v624 = vunpack.c.l.b16 %v362
        %v625 = vunpack.c.l.b16 %v363
        %v626 = vpack.c.b16 %v615, %v614
        %v627 = vpack.c.b16 %v617, %v616
        %v628 = vpack.c.b16 %v619, %v618
        %v629 = vpack.c.b16 %v621, %v620
        %v630 = vpack.c.b16 %v623, %v622
        %v631 = vpack.c.b16 %v625, %v624
        %v638 = vsel %vm548, %v349, 0
        %v640 = vsel %vm548, %v351, 0
        %642 = vmatprep.subr.bf16.mxu0 0
        %643 = vmatpush1.bf16.msra.mxu0 0
        %644 = vmatprep.subr.bf16.mxu0 0
        %645 = vmatpush1.bf16.msra.mxu0 0
        %646 = vmatprep.subr.bf16.mxu0 0
        %647 = vmatpush1.bf16.msra.mxu0 %v631
        %648 = vmatprep.subr.bf16.mxu0 0
        %649 = vmatpush1.bf16.msra.mxu0 %v630
        %650 = vmatprep.subr.bf16.mxu0 0
        %651 = vmatpush1.bf16.msra.mxu0 %v629
        %652 = vmatprep.subr.bf16.mxu0 0
        %653 = vmatpush1.bf16.msra.mxu0 %v628
        %654 = vmatprep.subr.bf16.mxu0 0
        %655 = vmatpush1.bf16.msra.mxu0 %v627
        %656 = vmatprep.subr.bf16.mxu0 0
        %657 = vmatpush1.bf16.msra.mxu0 %v626
        %658 = vmatprep.subr.bf16.mxu0 0
        %659 = vmatpush2.bf16.msra.mxu0 0
        %660 = vmatprep.subr.bf16.mxu0 0
        %661 = vmatpush2.bf16.msra.mxu0 0
        %662 = vmatprep.subr.bf16.mxu0 0
        %663 = vmatpush2.bf16.msra.mxu0 0
        %664 = vmatprep.subr.bf16.mxu0 0
        %665 = vmatpush2.bf16.msra.mxu0 0
        %666 = vmatprep.subr.bf16.mxu0 0
        %667 = vmatpush2.bf16.msra.mxu0 0
        %668 = vmatprep.subr.bf16.mxu0 0
        %669 = vmatpush2.bf16.msra.mxu0 0
        %670 = vmatprep.subr.bf16.mxu0 0
        %671 = vmatpush2.bf16.msra.mxu0 0
        %672 = vmatprep.subr.bf16.mxu0 0
        %673 = vmatpush2.bf16.msra.mxu0 0
        %674 = vmatprep.mubr.bf16.mxu0 0
        %675 = vmatmul.mubr.bf16.gmra.mxu0 %v638
        %v676 = vpop.f32.mrf.mxu0
        %v677 = vadd.f32 %v588, %v676
        %v678 = vpop.f32.mrf.mxu0
        %v679 = vpop.f32.mrf.mxu0
        %v680 = vadd.f32 %v591, %v679
        %v681 = vpop.f32.mrf.mxu0
        %682 = vmatprep.mubr.bf16.mxu0 0
        %683 = vmatmul.mubr.bf16.gmra.mxu0 %v640
        %v684 = vpop.f32.mrf.mxu0
        %v685 = vadd.f32 %v596, %v684
        %v686 = vpop.f32.mrf.mxu0
        %v687 = vpop.f32.mrf.mxu0
        %v688 = vadd.f32 %v599, %v687
        %v689 = vpop.f32.mrf.mxu0
        %690 = vdwg.mxu0
        %s691 = sadd.s32 %s208, 2
        %s692 = smul.u32 %s691, 2
        %s693 = smul.addr %s692, 4
        %s694 = scalar_lea.vmem %s196, %s693
        %v695 = vld [vmem:[%s694] sm:$0xf]
        %v696 = vld [vmem:[%s694 + $0x8] sm:$0xf]
        %v697 = vld [vmem:[%s694 + $0x10] sm:$0xf]
        %v698 = vld [vmem:[%s694 + $0x18] sm:$0xf]
        %v699 = vld [vmem:[%s694 + $0x4] sm:$0x1]
        %v700 = vld [vmem:[%s694 + $0xc] sm:$0x1]
        %v701 = vld [vmem:[%s694 + $0x14] sm:$0x1]
        %v702 = vld [vmem:[%s694 + $0x1c] sm:$0x1]
        %v704 = vshrl.u32 %v695, 16
        %v706 = vrot.slane %v704, 4
        %v707 = vshll.u32 %v695, 16
        %v709 = vrot.slane %v707, 5
        %v710 = vor.u32 %v706, %v709
        %v711 = vrot.slane %v710, 4
        %v713 = vshll.u32 %v699, 16
        %v715 = vrot.slane %v713, 5
        %v716 = vsel %vm222, %v711, %v715
        %v718 = vshrl.u32 %v696, 16
        %v720 = vrot.slane %v718, 4
        %v721 = vshll.u32 %v696, 16
        %v723 = vrot.slane %v721, 5
        %v724 = vor.u32 %v720, %v723
        %v725 = vrot.slane %v724, 4
        %v727 = vshll.u32 %v700, 16
        %v729 = vrot.slane %v727, 5
        %v730 = vsel %vm222, %v725, %v729
        %v732 = vshrl.u32 %v697, 16
        %v734 = vrot.slane %v732, 4
        %v735 = vshll.u32 %v697, 16
        %v737 = vrot.slane %v735, 5
        %v738 = vor.u32 %v734, %v737
        %v739 = vrot.slane %v738, 4
        %v741 = vshll.u32 %v701, 16
        %v743 = vrot.slane %v741, 5
        %v744 = vsel %vm222, %v739, %v743
        %v746 = vshrl.u32 %v698, 16
        %v748 = vrot.slane %v746, 4
        %v749 = vshll.u32 %v698, 16
        %v751 = vrot.slane %v749, 5
        %v752 = vor.u32 %v748, %v751
        %v753 = vrot.slane %v752, 4
        %v755 = vshll.u32 %v702, 16
        %v757 = vrot.slane %v755, 5
        %v758 = vsel %vm222, %v753, %v757
        %v759 = vld [vmem:[%s694] sm:$0xe]
        %v760 = vld [vmem:[%s694 + $0x8] sm:$0xe]
        %v761 = vld [vmem:[%s694 + $0x10] sm:$0xe]
        %v762 = vld [vmem:[%s694 + $0x18] sm:$0xe]
        %v771 = vrot.slane %v759, 5
        %v772 = vrot.slane %v771, 4
        %v773 = vrot.slane %v699, 5
        %v774 = vsel %vm293, %v772, %v773
        %v775 = vrot.slane %v760, 5
        %v776 = vrot.slane %v775, 4
        %v777 = vrot.slane %v700, 5
        %v778 = vsel %vm293, %v776, %v777
        %v779 = vrot.slane %v761, 5
        %v780 = vrot.slane %v779, 4
        %v781 = vrot.slane %v701, 5
        %v782 = vsel %vm293, %v780, %v781
        %v783 = vrot.slane %v762, 5
        %v784 = vrot.slane %v783, 4
        %v785 = vrot.slane %v702, 5
        %v786 = vsel %vm293, %v784, %v785
        %v791 = vunpack.c.l.b16 %v695
        %v792 = vunpack.c.l.b16 %v696
        %v793 = vunpack.c.l.b16 %v697
        %v794 = vunpack.c.l.b16 %v698
        %v795 = vpack.c.b16 %v792, %v791
        %v796 = vpack.c.b16 %v794, %v793
        %v797 = vunpack.c.l.b16 %v716
        %v798 = vunpack.c.l.b16 %v730
        %v799 = vunpack.c.l.b16 %v744
        %v800 = vunpack.c.l.b16 %v758
        %v801 = vpack.c.b16 %v798, %v797
        %v802 = vpack.c.b16 %v800, %v799
        %803 = vrot.lane.b32.xlu0 %v801, 32
        %v804 = vpop.permute.xlu0 %803
        %805 = vrot.lane.b32.xlu0 %v802, 32
        %v806 = vpop.permute.xlu0 %805
        %v807 = vunpack.c.l.b16 %v774
        %v808 = vunpack.c.l.b16 %v778
        %v809 = vunpack.c.l.b16 %v782
        %v810 = vunpack.c.l.b16 %v786
        %v811 = vpack.c.b16 %v808, %v807
        %v812 = vpack.c.b16 %v810, %v809
        %813 = vrot.lane.b32.xlu0 %v811, 64
        %v814 = vpop.permute.xlu0 %813
        %815 = vrot.lane.b32.xlu0 %v812, 64
        %v816 = vpop.permute.xlu0 %815
        %v819 = vsel %vm340, %v795, %v804
        %v822 = vsel %vm340, %v796, %v806
        %v824 = vsel %vm347, %v819, %v814
        %v826 = vsel %vm347, %v822, %v816
        %v827 = vld [vmem:[%s1 + $0x60] sm:$0xf]
        %v828 = vld [vmem:[%s1 + $0x64] sm:$0xf]
        %v829 = vld [vmem:[%s1 + $0x68] sm:$0xf]
        %v830 = vld [vmem:[%s1 + $0x6c] sm:$0xf]
        %v831 = vld [vmem:[%s1 + $0x70] sm:$0xf]
        %v832 = vld [vmem:[%s1 + $0x74] sm:$0xf]
        %v833 = vld [vmem:[%s1 + $0x78] sm:$0xf]
        %v834 = vld [vmem:[%s1 + $0x7c] sm:$0xf]
        %v835 = vld [vmem:[%s1 + $0x80] sm:$0xf]
        %v836 = vld [vmem:[%s1 + $0x84] sm:$0xf]
        %v837 = vld [vmem:[%s1 + $0x88] sm:$0xf]
        %v838 = vld [vmem:[%s1 + $0x8c] sm:$0xf]
        %v851 = vunpack.c.l.b16 %v827
        %v852 = vunpack.c.l.b16 %v828
        %v853 = vunpack.c.l.b16 %v829
        %v854 = vunpack.c.l.b16 %v830
        %v855 = vunpack.c.l.b16 %v831
        %v856 = vunpack.c.l.b16 %v832
        %v857 = vunpack.c.l.b16 %v833
        %v858 = vunpack.c.l.b16 %v834
        %v859 = vunpack.c.l.b16 %v835
        %v860 = vunpack.c.l.b16 %v836
        %v861 = vunpack.c.l.b16 %v837
        %v862 = vunpack.c.l.b16 %v838
        %v863 = vpack.c.b16 %v852, %v851
        %v864 = vpack.c.b16 %v854, %v853
        %v865 = vpack.c.b16 %v856, %v855
        %v866 = vpack.c.b16 %v858, %v857
        %v867 = vpack.c.b16 %v860, %v859
        %v868 = vpack.c.b16 %v862, %v861
        %v875 = vsel %vm548, %v824, 0
        %v877 = vsel %vm548, %v826, 0
        %879 = vmatprep.subr.bf16.mxu0 0
        %880 = vmatpush1.bf16.msra.mxu0 0
        %881 = vmatprep.subr.bf16.mxu0 0
        %882 = vmatpush1.bf16.msra.mxu0 0
        %883 = vmatprep.subr.bf16.mxu0 0
        %884 = vmatpush1.bf16.msra.mxu0 %v868
        %885 = vmatprep.subr.bf16.mxu0 0
        %886 = vmatpush1.bf16.msra.mxu0 %v867
        %887 = vmatprep.subr.bf16.mxu0 0
        %888 = vmatpush1.bf16.msra.mxu0 %v866
        %889 = vmatprep.subr.bf16.mxu0 0
        %890 = vmatpush1.bf16.msra.mxu0 %v865
        %891 = vmatprep.subr.bf16.mxu0 0
        %892 = vmatpush1.bf16.msra.mxu0 %v864
        %893 = vmatprep.subr.bf16.mxu0 0
        %894 = vmatpush1.bf16.msra.mxu0 %v863
        %895 = vmatprep.subr.bf16.mxu0 0
        %896 = vmatpush2.bf16.msra.mxu0 0
        %897 = vmatprep.subr.bf16.mxu0 0
        %898 = vmatpush2.bf16.msra.mxu0 0
        %899 = vmatprep.subr.bf16.mxu0 0
        %900 = vmatpush2.bf16.msra.mxu0 0
        %901 = vmatprep.subr.bf16.mxu0 0
        %902 = vmatpush2.bf16.msra.mxu0 0
        %903 = vmatprep.subr.bf16.mxu0 0
        %904 = vmatpush2.bf16.msra.mxu0 0
        %905 = vmatprep.subr.bf16.mxu0 0
        %906 = vmatpush2.bf16.msra.mxu0 0
        %907 = vmatprep.subr.bf16.mxu0 0
        %908 = vmatpush2.bf16.msra.mxu0 0
        %909 = vmatprep.subr.bf16.mxu0 0
        %910 = vmatpush2.bf16.msra.mxu0 0
        %911 = vmatprep.mubr.bf16.mxu0 0
        %912 = vmatmul.mubr.bf16.gmra.mxu0 %v875
        %v913 = vpop.f32.mrf.mxu0
        %v914 = vadd.f32 0.0, %v913
        %v915 = vpop.f32.mrf.mxu0
        %v916 = vpop.f32.mrf.mxu0
        %v917 = vadd.f32 0.0, %v916
        %v918 = vpop.f32.mrf.mxu0
        %919 = vmatprep.mubr.bf16.mxu0 0
        %920 = vmatmul.mubr.bf16.gmra.mxu0 %v877
        %v921 = vpop.f32.mrf.mxu0
        %v922 = vadd.f32 0.0, %v921
        %v923 = vpop.f32.mrf.mxu0
        %v924 = vpop.f32.mrf.mxu0
        %v925 = vadd.f32 0.0, %v924
        %v926 = vpop.f32.mrf.mxu0
        %927 = vdwg.mxu0
        %v928 = vadd.f32 %v677, %v914
        %v929 = vadd.f32 %v680, %v917
        %v930 = vadd.f32 %v685, %v922
        %v931 = vadd.f32 %v688, %v925
        %v932 = vld [vmem:[#allocation2] sm:$0x1]
        %v934 = vlaneseq
        %v935 = vshrl.u32 %v934, 7
        %v936 = vsub.s32 0, %v935
        %v937 = vrot.slane %v932, %v936
        %v939 = vadd.f32 %v928, %v937
        %v940 = vadd.f32 %v929, %v937
        %v941 = vadd.f32 %v930, %v937
        %v942 = vadd.f32 %v931, %v937
        %v943 = vmax.f32 %v939, 0.0
        %v944 = vmax.f32 %v940, 0.0
        %v945 = vmax.f32 %v941, 0.0
        %v946 = vmax.f32 %v942, 0.0
        %v951 = vcombine.high %v943, %v943
        %v953 = vunpack.c.l.s4 1983009808
        %v954 = vunpack.c.0.s8 %v953
        %v955 = vlaneseq
        %v956 = vshrl.u32 %v955, 7
        %v957 = vsub.s32 %v954, %v956
        %v958 = vrot.slane %v943, %v957
        %v960 = vunpack.c.l.s4 1983009808
        %v961 = vunpack.c.0.s8 %v960
        %v962 = vlaneseq
        %v963 = vshrl.u32 %v962, 7
        %v964 = vsub.s32 %v961, %v963
        %v965 = vrot.slane %v951, %v964
        %v966 = vcombine.high %v958, %v958
        %v967 = vcombine.high %v965, %v965
        %v968 = vcombine.high %v944, %v944
        %v970 = vunpack.c.l.s4 1983009808
        %v971 = vunpack.c.0.s8 %v970
        %v972 = vlaneseq
        %v973 = vshrl.u32 %v972, 7
        %v974 = vsub.s32 %v971, %v973
        %v975 = vrot.slane %v944, %v974
        %v977 = vunpack.c.l.s4 1983009808
        %v978 = vunpack.c.0.s8 %v977
        %v979 = vlaneseq
        %v980 = vshrl.u32 %v979, 7
        %v981 = vsub.s32 %v978, %v980
        %v982 = vrot.slane %v968, %v981
        %v983 = vcombine.high %v975, %v975
        %v984 = vcombine.high %v982, %v982
        %v985 = vcombine.high %v945, %v945
        %v987 = vunpack.c.l.s4 1983009808
        %v988 = vunpack.c.0.s8 %v987
        %v989 = vlaneseq
        %v990 = vshrl.u32 %v989, 7
        %v991 = vsub.s32 %v988, %v990
        %v992 = vrot.slane %v945, %v991
        %v994 = vunpack.c.l.s4 1983009808
        %v995 = vunpack.c.0.s8 %v994
        %v996 = vlaneseq
        %v997 = vshrl.u32 %v996, 7
        %v998 = vsub.s32 %v995, %v997
        %v999 = vrot.slane %v985, %v998
        %v1000 = vcombine.high %v992, %v992
        %v1001 = vcombine.high %v999, %v999
        %v1002 = vcombine.high %v946, %v946
        %v1004 = vunpack.c.l.s4 1983009808
        %v1005 = vunpack.c.0.s8 %v1004
        %v1006 = vlaneseq
        %v1007 = vshrl.u32 %v1006, 7
        %v1008 = vsub.s32 %v1005, %v1007
        %v1009 = vrot.slane %v946, %v1008
        %v1011 = vunpack.c.l.s4 1983009808
        %v1012 = vunpack.c.0.s8 %v1011
        %v1013 = vlaneseq
        %v1014 = vshrl.u32 %v1013, 7
        %v1015 = vsub.s32 %v1012, %v1014
        %v1016 = vrot.slane %v1002, %v1015
        %v1017 = vcombine.high %v1009, %v1009
        %v1018 = vcombine.high %v1016, %v1016
        %v1035 = vmax.f32 %v958, %v975
        %v1036 = vmax.f32 %v966, %v983
        %v1037 = vmax.f32 %v965, %v982
        %v1038 = vmax.f32 %v967, %v984
        %v1039 = vmax.f32 %v992, %v1009
        %v1040 = vmax.f32 %v1000, %v1017
        %v1041 = vmax.f32 %v999, %v1016
        %v1042 = vmax.f32 %v1001, %v1018
        %v1051 = vrot.slane %v1035, 7
        %v1052 = vrot.slane %v1051, 2
        %v1053 = vrot.slane %v1036, 7
        %v1054 = vrot.slane %v1053, 2
        %v1055 = vrot.slane %v1037, 7
        %v1056 = vrot.slane %v1055, 2
        %v1057 = vrot.slane %v1038, 7
        %v1058 = vrot.slane %v1057, 2
        %v1059 = vrot.slane %v1039, 7
        %v1060 = vrot.slane %v1059, 2
        %v1061 = vrot.slane %v1040, 7
        %v1062 = vrot.slane %v1061, 2
        %v1063 = vrot.slane %v1041, 7
        %v1064 = vrot.slane %v1063, 2
        %v1065 = vrot.slane %v1042, 7
        %v1066 = vrot.slane %v1065, 2
        %v1075 = vmax.f32 %v1035, %v1052
        %v1076 = vmax.f32 %v1036, %v1054
        %v1077 = vmax.f32 %v1037, %v1056
        %v1078 = vmax.f32 %v1038, %v1058
        %v1079 = vmax.f32 %v1039, %v1060
        %v1080 = vmax.f32 %v1040, %v1062
        %v1081 = vmax.f32 %v1041, %v1064
        %v1082 = vmax.f32 %v1042, %v1066
        %v1083 = vpack.c.bf16 %v1075, %v1075
        %v1084 = vpack.c.bf16 %v1076, %v1076
        %v1085 = vpack.c.bf16 %v1077, %v1077
        %v1086 = vpack.c.bf16 %v1078, %v1078
        %v1087 = vpack.c.bf16 %v1079, %v1079
        %v1088 = vpack.c.bf16 %v1080, %v1080
        %v1089 = vpack.c.bf16 %v1081, %v1081
        %v1090 = vpack.c.bf16 %v1082, %v1082
        %v1100 = vunpack.c.l.s4 1983009808
        %v1101 = vunpack.c.0.s8 %v1100
        %v1102 = vlaneseq
        %v1103 = vshrl.u32 %v1102, 7
        %v1104 = vsub.s32 %v1101, %v1103
        %v1105 = vrot.slane %v1083, %v1104
        %v1107 = vunpack.c.l.s4 1983009808
        %v1108 = vunpack.c.0.s8 %v1107
        %v1109 = vlaneseq
        %v1110 = vshrl.u32 %v1109, 7
        %v1111 = vsub.s32 %v1108, %v1110
        %v1112 = vrot.slane %v1084, %v1111
        %v1114 = vunpack.c.l.s4 1983009808
        %v1115 = vunpack.c.0.s8 %v1114
        %v1116 = vlaneseq
        %v1117 = vshrl.u32 %v1116, 7
        %v1118 = vsub.s32 %v1115, %v1117
        %v1119 = vrot.slane %v1085, %v1118
        %v1121 = vunpack.c.l.s4 1983009808
        %v1122 = vunpack.c.0.s8 %v1121
        %v1123 = vlaneseq
        %v1124 = vshrl.u32 %v1123, 7
        %v1125 = vsub.s32 %v1122, %v1124
        %v1126 = vrot.slane %v1086, %v1125
        %v1128 = vunpack.c.l.s4 1983009808
        %v1129 = vunpack.c.0.s8 %v1128
        %v1130 = vlaneseq
        %v1131 = vshrl.u32 %v1130, 7
        %v1132 = vsub.s32 %v1129, %v1131
        %v1133 = vrot.slane %v1087, %v1132
        %v1135 = vunpack.c.l.s4 1983009808
        %v1136 = vunpack.c.0.s8 %v1135
        %v1137 = vlaneseq
        %v1138 = vshrl.u32 %v1137, 7
        %v1139 = vsub.s32 %v1136, %v1138
        %v1140 = vrot.slane %v1088, %v1139
        %v1142 = vunpack.c.l.s4 1983009808
        %v1143 = vunpack.c.0.s8 %v1142
        %v1144 = vlaneseq
        %v1145 = vshrl.u32 %v1144, 7
        %v1146 = vsub.s32 %v1143, %v1145
        %v1147 = vrot.slane %v1089, %v1146
        %v1149 = vunpack.c.l.s4 1983009808
        %v1150 = vunpack.c.0.s8 %v1149
        %v1151 = vlaneseq
        %v1152 = vshrl.u32 %v1151, 7
        %v1153 = vsub.s32 %v1150, %v1152
        %v1154 = vrot.slane %v1090, %v1153
        %v1156 = vunpack.c.l.s4 1983009808
        %v1157 = vunpack.c.0.s8 %v1156
        %v1158 = vlaneseq
        %v1159 = vshrl.u32 %v1158, 7
        %v1160 = vsub.s32 %v1157, %v1159
        %v1161 = vrot.slane %v1105, %v1160
        %v1163 = vunpack.c.l.s4 1983009808
        %v1164 = vunpack.c.0.s8 %v1163
        %v1165 = vlaneseq
        %v1166 = vshrl.u32 %v1165, 7
        %v1167 = vsub.s32 %v1164, %v1166
        %v1168 = vrot.slane %v1112, %v1167
        %v1170 = vunpack.c.l.s4 1983009808
        %v1171 = vunpack.c.0.s8 %v1170
        %v1172 = vlaneseq
        %v1173 = vshrl.u32 %v1172, 7
        %v1174 = vsub.s32 %v1171, %v1173
        %v1175 = vrot.slane %v1119, %v1174
        %v1177 = vunpack.c.l.s4 1983009808
        %v1178 = vunpack.c.0.s8 %v1177
        %v1179 = vlaneseq
        %v1180 = vshrl.u32 %v1179, 7
        %v1181 = vsub.s32 %v1178, %v1180
        %v1182 = vrot.slane %v1126, %v1181
        %v1184 = vunpack.c.l.s4 1983009808
        %v1185 = vunpack.c.0.s8 %v1184
        %v1186 = vlaneseq
        %v1187 = vshrl.u32 %v1186, 7
        %v1188 = vsub.s32 %v1185, %v1187
        %v1189 = vrot.slane %v1133, %v1188
        %v1191 = vunpack.c.l.s4 1983009808
        %v1192 = vunpack.c.0.s8 %v1191
        %v1193 = vlaneseq
        %v1194 = vshrl.u32 %v1193, 7
        %v1195 = vsub.s32 %v1192, %v1194
        %v1196 = vrot.slane %v1140, %v1195
        %v1198 = vunpack.c.l.s4 1983009808
        %v1199 = vunpack.c.0.s8 %v1198
        %v1200 = vlaneseq
        %v1201 = vshrl.u32 %v1200, 7
        %v1202 = vsub.s32 %v1199, %v1201
        %v1203 = vrot.slane %v1147, %v1202
        %v1205 = vunpack.c.l.s4 1983009808
        %v1206 = vunpack.c.0.s8 %v1205
        %v1207 = vlaneseq
        %v1208 = vshrl.u32 %v1207, 7
        %v1209 = vsub.s32 %v1206, %v1208
        %v1210 = vrot.slane %v1154, %v1209
        %v1211 = vunpack.c.l.b16 %v1161
        %v1212 = vunpack.c.l.b16 %v1168
        %v1213 = vunpack.c.l.b16 %v1175
        %v1214 = vunpack.c.l.b16 %v1182
        %v1215 = vunpack.c.l.b16 %v1189
        %v1216 = vunpack.c.l.b16 %v1196
        %v1217 = vunpack.c.l.b16 %v1203
        %v1218 = vunpack.c.l.b16 %v1210
        %v1219 = vrot.slane %v1212, 7
        %vm1220 = vcmask 1041409
        %v1221 = vsel %vm1220, %v1219, %v1211
        %v1222 = vrot.slane %v1213, 6
        %vm1223 = vcmask 1042434
        %v1224 = vsel %vm1223, %v1222, %v1221
        %v1225 = vrot.slane %v1214, 5
        %vm1226 = vcmask 1043459
        %v1227 = vsel %vm1226, %v1225, %v1224
        %v1228 = vrot.slane %v1216, 7
        %v1229 = vsel %vm1220, %v1228, %v1215
        %v1230 = vrot.slane %v1217, 6
        %v1231 = vsel %vm1223, %v1230, %v1229
        %v1232 = vrot.slane %v1218, 5
        %v1233 = vsel %vm1226, %v1232, %v1231
        %v1234 = vpack.c.b16 %v1227, %v1227
        %v1235 = vpack.c.b16 %v1233, %v1233
        %v1237 = vunpack.c.l.s4 1983009808
        %v1238 = vunpack.c.0.s8 %v1237
        %v1239 = vlaneseq
        %v1240 = vshrl.u32 %v1239, 7
        %v1241 = vsub.s32 %v1238, %v1240
        %v1242 = vrot.slane %v1234, %v1241
        %v1244 = vunpack.c.l.s4 1983009808
        %v1245 = vunpack.c.0.s8 %v1244
        %v1246 = vlaneseq
        %v1247 = vshrl.u32 %v1246, 7
        %v1248 = vsub.s32 %v1245, %v1247
        %v1249 = vrot.slane %v1235, %v1248
        %vm1252 = vcmask 517120
        %1253 = vst.msk [vmem:[%s205] sm:$0x3] %vm1252, %v1242
        %1254 = vst.msk [vmem:[%s205 + $0x2] sm:$0x3] %vm1252, %v1249
        %s1255 = smul.u32 2, %s20
        %p1256 = scmp.lt.s32.totalorder %s19, 1
        %s1257 = scalar_select %p1256, %s19, 1
        %p1258 = scmp.lt.s32.totalorder %s1255, 3
        %s1259 = scalar_select %p1258, %s1255, 3
        %s1260 = smul.addr %s1257, 4
        %s1261 = sadd.s32 %s1259, %s1260
        %s1262 = smul.addr %s1261, 2
        %s1263 = scalar_lea.vmem %s3, %s1262
        // Predicated region
        $region37: #{cnn_segmentation_forward.5} parent=31 // pred_check
          %p1264 = pneg %p115
        $region38: #{cnn_segmentation_forward.5} parent=31 // pred_check_branch
          %1266 = sbr.rel (%p1264) target = $region40
        $region39: #{cnn_segmentation_forward.5} parent=31 // pred_region
          %s1267 = smul.u32 2, %s20
        $region40: #{cnn_segmentation_forward.5} parent=31 // pred_fallthru
          _
      $region32: #{cnn_segmentation_forward.5} parent=5 // pred_fallthru
        _
      %p1268 = scmp.le.s32.totalorder 2, %s10
      // Predicated region
      $region41: #{cnn_segmentation_forward.5} parent=5 // pred_check
        %p1269 = pneg %p1268
      $region42: #{cnn_segmentation_forward.5} parent=5 // pred_check_branch
        %1271 = sbr.rel (%p1269) target = $region44
      $region43: #{cnn_segmentation_forward.5} parent=5 // pred_region
        %s1272 = ssub.s32 %s10, 2
        // Predicated region
        $region45: #{cnn_segmentation_forward.5} parent=43 // pred_check
          %p1273 = pneg %p121
        $region46: #{cnn_segmentation_forward.5} parent=43 // pred_check_branch
          %1275 = sbr.rel (%p1273) target = $region48
        $region47: #{cnn_segmentation_forward.5} parent=43 // pred_region
          %s1276 = smul.u32 2, %s22
          %p1277 = scmp.lt.s32.totalorder %s21, 1
          %s1278 = scalar_select %p1277, %s21, 1
          %p1279 = scmp.lt.s32.totalorder %s1276, 3
          %s1280 = scalar_select %p1279, %s1276, 3
          %s1281 = smul.addr %s1278, 4
          %s1282 = sadd.s32 %s1280, %s1281
          %s1283 = smul.addr %s1282, 2
          %s1284 = scalar_lea.vmem %s3, %s1283
        $region48: #{cnn_segmentation_forward.5} parent=43 // pred_fallthru
          _
      $region44: #{cnn_segmentation_forward.5} parent=5 // pred_fallthru
        _
    $region6: #{cnn_segmentation_forward.5} parent=1 // loop_footer
      %s14 = sadd.s32 1, %s10
    $region7: #{cnn_segmentation_forward.5} parent=1 // loop_footer_branch
      %9 = sbr.rel target = $region3
    $region8: #{cnn_segmentation_forward.5} parent=1 // loop_exit
      _
    %1285 = vsyncpa [#allocation3], 1
    %s1286 = scalar_lea.sflag [#allocation3], 1
    %1287 = vsyncpa %s1286, 1

// kernel: cnn_segmentation_forward.6
$region0: #{cnn_segmentation_forward.6}
  #allocation0 [shape = 'u32[]', space=smem, size = 0x4, offset = 0x4, fixed_abs, tag = 'smem constant byte address 0x4 - core index']
  #allocation1 [shape = 'u32[144,128]{1,0:T(1,128)}', space=vmem, size = 0x12000, scoped, tag = 'internal scratch']
  %s0 = inlined_call_operand.vmem [shape: bf16[2,6,6,64], index: 0, kind: input, shape index: {}]
  %s1 = inlined_call_operand.vmem [shape: bf16[576,128], index: 1, kind: input, shape index: {}]
  %s2 = inlined_call_operand.hbm [shape: f32[1,128], index: 2, kind: input, shape index: {}]
  %s3 = inlined_call_operand.vmem [shape: bf16[2,2,2,128], index: 3, kind: output, shape index: {}]
  %s4 = sld [smem:[#allocation0]]
  $region49: #{cnn_segmentation_forward.6} parent=0
    _
  %s6 = ssub.s32 1, %s4
  %s7 = scalar_select 0, %s6, %s4
  $region1: #{cnn_segmentation_forward.6} parent=0
    #allocation2 [shape = 'u8[512]{0}', space=vmem, size = 0x400, scoped, tag = 'input window, operand 2, single buffered']
    #allocation3 [shape = 's32[2]{0}', space=sflag, size = 0x8, scoped, tag = 'scoped memory for cnn_segmentation_forward.6']
    %8 = vsyncpa [#allocation3], 0
    loop: start=0, step=1, limit=6
    $region2: #{cnn_segmentation_forward.6} parent=1 // loop_pre_header
      _
    $region3: #{cnn_segmentation_forward.6} parent=1 // loop_header
      %s10 = sphi 0, %s14
      %p11 = scmp.ge.s32.totalorder %s10, 6
      %s17 = sphi 0, %s29
      %s18 = sphi 0, %s25
      %s19 = sphi 0, %s17
      %s20 = sphi 0, %s18
      %s21 = sphi 0, %s19
      %s22 = sphi 0, %s20
      %s32 = sphi 0, %s34
      %s35 = sphi 0, %s32
      %s36 = sphi 0, %s35
      %s52 = sphi 0, %s36
      %s56 = sphi 0, %s56
      %s58 = sphi 0, %s56
      %s59 = sphi 0, %s58
      %s73 = sphi 0, %s59
      %s77 = sphi 0, %s77
      %s79 = sphi 0, %s77
      %s80 = sphi 0, %s79
      %s94 = sphi 0, %s80
      %s102 = sphi 0, %s104
      %s105 = sphi 0, %s102
      %s106 = sphi 0, %s105
      %s122 = sphi 0, %s106
    $region4: #{cnn_segmentation_forward.6} parent=1 // loop_header_branch
      %13 = sbr.rel (%p11) target = $region8
    $region5: #{cnn_segmentation_forward.6} parent=1 // loop_body
      %s15 = ssub.s32 %s10, 1
      %s16 = ssub.s32 %s10, 2
      %s23 = sadd.s32 1, %s18
      %p24 = scmp.ge.s32.totalorder %s23, 2
      %s25 = scalar_select %p24, 0, %s23
      %s26 = sadd.s32 1, %s17
      %s27 = scalar_select %p24, %s26, %s17
      %p28 = scmp.ge.s32.totalorder %s27, 2
      %s29 = scalar_select %p28, 0, %s27
      %s30 = ssub.s32 %s17, %s29
      %p31 = scmp.eq.s32.totalorder %s30, 0
      %s33 = sadd.s32 %s32, 1
      %s34 = scalar_select %p31, %s32, %s33
      %p37 = pneg %p31
      %p38 = scmp.eq.s32.totalorder %s10, 3
      %p39 = por %p37, %p38
      %p40 = scmp.ne.s32.totalorder %s32, %s35
      %p41 = scmp.eq.s32.totalorder %s10, 0
      %p42 = por %p40, %p41
      %p43 = scmp.ne.s32.totalorder %s32, %s35
      %p44 = scmp.eq.s32.totalorder %s15, 3
      %p45 = por %p43, %p44
      %p46 = scmp.ne.s32.totalorder %s35, %s36
      %p47 = scmp.eq.s32.totalorder %s15, 0
      %p48 = por %p46, %p47
      %p49 = scmp.ne.s32.totalorder %s35, %s36
      %p50 = scmp.eq.s32.totalorder %s16, 3
      %p51 = por %p49, %p50
      %p53 = scmp.ne.s32.totalorder %s36, %s52
      %p54 = scmp.eq.s32.totalorder %s16, 0
      %p55 = por %p53, %p54
      %s57 = sadd.s32 %s56, 1
      %p60 = scmp.eq.s32.totalorder %s10, 3
      %p61 = scmp.ne.s32.totalorder %s56, %s58
      %p62 = scmp.eq.s32.totalorder %s10, 0
      %p63 = por %p61, %p62
      %p64 = scmp.ne.s32.totalorder %s56, %s58
      %p65 = scmp.eq.s32.totalorder %s15, 3
      %p66 = por %p64, %p65
      %p67 = scmp.ne.s32.totalorder %s58, %s59
      %p68 = scmp.eq.s32.totalorder %s15, 0
      %p69 = por %p67, %p68
      %p70 = scmp.ne.s32.totalorder %s58, %s59
      %p71 = scmp.eq.s32.totalorder %s16, 3
      %p72 = por %p70, %p71
      %p74 = scmp.ne.s32.totalorder %s59, %s73
      %p75 = scmp.eq.s32.totalorder %s16, 0
      %p76 = por %p74, %p75
      %s78 = sadd.s32 %s77, 1
      %p81 = scmp.eq.s32.totalorder %s10, 3
      %p82 = scmp.ne.s32.totalorder %s77, %s79
      %p83 = scmp.eq.s32.totalorder %s10, 0
      %p84 = por %p82, %p83
      %p85 = scmp.ne.s32.totalorder %s77, %s79
      %p86 = scmp.eq.s32.totalorder %s15, 3
      %p87 = por %p85, %p86
      %p88 = scmp.ne.s32.totalorder %s79, %s80
      %p89 = scmp.eq.s32.totalorder %s15, 0
      %p90 = por %p88, %p89
      %p91 = scmp.ne.s32.totalorder %s79, %s80
      %p92 = scmp.eq.s32.totalorder %s16, 3
      %p93 = por %p91, %p92
      %p95 = scmp.ne.s32.totalorder %s80, %s94
      %p96 = scmp.eq.s32.totalorder %s16, 0
      %p97 = por %p95, %p96
      %s98 = ssub.s32 %s17, %s29
      %s99 = ssub.s32 %s18, %s25
      %s100 = sor.u32 %s98, %s99
      %p101 = scmp.eq.s32.totalorder %s100, 0
      %s103 = sadd.s32 %s102, 1
      %s104 = scalar_select %p101, %s102, %s103
      %p107 = pneg %p101
      %p108 = scmp.eq.s32.totalorder %s10, 3
      %p109 = por %p107, %p108
      %p110 = scmp.ne.s32.totalorder %s102, %s105
      %p111 = scmp.eq.s32.totalorder %s10, 0
      %p112 = por %p110, %p111
      %p113 = scmp.ne.s32.totalorder %s102, %s105
      %p114 = scmp.eq.s32.totalorder %s15, 3
      %p115 = por %p113, %p114
      %p116 = scmp.ne.s32.totalorder %s105, %s106
      %p117 = scmp.eq.s32.totalorder %s15, 0
      %p118 = por %p116, %p117
      %p119 = scmp.ne.s32.totalorder %s105, %s106
      %p120 = scmp.eq.s32.totalorder %s16, 3
      %p121 = por %p119, %p120
      %p123 = scmp.ne.s32.totalorder %s106, %s122
      %p124 = scmp.eq.s32.totalorder %s16, 0
      %p125 = por %p123, %p124
      %p126 = scmp.le.s32.totalorder 1, %s10
      %p127 = scmp.lt.s32.totalorder %s10, 5
      %p128 = pnand %p126, %p127
      %p129 = pneg %p128
      // Predicated region
      $region9: #{cnn_segmentation_forward.6} parent=5 // pred_check
        _
      $region10: #{cnn_segmentation_forward.6} parent=5 // pred_check_branch
        %131 = sbr.rel (%p128) target = $region12
      $region11: #{cnn_segmentation_forward.6} parent=5 // pred_region
        %s132 = ssub.s32 %s10, 1
        // Predicated region
        $region13: #{cnn_segmentation_forward.6} parent=11 // pred_check
          %p133 = pneg %p69
        $region14: #{cnn_segmentation_forward.6} parent=11 // pred_check_branch
          %135 = sbr.rel (%p133) target = $region16
        $region15: #{cnn_segmentation_forward.6} parent=11 // pred_region
          _
        $region16: #{cnn_segmentation_forward.6} parent=11 // pred_fallthru
          _
        // Predicated region
        $region17: #{cnn_segmentation_forward.6} parent=11 // pred_check
          %p136 = pneg %p90
        $region18: #{cnn_segmentation_forward.6} parent=11 // pred_check_branch
          %138 = sbr.rel (%p136) target = $region20
        $region19: #{cnn_segmentation_forward.6} parent=11 // pred_region
          %s140 = ssub.s32 16, 16
          %141 = vsyncadd [#allocation3], %s140
          %s143 = sshll.u32 [#allocation2], 4
          %s144 = int_to_ptr.vmem [resolvable:$true] %s143
          %146 = dma.hbm_to_vmem [thread:$0]  %s2, 16, %s144, [#allocation3]
        $region20: #{cnn_segmentation_forward.6} parent=11 // pred_fallthru
          _
      $region12: #{cnn_segmentation_forward.6} parent=5 // pred_fallthru
        _
      %p147 = scmp.lt.s32.totalorder %s10, 4
      // Predicated region
      $region21: #{cnn_segmentation_forward.6} parent=5 // pred_check
        %p148 = pneg %p147
      $region22: #{cnn_segmentation_forward.6} parent=5 // pred_check_branch
        %150 = sbr.rel (%p148) target = $region24
      $region23: #{cnn_segmentation_forward.6} parent=5 // pred_region
        // Predicated region
        $region25: #{cnn_segmentation_forward.6} parent=23 // pred_check
          %p151 = pneg %p42
        $region26: #{cnn_segmentation_forward.6} parent=23 // pred_check_branch
          %153 = sbr.rel (%p151) target = $region28
        $region27: #{cnn_segmentation_forward.6} parent=23 // pred_region
          %p154 = scmp.lt.s32.totalorder %s17, 1
          %s155 = scalar_select %p154, %s17, 1
          %s156 = smul.addr %s155, 6
          %s157 = smul.addr %s156, 4
          %s158 = scalar_lea.vmem %s0, %s157
        $region28: #{cnn_segmentation_forward.6} parent=23 // pred_fallthru
          _
      $region24: #{cnn_segmentation_forward.6} parent=5 // pred_fallthru
        _
      %p159 = scmp.le.s32.totalorder 1, %s10
      %p160 = scmp.lt.s32.totalorder %s10, 5
      %p161 = pnand %p159, %p160
      %p162 = pneg %p161
      // Predicated region
      $region29: #{cnn_segmentation_forward.6} parent=5 // pred_check
        _
      $region30: #{cnn_segmentation_forward.6} parent=5 // pred_check_branch
        %164 = sbr.rel (%p161) target = $region32
      $region31: #{cnn_segmentation_forward.6} parent=5 // pred_region
        %s165 = ssub.s32 %s10, 1
        // Predicated region
        $region33: #{cnn_segmentation_forward.6} parent=31 // pred_check
          %p166 = pneg %p90
        $region34: #{cnn_segmentation_forward.6} parent=31 // pred_check_branch
          %168 = sbr.rel (%p166) target = $region36
        $region35: #{cnn_segmentation_forward.6} parent=31 // pred_region
          %169 = dma.done [#allocation3], 16
        $region36: #{cnn_segmentation_forward.6} parent=31 // pred_fallthru
          _
        %p170 = scmp.lt.s32.totalorder %s19, 1
        %s171 = scalar_select %p170, %s19, 1
        %s172 = smul.addr %s171, 6
        %s173 = smul.addr %s172, 4
        %s174 = scalar_lea.vmem %s0, %s173
        %p175 = pneg %p48
        %p176 = pneg %p45
        %p177 = pneg %p69
        %p178 = pneg %p66
        %p179 = pneg %p90
        %p180 = pneg %p87
        %p181 = pneg %p118
        %p182 = pneg %p115
        %p183 = scmp.lt.s32.totalorder %s19, 1
        %s184 = scalar_select %p183, %s19, 1
        %p185 = scmp.lt.s32.totalorder %s20, 1
        %s186 = scalar_select %p185, %s20, 1
        %s187 = smul.addr %s184, 2
        %s188 = sadd.s32 %s186, %s187
        %s189 = scalar_lea.vmem %s3, %s188
        %p190 = scmp.lt.s32.totalorder %s19, 1
        %s191 = scalar_select %p190, %s19, 1
        %s192 = smul.addr %s191, 6
        %s193 = smul.addr %s192, 4
        %s194 = scalar_lea.vmem %s0, %s193
        %p195 = scmp.lt.s32.totalorder %s19, 1
        %s196 = scalar_select %p195, %s19, 1
        %p197 = scmp.lt.s32.totalorder %s20, 1
        %s198 = scalar_select %p197, %s20, 1
        %s199 = smul.addr %s196, 2
        %s200 = sadd.s32 %s198, %s199
        %s201 = scalar_lea.vmem %s3, %s200
        %s203 = smul.u32 %s20, 2
        %s204 = smul.addr %s203, 4
        %s205 = scalar_lea.vmem %s194, %s204
        %v206 = vld [vmem:[%s205] sm:$0x3]
        %v207 = vld [vmem:[%s205 + $0x4] sm:$0x3]
        %v208 = vld [vmem:[%s205] sm:$0x7]
        %v209 = vld [vmem:[%s205 + $0x4] sm:$0x7]
        %v213 = vunpack.c.l.s4 1983009808
        %v214 = vunpack.c.0.s8 %v213
        %v215 = vlaneseq
        %v216 = vshrl.u32 %v215, 7
        %v217 = vsub.s32 %v214, %v216
        %v218 = vrot.slane %v208, %v217
        %v219 = vcombine.high %v218, %v218
        %v221 = vunpack.c.l.s4 1983009808
        %v222 = vunpack.c.0.s8 %v221
        %v223 = vlaneseq
        %v224 = vshrl.u32 %v223, 7
        %v225 = vsub.s32 %v222, %v224
        %v226 = vrot.slane %v209, %v225
        %v227 = vcombine.high %v226, %v226
        %vm228 = vsmask.f32 1280
        %vm229 = vsmask.f32 3336
        %vm230 = vmor %vm228, %vm229
        %vm231 = vsmask.f32 5392
        %vm232 = vmor %vm230, %vm231
        %vm233 = vsmask.f32 7448
        %vm234 = vmor %vm232, %vm233
        %v236 = vshrl.u32 %v218, 16
        %v238 = vrot.slane %v236, 6
        %v239 = vshll.u32 %v218, 16
        %v241 = vrot.slane %v239, 7
        %v242 = vor.u32 %v238, %v241
        %v243 = vrot.slane %v242, 2
        %v245 = vshll.u32 %v219, 16
        %v247 = vrot.slane %v245, 7
        %v248 = vsel %vm234, %v243, %v247
        %v250 = vshrl.u32 %v226, 16
        %v252 = vrot.slane %v250, 6
        %v253 = vshll.u32 %v226, 16
        %v255 = vrot.slane %v253, 7
        %v256 = vor.u32 %v252, %v255
        %v257 = vrot.slane %v256, 2
        %v259 = vshll.u32 %v227, 16
        %v261 = vrot.slane %v259, 7
        %v262 = vsel %vm234, %v257, %v261
        %v263 = vld [vmem:[%s205] sm:$0x6]
        %v264 = vld [vmem:[%s205 + $0x4] sm:$0x6]
        %v268 = vunpack.c.l.s4 1983009808
        %v269 = vunpack.c.0.s8 %v268
        %v270 = vlaneseq
        %v271 = vshrl.u32 %v270, 7
        %v272 = vsub.s32 %v269, %v271
        %v273 = vrot.slane %v263, %v272
        %v274 = vcombine.high %v273, %v273
        %v276 = vunpack.c.l.s4 1983009808
        %v277 = vunpack.c.0.s8 %v276
        %v278 = vlaneseq
        %v279 = vshrl.u32 %v278, 7
        %v280 = vsub.s32 %v277, %v279
        %v281 = vrot.slane %v264, %v280
        %v282 = vcombine.high %v281, %v281
        %vm283 = vcmask 1040384
        %vm284 = vcmask 1042434
        %vm285 = vmor %vm283, %vm284
        %vm286 = vcmask 1044484
        %vm287 = vmor %vm285, %vm286
        %vm288 = vcmask 1046534
        %vm289 = vmor %vm287, %vm288
        %v290 = vrot.slane %v273, 7
        %v291 = vrot.slane %v290, 2
        %v292 = vrot.slane %v274, 7
        %v293 = vsel %vm289, %v291, %v292
        %v294 = vrot.slane %v281, 7
        %v295 = vrot.slane %v294, 2
        %v296 = vrot.slane %v282, 7
        %v297 = vsel %vm289, %v295, %v296
        %v300 = vcombine.low %v206, %v207
        %v302 = vunpack.c.l.s4 1983009808
        %v303 = vunpack.c.0.s8 %v302
        %v304 = vlaneseq
        %v305 = vshrl.u32 %v304, 7
        %v306 = vsub.s32 %v303, %v305
        %v307 = vrot.slane %v300, %v306
        %v308 = vcombine.low %v248, %v262
        %v310 = vunpack.c.l.s4 1983009808
        %v311 = vunpack.c.0.s8 %v310
        %v312 = vlaneseq
        %v313 = vshrl.u32 %v312, 7
        %v314 = vsub.s32 %v311, %v313
        %v315 = vrot.slane %v308, %v314
        %316 = vrot.lane.b32.xlu0 %v315, 64
        %v317 = vpop.permute.xlu0 %316
        %v318 = vcombine.low %v293, %v297
        %v320 = vunpack.c.l.s4 1983009808
        %v321 = vunpack.c.0.s8 %v320
        %v322 = vlaneseq
        %v323 = vshrl.u32 %v322, 7
        %v324 = vsub.s32 %v321, %v323
        %v325 = vrot.slane %v318, %v324
        %vm326 = vcmask 523264
        %v329 = vsel %vm326, %v307, %v317
        %v331 = vld [vmem:[%s1] sm:$0xf]
        %v332 = vld [vmem:[%s1 + $0x4] sm:$0xf]
        %v333 = vld [vmem:[%s1 + $0x8] sm:$0xf]
        %v334 = vld [vmem:[%s1 + $0xc] sm:$0xf]
        %v335 = vld [vmem:[%s1 + $0x10] sm:$0xf]
        %v336 = vld [vmem:[%s1 + $0x14] sm:$0xf]
        %v337 = vld [vmem:[%s1 + $0x18] sm:$0xf]
        %v338 = vld [vmem:[%s1 + $0x1c] sm:$0xf]
        %v339 = vld [vmem:[%s1 + $0x20] sm:$0xf]
        %v340 = vld [vmem:[%s1 + $0x24] sm:$0xf]
        %v341 = vld [vmem:[%s1 + $0x28] sm:$0xf]
        %v342 = vld [vmem:[%s1 + $0x2c] sm:$0xf]
        %v343 = vld [vmem:[%s1 + $0x30] sm:$0xf]
        %v344 = vld [vmem:[%s1 + $0x34] sm:$0xf]
        %v345 = vld [vmem:[%s1 + $0x38] sm:$0xf]
        %v346 = vld [vmem:[%s1 + $0x3c] sm:$0xf]
        %v347 = vld [vmem:[%s1 + $0x40] sm:$0xf]
        %v348 = vld [vmem:[%s1 + $0x44] sm:$0xf]
        %v349 = vld [vmem:[%s1 + $0x48] sm:$0xf]
        %v350 = vld [vmem:[%s1 + $0x4c] sm:$0xf]
        %v351 = vld [vmem:[%s1 + $0x50] sm:$0xf]
        %v352 = vld [vmem:[%s1 + $0x54] sm:$0xf]
        %v353 = vld [vmem:[%s1 + $0x58] sm:$0xf]
        %v354 = vld [vmem:[%s1 + $0x5c] sm:$0xf]
        %s355 = sadd.s32 %s203, 1
        %s356 = smul.addr %s355, 4
        %s357 = scalar_lea.vmem %s194, %s356
        %v358 = vld [vmem:[%s357] sm:$0x3]
        %v359 = vld [vmem:[%s357 + $0x4] sm:$0x3]
        %v360 = vld [vmem:[%s357] sm:$0x7]
        %v361 = vld [vmem:[%s357 + $0x4] sm:$0x7]
        %v365 = vunpack.c.l.s4 1983009808
        %v366 = vunpack.c.0.s8 %v365
        %v367 = vlaneseq
        %v368 = vshrl.u32 %v367, 7
        %v369 = vsub.s32 %v366, %v368
        %v370 = vrot.slane %v360, %v369
        %v371 = vcombine.high %v370, %v370
        %v373 = vunpack.c.l.s4 1983009808
        %v374 = vunpack.c.0.s8 %v373
        %v375 = vlaneseq
        %v376 = vshrl.u32 %v375, 7
        %v377 = vsub.s32 %v374, %v376
        %v378 = vrot.slane %v361, %v377
        %v379 = vcombine.high %v378, %v378
        %v381 = vshrl.u32 %v370, 16
        %v383 = vrot.slane %v381, 6
        %v384 = vshll.u32 %v370, 16
        %v386 = vrot.slane %v384, 7
        %v387 = vor.u32 %v383, %v386
        %v388 = vrot.slane %v387, 2
        %v390 = vshll.u32 %v371, 16
        %v392 = vrot.slane %v390, 7
        %v393 = vsel %vm234, %v388, %v392
        %v395 = vshrl.u32 %v378, 16
        %v397 = vrot.slane %v395, 6
        %v398 = vshll.u32 %v378, 16
        %v400 = vrot.slane %v398, 7
        %v401 = vor.u32 %v397, %v400
        %v402 = vrot.slane %v401, 2
        %v404 = vshll.u32 %v379, 16
        %v406 = vrot.slane %v404, 7
        %v407 = vsel %vm234, %v402, %v406
        %v408 = vld [vmem:[%s357] sm:$0x6]
        %v409 = vld [vmem:[%s357 + $0x4] sm:$0x6]
        %v413 = vunpack.c.l.s4 1983009808
        %v414 = vunpack.c.0.s8 %v413
        %v415 = vlaneseq
        %v416 = vshrl.u32 %v415, 7
        %v417 = vsub.s32 %v414, %v416
        %v418 = vrot.slane %v408, %v417
        %v419 = vcombine.high %v418, %v418
        %v421 = vunpack.c.l.s4 1983009808
        %v422 = vunpack.c.0.s8 %v421
        %v423 = vlaneseq
        %v424 = vshrl.u32 %v423, 7
        %v425 = vsub.s32 %v422, %v424
        %v426 = vrot.slane %v409, %v425
        %v427 = vcombine.high %v426, %v426
        %v428 = vrot.slane %v418, 7
        %v429 = vrot.slane %v428, 2
        %v430 = vrot.slane %v419, 7
        %v431 = vsel %vm289, %v429, %v430
        %v432 = vrot.slane %v426, 7
        %v433 = vrot.slane %v432, 2
        %v434 = vrot.slane %v427, 7
        %v435 = vsel %vm289, %v433, %v434
        %v438 = vcombine.low %v358, %v359
        %v440 = vunpack.c.l.s4 1983009808
        %v441 = vunpack.c.0.s8 %v440
        %v442 = vlaneseq
        %v443 = vshrl.u32 %v442, 7
        %v444 = vsub.s32 %v441, %v443
        %v445 = vrot.slane %v438, %v444
        %v446 = vcombine.low %v393, %v407
        %v448 = vunpack.c.l.s4 1983009808
        %v449 = vunpack.c.0.s8 %v448
        %v450 = vlaneseq
        %v451 = vshrl.u32 %v450, 7
        %v452 = vsub.s32 %v449, %v451
        %v453 = vrot.slane %v446, %v452
        %454 = vrot.lane.b32.xlu0 %v453, 64
        %v455 = vpop.permute.xlu0 %454
        %v456 = vcombine.low %v431, %v435
        %v458 = vunpack.c.l.s4 1983009808
        %v459 = vunpack.c.0.s8 %v458
        %v460 = vlaneseq
        %v461 = vshrl.u32 %v460, 7
        %v462 = vsub.s32 %v459, %v461
        %v463 = vrot.slane %v456, %v462
        %v466 = vsel %vm326, %v445, %v455
        %v468 = vld [vmem:[%s1 + $0x60] sm:$0xf]
        %v469 = vld [vmem:[%s1 + $0x64] sm:$0xf]
        %v470 = vld [vmem:[%s1 + $0x68] sm:$0xf]
        %v471 = vld [vmem:[%s1 + $0x6c] sm:$0xf]
        %v472 = vld [vmem:[%s1 + $0x70] sm:$0xf]
        %v473 = vld [vmem:[%s1 + $0x74] sm:$0xf]
        %v474 = vld [vmem:[%s1 + $0x78] sm:$0xf]
        %v475 = vld [vmem:[%s1 + $0x7c] sm:$0xf]
        %v476 = vld [vmem:[%s1 + $0x80] sm:$0xf]
        %v477 = vld [vmem:[%s1 + $0x84] sm:$0xf]
        %v478 = vld [vmem:[%s1 + $0x88] sm:$0xf]
        %v479 = vld [vmem:[%s1 + $0x8c] sm:$0xf]
        %v480 = vld [vmem:[%s1 + $0x90] sm:$0xf]
        %v481 = vld [vmem:[%s1 + $0x94] sm:$0xf]
        %v482 = vld [vmem:[%s1 + $0x98] sm:$0xf]
        %v483 = vld [vmem:[%s1 + $0x9c] sm:$0xf]
        %v484 = vld [vmem:[%s1 + $0xa0] sm:$0xf]
        %v485 = vld [vmem:[%s1 + $0xa4] sm:$0xf]
        %v486 = vld [vmem:[%s1 + $0xa8] sm:$0xf]
        %v487 = vld [vmem:[%s1 + $0xac] sm:$0xf]
        %v488 = vld [vmem:[%s1 + $0xb0] sm:$0xf]
        %v489 = vld [vmem:[%s1 + $0xb4] sm:$0xf]
        %v490 = vld [vmem:[%s1 + $0xb8] sm:$0xf]
        %v491 = vld [vmem:[%s1 + $0xbc] sm:$0xf]
        %v516 = vunpack.c.l.b16 %v468
        %v517 = vunpack.c.l.b16 %v469
        %v518 = vunpack.c.l.b16 %v470
        %v519 = vunpack.c.l.b16 %v471
        %v520 = vunpack.c.l.b16 %v472
        %v521 = vunpack.c.l.b16 %v473
        %v522 = vunpack.c.l.b16 %v474
        %v523 = vunpack.c.l.b16 %v475
        %v524 = vunpack.c.l.b16 %v476
        %v525 = vunpack.c.l.b16 %v477
        %v526 = vunpack.c.l.b16 %v478
        %v527 = vunpack.c.l.b16 %v479
        %v528 = vunpack.c.l.b16 %v480
        %v529 = vunpack.c.l.b16 %v481
        %v530 = vunpack.c.l.b16 %v482
        %v531 = vunpack.c.l.b16 %v483
        %v532 = vunpack.c.l.b16 %v484
        %v533 = vunpack.c.l.b16 %v485
        %v534 = vunpack.c.l.b16 %v486
        %v535 = vunpack.c.l.b16 %v487
        %v536 = vunpack.c.l.b16 %v488
        %v537 = vunpack.c.l.b16 %v489
        %v538 = vunpack.c.l.b16 %v490
        %v539 = vunpack.c.l.b16 %v491
        %v540 = vpack.c.b16 %v517, %v516
        %v541 = vpack.c.b16 %v519, %v518
        %v542 = vpack.c.b16 %v521, %v520
        %v543 = vpack.c.b16 %v523, %v522
        %v544 = vpack.c.b16 %v525, %v524
        %v545 = vpack.c.b16 %v527, %v526
        %v546 = vpack.c.b16 %v529, %v528
        %v547 = vpack.c.b16 %v531, %v530
        %v548 = vpack.c.b16 %v533, %v532
        %v549 = vpack.c.b16 %v535, %v534
        %v550 = vpack.c.b16 %v537, %v536
        %v551 = vpack.c.b16 %v539, %v538
        %v565 = vsel %vm326, %v463, 0
        %567 = vmatprep.subr.bf16.mxu0 0
        %568 = vmatpush1.bf16.msra.mxu0 %v547
        %569 = vmatprep.subr.bf16.mxu0 0
        %570 = vmatpush1.bf16.msra.mxu0 %v546
        %571 = vmatprep.subr.bf16.mxu0 0
        %572 = vmatpush1.bf16.msra.mxu0 %v545
        %573 = vmatprep.subr.bf16.mxu0 0
        %574 = vmatpush1.bf16.msra.mxu0 %v544
        %575 = vmatprep.subr.bf16.mxu0 0
        %576 = vmatpush1.bf16.msra.mxu0 %v543
        %577 = vmatprep.subr.bf16.mxu0 0
        %578 = vmatpush1.bf16.msra.mxu0 %v542
        %579 = vmatprep.subr.bf16.mxu0 0
        %580 = vmatpush1.bf16.msra.mxu0 %v541
        %581 = vmatprep.subr.bf16.mxu0 0
        %582 = vmatpush1.bf16.msra.mxu0 %v540
        %583 = vmatprep.subr.bf16.mxu0 0
        %584 = vmatpush2.bf16.msra.mxu0 0
        %585 = vmatprep.subr.bf16.mxu0 0
        %586 = vmatpush2.bf16.msra.mxu0 0
        %587 = vmatprep.subr.bf16.mxu0 0
        %588 = vmatpush2.bf16.msra.mxu0 0
        %589 = vmatprep.subr.bf16.mxu0 0
        %590 = vmatpush2.bf16.msra.mxu0 0
        %591 = vmatprep.subr.bf16.mxu0 0
        %592 = vmatpush2.bf16.msra.mxu0 %v551
        %593 = vmatprep.subr.bf16.mxu0 0
        %594 = vmatpush2.bf16.msra.mxu0 %v550
        %595 = vmatprep.subr.bf16.mxu0 0
        %596 = vmatpush2.bf16.msra.mxu0 %v549
        %597 = vmatprep.subr.bf16.mxu0 0
        %598 = vmatpush2.bf16.msra.mxu0 %v548
        %599 = vmatprep.mubr.bf16.mxu0 %v565
        %600 = vmatmul.mubr.bf16.gmra.mxu0 %v466
        %v601 = vpop.f32.mrf.mxu0
        %v602 = vadd.f32 0.0, %v601
        %v603 = vpop.f32.mrf.mxu0
        %v604 = vpop.f32.mrf.mxu0
        %v605 = vpop.f32.mrf.mxu0
        %606 = vdwg.mxu0
        %v631 = vunpack.c.l.b16 %v331
        %v632 = vunpack.c.l.b16 %v332
        %v633 = vunpack.c.l.b16 %v333
        %v634 = vunpack.c.l.b16 %v334
        %v635 = vunpack.c.l.b16 %v335
        %v636 = vunpack.c.l.b16 %v336
        %v637 = vunpack.c.l.b16 %v337
        %v638 = vunpack.c.l.b16 %v338
        %v639 = vunpack.c.l.b16 %v339
        %v640 = vunpack.c.l.b16 %v340
        %v641 = vunpack.c.l.b16 %v341
        %v642 = vunpack.c.l.b16 %v342
        %v643 = vunpack.c.l.b16 %v343
        %v644 = vunpack.c.l.b16 %v344
        %v645 = vunpack.c.l.b16 %v345
        %v646 = vunpack.c.l.b16 %v346
        %v647 = vunpack.c.l.b16 %v347
        %v648 = vunpack.c.l.b16 %v348
        %v649 = vunpack.c.l.b16 %v349
        %v650 = vunpack.c.l.b16 %v350
        %v651 = vunpack.c.l.b16 %v351
        %v652 = vunpack.c.l.b16 %v352
        %v653 = vunpack.c.l.b16 %v353
        %v654 = vunpack.c.l.b16 %v354
        %v655 = vpack.c.b16 %v632, %v631
        %v656 = vpack.c.b16 %v634, %v633
        %v657 = vpack.c.b16 %v636, %v635
        %v658 = vpack.c.b16 %v638, %v637
        %v659 = vpack.c.b16 %v640, %v639
        %v660 = vpack.c.b16 %v642, %v641
        %v661 = vpack.c.b16 %v644, %v643
        %v662 = vpack.c.b16 %v646, %v645
        %v663 = vpack.c.b16 %v648, %v647
        %v664 = vpack.c.b16 %v650, %v649
        %v665 = vpack.c.b16 %v652, %v651
        %v666 = vpack.c.b16 %v654, %v653
        %v680 = vsel %vm326, %v325, 0
        %682 = vmatprep.subr.bf16.mxu0 0
        %683 = vmatpush1.bf16.msra.mxu0 %v662
        %684 = vmatprep.subr.bf16.mxu0 0
        %685 = vmatpush1.bf16.msra.mxu0 %v661
        %686 = vmatprep.subr.bf16.mxu0 0
        %687 = vmatpush1.bf16.msra.mxu0 %v660
        %688 = vmatprep.subr.bf16.mxu0 0
        %689 = vmatpush1.bf16.msra.mxu0 %v659
        %690 = vmatprep.subr.bf16.mxu0 0
        %691 = vmatpush1.bf16.msra.mxu0 %v658
        %692 = vmatprep.subr.bf16.mxu0 0
        %693 = vmatpush1.bf16.msra.mxu0 %v657
        %694 = vmatprep.subr.bf16.mxu0 0
        %695 = vmatpush1.bf16.msra.mxu0 %v656
        %696 = vmatprep.subr.bf16.mxu0 0
        %697 = vmatpush1.bf16.msra.mxu0 %v655
        %698 = vmatprep.subr.bf16.mxu0 0
        %699 = vmatpush2.bf16.msra.mxu0 0
        %700 = vmatprep.subr.bf16.mxu0 0
        %701 = vmatpush2.bf16.msra.mxu0 0
        %702 = vmatprep.subr.bf16.mxu0 0
        %703 = vmatpush2.bf16.msra.mxu0 0
        %704 = vmatprep.subr.bf16.mxu0 0
        %705 = vmatpush2.bf16.msra.mxu0 0
        %706 = vmatprep.subr.bf16.mxu0 0
        %707 = vmatpush2.bf16.msra.mxu0 %v666
        %708 = vmatprep.subr.bf16.mxu0 0
        %709 = vmatpush2.bf16.msra.mxu0 %v665
        %710 = vmatprep.subr.bf16.mxu0 0
        %711 = vmatpush2.bf16.msra.mxu0 %v664
        %712 = vmatprep.subr.bf16.mxu0 0
        %713 = vmatpush2.bf16.msra.mxu0 %v663
        %714 = vmatprep.mubr.bf16.mxu0 %v680
        %715 = vmatmul.mubr.bf16.gmra.mxu0 %v329
        %v716 = vpop.f32.mrf.mxu0
        %v717 = vadd.f32 %v602, %v716
        %v718 = vpop.f32.mrf.mxu0
        %v719 = vpop.f32.mrf.mxu0
        %v720 = vpop.f32.mrf.mxu0
        %721 = vdwg.mxu0
        %s722 = sadd.s32 %s203, 2
        %s723 = smul.addr %s722, 4
        %s724 = scalar_lea.vmem %s194, %s723
        %v725 = vld [vmem:[%s724] sm:$0x3]
        %v726 = vld [vmem:[%s724 + $0x4] sm:$0x3]
        %v727 = vld [vmem:[%s724] sm:$0x7]
        %v728 = vld [vmem:[%s724 + $0x4] sm:$0x7]
        %v732 = vunpack.c.l.s4 1983009808
        %v733 = vunpack.c.0.s8 %v732
        %v734 = vlaneseq
        %v735 = vshrl.u32 %v734, 7
        %v736 = vsub.s32 %v733, %v735
        %v737 = vrot.slane %v727, %v736
        %v738 = vcombine.high %v737, %v737
        %v740 = vunpack.c.l.s4 1983009808
        %v741 = vunpack.c.0.s8 %v740
        %v742 = vlaneseq
        %v743 = vshrl.u32 %v742, 7
        %v744 = vsub.s32 %v741, %v743
        %v745 = vrot.slane %v728, %v744
        %v746 = vcombine.high %v745, %v745
        %v748 = vshrl.u32 %v737, 16
        %v750 = vrot.slane %v748, 6
        %v751 = vshll.u32 %v737, 16
        %v753 = vrot.slane %v751, 7
        %v754 = vor.u32 %v750, %v753
        %v755 = vrot.slane %v754, 2
        %v757 = vshll.u32 %v738, 16
        %v759 = vrot.slane %v757, 7
        %v760 = vsel %vm234, %v755, %v759
        %v762 = vshrl.u32 %v745, 16
        %v764 = vrot.slane %v762, 6
        %v765 = vshll.u32 %v745, 16
        %v767 = vrot.slane %v765, 7
        %v768 = vor.u32 %v764, %v767
        %v769 = vrot.slane %v768, 2
        %v771 = vshll.u32 %v746, 16
        %v773 = vrot.slane %v771, 7
        %v774 = vsel %vm234, %v769, %v773
        %v775 = vld [vmem:[%s724] sm:$0x6]
        %v776 = vld [vmem:[%s724 + $0x4] sm:$0x6]
        %v780 = vunpack.c.l.s4 1983009808
        %v781 = vunpack.c.0.s8 %v780
        %v782 = vlaneseq
        %v783 = vshrl.u32 %v782, 7
        %v784 = vsub.s32 %v781, %v783
        %v785 = vrot.slane %v775, %v784
        %v786 = vcombine.high %v785, %v785
        %v788 = vunpack.c.l.s4 1983009808
        %v789 = vunpack.c.0.s8 %v788
        %v790 = vlaneseq
        %v791 = vshrl.u32 %v790, 7
        %v792 = vsub.s32 %v789, %v791
        %v793 = vrot.slane %v776, %v792
        %v794 = vcombine.high %v793, %v793
        %v795 = vrot.slane %v785, 7
        %v796 = vrot.slane %v795, 2
        %v797 = vrot.slane %v786, 7
        %v798 = vsel %vm289, %v796, %v797
        %v799 = vrot.slane %v793, 7
        %v800 = vrot.slane %v799, 2
        %v801 = vrot.slane %v794, 7
        %v802 = vsel %vm289, %v800, %v801
        %v805 = vcombine.low %v725, %v726
        %v807 = vunpack.c.l.s4 1983009808
        %v808 = vunpack.c.0.s8 %v807
        %v809 = vlaneseq
        %v810 = vshrl.u32 %v809, 7
        %v811 = vsub.s32 %v808, %v810
        %v812 = vrot.slane %v805, %v811
        %v813 = vcombine.low %v760, %v774
        %v815 = vunpack.c.l.s4 1983009808
        %v816 = vunpack.c.0.s8 %v815
        %v817 = vlaneseq
        %v818 = vshrl.u32 %v817, 7
        %v819 = vsub.s32 %v816, %v818
        %v820 = vrot.slane %v813, %v819
        %821 = vrot.lane.b32.xlu0 %v820, 64
        %v822 = vpop.permute.xlu0 %821
        %v823 = vcombine.low %v798, %v802
        %v825 = vunpack.c.l.s4 1983009808
        %v826 = vunpack.c.0.s8 %v825
        %v827 = vlaneseq
        %v828 = vshrl.u32 %v827, 7
        %v829 = vsub.s32 %v826, %v828
        %v830 = vrot.slane %v823, %v829
        %v833 = vsel %vm326, %v812, %v822
        %v835 = vld [vmem:[%s1 + $0xc0] sm:$0xf]
        %v836 = vld [vmem:[%s1 + $0xc4] sm:$0xf]
        %v837 = vld [vmem:[%s1 + $0xc8] sm:$0xf]
        %v838 = vld [vmem:[%s1 + $0xcc] sm:$0xf]
        %v839 = vld [vmem:[%s1 + $0xd0] sm:$0xf]
        %v840 = vld [vmem:[%s1 + $0xd4] sm:$0xf]
        %v841 = vld [vmem:[%s1 + $0xd8] sm:$0xf]
        %v842 = vld [vmem:[%s1 + $0xdc] sm:$0xf]
        %v843 = vld [vmem:[%s1 + $0xe0] sm:$0xf]
        %v844 = vld [vmem:[%s1 + $0xe4] sm:$0xf]
        %v845 = vld [vmem:[%s1 + $0xe8] sm:$0xf]
        %v846 = vld [vmem:[%s1 + $0xec] sm:$0xf]
        %v847 = vld [vmem:[%s1 + $0xf0] sm:$0xf]
        %v848 = vld [vmem:[%s1 + $0xf4] sm:$0xf]
        %v849 = vld [vmem:[%s1 + $0xf8] sm:$0xf]
        %v850 = vld [vmem:[%s1 + $0xfc] sm:$0xf]
        %v851 = vld [vmem:[%s1 + $0x100] sm:$0xf]
        %v852 = vld [vmem:[%s1 + $0x104] sm:$0xf]
        %v853 = vld [vmem:[%s1 + $0x108] sm:$0xf]
        %v854 = vld [vmem:[%s1 + $0x10c] sm:$0xf]
        %v855 = vld [vmem:[%s1 + $0x110] sm:$0xf]
        %v856 = vld [vmem:[%s1 + $0x114] sm:$0xf]
        %v857 = vld [vmem:[%s1 + $0x118] sm:$0xf]
        %v858 = vld [vmem:[%s1 + $0x11c] sm:$0xf]
        %v883 = vunpack.c.l.b16 %v835
        %v884 = vunpack.c.l.b16 %v836
        %v885 = vunpack.c.l.b16 %v837
        %v886 = vunpack.c.l.b16 %v838
        %v887 = vunpack.c.l.b16 %v839
        %v888 = vunpack.c.l.b16 %v840
        %v889 = vunpack.c.l.b16 %v841
        %v890 = vunpack.c.l.b16 %v842
        %v891 = vunpack.c.l.b16 %v843
        %v892 = vunpack.c.l.b16 %v844
        %v893 = vunpack.c.l.b16 %v845
        %v894 = vunpack.c.l.b16 %v846
        %v895 = vunpack.c.l.b16 %v847
        %v896 = vunpack.c.l.b16 %v848
        %v897 = vunpack.c.l.b16 %v849
        %v898 = vunpack.c.l.b16 %v850
        %v899 = vunpack.c.l.b16 %v851
        %v900 = vunpack.c.l.b16 %v852
        %v901 = vunpack.c.l.b16 %v853
        %v902 = vunpack.c.l.b16 %v854
        %v903 = vunpack.c.l.b16 %v855
        %v904 = vunpack.c.l.b16 %v856
        %v905 = vunpack.c.l.b16 %v857
        %v906 = vunpack.c.l.b16 %v858
        %v907 = vpack.c.b16 %v884, %v883
        %v908 = vpack.c.b16 %v886, %v885
        %v909 = vpack.c.b16 %v888, %v887
        %v910 = vpack.c.b16 %v890, %v889
        %v911 = vpack.c.b16 %v892, %v891
        %v912 = vpack.c.b16 %v894, %v893
        %v913 = vpack.c.b16 %v896, %v895
        %v914 = vpack.c.b16 %v898, %v897
        %v915 = vpack.c.b16 %v900, %v899
        %v916 = vpack.c.b16 %v902, %v901
        %v917 = vpack.c.b16 %v904, %v903
        %v918 = vpack.c.b16 %v906, %v905
        %v932 = vsel %vm326, %v830, 0
        %934 = vmatprep.subr.bf16.mxu0 0
        %935 = vmatpush1.bf16.msra.mxu0 %v914
        %936 = vmatprep.subr.bf16.mxu0 0
        %937 = vmatpush1.bf16.msra.mxu0 %v913
        %938 = vmatprep.subr.bf16.mxu0 0
        %939 = vmatpush1.bf16.msra.mxu0 %v912
        %940 = vmatprep.subr.bf16.mxu0 0
        %941 = vmatpush1.bf16.msra.mxu0 %v911
        %942 = vmatprep.subr.bf16.mxu0 0
        %943 = vmatpush1.bf16.msra.mxu0 %v910
        %944 = vmatprep.subr.bf16.mxu0 0
        %945 = vmatpush1.bf16.msra.mxu0 %v909
        %946 = vmatprep.subr.bf16.mxu0 0
        %947 = vmatpush1.bf16.msra.mxu0 %v908
        %948 = vmatprep.subr.bf16.mxu0 0
        %949 = vmatpush1.bf16.msra.mxu0 %v907
        %950 = vmatprep.subr.bf16.mxu0 0
        %951 = vmatpush2.bf16.msra.mxu0 0
        %952 = vmatprep.subr.bf16.mxu0 0
        %953 = vmatpush2.bf16.msra.mxu0 0
        %954 = vmatprep.subr.bf16.mxu0 0
        %955 = vmatpush2.bf16.msra.mxu0 0
        %956 = vmatprep.subr.bf16.mxu0 0
        %957 = vmatpush2.bf16.msra.mxu0 0
        %958 = vmatprep.subr.bf16.mxu0 0
        %959 = vmatpush2.bf16.msra.mxu0 %v918
        %960 = vmatprep.subr.bf16.mxu0 0
        %961 = vmatpush2.bf16.msra.mxu0 %v917
        %962 = vmatprep.subr.bf16.mxu0 0
        %963 = vmatpush2.bf16.msra.mxu0 %v916
        %964 = vmatprep.subr.bf16.mxu0 0
        %965 = vmatpush2.bf16.msra.mxu0 %v915
        %966 = vmatprep.mubr.bf16.mxu0 %v932
        %967 = vmatmul.mubr.bf16.gmra.mxu0 %v833
        %v968 = vpop.f32.mrf.mxu0
        %v969 = vadd.f32 0.0, %v968
        %v970 = vpop.f32.mrf.mxu0
        %v971 = vpop.f32.mrf.mxu0
        %v972 = vpop.f32.mrf.mxu0
        %973 = vdwg.mxu0
        %v974 = vadd.f32 %v717, %v969
        %v975 = vld [vmem:[#allocation2] sm:$0x1]
        %v977 = vlaneseq
        %v978 = vshrl.u32 %v977, 7
        %v979 = vsub.s32 0, %v978
        %v980 = vrot.slane %v975, %v979
        %v982 = vadd.f32 %v974, %v980
        %v983 = vmax.f32 %v982, 0.0
        %v985 = vcombine.high %v983, %v983
        %v987 = vunpack.c.l.s4 1983009808
        %v988 = vunpack.c.0.s8 %v987
        %v989 = vlaneseq
        %v990 = vshrl.u32 %v989, 7
        %v991 = vsub.s32 %v988, %v990
        %v992 = vrot.slane %v983, %v991
        %v994 = vunpack.c.l.s4 1983009808
        %v995 = vunpack.c.0.s8 %v994
        %v996 = vlaneseq
        %v997 = vshrl.u32 %v996, 7
        %v998 = vsub.s32 %v995, %v997
        %v999 = vrot.slane %v985, %v998
        %v1000 = vcombine.high %v992, %v992
        %v1001 = vcombine.high %v999, %v999
        %v1006 = vmax.f32 %v992, %v999
        %v1007 = vmax.f32 %v1000, %v1001
        %v1010 = vrot.slane %v1006, 7
        %v1011 = vrot.slane %v1010, 2
        %v1012 = vrot.slane %v1007, 7
        %v1013 = vrot.slane %v1012, 2
        %v1016 = vmax.f32 %v1006, %v1011
        %v1017 = vmax.f32 %v1007, %v1013
        %v1018 = vpack.c.bf16 %v1016, %v1016
        %v1019 = vpack.c.bf16 %v1017, %v1017
        %v1023 = vunpack.c.l.s4 1966171168
        %v1024 = vunpack.c.0.s8 %v1023
        %v1025 = vlaneseq
        %v1026 = vshrl.u32 %v1025, 7
        %v1027 = vsub.s32 %v1024, %v1026
        %v1028 = vrot.slane %v1018, %v1027
        %v1030 = vunpack.c.l.s4 1966171168
        %v1031 = vunpack.c.0.s8 %v1030
        %v1032 = vlaneseq
        %v1033 = vshrl.u32 %v1032, 7
        %v1034 = vsub.s32 %v1031, %v1033
        %v1035 = vrot.slane %v1028, %v1034
        %v1037 = vunpack.c.l.s4 1966171168
        %v1038 = vunpack.c.0.s8 %v1037
        %v1039 = vlaneseq
        %v1040 = vshrl.u32 %v1039, 7
        %v1041 = vsub.s32 %v1038, %v1040
        %v1042 = vrot.slane %v1019, %v1041
        %v1044 = vunpack.c.l.s4 1966171168
        %v1045 = vunpack.c.0.s8 %v1044
        %v1046 = vlaneseq
        %v1047 = vshrl.u32 %v1046, 7
        %v1048 = vsub.s32 %v1045, %v1047
        %v1049 = vrot.slane %v1042, %v1048
        %v1051 = vunpack.c.l.s4 1935823168
        %v1052 = vunpack.c.0.s8 %v1051
        %v1053 = vlaneseq
        %v1054 = vshrl.u32 %v1053, 7
        %v1055 = vsub.s32 %v1052, %v1054
        %v1056 = vrot.slane %v1035, %v1055
        %v1058 = vunpack.c.l.s4 1935823168
        %v1059 = vunpack.c.0.s8 %v1058
        %v1060 = vlaneseq
        %v1061 = vshrl.u32 %v1060, 7
        %v1062 = vsub.s32 %v1059, %v1061
        %v1063 = vrot.slane %v1056, %v1062
        %v1065 = vunpack.c.l.s4 1935823168
        %v1066 = vunpack.c.0.s8 %v1065
        %v1067 = vlaneseq
        %v1068 = vshrl.u32 %v1067, 7
        %v1069 = vsub.s32 %v1066, %v1068
        %v1070 = vrot.slane %v1049, %v1069
        %v1072 = vunpack.c.l.s4 1935823168
        %v1073 = vunpack.c.0.s8 %v1072
        %v1074 = vlaneseq
        %v1075 = vshrl.u32 %v1074, 7
        %v1076 = vsub.s32 %v1073, %v1075
        %v1077 = vrot.slane %v1070, %v1076
        %v1078 = vunpack.c.l.b16 %v1063
        %v1079 = vunpack.c.l.b16 %v1077
        %v1080 = vrot.slane %v1079, 7
        %vm1081 = vcmask 1041409
        %v1082 = vsel %vm1081, %v1080, %v1078
        %v1083 = vpack.c.b16 %v1082, %v1082
        %v1085 = vunpack.c.l.s4 1966171168
        %v1086 = vunpack.c.0.s8 %v1085
        %v1087 = vlaneseq
        %v1088 = vshrl.u32 %v1087, 7
        %v1089 = vsub.s32 %v1086, %v1088
        %v1090 = vrot.slane %v1083, %v1089
        %v1092 = vunpack.c.l.s4 1966171168
        %v1093 = vunpack.c.0.s8 %v1092
        %v1094 = vlaneseq
        %v1095 = vshrl.u32 %v1094, 7
        %v1096 = vsub.s32 %v1093, %v1095
        %v1097 = vrot.slane %v1090, %v1096
        %1099 = vst [vmem:[%s201] sm:$0x1] %v1097
        %p1100 = scmp.lt.s32.totalorder %s19, 1
        %s1101 = scalar_select %p1100, %s19, 1
        %p1102 = scmp.lt.s32.totalorder %s20, 1
        %s1103 = scalar_select %p1102, %s20, 1
        %s1104 = smul.addr %s1101, 2
        %s1105 = sadd.s32 %s1103, %s1104
        %s1106 = scalar_lea.vmem %s3, %s1105
        // Predicated region
        $region37: #{cnn_segmentation_forward.6} parent=31 // pred_check
          %p1107 = pneg %p115
        $region38: #{cnn_segmentation_forward.6} parent=31 // pred_check_branch
          %1109 = sbr.rel (%p1107) target = $region40
        $region39: #{cnn_segmentation_forward.6} parent=31 // pred_region
          _
        $region40: #{cnn_segmentation_forward.6} parent=31 // pred_fallthru
          _
      $region32: #{cnn_segmentation_forward.6} parent=5 // pred_fallthru
        _
      %p1110 = scmp.le.s32.totalorder 2, %s10
      // Predicated region
      $region41: #{cnn_segmentation_forward.6} parent=5 // pred_check
        %p1111 = pneg %p1110
      $region42: #{cnn_segmentation_forward.6} parent=5 // pred_check_branch
        %1113 = sbr.rel (%p1111) target = $region44
      $region43: #{cnn_segmentation_forward.6} parent=5 // pred_region
        %s1114 = ssub.s32 %s10, 2
        // Predicated region
        $region45: #{cnn_segmentation_forward.6} parent=43 // pred_check
          %p1115 = pneg %p121
        $region46: #{cnn_segmentation_forward.6} parent=43 // pred_check_branch
          %1117 = sbr.rel (%p1115) target = $region48
        $region47: #{cnn_segmentation_forward.6} parent=43 // pred_region
          %p1118 = scmp.lt.s32.totalorder %s21, 1
          %s1119 = scalar_select %p1118, %s21, 1
          %p1120 = scmp.lt.s32.totalorder %s22, 1
          %s1121 = scalar_select %p1120, %s22, 1
          %s1122 = smul.addr %s1119, 2
          %s1123 = sadd.s32 %s1121, %s1122
          %s1124 = scalar_lea.vmem %s3, %s1123
        $region48: #{cnn_segmentation_forward.6} parent=43 // pred_fallthru
          _
      $region44: #{cnn_segmentation_forward.6} parent=5 // pred_fallthru
        _
    $region6: #{cnn_segmentation_forward.6} parent=1 // loop_footer
      %s14 = sadd.s32 1, %s10
    $region7: #{cnn_segmentation_forward.6} parent=1 // loop_footer_branch
      %9 = sbr.rel target = $region3
    $region8: #{cnn_segmentation_forward.6} parent=1 // loop_exit
      _
    %1125 = vsyncpa [#allocation3], 1
    %s1126 = scalar_lea.sflag [#allocation3], 1
    %1127 = vsyncpa %s1126, 1

// kernel: tile.51
$region0: #{tile.51}
  #allocation0 [shape = 's32[1]{0}', space=sflag, size = 0x4, scoped, tag = 'scoped memory for tile.51']
  %s0 = inlined_call_operand.vmem [shape: f32[9], index: 0, kind: input, shape index: {}]
  %s1 = inlined_call_operand.vmem [shape: f32[64,9], index: 1, kind: output, shape index: {}]
  // Predicated region
  $region2: #{tile.51} parent=0 // pred_check
    _
  $region3: #{tile.51} parent=0 // pred_check_branch
    %3 = sbr.rel (0) target = $region5
  $region4: #{tile.51} parent=0 // pred_region
    _
  $region5: #{tile.51} parent=0 // pred_fallthru
    _
  %v4 = vld [vmem:[%s0] ss:$0 sm:$0xff]
  %5 = vst [vmem:[%s1] sm:$0xff] %v4
  %s6 = scalar_lea.vmem %s1, 8
  %7 = vst [vmem:[%s6] sm:$0xff] %v4
  %s8 = scalar_lea.vmem %s1, 16
  %9 = vst [vmem:[%s8] sm:$0xff] %v4
  %s10 = scalar_lea.vmem %s1, 24
  %11 = vst [vmem:[%s10] sm:$0xff] %v4
  %s12 = scalar_lea.vmem %s1, 32
  %13 = vst [vmem:[%s12] sm:$0xff] %v4
  %s14 = scalar_lea.vmem %s1, 40
  %15 = vst [vmem:[%s14] sm:$0xff] %v4
  %s16 = scalar_lea.vmem %s1, 48
  %17 = vst [vmem:[%s16] sm:$0xff] %v4
  %s18 = scalar_lea.vmem %s1, 56
  %19 = vst [vmem:[%s18] sm:$0xff] %v4

// kernel: tile.55
$region0: #{tile.55}
  %s0 = inlined_call_operand.vmem [shape: f32[64,9], index: 0, kind: input, shape index: {}]
  %s1 = inlined_call_operand.vmem [shape: f32[1,576], index: 1, kind: output, shape index: {}]
  $region1: #{tile.55} parent=0
    #allocation0 [shape = 'u8[20480]{0}', space=vmem, size = 0x5000, scoped, tag = 'scoped mem for output reshape']
    %v2 = vld [vmem:[%s0] sm:$0x1]
    %vm3 = vcmask 72704
    %4 = vst.msk [vmem:[#allocation0] sm:$0x1] %vm3, %v2
    %s5 = scalar_lea.vmem %s0, 14
    %v6 = vld [vmem:[%s5] sm:$0x1]
    %s7 = scalar_lea.vmem %s0, 14
    %v8 = vld [vmem:[%s7] sm:$0x1]
    %vm9 = vcmask 15360
    %v10 = vsel %vm9, %v8, %v6
    %11 = vrot.lane.b32.xlu0 %v10, 126
    %v12 = vpop.permute.xlu0 %11
    %vm13 = vcmask 56320
    %s14 = scalar_lea.vmem [#allocation0], 8
    %15 = vst.msk [vmem:[%s14] sm:$0x1] %vm13, %v12
    %vm16 = vcmask 1048560
    %17 = vst.msk [vmem:[#allocation0] sm:$0x1] %vm16, %v12
    %s18 = scalar_lea.vmem %s0, 28
    %v19 = vld [vmem:[%s18] sm:$0x1]
    %s20 = scalar_lea.vmem %s0, 28
    %v21 = vld [vmem:[%s20] sm:$0x1]
    %vm22 = vcmask 31744
    %v23 = vsel %vm22, %v21, %v19
    %24 = vrot.lane.b32.xlu0 %v23, 124
    %v25 = vpop.permute.xlu0 %24
    %vm26 = vcmask 39936
    %s27 = scalar_lea.vmem [#allocation0], 16
    %28 = vst.msk [vmem:[%s27] sm:$0x1] %vm26, %v25
    %vm29 = vcmask 1048544
    %s30 = scalar_lea.vmem [#allocation0], 8
    %31 = vst.msk [vmem:[%s30] sm:$0x1] %vm29, %v25
    %s32 = scalar_lea.vmem %s0, 42
    %v33 = vld [vmem:[%s32] sm:$0x1]
    %s34 = scalar_lea.vmem %s0, 42
    %v35 = vld [vmem:[%s34] sm:$0x1]
    %vm36 = vcmask 48128
    %v37 = vsel %vm36, %v35, %v33
    %38 = vrot.lane.b32.xlu0 %v37, 122
    %v39 = vpop.permute.xlu0 %38
    %vm40 = vcmask 23552
    %s41 = scalar_lea.vmem [#allocation0], 24
    %42 = vst.msk [vmem:[%s41] sm:$0x1] %vm40, %v39
    %vm43 = vcmask 1048528
    %s44 = scalar_lea.vmem [#allocation0], 16
    %45 = vst.msk [vmem:[%s44] sm:$0x1] %vm43, %v39
    %s46 = scalar_lea.vmem %s0, 56
    %v47 = vld [vmem:[%s46] sm:$0x1]
    %s48 = scalar_lea.vmem %s0, 56
    %v49 = vld [vmem:[%s48] sm:$0x1]
    %vm50 = vcmask 64512
    %v51 = vsel %vm50, %v49, %v47
    %52 = vrot.lane.b32.xlu0 %v51, 120
    %v53 = vpop.permute.xlu0 %52
    %vm54 = vcmask 7168
    %s55 = scalar_lea.vmem [#allocation0], 32
    %56 = vst.msk [vmem:[%s55] sm:$0x1] %vm54, %v53
    %vm57 = vcmask 1048512
    %s58 = scalar_lea.vmem [#allocation0], 24
    %59 = vst.msk [vmem:[%s58] sm:$0x1] %vm57, %v53
    %s60 = scalar_lea.vmem %s0, 13
    %v61 = vld [vmem:[%s60] sm:$0x1]
    %62 = vrot.lane.b32.xlu0 %v61, 117
    %v63 = vpop.permute.xlu0 %62
    %vm64 = vcmask 1032104
    %65 = vst.msk [vmem:[#allocation0] sm:$0x1] %vm64, %v63
    %s66 = scalar_lea.vmem %s0, 27
    %v67 = vld [vmem:[%s66] sm:$0x1]
    %68 = vrot.lane.b32.xlu0 %v67, 115
    %v69 = vpop.permute.xlu0 %68
    %vm70 = vcmask 1015704
    %s71 = scalar_lea.vmem [#allocation0], 8
    %72 = vst.msk [vmem:[%s71] sm:$0x1] %vm70, %v69
    %s73 = scalar_lea.vmem %s0, 41
    %v74 = vld [vmem:[%s73] sm:$0x1]
    %75 = vrot.lane.b32.xlu0 %v74, 113
    %v76 = vpop.permute.xlu0 %75
    %vm77 = vcmask 999304
    %s78 = scalar_lea.vmem [#allocation0], 16
    %79 = vst.msk [vmem:[%s78] sm:$0x1] %vm77, %v76
    %s80 = scalar_lea.vmem %s0, 55
    %v81 = vld [vmem:[%s80] sm:$0x1]
    %82 = vrot.lane.b32.xlu0 %v81, 111
    %v83 = vpop.permute.xlu0 %82
    %vm84 = vcmask 982904
    %s85 = scalar_lea.vmem [#allocation0], 24
    %86 = vst.msk [vmem:[%s85] sm:$0x1] %vm84, %v83
    %s87 = scalar_lea.vmem %s0, 12
    %v88 = vld [vmem:[%s87] sm:$0x1]
    %89 = vrot.lane.b32.xlu0 %v88, 108
    %v90 = vpop.permute.xlu0 %89
    %vm91 = vcmask 958304
    %92 = vst.msk [vmem:[#allocation0] sm:$0x1] %vm91, %v90
    %s93 = scalar_lea.vmem %s0, 26
    %v94 = vld [vmem:[%s93] sm:$0x1]
    %95 = vrot.lane.b32.xlu0 %v94, 106
    %v96 = vpop.permute.xlu0 %95
    %vm97 = vcmask 941904
    %s98 = scalar_lea.vmem [#allocation0], 8
    %99 = vst.msk [vmem:[%s98] sm:$0x1] %vm97, %v96
    %s100 = scalar_lea.vmem %s0, 40
    %v101 = vld [vmem:[%s100] sm:$0x1]
    %102 = vrot.lane.b32.xlu0 %v101, 104
    %v103 = vpop.permute.xlu0 %102
    %vm104 = vcmask 925504
    %s105 = scalar_lea.vmem [#allocation0], 16
    %106 = vst.msk [vmem:[%s105] sm:$0x1] %vm104, %v103
    %s107 = scalar_lea.vmem %s0, 54
    %v108 = vld [vmem:[%s107] sm:$0x1]
    %109 = vrot.lane.b32.xlu0 %v108, 102
    %v110 = vpop.permute.xlu0 %109
    %vm111 = vcmask 909104
    %s112 = scalar_lea.vmem [#allocation0], 24
    %113 = vst.msk [vmem:[%s112] sm:$0x1] %vm111, %v110
    %s114 = scalar_lea.vmem %s0, 11
    %v115 = vld [vmem:[%s114] sm:$0x1]
    %116 = vrot.lane.b32.xlu0 %v115, 99
    %v117 = vpop.permute.xlu0 %116
    %vm118 = vcmask 884504
    %119 = vst.msk [vmem:[#allocation0] sm:$0x1] %vm118, %v117
    %s120 = scalar_lea.vmem %s0, 25
    %v121 = vld [vmem:[%s120] sm:$0x1]
    %122 = vrot.lane.b32.xlu0 %v121, 97
    %v123 = vpop.permute.xlu0 %122
    %vm124 = vcmask 868104
    %s125 = scalar_lea.vmem [#allocation0], 8
    %126 = vst.msk [vmem:[%s125] sm:$0x1] %vm124, %v123
    %s127 = scalar_lea.vmem %s0, 39
    %v128 = vld [vmem:[%s127] sm:$0x1]
    %129 = vrot.lane.b32.xlu0 %v128, 95
    %v130 = vpop.permute.xlu0 %129
    %vm131 = vcmask 851704
    %s132 = scalar_lea.vmem [#allocation0], 16
    %133 = vst.msk [vmem:[%s132] sm:$0x1] %vm131, %v130
    %s134 = scalar_lea.vmem %s0, 53
    %v135 = vld [vmem:[%s134] sm:$0x1]
    %136 = vrot.lane.b32.xlu0 %v135, 93
    %v137 = vpop.permute.xlu0 %136
    %vm138 = vcmask 835304
    %s139 = scalar_lea.vmem [#allocation0], 24
    %140 = vst.msk [vmem:[%s139] sm:$0x1] %vm138, %v137
    %s141 = scalar_lea.vmem %s0, 10
    %v142 = vld [vmem:[%s141] sm:$0x1]
    %143 = vrot.lane.b32.xlu0 %v142, 90
    %v144 = vpop.permute.xlu0 %143
    %vm145 = vcmask 810704
    %146 = vst.msk [vmem:[#allocation0] sm:$0x1] %vm145, %v144
    %s147 = scalar_lea.vmem %s0, 24
    %v148 = vld [vmem:[%s147] sm:$0x1]
    %149 = vrot.lane.b32.xlu0 %v148, 88
    %v150 = vpop.permute.xlu0 %149
    %vm151 = vcmask 794304
    %s152 = scalar_lea.vmem [#allocation0], 8
    %153 = vst.msk [vmem:[%s152] sm:$0x1] %vm151, %v150
    %s154 = scalar_lea.vmem %s0, 38
    %v155 = vld [vmem:[%s154] sm:$0x1]
    %156 = vrot.lane.b32.xlu0 %v155, 86
    %v157 = vpop.permute.xlu0 %156
    %vm158 = vcmask 777904
    %s159 = scalar_lea.vmem [#allocation0], 16
    %160 = vst.msk [vmem:[%s159] sm:$0x1] %vm158, %v157
    %s161 = scalar_lea.vmem %s0, 52
    %v162 = vld [vmem:[%s161] sm:$0x1]
    %163 = vrot.lane.b32.xlu0 %v162, 84
    %v164 = vpop.permute.xlu0 %163
    %vm165 = vcmask 761504
    %s166 = scalar_lea.vmem [#allocation0], 24
    %167 = vst.msk [vmem:[%s166] sm:$0x1] %vm165, %v164
    %s168 = scalar_lea.vmem %s0, 9
    %v169 = vld [vmem:[%s168] sm:$0x1]
    %170 = vrot.lane.b32.xlu0 %v169, 81
    %v171 = vpop.permute.xlu0 %170
    %vm172 = vcmask 736904
    %173 = vst.msk [vmem:[#allocation0] sm:$0x1] %vm172, %v171
    %s174 = scalar_lea.vmem %s0, 23
    %v175 = vld [vmem:[%s174] sm:$0x1]
    %176 = vrot.lane.b32.xlu0 %v175, 79
    %v177 = vpop.permute.xlu0 %176
    %vm178 = vcmask 720504
    %s179 = scalar_lea.vmem [#allocation0], 8
    %180 = vst.msk [vmem:[%s179] sm:$0x1] %vm178, %v177
    %s181 = scalar_lea.vmem %s0, 37
    %v182 = vld [vmem:[%s181] sm:$0x1]
    %183 = vrot.lane.b32.xlu0 %v182, 77
    %v184 = vpop.permute.xlu0 %183
    %vm185 = vcmask 704104
    %s186 = scalar_lea.vmem [#allocation0], 16
    %187 = vst.msk [vmem:[%s186] sm:$0x1] %vm185, %v184
    %s188 = scalar_lea.vmem %s0, 51
    %v189 = vld [vmem:[%s188] sm:$0x1]
    %190 = vrot.lane.b32.xlu0 %v189, 75
    %v191 = vpop.permute.xlu0 %190
    %vm192 = vcmask 687704
    %s193 = scalar_lea.vmem [#allocation0], 24
    %194 = vst.msk [vmem:[%s193] sm:$0x1] %vm192, %v191
    %s195 = scalar_lea.vmem %s0, 8
    %v196 = vld [vmem:[%s195] sm:$0x1]
    %197 = vrot.lane.b32.xlu0 %v196, 72
    %v198 = vpop.permute.xlu0 %197
    %vm199 = vcmask 663104
    %200 = vst.msk [vmem:[#allocation0] sm:$0x1] %vm199, %v198
    %s201 = scalar_lea.vmem %s0, 22
    %v202 = vld [vmem:[%s201] sm:$0x1]
    %203 = vrot.lane.b32.xlu0 %v202, 70
    %v204 = vpop.permute.xlu0 %203
    %vm205 = vcmask 646704
    %s206 = scalar_lea.vmem [#allocation0], 8
    %207 = vst.msk [vmem:[%s206] sm:$0x1] %vm205, %v204
    %s208 = scalar_lea.vmem %s0, 36
    %v209 = vld [vmem:[%s208] sm:$0x1]
    %210 = vrot.lane.b32.xlu0 %v209, 68
    %v211 = vpop.permute.xlu0 %210
    %vm212 = vcmask 630304
    %s213 = scalar_lea.vmem [#allocation0], 16
    %214 = vst.msk [vmem:[%s213] sm:$0x1] %vm212, %v211
    %s215 = scalar_lea.vmem %s0, 50
    %v216 = vld [vmem:[%s215] sm:$0x1]
    %217 = vrot.lane.b32.xlu0 %v216, 66
    %v218 = vpop.permute.xlu0 %217
    %vm219 = vcmask 613904
    %s220 = scalar_lea.vmem [#allocation0], 24
    %221 = vst.msk [vmem:[%s220] sm:$0x1] %vm219, %v218
    %s222 = scalar_lea.vmem %s0, 7
    %v223 = vld [vmem:[%s222] sm:$0x1]
    %224 = vrot.lane.b32.xlu0 %v223, 63
    %v225 = vpop.permute.xlu0 %224
    %vm226 = vcmask 589304
    %227 = vst.msk [vmem:[#allocation0] sm:$0x1] %vm226, %v225
    %s228 = scalar_lea.vmem %s0, 21
    %v229 = vld [vmem:[%s228] sm:$0x1]
    %230 = vrot.lane.b32.xlu0 %v229, 61
    %v231 = vpop.permute.xlu0 %230
    %vm232 = vcmask 572904
    %s233 = scalar_lea.vmem [#allocation0], 8
    %234 = vst.msk [vmem:[%s233] sm:$0x1] %vm232, %v231
    %s235 = scalar_lea.vmem %s0, 35
    %v236 = vld [vmem:[%s235] sm:$0x1]
    %237 = vrot.lane.b32.xlu0 %v236, 59
    %v238 = vpop.permute.xlu0 %237
    %vm239 = vcmask 556504
    %s240 = scalar_lea.vmem [#allocation0], 16
    %241 = vst.msk [vmem:[%s240] sm:$0x1] %vm239, %v238
    %s242 = scalar_lea.vmem %s0, 49
    %v243 = vld [vmem:[%s242] sm:$0x1]
    %244 = vrot.lane.b32.xlu0 %v243, 57
    %v245 = vpop.permute.xlu0 %244
    %vm246 = vcmask 540104
    %s247 = scalar_lea.vmem [#allocation0], 24
    %248 = vst.msk [vmem:[%s247] sm:$0x1] %vm246, %v245
    %s249 = scalar_lea.vmem %s0, 63
    %v250 = vld [vmem:[%s249] sm:$0x1]
    %251 = vrot.lane.b32.xlu0 %v250, 55
    %v252 = vpop.permute.xlu0 %251
    %vm253 = vcmask 523704
    %s254 = scalar_lea.vmem [#allocation0], 32
    %255 = vst.msk [vmem:[%s254] sm:$0x1] %vm253, %v252
    %s256 = scalar_lea.vmem %s0, 6
    %v257 = vld [vmem:[%s256] sm:$0x1]
    %258 = vrot.lane.b32.xlu0 %v257, 54
    %v259 = vpop.permute.xlu0 %258
    %vm260 = vcmask 515504
    %261 = vst.msk [vmem:[#allocation0] sm:$0x1] %vm260, %v259
    %s262 = scalar_lea.vmem %s0, 20
    %v263 = vld [vmem:[%s262] sm:$0x1]
    %264 = vrot.lane.b32.xlu0 %v263, 52
    %v265 = vpop.permute.xlu0 %264
    %vm266 = vcmask 499104
    %s267 = scalar_lea.vmem [#allocation0], 8
    %268 = vst.msk [vmem:[%s267] sm:$0x1] %vm266, %v265
    %s269 = scalar_lea.vmem %s0, 34
    %v270 = vld [vmem:[%s269] sm:$0x1]
    %271 = vrot.lane.b32.xlu0 %v270, 50
    %v272 = vpop.permute.xlu0 %271
    %vm273 = vcmask 482704
    %s274 = scalar_lea.vmem [#allocation0], 16
    %275 = vst.msk [vmem:[%s274] sm:$0x1] %vm273, %v272
    %s276 = scalar_lea.vmem %s0, 48
    %v277 = vld [vmem:[%s276] sm:$0x1]
    %278 = vrot.lane.b32.xlu0 %v277, 48
    %v279 = vpop.permute.xlu0 %278
    %vm280 = vcmask 466304
    %s281 = scalar_lea.vmem [#allocation0], 24
    %282 = vst.msk [vmem:[%s281] sm:$0x1] %vm280, %v279
    %s283 = scalar_lea.vmem %s0, 62
    %v284 = vld [vmem:[%s283] sm:$0x1]
    %285 = vrot.lane.b32.xlu0 %v284, 46
    %v286 = vpop.permute.xlu0 %285
    %vm287 = vcmask 449904
    %s288 = scalar_lea.vmem [#allocation0], 32
    %289 = vst.msk [vmem:[%s288] sm:$0x1] %vm287, %v286
    %s290 = scalar_lea.vmem %s0, 5
    %v291 = vld [vmem:[%s290] sm:$0x1]
    %292 = vrot.lane.b32.xlu0 %v291, 45
    %v293 = vpop.permute.xlu0 %292
    %vm294 = vcmask 441704
    %295 = vst.msk [vmem:[#allocation0] sm:$0x1] %vm294, %v293
    %s296 = scalar_lea.vmem %s0, 19
    %v297 = vld [vmem:[%s296] sm:$0x1]
    %298 = vrot.lane.b32.xlu0 %v297, 43
    %v299 = vpop.permute.xlu0 %298
    %vm300 = vcmask 425304
    %s301 = scalar_lea.vmem [#allocation0], 8
    %302 = vst.msk [vmem:[%s301] sm:$0x1] %vm300, %v299
    %s303 = scalar_lea.vmem %s0, 33
    %v304 = vld [vmem:[%s303] sm:$0x1]
    %305 = vrot.lane.b32.xlu0 %v304, 41
    %v306 = vpop.permute.xlu0 %305
    %vm307 = vcmask 408904
    %s308 = scalar_lea.vmem [#allocation0], 16
    %309 = vst.msk [vmem:[%s308] sm:$0x1] %vm307, %v306
    %s310 = scalar_lea.vmem %s0, 47
    %v311 = vld [vmem:[%s310] sm:$0x1]
    %312 = vrot.lane.b32.xlu0 %v311, 39
    %v313 = vpop.permute.xlu0 %312
    %vm314 = vcmask 392504
    %s315 = scalar_lea.vmem [#allocation0], 24
    %316 = vst.msk [vmem:[%s315] sm:$0x1] %vm314, %v313
    %s317 = scalar_lea.vmem %s0, 61
    %v318 = vld [vmem:[%s317] sm:$0x1]
    %319 = vrot.lane.b32.xlu0 %v318, 37
    %v320 = vpop.permute.xlu0 %319
    %vm321 = vcmask 376104
    %s322 = scalar_lea.vmem [#allocation0], 32
    %323 = vst.msk [vmem:[%s322] sm:$0x1] %vm321, %v320
    %s324 = scalar_lea.vmem %s0, 4
    %v325 = vld [vmem:[%s324] sm:$0x1]
    %326 = vrot.lane.b32.xlu0 %v325, 36
    %v327 = vpop.permute.xlu0 %326
    %vm328 = vcmask 367904
    %329 = vst.msk [vmem:[#allocation0] sm:$0x1] %vm328, %v327
    %s330 = scalar_lea.vmem %s0, 18
    %v331 = vld [vmem:[%s330] sm:$0x1]
    %332 = vrot.lane.b32.xlu0 %v331, 34
    %v333 = vpop.permute.xlu0 %332
    %vm334 = vcmask 351504
    %s335 = scalar_lea.vmem [#allocation0], 8
    %336 = vst.msk [vmem:[%s335] sm:$0x1] %vm334, %v333
    %s337 = scalar_lea.vmem %s0, 32
    %v338 = vld [vmem:[%s337] sm:$0x1]
    %339 = vrot.lane.b32.xlu0 %v338, 32
    %v340 = vpop.permute.xlu0 %339
    %vm341 = vcmask 335104
    %s342 = scalar_lea.vmem [#allocation0], 16
    %343 = vst.msk [vmem:[%s342] sm:$0x1] %vm341, %v340
    %s344 = scalar_lea.vmem %s0, 46
    %v345 = vld [vmem:[%s344] sm:$0x1]
    %346 = vrot.lane.b32.xlu0 %v345, 30
    %v347 = vpop.permute.xlu0 %346
    %vm348 = vcmask 318704
    %s349 = scalar_lea.vmem [#allocation0], 24
    %350 = vst.msk [vmem:[%s349] sm:$0x1] %vm348, %v347
    %s351 = scalar_lea.vmem %s0, 60
    %v352 = vld [vmem:[%s351] sm:$0x1]
    %353 = vrot.lane.b32.xlu0 %v352, 28
    %v354 = vpop.permute.xlu0 %353
    %vm355 = vcmask 302304
    %s356 = scalar_lea.vmem [#allocation0], 32
    %357 = vst.msk [vmem:[%s356] sm:$0x1] %vm355, %v354
    %s358 = scalar_lea.vmem %s0, 3
    %v359 = vld [vmem:[%s358] sm:$0x1]
    %360 = vrot.lane.b32.xlu0 %v359, 27
    %v361 = vpop.permute.xlu0 %360
    %vm362 = vcmask 294104
    %363 = vst.msk [vmem:[#allocation0] sm:$0x1] %vm362, %v361
    %s364 = scalar_lea.vmem %s0, 17
    %v365 = vld [vmem:[%s364] sm:$0x1]
    %366 = vrot.lane.b32.xlu0 %v365, 25
    %v367 = vpop.permute.xlu0 %366
    %vm368 = vcmask 277704
    %s369 = scalar_lea.vmem [#allocation0], 8
    %370 = vst.msk [vmem:[%s369] sm:$0x1] %vm368, %v367
    %s371 = scalar_lea.vmem %s0, 31
    %v372 = vld [vmem:[%s371] sm:$0x1]
    %373 = vrot.lane.b32.xlu0 %v372, 23
    %v374 = vpop.permute.xlu0 %373
    %vm375 = vcmask 261304
    %s376 = scalar_lea.vmem [#allocation0], 16
    %377 = vst.msk [vmem:[%s376] sm:$0x1] %vm375, %v374
    %s378 = scalar_lea.vmem %s0, 45
    %v379 = vld [vmem:[%s378] sm:$0x1]
    %380 = vrot.lane.b32.xlu0 %v379, 21
    %v381 = vpop.permute.xlu0 %380
    %vm382 = vcmask 244904
    %s383 = scalar_lea.vmem [#allocation0], 24
    %384 = vst.msk [vmem:[%s383] sm:$0x1] %vm382, %v381
    %s385 = scalar_lea.vmem %s0, 59
    %v386 = vld [vmem:[%s385] sm:$0x1]
    %387 = vrot.lane.b32.xlu0 %v386, 19
    %v388 = vpop.permute.xlu0 %387
    %vm389 = vcmask 228504
    %s390 = scalar_lea.vmem [#allocation0], 32
    %391 = vst.msk [vmem:[%s390] sm:$0x1] %vm389, %v388
    %s392 = scalar_lea.vmem %s0, 2
    %v393 = vld [vmem:[%s392] sm:$0x1]
    %394 = vrot.lane.b32.xlu0 %v393, 18
    %v395 = vpop.permute.xlu0 %394
    %vm396 = vcmask 220304
    %397 = vst.msk [vmem:[#allocation0] sm:$0x1] %vm396, %v395
    %s398 = scalar_lea.vmem %s0, 16
    %v399 = vld [vmem:[%s398] sm:$0x1]
    %400 = vrot.lane.b32.xlu0 %v399, 16
    %v401 = vpop.permute.xlu0 %400
    %vm402 = vcmask 203904
    %s403 = scalar_lea.vmem [#allocation0], 8
    %404 = vst.msk [vmem:[%s403] sm:$0x1] %vm402, %v401
    %s405 = scalar_lea.vmem %s0, 30
    %v406 = vld [vmem:[%s405] sm:$0x1]
    %407 = vrot.lane.b32.xlu0 %v406, 14
    %v408 = vpop.permute.xlu0 %407
    %vm409 = vcmask 187504
    %s410 = scalar_lea.vmem [#allocation0], 16
    %411 = vst.msk [vmem:[%s410] sm:$0x1] %vm409, %v408
    %s412 = scalar_lea.vmem %s0, 44
    %v413 = vld [vmem:[%s412] sm:$0x1]
    %414 = vrot.lane.b32.xlu0 %v413, 12
    %v415 = vpop.permute.xlu0 %414
    %vm416 = vcmask 171104
    %s417 = scalar_lea.vmem [#allocation0], 24
    %418 = vst.msk [vmem:[%s417] sm:$0x1] %vm416, %v415
    %s419 = scalar_lea.vmem %s0, 58
    %v420 = vld [vmem:[%s419] sm:$0x1]
    %421 = vrot.lane.b32.xlu0 %v420, 10
    %v422 = vpop.permute.xlu0 %421
    %vm423 = vcmask 154704
    %s424 = scalar_lea.vmem [#allocation0], 32
    %425 = vst.msk [vmem:[%s424] sm:$0x1] %vm423, %v422
    %s426 = scalar_lea.vmem %s0, 1
    %v427 = vld [vmem:[%s426] sm:$0x1]
    %428 = vrot.lane.b32.xlu0 %v427, 9
    %v429 = vpop.permute.xlu0 %428
    %vm430 = vcmask 146504
    %431 = vst.msk [vmem:[#allocation0] sm:$0x1] %vm430, %v429
    %s432 = scalar_lea.vmem %s0, 15
    %v433 = vld [vmem:[%s432] sm:$0x1]
    %434 = vrot.lane.b32.xlu0 %v433, 7
    %v435 = vpop.permute.xlu0 %434
    %vm436 = vcmask 130104
    %s437 = scalar_lea.vmem [#allocation0], 8
    %438 = vst.msk [vmem:[%s437] sm:$0x1] %vm436, %v435
    %s439 = scalar_lea.vmem %s0, 29
    %v440 = vld [vmem:[%s439] sm:$0x1]
    %441 = vrot.lane.b32.xlu0 %v440, 5
    %v442 = vpop.permute.xlu0 %441
    %vm443 = vcmask 113704
    %s444 = scalar_lea.vmem [#allocation0], 16
    %445 = vst.msk [vmem:[%s444] sm:$0x1] %vm443, %v442
    %s446 = scalar_lea.vmem %s0, 43
    %v447 = vld [vmem:[%s446] sm:$0x1]
    %448 = vrot.lane.b32.xlu0 %v447, 3
    %v449 = vpop.permute.xlu0 %448
    %vm450 = vcmask 97304
    %s451 = scalar_lea.vmem [#allocation0], 24
    %452 = vst.msk [vmem:[%s451] sm:$0x1] %vm450, %v449
    %s453 = scalar_lea.vmem %s0, 57
    %v454 = vld [vmem:[%s453] sm:$0x1]
    %455 = vrot.lane.b32.xlu0 %v454, 1
    %v456 = vpop.permute.xlu0 %455
    %vm457 = vcmask 80904
    %s458 = scalar_lea.vmem [#allocation0], 32
    %459 = vst.msk [vmem:[%s458] sm:$0x1] %vm457, %v456
    %s461 = sshll.u32 1, 1
    %s462 = ssub.s32 %s461, 1
    %v464 = vld [vmem:[#allocation0] sm:%s462]
    %s465 = sshll.u32 1, 1
    %s466 = ssub.s32 %s465, 1
    %467 = vst [vmem:[%s1] sm:%s466] %v464
    %s468 = scalar_lea.vmem [#allocation0], 8
    %v469 = vld [vmem:[%s468] sm:%s462]
    %s470 = sshll.u32 1, 1
    %s471 = ssub.s32 %s470, 1
    %s472 = scalar_lea.vmem %s1, 1
    %473 = vst [vmem:[%s472] sm:%s471] %v469
    %s474 = scalar_lea.vmem [#allocation0], 16
    %v475 = vld [vmem:[%s474] sm:%s462]
    %s476 = sshll.u32 1, 1
    %s477 = ssub.s32 %s476, 1
    %s478 = smul.addr 1, 2
    %s479 = scalar_lea.vmem %s1, %s478
    %480 = vst [vmem:[%s479] sm:%s477] %v475
    %s481 = scalar_lea.vmem [#allocation0], 24
    %v482 = vld [vmem:[%s481] sm:%s462]
    %s483 = sshll.u32 1, 1
    %s484 = ssub.s32 %s483, 1
    %s485 = smul.addr 1, 3
    %s486 = scalar_lea.vmem %s1, %s485
    %487 = vst [vmem:[%s486] sm:%s484] %v482
    %s488 = scalar_lea.vmem [#allocation0], 32
    %v489 = vld [vmem:[%s488] sm:%s462]
    %s490 = sshll.u32 1, 1
    %s491 = ssub.s32 %s490, 1
    %s492 = smul.addr 1, 4
    %s493 = scalar_lea.vmem %s1, %s492
    %494 = vst [vmem:[%s493] sm:%s491] %v489

// kernel: tile.39
$region0: #{tile.39}
  #allocation0 [shape = 's32[1]{0}', space=sflag, size = 0x4, scoped, tag = 'scoped memory for tile.39']
  %s0 = inlined_call_operand.vmem [shape: f32[16], index: 0, kind: input, shape index: {}]
  %s1 = inlined_call_operand.vmem [shape: f32[4,16], index: 1, kind: output, shape index: {}]
  // Predicated region
  $region2: #{tile.39} parent=0 // pred_check
    _
  $region3: #{tile.39} parent=0 // pred_check_branch
    %3 = sbr.rel (0) target = $region5
  $region4: #{tile.39} parent=0 // pred_region
    _
  $region5: #{tile.39} parent=0 // pred_fallthru
    _
  %v4 = vld [vmem:[%s0] ss:$0 sm:$0xff]
  %5 = vst [vmem:[%s1] sm:$0xf] %v4

// kernel: tile.46
$region0: #{tile.46}
  %s0 = inlined_call_operand.vmem [shape: f32[4,16], index: 0, kind: input, shape index: {}]
  %s1 = inlined_call_operand.vmem [shape: f32[64], index: 1, kind: output, shape index: {}]
  $region1: #{tile.46} parent=0
    #allocation0 [shape = 'u8[4096]{0}', space=vmem, size = 0x1000, scoped, tag = 'scoped mem for output reshape']
    #allocation1 [shape = 'u8[4096]{0}', space=vmem, size = 0x1000, scoped, tag = 'scoped mem for input reshape']
    %s3 = sshll.u32 1, 4
    %s4 = ssub.s32 %s3, 1
    %v5 = vld [vmem:[%s0] sm:%s4]
    %6 = vst [vmem:[#allocation1] sm:%s4] %v5
    %v7 = vld [vmem:[#allocation1] sm:$0x1]
    %vm8 = vcmask 130048
    %9 = vst.msk [vmem:[#allocation0] sm:$0x1] %vm8, %v7
    %s10 = scalar_lea.vmem [#allocation1], 3
    %v11 = vld [vmem:[%s10] sm:$0x1]
    %12 = vrot.lane.b32.xlu0 %v11, 48
    %v13 = vpop.permute.xlu0 %12
    %vm14 = vcmask 523648
    %15 = vst.msk [vmem:[#allocation0] sm:$0x1] %vm14, %v13
    %s16 = scalar_lea.vmem [#allocation1], 2
    %v17 = vld [vmem:[%s16] sm:$0x1]
    %18 = vrot.lane.b32.xlu0 %v17, 32
    %v19 = vpop.permute.xlu0 %18
    %vm20 = vcmask 392448
    %21 = vst.msk [vmem:[#allocation0] sm:$0x1] %vm20, %v19
    %s22 = scalar_lea.vmem [#allocation1], 1
    %v23 = vld [vmem:[%s22] sm:$0x1]
    %24 = vrot.lane.b32.xlu0 %v23, 16
    %v25 = vpop.permute.xlu0 %24
    %vm26 = vcmask 261248
    %27 = vst.msk [vmem:[#allocation0] sm:$0x1] %vm26, %v25
    %s29 = sshll.u32 1, 1
    %s30 = ssub.s32 %s29, 1
    %v32 = vld [vmem:[#allocation0] sm:%s30]
    %s33 = sshll.u32 1, 1
    %s34 = ssub.s32 %s33, 1
    %35 = vst [vmem:[%s1] sm:%s34] %v32

// kernel: tile.47
$region0: #{tile.47}
  #allocation0 [shape = 's32[1]{0}', space=sflag, size = 0x4, scoped, tag = 'scoped memory for tile.47']
  %s0 = inlined_call_operand.vmem [shape: f32[64], index: 0, kind: input, shape index: {}]
  %s1 = inlined_call_operand.vmem [shape: f32[16,64], index: 1, kind: output, shape index: {}]
  // Predicated region
  $region2: #{tile.47} parent=0 // pred_check
    _
  $region3: #{tile.47} parent=0 // pred_check_branch
    %3 = sbr.rel (0) target = $region5
  $region4: #{tile.47} parent=0 // pred_region
    _
  $region5: #{tile.47} parent=0 // pred_fallthru
    _
  %v4 = vld [vmem:[%s0] ss:$0 sm:$0xff]
  %5 = vst [vmem:[%s1] sm:$0xff] %v4
  %s6 = scalar_lea.vmem %s1, 8
  %7 = vst [vmem:[%s6] sm:$0xff] %v4

// kernel: tile.54
$region0: #{tile.54}
  %s0 = inlined_call_operand.vmem [shape: f32[16,64], index: 0, kind: input, shape index: {}]
  %s1 = inlined_call_operand.vmem [shape: f32[1,1024], index: 1, kind: output, shape index: {}]
  $region1: #{tile.54} parent=0
    #allocation0 [shape = 'u8[32768]{0}', space=vmem, size = 0x8000, scoped, tag = 'scoped mem for output reshape']
    %v2 = vld [vmem:[%s0] ss:$2 sm:$0xff]
    %vm3 = vcmask 523264
    %4 = vst.msk [vmem:[#allocation0] ss:$8 sm:$0xf] %vm3, %v2
    %5 = vst.msk [vmem:[#allocation0] ss:$8 sm:$0xf0] %vm3, %v2
    %s6 = scalar_lea.vmem %s0, 1
    %v7 = vld [vmem:[%s6] ss:$2 sm:$0xff]
    %8 = vrot.lane.b32.xlu0 %v7, 64
    %v9 = vpop.permute.xlu0 %8
    %vm10 = vcmask 1048064
    %11 = vst.msk [vmem:[#allocation0] ss:$8 sm:$0xf] %vm10, %v9
    %12 = vst.msk [vmem:[#allocation0] ss:$8 sm:$0xf0] %vm10, %v9
    %s14 = sshll.u32 1, 1
    %s15 = ssub.s32 %s14, 1
    %v17 = vld [vmem:[#allocation0] sm:%s15]
    %s18 = sshll.u32 1, 1
    %s19 = ssub.s32 %s18, 1
    %20 = vst [vmem:[%s1] sm:%s19] %v17
    %s21 = scalar_lea.vmem [#allocation0], 8
    %v22 = vld [vmem:[%s21] sm:%s15]
    %s23 = sshll.u32 1, 1
    %s24 = ssub.s32 %s23, 1
    %s25 = scalar_lea.vmem %s1, 1
    %26 = vst [vmem:[%s25] sm:%s24] %v22
    %s27 = scalar_lea.vmem [#allocation0], 16
    %v28 = vld [vmem:[%s27] sm:%s15]
    %s29 = sshll.u32 1, 1
    %s30 = ssub.s32 %s29, 1
    %s31 = smul.addr 1, 2
    %s32 = scalar_lea.vmem %s1, %s31
    %33 = vst [vmem:[%s32] sm:%s30] %v28
    %s34 = scalar_lea.vmem [#allocation0], 24
    %v35 = vld [vmem:[%s34] sm:%s15]
    %s36 = sshll.u32 1, 1
    %s37 = ssub.s32 %s36, 1
    %s38 = smul.addr 1, 3
    %s39 = scalar_lea.vmem %s1, %s38
    %40 = vst [vmem:[%s39] sm:%s37] %v35
    %s41 = scalar_lea.vmem [#allocation0], 32
    %v42 = vld [vmem:[%s41] sm:%s15]
    %s43 = sshll.u32 1, 1
    %s44 = ssub.s32 %s43, 1
    %s45 = smul.addr 1, 4
    %s46 = scalar_lea.vmem %s1, %s45
    %47 = vst [vmem:[%s46] sm:%s44] %v42
    %s48 = scalar_lea.vmem [#allocation0], 40
    %v49 = vld [vmem:[%s48] sm:%s15]
    %s50 = sshll.u32 1, 1
    %s51 = ssub.s32 %s50, 1
    %s52 = smul.addr 1, 5
    %s53 = scalar_lea.vmem %s1, %s52
    %54 = vst [vmem:[%s53] sm:%s51] %v49
    %s55 = scalar_lea.vmem [#allocation0], 48
    %v56 = vld [vmem:[%s55] sm:%s15]
    %s57 = sshll.u32 1, 1
    %s58 = ssub.s32 %s57, 1
    %s59 = smul.addr 1, 6
    %s60 = scalar_lea.vmem %s1, %s59
    %61 = vst [vmem:[%s60] sm:%s58] %v56
    %s62 = scalar_lea.vmem [#allocation0], 56
    %v63 = vld [vmem:[%s62] sm:%s15]
    %s64 = sshll.u32 1, 1
    %s65 = ssub.s32 %s64, 1
    %s66 = smul.addr 1, 7
    %s67 = scalar_lea.vmem %s1, %s66
    %68 = vst [vmem:[%s67] sm:%s65] %v63

// kernel: tile.35
$region0: #{tile.35}
  #allocation0 [shape = 's32[1]{0}', space=sflag, size = 0x4, scoped, tag = 'scoped memory for tile.35']
  %s0 = inlined_call_operand.vmem [shape: f32[32], index: 0, kind: input, shape index: {}]
  %s1 = inlined_call_operand.vmem [shape: f32[4,32], index: 1, kind: output, shape index: {}]
  // Predicated region
  $region2: #{tile.35} parent=0 // pred_check
    _
  $region3: #{tile.35} parent=0 // pred_check_branch
    %3 = sbr.rel (0) target = $region5
  $region4: #{tile.35} parent=0 // pred_region
    _
  $region5: #{tile.35} parent=0 // pred_fallthru
    _
  %v4 = vld [vmem:[%s0] ss:$0 sm:$0xff]
  %5 = vst [vmem:[%s1] sm:$0xf] %v4

// kernel: tile.42
$region0: #{tile.42}
  %s0 = inlined_call_operand.vmem [shape: f32[4,32], index: 0, kind: input, shape index: {}]
  %s1 = inlined_call_operand.vmem [shape: f32[128], index: 1, kind: output, shape index: {}]
  $region1: #{tile.42} parent=0
    #allocation0 [shape = 'u8[4096]{0}', space=vmem, size = 0x1000, scoped, tag = 'scoped mem for output reshape']
    #allocation1 [shape = 'u8[4096]{0}', space=vmem, size = 0x1000, scoped, tag = 'scoped mem for input reshape']
    %s3 = sshll.u32 1, 4
    %s4 = ssub.s32 %s3, 1
    %v5 = vld [vmem:[%s0] sm:%s4]
    %6 = vst [vmem:[#allocation1] sm:%s4] %v5
    %v7 = vld [vmem:[#allocation1] sm:$0x1]
    %vm8 = vcmask 261120
    %9 = vst.msk [vmem:[#allocation0] sm:$0x1] %vm8, %v7
    %s10 = scalar_lea.vmem [#allocation1], 3
    %v11 = vld [vmem:[%s10] sm:$0x1]
    %12 = vrot.lane.b32.xlu0 %v11, 96
    %v13 = vpop.permute.xlu0 %12
    %vm14 = vcmask 1048320
    %15 = vst.msk [vmem:[#allocation0] sm:$0x1] %vm14, %v13
    %s16 = scalar_lea.vmem [#allocation1], 2
    %v17 = vld [vmem:[%s16] sm:$0x1]
    %18 = vrot.lane.b32.xlu0 %v17, 64
    %v19 = vpop.permute.xlu0 %18
    %vm20 = vcmask 785920
    %21 = vst.msk [vmem:[#allocation0] sm:$0x1] %vm20, %v19
    %s22 = scalar_lea.vmem [#allocation1], 1
    %v23 = vld [vmem:[%s22] sm:$0x1]
    %24 = vrot.lane.b32.xlu0 %v23, 32
    %v25 = vpop.permute.xlu0 %24
    %vm26 = vcmask 523520
    %27 = vst.msk [vmem:[#allocation0] sm:$0x1] %vm26, %v25
    %s29 = sshll.u32 1, 1
    %s30 = ssub.s32 %s29, 1
    %v32 = vld [vmem:[#allocation0] sm:%s30]
    %s33 = sshll.u32 1, 1
    %s34 = ssub.s32 %s33, 1
    %35 = vst [vmem:[%s1] sm:%s34] %v32

// kernel: tile.43
$region0: #{tile.43}
  #allocation0 [shape = 's32[1]{0}', space=sflag, size = 0x4, scoped, tag = 'scoped memory for tile.43']
  %s0 = inlined_call_operand.vmem [shape: f32[128], index: 0, kind: input, shape index: {}]
  %s1 = inlined_call_operand.vmem [shape: f32[4,128], index: 1, kind: output, shape index: {}]
  // Predicated region
  $region2: #{tile.43} parent=0 // pred_check
    _
  $region3: #{tile.43} parent=0 // pred_check_branch
    %3 = sbr.rel (0) target = $region5
  $region4: #{tile.43} parent=0 // pred_region
    _
  $region5: #{tile.43} parent=0 // pred_fallthru
    _
  %v4 = vld [vmem:[%s0] ss:$0 sm:$0xff]
  %5 = vst [vmem:[%s1] sm:$0xf] %v4

// kernel: tile.31
$region0: #{tile.31}
  #allocation0 [shape = 's32[1]{0}', space=sflag, size = 0x4, scoped, tag = 'scoped memory for tile.31']
  %s0 = inlined_call_operand.vmem [shape: f32[64], index: 0, kind: input, shape index: {}]
  %s1 = inlined_call_operand.vmem [shape: f32[4,64], index: 1, kind: output, shape index: {}]
  // Predicated region
  $region2: #{tile.31} parent=0 // pred_check
    _
  $region3: #{tile.31} parent=0 // pred_check_branch
    %3 = sbr.rel (0) target = $region5
  $region4: #{tile.31} parent=0 // pred_region
    _
  $region5: #{tile.31} parent=0 // pred_fallthru
    _
  %v4 = vld [vmem:[%s0] ss:$0 sm:$0xff]
  %5 = vst [vmem:[%s1] sm:$0xf] %v4

// kernel: tile.52
$region0: #{tile.52}
  %s0 = inlined_call_operand.vmem [shape: f32[4,64], index: 0, kind: input, shape index: {}]
  %s1 = inlined_call_operand.vmem [shape: f32[1,256], index: 1, kind: output, shape index: {}]
  $region1: #{tile.52} parent=0
    #allocation0 [shape = 'u8[8192]{0}', space=vmem, size = 0x2000, scoped, tag = 'scoped mem for output reshape']
    #allocation1 [shape = 'u8[4096]{0}', space=vmem, size = 0x1000, scoped, tag = 'scoped mem for input reshape']
    %s3 = sshll.u32 1, 4
    %s4 = ssub.s32 %s3, 1
    %v5 = vld [vmem:[%s0] sm:%s4]
    %6 = vst [vmem:[#allocation1] sm:%s4] %v5
    %s7 = smov 3
    %v8 = vld [vmem:[#allocation1] ss:$2 sm:%s7]
    %vm9 = vcmask 523264
    %10 = vst.msk [vmem:[#allocation0] ss:$8 sm:$0x3] %vm9, %v8
    %s11 = scalar_lea.vmem [#allocation1], 1
    %s12 = smov 3
    %v13 = vld [vmem:[%s11] ss:$2 sm:%s12]
    %14 = vrot.lane.b32.xlu0 %v13, 64
    %v15 = vpop.permute.xlu0 %14
    %vm16 = vcmask 1048064
    %17 = vst.msk [vmem:[#allocation0] ss:$8 sm:$0x3] %vm16, %v15
    %s19 = sshll.u32 1, 1
    %s20 = ssub.s32 %s19, 1
    %v22 = vld [vmem:[#allocation0] sm:%s20]
    %s23 = sshll.u32 1, 1
    %s24 = ssub.s32 %s23, 1
    %25 = vst [vmem:[%s1] sm:%s24] %v22
    %s26 = scalar_lea.vmem [#allocation0], 8
    %v27 = vld [vmem:[%s26] sm:%s20]
    %s28 = sshll.u32 1, 1
    %s29 = ssub.s32 %s28, 1
    %s30 = scalar_lea.vmem %s1, 1
    %31 = vst [vmem:[%s30] sm:%s29] %v27

// kernel: cnn_segmentation_forward.7
$region0: #{cnn_segmentation_forward.7}
  #allocation0 [shape = 'u32[]', space=smem, size = 0x4, offset = 0x4, fixed_abs, tag = 'smem constant byte address 0x4 - core index']
  #allocation1 [shape = 'u32[144,128]{1,0:T(1,128)}', space=vmem, size = 0x12000, scoped, tag = 'internal scratch']
  %s0 = inlined_call_operand.vmem [shape: bf16[16,128], index: 0, kind: input, shape index: {}]
  %s1 = inlined_call_operand.vmem [shape: bf16[128,256], index: 1, kind: input, shape index: {}]
  %s2 = inlined_call_operand.vmem [shape: f32[1,256], index: 2, kind: input, shape index: {}]
  %s3 = inlined_call_operand.vmem [shape: bf16[256,512], index: 3, kind: input, shape index: {}]
  %s4 = inlined_call_operand.vmem [shape: f32[1,512], index: 4, kind: input, shape index: {}]
  %s5 = inlined_call_operand.vmem [shape: bf16[512,1024], index: 5, kind: input, shape index: {}]
  %s6 = inlined_call_operand.vmem [shape: f32[1,1024], index: 6, kind: input, shape index: {}]
  %s7 = inlined_call_operand.vmem [shape: bf16[1024,576], index: 7, kind: input, shape index: {}]
  %s8 = inlined_call_operand.vmem [shape: f32[1,576], index: 8, kind: input, shape index: {}]
  %s9 = inlined_call_operand.vmem [shape: f32[16,576], index: 9, kind: output, shape index: {}]
  %s10 = sld [smem:[#allocation0]]
  $region46: #{cnn_segmentation_forward.7} parent=0
    _
  %s12 = ssub.s32 1, %s10
  %s13 = scalar_select 0, %s12, %s10
  // Predicated region
  $region2: #{cnn_segmentation_forward.7} parent=0 // pred_check
    _
  $region3: #{cnn_segmentation_forward.7} parent=0 // pred_check_branch
    %15 = sbr.rel (0) target = $region5
  $region4: #{cnn_segmentation_forward.7} parent=0 // pred_region
    _
  $region5: #{cnn_segmentation_forward.7} parent=0 // pred_fallthru
    _
  // Predicated region
  $region6: #{cnn_segmentation_forward.7} parent=0 // pred_check
    _
  $region7: #{cnn_segmentation_forward.7} parent=0 // pred_check_branch
    %17 = sbr.rel (0) target = $region9
  $region8: #{cnn_segmentation_forward.7} parent=0 // pred_region
    _
  $region9: #{cnn_segmentation_forward.7} parent=0 // pred_fallthru
    _
  // Predicated region
  $region10: #{cnn_segmentation_forward.7} parent=0 // pred_check
    _
  $region11: #{cnn_segmentation_forward.7} parent=0 // pred_check_branch
    %19 = sbr.rel (0) target = $region13
  $region12: #{cnn_segmentation_forward.7} parent=0 // pred_region
    _
  $region13: #{cnn_segmentation_forward.7} parent=0 // pred_fallthru
    _
  // Predicated region
  $region14: #{cnn_segmentation_forward.7} parent=0 // pred_check
    _
  $region15: #{cnn_segmentation_forward.7} parent=0 // pred_check_branch
    %21 = sbr.rel (0) target = $region17
  $region16: #{cnn_segmentation_forward.7} parent=0 // pred_region
    _
  $region17: #{cnn_segmentation_forward.7} parent=0 // pred_fallthru
    _
  // Predicated region
  $region18: #{cnn_segmentation_forward.7} parent=0 // pred_check
    _
  $region19: #{cnn_segmentation_forward.7} parent=0 // pred_check_branch
    %23 = sbr.rel (0) target = $region21
  $region20: #{cnn_segmentation_forward.7} parent=0 // pred_region
    _
  $region21: #{cnn_segmentation_forward.7} parent=0 // pred_fallthru
    _
  // Predicated region
  $region22: #{cnn_segmentation_forward.7} parent=0 // pred_check
    _
  $region23: #{cnn_segmentation_forward.7} parent=0 // pred_check_branch
    %25 = sbr.rel (0) target = $region25
  $region24: #{cnn_segmentation_forward.7} parent=0 // pred_region
    _
  $region25: #{cnn_segmentation_forward.7} parent=0 // pred_fallthru
    _
  // Predicated region
  $region26: #{cnn_segmentation_forward.7} parent=0 // pred_check
    _
  $region27: #{cnn_segmentation_forward.7} parent=0 // pred_check_branch
    %27 = sbr.rel (0) target = $region29
  $region28: #{cnn_segmentation_forward.7} parent=0 // pred_region
    _
  $region29: #{cnn_segmentation_forward.7} parent=0 // pred_fallthru
    _
  // Predicated region
  $region30: #{cnn_segmentation_forward.7} parent=0 // pred_check
    _
  $region31: #{cnn_segmentation_forward.7} parent=0 // pred_check_branch
    %29 = sbr.rel (0) target = $region33
  $region32: #{cnn_segmentation_forward.7} parent=0 // pred_region
    _
  $region33: #{cnn_segmentation_forward.7} parent=0 // pred_fallthru
    _
  // Predicated region
  $region34: #{cnn_segmentation_forward.7} parent=0 // pred_check
    _
  $region35: #{cnn_segmentation_forward.7} parent=0 // pred_check_branch
    %31 = sbr.rel (0) target = $region37
  $region36: #{cnn_segmentation_forward.7} parent=0 // pred_region
    _
  $region37: #{cnn_segmentation_forward.7} parent=0 // pred_fallthru
    _
  %v33 = vld [vmem:[%s0] sm:$0xf]
  %v34 = vld [vmem:[%s0 + $0x4] sm:$0xf]
  %v35 = vld [vmem:[%s1] sm:$0xff]
  %v36 = vld [vmem:[%s1 + $0x8] sm:$0xff]
  %v37 = vld [vmem:[%s1 + $0x10] sm:$0xff]
  %v38 = vld [vmem:[%s1 + $0x18] sm:$0xff]
  %v39 = vld [vmem:[%s1 + $0x20] sm:$0xff]
  %v40 = vld [vmem:[%s1 + $0x28] sm:$0xff]
  %v41 = vld [vmem:[%s1 + $0x30] sm:$0xff]
  %v42 = vld [vmem:[%s1 + $0x38] sm:$0xff]
  %v43 = vld [vmem:[%s1 + $0x40] sm:$0xff]
  %v44 = vld [vmem:[%s1 + $0x48] sm:$0xff]
  %v45 = vld [vmem:[%s1 + $0x50] sm:$0xff]
  %v46 = vld [vmem:[%s1 + $0x58] sm:$0xff]
  %v47 = vld [vmem:[%s1 + $0x60] sm:$0xff]
  %v48 = vld [vmem:[%s1 + $0x68] sm:$0xff]
  %v49 = vld [vmem:[%s1 + $0x70] sm:$0xff]
  %v50 = vld [vmem:[%s1 + $0x78] sm:$0xff]
  %v51 = vld [vmem:[%s2] sm:$0x3]
  %v53 = vlaneseq
  %v54 = vshrl.u32 %v53, 7
  %v55 = vsub.s32 0, %v54
  %v56 = vrot.slane %v51, %v55
  %v57 = vlaneseq
  %v58 = vshrl.u32 %v57, 7
  %v59 = vsub.s32 1, %v58
  %v60 = vrot.slane %v51, %v59
  %v65 = vunpack.c.l.b16 %v33
  %v66 = vunpack.c.l.b16 %v34
  %v67 = vpack.c.b16 %v66, %v65
  %v85 = vunpack.c.l.b16 %v35
  %v86 = vunpack.c.h.b16 %v35
  %v87 = vunpack.c.l.b16 %v36
  %v88 = vunpack.c.h.b16 %v36
  %v89 = vunpack.c.l.b16 %v37
  %v90 = vunpack.c.h.b16 %v37
  %v91 = vunpack.c.l.b16 %v38
  %v92 = vunpack.c.h.b16 %v38
  %v93 = vunpack.c.l.b16 %v39
  %v94 = vunpack.c.h.b16 %v39
  %v95 = vunpack.c.l.b16 %v40
  %v96 = vunpack.c.h.b16 %v40
  %v97 = vunpack.c.l.b16 %v41
  %v98 = vunpack.c.h.b16 %v41
  %v99 = vunpack.c.l.b16 %v42
  %v100 = vunpack.c.h.b16 %v42
  %v101 = vunpack.c.l.b16 %v43
  %v102 = vunpack.c.h.b16 %v43
  %v103 = vunpack.c.l.b16 %v44
  %v104 = vunpack.c.h.b16 %v44
  %v105 = vunpack.c.l.b16 %v45
  %v106 = vunpack.c.h.b16 %v45
  %v107 = vunpack.c.l.b16 %v46
  %v108 = vunpack.c.h.b16 %v46
  %v109 = vunpack.c.l.b16 %v47
  %v110 = vunpack.c.h.b16 %v47
  %v111 = vunpack.c.l.b16 %v48
  %v112 = vunpack.c.h.b16 %v48
  %v113 = vunpack.c.l.b16 %v49
  %v114 = vunpack.c.h.b16 %v49
  %v115 = vunpack.c.l.b16 %v50
  %v116 = vunpack.c.h.b16 %v50
  %v117 = vpack.c.b16 %v87, %v85
  %v118 = vpack.c.b16 %v88, %v86
  %v119 = vpack.c.b16 %v91, %v89
  %v120 = vpack.c.b16 %v92, %v90
  %v121 = vpack.c.b16 %v95, %v93
  %v122 = vpack.c.b16 %v96, %v94
  %v123 = vpack.c.b16 %v99, %v97
  %v124 = vpack.c.b16 %v100, %v98
  %v125 = vpack.c.b16 %v103, %v101
  %v126 = vpack.c.b16 %v104, %v102
  %v127 = vpack.c.b16 %v107, %v105
  %v128 = vpack.c.b16 %v108, %v106
  %v129 = vpack.c.b16 %v111, %v109
  %v130 = vpack.c.b16 %v112, %v110
  %v131 = vpack.c.b16 %v115, %v113
  %v132 = vpack.c.b16 %v116, %v114
  %149 = vmatprep.subr.bf16.mxu0 %v132
  %150 = vmatpush1.bf16.msra.mxu0 %v131
  %151 = vmatprep.subr.bf16.mxu0 %v130
  %152 = vmatpush1.bf16.msra.mxu0 %v129
  %153 = vmatprep.subr.bf16.mxu0 %v128
  %154 = vmatpush1.bf16.msra.mxu0 %v127
  %155 = vmatprep.subr.bf16.mxu0 %v126
  %156 = vmatpush1.bf16.msra.mxu0 %v125
  %157 = vmatprep.subr.bf16.mxu0 %v124
  %158 = vmatpush1.bf16.msra.mxu0 %v123
  %159 = vmatprep.subr.bf16.mxu0 %v122
  %160 = vmatpush1.bf16.msra.mxu0 %v121
  %161 = vmatprep.subr.bf16.mxu0 %v120
  %162 = vmatpush1.bf16.msra.mxu0 %v119
  %163 = vmatprep.subr.bf16.mxu0 %v118
  %164 = vmatpush1.bf16.msra.mxu0 %v117
  %165 = vmatprep.subr.bf16.mxu0 0
  %166 = vmatpush2.bf16.msra.mxu0 0
  %167 = vmatprep.subr.bf16.mxu0 0
  %168 = vmatpush2.bf16.msra.mxu0 0
  %169 = vmatprep.subr.bf16.mxu0 0
  %170 = vmatpush2.bf16.msra.mxu0 0
  %171 = vmatprep.subr.bf16.mxu0 0
  %172 = vmatpush2.bf16.msra.mxu0 0
  %173 = vmatprep.subr.bf16.mxu0 0
  %174 = vmatpush2.bf16.msra.mxu0 0
  %175 = vmatprep.subr.bf16.mxu0 0
  %176 = vmatpush2.bf16.msra.mxu0 0
  %177 = vmatprep.subr.bf16.mxu0 0
  %178 = vmatpush2.bf16.msra.mxu0 0
  %179 = vmatprep.subr.bf16.mxu0 0
  %180 = vmatpush2.bf16.msra.mxu0 0
  %181 = vmatprep.mubr.bf16.mxu0 0
  %182 = vmatmul.mubr.bf16.gmra.mxu0 %v67
  %v183 = vpop.f32.mrf.mxu0
  %v184 = vadd.f32 %v56, %v183
  %v185 = vpop.f32.mrf.mxu0
  %v186 = vadd.f32 %v60, %v185
  %v187 = vpop.f32.mrf.mxu0
  %v188 = vadd.f32 %v56, %v187
  %v189 = vpop.f32.mrf.mxu0
  %v190 = vadd.f32 %v60, %v189
  %191 = vdwg.mxu0
  %v192 = vmax.f32 %v184, 0.0
  %v193 = vmax.f32 %v186, 0.0
  %v194 = vmax.f32 %v188, 0.0
  %v195 = vmax.f32 %v190, 0.0
  %v196 = vpack.c.bf16 %v194, %v192
  %v197 = vpack.c.bf16 %v195, %v193
  %v198 = vld [vmem:[%s3] sm:$0xff]
  %v199 = vld [vmem:[%s3 + $0x8] sm:$0xff]
  %v200 = vld [vmem:[%s3 + $0x10] sm:$0xff]
  %v201 = vld [vmem:[%s3 + $0x18] sm:$0xff]
  %v202 = vld [vmem:[%s3 + $0x20] sm:$0xff]
  %v203 = vld [vmem:[%s3 + $0x28] sm:$0xff]
  %v204 = vld [vmem:[%s3 + $0x30] sm:$0xff]
  %v205 = vld [vmem:[%s3 + $0x38] sm:$0xff]
  %v206 = vld [vmem:[%s3 + $0x40] sm:$0xff]
  %v207 = vld [vmem:[%s3 + $0x48] sm:$0xff]
  %v208 = vld [vmem:[%s3 + $0x50] sm:$0xff]
  %v209 = vld [vmem:[%s3 + $0x58] sm:$0xff]
  %v210 = vld [vmem:[%s3 + $0x60] sm:$0xff]
  %v211 = vld [vmem:[%s3 + $0x68] sm:$0xff]
  %v212 = vld [vmem:[%s3 + $0x70] sm:$0xff]
  %v213 = vld [vmem:[%s3 + $0x78] sm:$0xff]
  %v214 = vld [vmem:[%s3 + $0x80] sm:$0xff]
  %v215 = vld [vmem:[%s3 + $0x88] sm:$0xff]
  %v216 = vld [vmem:[%s3 + $0x90] sm:$0xff]
  %v217 = vld [vmem:[%s3 + $0x98] sm:$0xff]
  %v218 = vld [vmem:[%s3 + $0xa0] sm:$0xff]
  %v219 = vld [vmem:[%s3 + $0xa8] sm:$0xff]
  %v220 = vld [vmem:[%s3 + $0xb0] sm:$0xff]
  %v221 = vld [vmem:[%s3 + $0xb8] sm:$0xff]
  %v222 = vld [vmem:[%s3 + $0xc0] sm:$0xff]
  %v223 = vld [vmem:[%s3 + $0xc8] sm:$0xff]
  %v224 = vld [vmem:[%s3 + $0xd0] sm:$0xff]
  %v225 = vld [vmem:[%s3 + $0xd8] sm:$0xff]
  %v226 = vld [vmem:[%s3 + $0xe0] sm:$0xff]
  %v227 = vld [vmem:[%s3 + $0xe8] sm:$0xff]
  %v228 = vld [vmem:[%s3 + $0xf0] sm:$0xff]
  %v229 = vld [vmem:[%s3 + $0xf8] sm:$0xff]
  %v230 = vld [vmem:[%s3 + $0x100] sm:$0xff]
  %v231 = vld [vmem:[%s3 + $0x108] sm:$0xff]
  %v232 = vld [vmem:[%s3 + $0x110] sm:$0xff]
  %v233 = vld [vmem:[%s3 + $0x118] sm:$0xff]
  %v234 = vld [vmem:[%s3 + $0x120] sm:$0xff]
  %v235 = vld [vmem:[%s3 + $0x128] sm:$0xff]
  %v236 = vld [vmem:[%s3 + $0x130] sm:$0xff]
  %v237 = vld [vmem:[%s3 + $0x138] sm:$0xff]
  %v238 = vld [vmem:[%s3 + $0x140] sm:$0xff]
  %v239 = vld [vmem:[%s3 + $0x148] sm:$0xff]
  %v240 = vld [vmem:[%s3 + $0x150] sm:$0xff]
  %v241 = vld [vmem:[%s3 + $0x158] sm:$0xff]
  %v242 = vld [vmem:[%s3 + $0x160] sm:$0xff]
  %v243 = vld [vmem:[%s3 + $0x168] sm:$0xff]
  %v244 = vld [vmem:[%s3 + $0x170] sm:$0xff]
  %v245 = vld [vmem:[%s3 + $0x178] sm:$0xff]
  %v246 = vld [vmem:[%s3 + $0x180] sm:$0xff]
  %v247 = vld [vmem:[%s3 + $0x188] sm:$0xff]
  %v248 = vld [vmem:[%s3 + $0x190] sm:$0xff]
  %v249 = vld [vmem:[%s3 + $0x198] sm:$0xff]
  %v250 = vld [vmem:[%s3 + $0x1a0] sm:$0xff]
  %v251 = vld [vmem:[%s3 + $0x1a8] sm:$0xff]
  %v252 = vld [vmem:[%s3 + $0x1b0] sm:$0xff]
  %v253 = vld [vmem:[%s3 + $0x1b8] sm:$0xff]
  %v254 = vld [vmem:[%s3 + $0x1c0] sm:$0xff]
  %v255 = vld [vmem:[%s3 + $0x1c8] sm:$0xff]
  %v256 = vld [vmem:[%s3 + $0x1d0] sm:$0xff]
  %v257 = vld [vmem:[%s3 + $0x1d8] sm:$0xff]
  %v258 = vld [vmem:[%s3 + $0x1e0] sm:$0xff]
  %v259 = vld [vmem:[%s3 + $0x1e8] sm:$0xff]
  %v260 = vld [vmem:[%s3 + $0x1f0] sm:$0xff]
  %v261 = vld [vmem:[%s3 + $0x1f8] sm:$0xff]
  %v262 = vld [vmem:[%s4] sm:$0xf]
  %v264 = vlaneseq
  %v265 = vshrl.u32 %v264, 7
  %v266 = vsub.s32 0, %v265
  %v267 = vrot.slane %v262, %v266
  %v268 = vlaneseq
  %v269 = vshrl.u32 %v268, 7
  %v270 = vsub.s32 1, %v269
  %v271 = vrot.slane %v262, %v270
  %v272 = vlaneseq
  %v273 = vshrl.u32 %v272, 7
  %v274 = vsub.s32 2, %v273
  %v275 = vrot.slane %v262, %v274
  %v276 = vlaneseq
  %v277 = vshrl.u32 %v276, 7
  %v278 = vsub.s32 3, %v277
  %v279 = vrot.slane %v262, %v278
  %v348 = vunpack.c.l.b16 %v198
  %v349 = vunpack.c.h.b16 %v198
  %v350 = vunpack.c.l.b16 %v199
  %v351 = vunpack.c.h.b16 %v199
  %v352 = vunpack.c.l.b16 %v200
  %v353 = vunpack.c.h.b16 %v200
  %v354 = vunpack.c.l.b16 %v201
  %v355 = vunpack.c.h.b16 %v201
  %v356 = vunpack.c.l.b16 %v202
  %v357 = vunpack.c.h.b16 %v202
  %v358 = vunpack.c.l.b16 %v203
  %v359 = vunpack.c.h.b16 %v203
  %v360 = vunpack.c.l.b16 %v204
  %v361 = vunpack.c.h.b16 %v204
  %v362 = vunpack.c.l.b16 %v205
  %v363 = vunpack.c.h.b16 %v205
  %v364 = vunpack.c.l.b16 %v206
  %v365 = vunpack.c.h.b16 %v206
  %v366 = vunpack.c.l.b16 %v207
  %v367 = vunpack.c.h.b16 %v207
  %v368 = vunpack.c.l.b16 %v208
  %v369 = vunpack.c.h.b16 %v208
  %v370 = vunpack.c.l.b16 %v209
  %v371 = vunpack.c.h.b16 %v209
  %v372 = vunpack.c.l.b16 %v210
  %v373 = vunpack.c.h.b16 %v210
  %v374 = vunpack.c.l.b16 %v211
  %v375 = vunpack.c.h.b16 %v211
  %v376 = vunpack.c.l.b16 %v212
  %v377 = vunpack.c.h.b16 %v212
  %v378 = vunpack.c.l.b16 %v213
  %v379 = vunpack.c.h.b16 %v213
  %v380 = vunpack.c.l.b16 %v214
  %v381 = vunpack.c.h.b16 %v214
  %v382 = vunpack.c.l.b16 %v215
  %v383 = vunpack.c.h.b16 %v215
  %v384 = vunpack.c.l.b16 %v216
  %v385 = vunpack.c.h.b16 %v216
  %v386 = vunpack.c.l.b16 %v217
  %v387 = vunpack.c.h.b16 %v217
  %v388 = vunpack.c.l.b16 %v218
  %v389 = vunpack.c.h.b16 %v218
  %v390 = vunpack.c.l.b16 %v219
  %v391 = vunpack.c.h.b16 %v219
  %v392 = vunpack.c.l.b16 %v220
  %v393 = vunpack.c.h.b16 %v220
  %v394 = vunpack.c.l.b16 %v221
  %v395 = vunpack.c.h.b16 %v221
  %v396 = vunpack.c.l.b16 %v222
  %v397 = vunpack.c.h.b16 %v222
  %v398 = vunpack.c.l.b16 %v223
  %v399 = vunpack.c.h.b16 %v223
  %v400 = vunpack.c.l.b16 %v224
  %v401 = vunpack.c.h.b16 %v224
  %v402 = vunpack.c.l.b16 %v225
  %v403 = vunpack.c.h.b16 %v225
  %v404 = vunpack.c.l.b16 %v226
  %v405 = vunpack.c.h.b16 %v226
  %v406 = vunpack.c.l.b16 %v227
  %v407 = vunpack.c.h.b16 %v227
  %v408 = vunpack.c.l.b16 %v228
  %v409 = vunpack.c.h.b16 %v228
  %v410 = vunpack.c.l.b16 %v229
  %v411 = vunpack.c.h.b16 %v229
  %v412 = vunpack.c.l.b16 %v230
  %v413 = vunpack.c.h.b16 %v230
  %v414 = vunpack.c.l.b16 %v231
  %v415 = vunpack.c.h.b16 %v231
  %v416 = vunpack.c.l.b16 %v232
  %v417 = vunpack.c.h.b16 %v232
  %v418 = vunpack.c.l.b16 %v233
  %v419 = vunpack.c.h.b16 %v233
  %v420 = vunpack.c.l.b16 %v234
  %v421 = vunpack.c.h.b16 %v234
  %v422 = vunpack.c.l.b16 %v235
  %v423 = vunpack.c.h.b16 %v235
  %v424 = vunpack.c.l.b16 %v236
  %v425 = vunpack.c.h.b16 %v236
  %v426 = vunpack.c.l.b16 %v237
  %v427 = vunpack.c.h.b16 %v237
  %v428 = vunpack.c.l.b16 %v238
  %v429 = vunpack.c.h.b16 %v238
  %v430 = vunpack.c.l.b16 %v239
  %v431 = vunpack.c.h.b16 %v239
  %v432 = vunpack.c.l.b16 %v240
  %v433 = vunpack.c.h.b16 %v240
  %v434 = vunpack.c.l.b16 %v241
  %v435 = vunpack.c.h.b16 %v241
  %v436 = vunpack.c.l.b16 %v242
  %v437 = vunpack.c.h.b16 %v242
  %v438 = vunpack.c.l.b16 %v243
  %v439 = vunpack.c.h.b16 %v243
  %v440 = vunpack.c.l.b16 %v244
  %v441 = vunpack.c.h.b16 %v244
  %v442 = vunpack.c.l.b16 %v245
  %v443 = vunpack.c.h.b16 %v245
  %v444 = vunpack.c.l.b16 %v246
  %v445 = vunpack.c.h.b16 %v246
  %v446 = vunpack.c.l.b16 %v247
  %v447 = vunpack.c.h.b16 %v247
  %v448 = vunpack.c.l.b16 %v248
  %v449 = vunpack.c.h.b16 %v248
  %v450 = vunpack.c.l.b16 %v249
  %v451 = vunpack.c.h.b16 %v249
  %v452 = vunpack.c.l.b16 %v250
  %v453 = vunpack.c.h.b16 %v250
  %v454 = vunpack.c.l.b16 %v251
  %v455 = vunpack.c.h.b16 %v251
  %v456 = vunpack.c.l.b16 %v252
  %v457 = vunpack.c.h.b16 %v252
  %v458 = vunpack.c.l.b16 %v253
  %v459 = vunpack.c.h.b16 %v253
  %v460 = vunpack.c.l.b16 %v254
  %v461 = vunpack.c.h.b16 %v254
  %v462 = vunpack.c.l.b16 %v255
  %v463 = vunpack.c.h.b16 %v255
  %v464 = vunpack.c.l.b16 %v256
  %v465 = vunpack.c.h.b16 %v256
  %v466 = vunpack.c.l.b16 %v257
  %v467 = vunpack.c.h.b16 %v257
  %v468 = vunpack.c.l.b16 %v258
  %v469 = vunpack.c.h.b16 %v258
  %v470 = vunpack.c.l.b16 %v259
  %v471 = vunpack.c.h.b16 %v259
  %v472 = vunpack.c.l.b16 %v260
  %v473 = vunpack.c.h.b16 %v260
  %v474 = vunpack.c.l.b16 %v261
  %v475 = vunpack.c.h.b16 %v261
  %v476 = vpack.c.b16 %v352, %v348
  %v477 = vpack.c.b16 %v353, %v349
  %v478 = vpack.c.b16 %v354, %v350
  %v479 = vpack.c.b16 %v355, %v351
  %v480 = vpack.c.b16 %v360, %v356
  %v481 = vpack.c.b16 %v361, %v357
  %v482 = vpack.c.b16 %v362, %v358
  %v483 = vpack.c.b16 %v363, %v359
  %v484 = vpack.c.b16 %v368, %v364
  %v485 = vpack.c.b16 %v369, %v365
  %v486 = vpack.c.b16 %v370, %v366
  %v487 = vpack.c.b16 %v371, %v367
  %v488 = vpack.c.b16 %v376, %v372
  %v489 = vpack.c.b16 %v377, %v373
  %v490 = vpack.c.b16 %v378, %v374
  %v491 = vpack.c.b16 %v379, %v375
  %v492 = vpack.c.b16 %v384, %v380
  %v493 = vpack.c.b16 %v385, %v381
  %v494 = vpack.c.b16 %v386, %v382
  %v495 = vpack.c.b16 %v387, %v383
  %v496 = vpack.c.b16 %v392, %v388
  %v497 = vpack.c.b16 %v393, %v389
  %v498 = vpack.c.b16 %v394, %v390
  %v499 = vpack.c.b16 %v395, %v391
  %v500 = vpack.c.b16 %v400, %v396
  %v501 = vpack.c.b16 %v401, %v397
  %v502 = vpack.c.b16 %v402, %v398
  %v503 = vpack.c.b16 %v403, %v399
  %v504 = vpack.c.b16 %v408, %v404
  %v505 = vpack.c.b16 %v409, %v405
  %v506 = vpack.c.b16 %v410, %v406
  %v507 = vpack.c.b16 %v411, %v407
  %v508 = vpack.c.b16 %v416, %v412
  %v509 = vpack.c.b16 %v417, %v413
  %v510 = vpack.c.b16 %v418, %v414
  %v511 = vpack.c.b16 %v419, %v415
  %v512 = vpack.c.b16 %v424, %v420
  %v513 = vpack.c.b16 %v425, %v421
  %v514 = vpack.c.b16 %v426, %v422
  %v515 = vpack.c.b16 %v427, %v423
  %v516 = vpack.c.b16 %v432, %v428
  %v517 = vpack.c.b16 %v433, %v429
  %v518 = vpack.c.b16 %v434, %v430
  %v519 = vpack.c.b16 %v435, %v431
  %v520 = vpack.c.b16 %v440, %v436
  %v521 = vpack.c.b16 %v441, %v437
  %v522 = vpack.c.b16 %v442, %v438
  %v523 = vpack.c.b16 %v443, %v439
  %v524 = vpack.c.b16 %v448, %v444
  %v525 = vpack.c.b16 %v449, %v445
  %v526 = vpack.c.b16 %v450, %v446
  %v527 = vpack.c.b16 %v451, %v447
  %v528 = vpack.c.b16 %v456, %v452
  %v529 = vpack.c.b16 %v457, %v453
  %v530 = vpack.c.b16 %v458, %v454
  %v531 = vpack.c.b16 %v459, %v455
  %v532 = vpack.c.b16 %v464, %v460
  %v533 = vpack.c.b16 %v465, %v461
  %v534 = vpack.c.b16 %v466, %v462
  %v535 = vpack.c.b16 %v467, %v463
  %v536 = vpack.c.b16 %v472, %v468
  %v537 = vpack.c.b16 %v473, %v469
  %v538 = vpack.c.b16 %v474, %v470
  %v539 = vpack.c.b16 %v475, %v471
  %604 = vmatprep.subr.bf16.mxu0 %v505
  %605 = vmatpush1.bf16.msra.mxu0 %v504
  %606 = vmatprep.subr.bf16.mxu0 %v501
  %607 = vmatpush1.bf16.msra.mxu0 %v500
  %608 = vmatprep.subr.bf16.mxu0 %v497
  %609 = vmatpush1.bf16.msra.mxu0 %v496
  %610 = vmatprep.subr.bf16.mxu0 %v493
  %611 = vmatpush1.bf16.msra.mxu0 %v492
  %612 = vmatprep.subr.bf16.mxu0 %v489
  %613 = vmatpush1.bf16.msra.mxu0 %v488
  %614 = vmatprep.subr.bf16.mxu0 %v485
  %615 = vmatpush1.bf16.msra.mxu0 %v484
  %616 = vmatprep.subr.bf16.mxu0 %v481
  %617 = vmatpush1.bf16.msra.mxu0 %v480
  %618 = vmatprep.subr.bf16.mxu0 %v477
  %619 = vmatpush1.bf16.msra.mxu0 %v476
  %620 = vmatprep.subr.bf16.mxu0 %v537
  %621 = vmatpush2.bf16.msra.mxu0 %v536
  %622 = vmatprep.subr.bf16.mxu0 %v533
  %623 = vmatpush2.bf16.msra.mxu0 %v532
  %624 = vmatprep.subr.bf16.mxu0 %v529
  %625 = vmatpush2.bf16.msra.mxu0 %v528
  %626 = vmatprep.subr.bf16.mxu0 %v525
  %627 = vmatpush2.bf16.msra.mxu0 %v524
  %628 = vmatprep.subr.bf16.mxu0 %v521
  %629 = vmatpush2.bf16.msra.mxu0 %v520
  %630 = vmatprep.subr.bf16.mxu0 %v517
  %631 = vmatpush2.bf16.msra.mxu0 %v516
  %632 = vmatprep.subr.bf16.mxu0 %v513
  %633 = vmatpush2.bf16.msra.mxu0 %v512
  %634 = vmatprep.subr.bf16.mxu0 %v509
  %635 = vmatpush2.bf16.msra.mxu0 %v508
  %636 = vmatprep.mubr.bf16.mxu0 %v197
  %637 = vmatmul.mubr.bf16.gmra.mxu0 %v196
  %v638 = vpop.f32.mrf.mxu0
  %v639 = vadd.f32 %v267, %v638
  %v640 = vpop.f32.mrf.mxu0
  %v641 = vadd.f32 %v271, %v640
  %v642 = vpop.f32.mrf.mxu0
  %v643 = vadd.f32 %v267, %v642
  %v644 = vpop.f32.mrf.mxu0
  %v645 = vadd.f32 %v271, %v644
  %646 = vdwg.mxu0
  %647 = vmatprep.subr.bf16.mxu0 %v507
  %648 = vmatpush1.bf16.msra.mxu0 %v506
  %649 = vmatprep.subr.bf16.mxu0 %v503
  %650 = vmatpush1.bf16.msra.mxu0 %v502
  %651 = vmatprep.subr.bf16.mxu0 %v499
  %652 = vmatpush1.bf16.msra.mxu0 %v498
  %653 = vmatprep.subr.bf16.mxu0 %v495
  %654 = vmatpush1.bf16.msra.mxu0 %v494
  %655 = vmatprep.subr.bf16.mxu0 %v491
  %656 = vmatpush1.bf16.msra.mxu0 %v490
  %657 = vmatprep.subr.bf16.mxu0 %v487
  %658 = vmatpush1.bf16.msra.mxu0 %v486
  %659 = vmatprep.subr.bf16.mxu0 %v483
  %660 = vmatpush1.bf16.msra.mxu0 %v482
  %661 = vmatprep.subr.bf16.mxu0 %v479
  %662 = vmatpush1.bf16.msra.mxu0 %v478
  %663 = vmatprep.subr.bf16.mxu0 %v539
  %664 = vmatpush2.bf16.msra.mxu0 %v538
  %665 = vmatprep.subr.bf16.mxu0 %v535
  %666 = vmatpush2.bf16.msra.mxu0 %v534
  %667 = vmatprep.subr.bf16.mxu0 %v531
  %668 = vmatpush2.bf16.msra.mxu0 %v530
  %669 = vmatprep.subr.bf16.mxu0 %v527
  %670 = vmatpush2.bf16.msra.mxu0 %v526
  %671 = vmatprep.subr.bf16.mxu0 %v523
  %672 = vmatpush2.bf16.msra.mxu0 %v522
  %673 = vmatprep.subr.bf16.mxu0 %v519
  %674 = vmatpush2.bf16.msra.mxu0 %v518
  %675 = vmatprep.subr.bf16.mxu0 %v515
  %676 = vmatpush2.bf16.msra.mxu0 %v514
  %677 = vmatprep.subr.bf16.mxu0 %v511
  %678 = vmatpush2.bf16.msra.mxu0 %v510
  %679 = vmatprep.mubr.bf16.mxu0 %v197
  %680 = vmatmul.mubr.bf16.gmra.mxu0 %v196
  %v681 = vpop.f32.mrf.mxu0
  %v682 = vadd.f32 %v275, %v681
  %v683 = vpop.f32.mrf.mxu0
  %v684 = vadd.f32 %v279, %v683
  %v685 = vpop.f32.mrf.mxu0
  %v686 = vadd.f32 %v275, %v685
  %v687 = vpop.f32.mrf.mxu0
  %v688 = vadd.f32 %v279, %v687
  %689 = vdwg.mxu0
  %v690 = vmax.f32 %v639, 0.0
  %v691 = vmax.f32 %v641, 0.0
  %v692 = vmax.f32 %v682, 0.0
  %v693 = vmax.f32 %v684, 0.0
  %v694 = vmax.f32 %v643, 0.0
  %v695 = vmax.f32 %v645, 0.0
  %v696 = vmax.f32 %v686, 0.0
  %v697 = vmax.f32 %v688, 0.0
  %v698 = vpack.c.bf16 %v694, %v690
  %v699 = vpack.c.bf16 %v695, %v691
  %v700 = vpack.c.bf16 %v696, %v692
  %v701 = vpack.c.bf16 %v697, %v693
  %v702 = vld [vmem:[%s5] sm:$0xff]
  %v703 = vld [vmem:[%s5 + $0x8] sm:$0xff]
  %v704 = vld [vmem:[%s5 + $0x10] sm:$0xff]
  %v705 = vld [vmem:[%s5 + $0x18] sm:$0xff]
  %v706 = vld [vmem:[%s5 + $0x20] sm:$0xff]
  %v707 = vld [vmem:[%s5 + $0x28] sm:$0xff]
  %v708 = vld [vmem:[%s5 + $0x30] sm:$0xff]
  %v709 = vld [vmem:[%s5 + $0x38] sm:$0xff]
  %v710 = vld [vmem:[%s5 + $0x40] sm:$0xff]
  %v711 = vld [vmem:[%s5 + $0x48] sm:$0xff]
  %v712 = vld [vmem:[%s5 + $0x50] sm:$0xff]
  %v713 = vld [vmem:[%s5 + $0x58] sm:$0xff]
  %v714 = vld [vmem:[%s5 + $0x60] sm:$0xff]
  %v715 = vld [vmem:[%s5 + $0x68] sm:$0xff]
  %v716 = vld [vmem:[%s5 + $0x70] sm:$0xff]
  %v717 = vld [vmem:[%s5 + $0x78] sm:$0xff]
  %v718 = vld [vmem:[%s5 + $0x80] sm:$0xff]
  %v719 = vld [vmem:[%s5 + $0x88] sm:$0xff]
  %v720 = vld [vmem:[%s5 + $0x90] sm:$0xff]
  %v721 = vld [vmem:[%s5 + $0x98] sm:$0xff]
  %v722 = vld [vmem:[%s5 + $0xa0] sm:$0xff]
  %v723 = vld [vmem:[%s5 + $0xa8] sm:$0xff]
  %v724 = vld [vmem:[%s5 + $0xb0] sm:$0xff]
  %v725 = vld [vmem:[%s5 + $0xb8] sm:$0xff]
  %v726 = vld [vmem:[%s5 + $0xc0] sm:$0xff]
  %v727 = vld [vmem:[%s5 + $0xc8] sm:$0xff]
  %v728 = vld [vmem:[%s5 + $0xd0] sm:$0xff]
  %v729 = vld [vmem:[%s5 + $0xd8] sm:$0xff]
  %v730 = vld [vmem:[%s5 + $0xe0] sm:$0xff]
  %v731 = vld [vmem:[%s5 + $0xe8] sm:$0xff]
  %v732 = vld [vmem:[%s5 + $0xf0] sm:$0xff]
  %v733 = vld [vmem:[%s5 + $0xf8] sm:$0xff]
  %v734 = vld [vmem:[%s5 + $0x100] sm:$0xff]
  %v735 = vld [vmem:[%s5 + $0x108] sm:$0xff]
  %v736 = vld [vmem:[%s5 + $0x110] sm:$0xff]
  %v737 = vld [vmem:[%s5 + $0x118] sm:$0xff]
  %v738 = vld [vmem:[%s5 + $0x120] sm:$0xff]
  %v739 = vld [vmem:[%s5 + $0x128] sm:$0xff]
  %v740 = vld [vmem:[%s5 + $0x130] sm:$0xff]
  %v741 = vld [vmem:[%s5 + $0x138] sm:$0xff]
  %v742 = vld [vmem:[%s5 + $0x140] sm:$0xff]
  %v743 = vld [vmem:[%s5 + $0x148] sm:$0xff]
  %v744 = vld [vmem:[%s5 + $0x150] sm:$0xff]
  %v745 = vld [vmem:[%s5 + $0x158] sm:$0xff]
  %v746 = vld [vmem:[%s5 + $0x160] sm:$0xff]
  %v747 = vld [vmem:[%s5 + $0x168] sm:$0xff]
  %v748 = vld [vmem:[%s5 + $0x170] sm:$0xff]
  %v749 = vld [vmem:[%s5 + $0x178] sm:$0xff]
  %v750 = vld [vmem:[%s5 + $0x180] sm:$0xff]
  %v751 = vld [vmem:[%s5 + $0x188] sm:$0xff]
  %v752 = vld [vmem:[%s5 + $0x190] sm:$0xff]
  %v753 = vld [vmem:[%s5 + $0x198] sm:$0xff]
  %v754 = vld [vmem:[%s5 + $0x1a0] sm:$0xff]
  %v755 = vld [vmem:[%s5 + $0x1a8] sm:$0xff]
  %v756 = vld [vmem:[%s5 + $0x1b0] sm:$0xff]
  %v757 = vld [vmem:[%s5 + $0x1b8] sm:$0xff]
  %v758 = vld [vmem:[%s5 + $0x1c0] sm:$0xff]
  %v759 = vld [vmem:[%s5 + $0x1c8] sm:$0xff]
  %v760 = vld [vmem:[%s5 + $0x1d0] sm:$0xff]
  %v761 = vld [vmem:[%s5 + $0x1d8] sm:$0xff]
  %v762 = vld [vmem:[%s5 + $0x1e0] sm:$0xff]
  %v763 = vld [vmem:[%s5 + $0x1e8] sm:$0xff]
  %v764 = vld [vmem:[%s5 + $0x1f0] sm:$0xff]
  %v765 = vld [vmem:[%s5 + $0x1f8] sm:$0xff]
  %v766 = vld [vmem:[%s5 + $0x200] sm:$0xff]
  %v767 = vld [vmem:[%s5 + $0x208] sm:$0xff]
  %v768 = vld [vmem:[%s5 + $0x210] sm:$0xff]
  %v769 = vld [vmem:[%s5 + $0x218] sm:$0xff]
  %v770 = vld [vmem:[%s5 + $0x220] sm:$0xff]
  %v771 = vld [vmem:[%s5 + $0x228] sm:$0xff]
  %v772 = vld [vmem:[%s5 + $0x230] sm:$0xff]
  %v773 = vld [vmem:[%s5 + $0x238] sm:$0xff]
  %v774 = vld [vmem:[%s5 + $0x240] sm:$0xff]
  %v775 = vld [vmem:[%s5 + $0x248] sm:$0xff]
  %v776 = vld [vmem:[%s5 + $0x250] sm:$0xff]
  %v777 = vld [vmem:[%s5 + $0x258] sm:$0xff]
  %v778 = vld [vmem:[%s5 + $0x260] sm:$0xff]
  %v779 = vld [vmem:[%s5 + $0x268] sm:$0xff]
  %v780 = vld [vmem:[%s5 + $0x270] sm:$0xff]
  %v781 = vld [vmem:[%s5 + $0x278] sm:$0xff]
  %v782 = vld [vmem:[%s5 + $0x280] sm:$0xff]
  %v783 = vld [vmem:[%s5 + $0x288] sm:$0xff]
  %v784 = vld [vmem:[%s5 + $0x290] sm:$0xff]
  %v785 = vld [vmem:[%s5 + $0x298] sm:$0xff]
  %v786 = vld [vmem:[%s5 + $0x2a0] sm:$0xff]
  %v787 = vld [vmem:[%s5 + $0x2a8] sm:$0xff]
  %v788 = vld [vmem:[%s5 + $0x2b0] sm:$0xff]
  %v789 = vld [vmem:[%s5 + $0x2b8] sm:$0xff]
  %v790 = vld [vmem:[%s5 + $0x2c0] sm:$0xff]
  %v791 = vld [vmem:[%s5 + $0x2c8] sm:$0xff]
  %v792 = vld [vmem:[%s5 + $0x2d0] sm:$0xff]
  %v793 = vld [vmem:[%s5 + $0x2d8] sm:$0xff]
  %v794 = vld [vmem:[%s5 + $0x2e0] sm:$0xff]
  %v795 = vld [vmem:[%s5 + $0x2e8] sm:$0xff]
  %v796 = vld [vmem:[%s5 + $0x2f0] sm:$0xff]
  %v797 = vld [vmem:[%s5 + $0x2f8] sm:$0xff]
  %v798 = vld [vmem:[%s5 + $0x300] sm:$0xff]
  %v799 = vld [vmem:[%s5 + $0x308] sm:$0xff]
  %v800 = vld [vmem:[%s5 + $0x310] sm:$0xff]
  %v801 = vld [vmem:[%s5 + $0x318] sm:$0xff]
  %v802 = vld [vmem:[%s5 + $0x320] sm:$0xff]
  %v803 = vld [vmem:[%s5 + $0x328] sm:$0xff]
  %v804 = vld [vmem:[%s5 + $0x330] sm:$0xff]
  %v805 = vld [vmem:[%s5 + $0x338] sm:$0xff]
  %v806 = vld [vmem:[%s5 + $0x340] sm:$0xff]
  %v807 = vld [vmem:[%s5 + $0x348] sm:$0xff]
  %v808 = vld [vmem:[%s5 + $0x350] sm:$0xff]
  %v809 = vld [vmem:[%s5 + $0x358] sm:$0xff]
  %v810 = vld [vmem:[%s5 + $0x360] sm:$0xff]
  %v811 = vld [vmem:[%s5 + $0x368] sm:$0xff]
  %v812 = vld [vmem:[%s5 + $0x370] sm:$0xff]
  %v813 = vld [vmem:[%s5 + $0x378] sm:$0xff]
  %v814 = vld [vmem:[%s5 + $0x380] sm:$0xff]
  %v815 = vld [vmem:[%s5 + $0x388] sm:$0xff]
  %v816 = vld [vmem:[%s5 + $0x390] sm:$0xff]
  %v817 = vld [vmem:[%s5 + $0x398] sm:$0xff]
  %v818 = vld [vmem:[%s5 + $0x3a0] sm:$0xff]
  %v819 = vld [vmem:[%s5 + $0x3a8] sm:$0xff]
  %v820 = vld [vmem:[%s5 + $0x3b0] sm:$0xff]
  %v821 = vld [vmem:[%s5 + $0x3b8] sm:$0xff]
  %v822 = vld [vmem:[%s5 + $0x3c0] sm:$0xff]
  %v823 = vld [vmem:[%s5 + $0x3c8] sm:$0xff]
  %v824 = vld [vmem:[%s5 + $0x3d0] sm:$0xff]
  %v825 = vld [vmem:[%s5 + $0x3d8] sm:$0xff]
  %v826 = vld [vmem:[%s5 + $0x3e0] sm:$0xff]
  %v827 = vld [vmem:[%s5 + $0x3e8] sm:$0xff]
  %v828 = vld [vmem:[%s5 + $0x3f0] sm:$0xff]
  %v829 = vld [vmem:[%s5 + $0x3f8] sm:$0xff]
  %v830 = vld [vmem:[%s5 + $0x400] sm:$0xff]
  %v831 = vld [vmem:[%s5 + $0x408] sm:$0xff]
  %v832 = vld [vmem:[%s5 + $0x410] sm:$0xff]
  %v833 = vld [vmem:[%s5 + $0x418] sm:$0xff]
  %v834 = vld [vmem:[%s5 + $0x420] sm:$0xff]
  %v835 = vld [vmem:[%s5 + $0x428] sm:$0xff]
  %v836 = vld [vmem:[%s5 + $0x430] sm:$0xff]
  %v837 = vld [vmem:[%s5 + $0x438] sm:$0xff]
  %v838 = vld [vmem:[%s5 + $0x440] sm:$0xff]
  %v839 = vld [vmem:[%s5 + $0x448] sm:$0xff]
  %v840 = vld [vmem:[%s5 + $0x450] sm:$0xff]
  %v841 = vld [vmem:[%s5 + $0x458] sm:$0xff]
  %v842 = vld [vmem:[%s5 + $0x460] sm:$0xff]
  %v843 = vld [vmem:[%s5 + $0x468] sm:$0xff]
  %v844 = vld [vmem:[%s5 + $0x470] sm:$0xff]
  %v845 = vld [vmem:[%s5 + $0x478] sm:$0xff]
  %v846 = vld [vmem:[%s5 + $0x480] sm:$0xff]
  %v847 = vld [vmem:[%s5 + $0x488] sm:$0xff]
  %v848 = vld [vmem:[%s5 + $0x490] sm:$0xff]
  %v849 = vld [vmem:[%s5 + $0x498] sm:$0xff]
  %v850 = vld [vmem:[%s5 + $0x4a0] sm:$0xff]
  %v851 = vld [vmem:[%s5 + $0x4a8] sm:$0xff]
  %v852 = vld [vmem:[%s5 + $0x4b0] sm:$0xff]
  %v853 = vld [vmem:[%s5 + $0x4b8] sm:$0xff]
  %v854 = vld [vmem:[%s5 + $0x4c0] sm:$0xff]
  %v855 = vld [vmem:[%s5 + $0x4c8] sm:$0xff]
  %v856 = vld [vmem:[%s5 + $0x4d0] sm:$0xff]
  %v857 = vld [vmem:[%s5 + $0x4d8] sm:$0xff]
  %v858 = vld [vmem:[%s5 + $0x4e0] sm:$0xff]
  %v859 = vld [vmem:[%s5 + $0x4e8] sm:$0xff]
  %v860 = vld [vmem:[%s5 + $0x4f0] sm:$0xff]
  %v861 = vld [vmem:[%s5 + $0x4f8] sm:$0xff]
  %v862 = vld [vmem:[%s5 + $0x500] sm:$0xff]
  %v863 = vld [vmem:[%s5 + $0x508] sm:$0xff]
  %v864 = vld [vmem:[%s5 + $0x510] sm:$0xff]
  %v865 = vld [vmem:[%s5 + $0x518] sm:$0xff]
  %v866 = vld [vmem:[%s5 + $0x520] sm:$0xff]
  %v867 = vld [vmem:[%s5 + $0x528] sm:$0xff]
  %v868 = vld [vmem:[%s5 + $0x530] sm:$0xff]
  %v869 = vld [vmem:[%s5 + $0x538] sm:$0xff]
  %v870 = vld [vmem:[%s5 + $0x540] sm:$0xff]
  %v871 = vld [vmem:[%s5 + $0x548] sm:$0xff]
  %v872 = vld [vmem:[%s5 + $0x550] sm:$0xff]
  %v873 = vld [vmem:[%s5 + $0x558] sm:$0xff]
  %v874 = vld [vmem:[%s5 + $0x560] sm:$0xff]
  %v875 = vld [vmem:[%s5 + $0x568] sm:$0xff]
  %v876 = vld [vmem:[%s5 + $0x570] sm:$0xff]
  %v877 = vld [vmem:[%s5 + $0x578] sm:$0xff]
  %v878 = vld [vmem:[%s5 + $0x580] sm:$0xff]
  %v879 = vld [vmem:[%s5 + $0x588] sm:$0xff]
  %v880 = vld [vmem:[%s5 + $0x590] sm:$0xff]
  %v881 = vld [vmem:[%s5 + $0x598] sm:$0xff]
  %v882 = vld [vmem:[%s5 + $0x5a0] sm:$0xff]
  %v883 = vld [vmem:[%s5 + $0x5a8] sm:$0xff]
  %v884 = vld [vmem:[%s5 + $0x5b0] sm:$0xff]
  %v885 = vld [vmem:[%s5 + $0x5b8] sm:$0xff]
  %v886 = vld [vmem:[%s5 + $0x5c0] sm:$0xff]
  %v887 = vld [vmem:[%s5 + $0x5c8] sm:$0xff]
  %v888 = vld [vmem:[%s5 + $0x5d0] sm:$0xff]
  %v889 = vld [vmem:[%s5 + $0x5d8] sm:$0xff]
  %v890 = vld [vmem:[%s5 + $0x5e0] sm:$0xff]
  %v891 = vld [vmem:[%s5 + $0x5e8] sm:$0xff]
  %v892 = vld [vmem:[%s5 + $0x5f0] sm:$0xff]
  %v893 = vld [vmem:[%s5 + $0x5f8] sm:$0xff]
  %v894 = vld [vmem:[%s5 + $0x600] sm:$0xff]
  %v895 = vld [vmem:[%s5 + $0x608] sm:$0xff]
  %v896 = vld [vmem:[%s5 + $0x610] sm:$0xff]
  %v897 = vld [vmem:[%s5 + $0x618] sm:$0xff]
  %v898 = vld [vmem:[%s5 + $0x620] sm:$0xff]
  %v899 = vld [vmem:[%s5 + $0x628] sm:$0xff]
  %v900 = vld [vmem:[%s5 + $0x630] sm:$0xff]
  %v901 = vld [vmem:[%s5 + $0x638] sm:$0xff]
  %v902 = vld [vmem:[%s5 + $0x640] sm:$0xff]
  %v903 = vld [vmem:[%s5 + $0x648] sm:$0xff]
  %v904 = vld [vmem:[%s5 + $0x650] sm:$0xff]
  %v905 = vld [vmem:[%s5 + $0x658] sm:$0xff]
  %v906 = vld [vmem:[%s5 + $0x660] sm:$0xff]
  %v907 = vld [vmem:[%s5 + $0x668] sm:$0xff]
  %v908 = vld [vmem:[%s5 + $0x670] sm:$0xff]
  %v909 = vld [vmem:[%s5 + $0x678] sm:$0xff]
  %v910 = vld [vmem:[%s5 + $0x680] sm:$0xff]
  %v911 = vld [vmem:[%s5 + $0x688] sm:$0xff]
  %v912 = vld [vmem:[%s5 + $0x690] sm:$0xff]
  %v913 = vld [vmem:[%s5 + $0x698] sm:$0xff]
  %v914 = vld [vmem:[%s5 + $0x6a0] sm:$0xff]
  %v915 = vld [vmem:[%s5 + $0x6a8] sm:$0xff]
  %v916 = vld [vmem:[%s5 + $0x6b0] sm:$0xff]
  %v917 = vld [vmem:[%s5 + $0x6b8] sm:$0xff]
  %v918 = vld [vmem:[%s5 + $0x6c0] sm:$0xff]
  %v919 = vld [vmem:[%s5 + $0x6c8] sm:$0xff]
  %v920 = vld [vmem:[%s5 + $0x6d0] sm:$0xff]
  %v921 = vld [vmem:[%s5 + $0x6d8] sm:$0xff]
  %v922 = vld [vmem:[%s5 + $0x6e0] sm:$0xff]
  %v923 = vld [vmem:[%s5 + $0x6e8] sm:$0xff]
  %v924 = vld [vmem:[%s5 + $0x6f0] sm:$0xff]
  %v925 = vld [vmem:[%s5 + $0x6f8] sm:$0xff]
  %v926 = vld [vmem:[%s5 + $0x700] sm:$0xff]
  %v927 = vld [vmem:[%s5 + $0x708] sm:$0xff]
  %v928 = vld [vmem:[%s5 + $0x710] sm:$0xff]
  %v929 = vld [vmem:[%s5 + $0x718] sm:$0xff]
  %v930 = vld [vmem:[%s5 + $0x720] sm:$0xff]
  %v931 = vld [vmem:[%s5 + $0x728] sm:$0xff]
  %v932 = vld [vmem:[%s5 + $0x730] sm:$0xff]
  %v933 = vld [vmem:[%s5 + $0x738] sm:$0xff]
  %v934 = vld [vmem:[%s5 + $0x740] sm:$0xff]
  %v935 = vld [vmem:[%s5 + $0x748] sm:$0xff]
  %v936 = vld [vmem:[%s5 + $0x750] sm:$0xff]
  %v937 = vld [vmem:[%s5 + $0x758] sm:$0xff]
  %v938 = vld [vmem:[%s5 + $0x760] sm:$0xff]
  %v939 = vld [vmem:[%s5 + $0x768] sm:$0xff]
  %v940 = vld [vmem:[%s5 + $0x770] sm:$0xff]
  %v941 = vld [vmem:[%s5 + $0x778] sm:$0xff]
  %v942 = vld [vmem:[%s5 + $0x780] sm:$0xff]
  %v943 = vld [vmem:[%s5 + $0x788] sm:$0xff]
  %v944 = vld [vmem:[%s5 + $0x790] sm:$0xff]
  %v945 = vld [vmem:[%s5 + $0x798] sm:$0xff]
  %v946 = vld [vmem:[%s5 + $0x7a0] sm:$0xff]
  %v947 = vld [vmem:[%s5 + $0x7a8] sm:$0xff]
  %v948 = vld [vmem:[%s5 + $0x7b0] sm:$0xff]
  %v949 = vld [vmem:[%s5 + $0x7b8] sm:$0xff]
  %v950 = vld [vmem:[%s5 + $0x7c0] sm:$0xff]
  %v951 = vld [vmem:[%s5 + $0x7c8] sm:$0xff]
  %v952 = vld [vmem:[%s5 + $0x7d0] sm:$0xff]
  %v953 = vld [vmem:[%s5 + $0x7d8] sm:$0xff]
  %v954 = vld [vmem:[%s5 + $0x7e0] sm:$0xff]
  %v955 = vld [vmem:[%s5 + $0x7e8] sm:$0xff]
  %v956 = vld [vmem:[%s5 + $0x7f0] sm:$0xff]
  %v957 = vld [vmem:[%s5 + $0x7f8] sm:$0xff]
  %v958 = vld [vmem:[%s6] sm:$0xff]
  %v960 = vlaneseq
  %v961 = vshrl.u32 %v960, 7
  %v962 = vsub.s32 0, %v961
  %v963 = vrot.slane %v958, %v962
  %v964 = vlaneseq
  %v965 = vshrl.u32 %v964, 7
  %v966 = vsub.s32 1, %v965
  %v967 = vrot.slane %v958, %v966
  %v968 = vlaneseq
  %v969 = vshrl.u32 %v968, 7
  %v970 = vsub.s32 2, %v969
  %v971 = vrot.slane %v958, %v970
  %v972 = vlaneseq
  %v973 = vshrl.u32 %v972, 7
  %v974 = vsub.s32 3, %v973
  %v975 = vrot.slane %v958, %v974
  %v976 = vlaneseq
  %v977 = vshrl.u32 %v976, 7
  %v978 = vsub.s32 4, %v977
  %v979 = vrot.slane %v958, %v978
  %v980 = vlaneseq
  %v981 = vshrl.u32 %v980, 7
  %v982 = vsub.s32 5, %v981
  %v983 = vrot.slane %v958, %v982
  %v984 = vlaneseq
  %v985 = vshrl.u32 %v984, 7
  %v986 = vsub.s32 6, %v985
  %v987 = vrot.slane %v958, %v986
  %v988 = vlaneseq
  %v989 = vshrl.u32 %v988, 7
  %v990 = vsub.s32 7, %v989
  %v991 = vrot.slane %v958, %v990
  %v1256 = vunpack.c.l.b16 %v702
  %v1257 = vunpack.c.h.b16 %v702
  %v1258 = vunpack.c.l.b16 %v703
  %v1259 = vunpack.c.h.b16 %v703
  %v1260 = vunpack.c.l.b16 %v704
  %v1261 = vunpack.c.h.b16 %v704
  %v1262 = vunpack.c.l.b16 %v705
  %v1263 = vunpack.c.h.b16 %v705
  %v1264 = vunpack.c.l.b16 %v706
  %v1265 = vunpack.c.h.b16 %v706
  %v1266 = vunpack.c.l.b16 %v707
  %v1267 = vunpack.c.h.b16 %v707
  %v1268 = vunpack.c.l.b16 %v708
  %v1269 = vunpack.c.h.b16 %v708
  %v1270 = vunpack.c.l.b16 %v709
  %v1271 = vunpack.c.h.b16 %v709
  %v1272 = vunpack.c.l.b16 %v710
  %v1273 = vunpack.c.h.b16 %v710
  %v1274 = vunpack.c.l.b16 %v711
  %v1275 = vunpack.c.h.b16 %v711
  %v1276 = vunpack.c.l.b16 %v712
  %v1277 = vunpack.c.h.b16 %v712
  %v1278 = vunpack.c.l.b16 %v713
  %v1279 = vunpack.c.h.b16 %v713
  %v1280 = vunpack.c.l.b16 %v714
  %v1281 = vunpack.c.h.b16 %v714
  %v1282 = vunpack.c.l.b16 %v715
  %v1283 = vunpack.c.h.b16 %v715
  %v1284 = vunpack.c.l.b16 %v716
  %v1285 = vunpack.c.h.b16 %v716
  %v1286 = vunpack.c.l.b16 %v717
  %v1287 = vunpack.c.h.b16 %v717
  %v1288 = vunpack.c.l.b16 %v718
  %v1289 = vunpack.c.h.b16 %v718
  %v1290 = vunpack.c.l.b16 %v719
  %v1291 = vunpack.c.h.b16 %v719
  %v1292 = vunpack.c.l.b16 %v720
  %v1293 = vunpack.c.h.b16 %v720
  %v1294 = vunpack.c.l.b16 %v721
  %v1295 = vunpack.c.h.b16 %v721
  %v1296 = vunpack.c.l.b16 %v722
  %v1297 = vunpack.c.h.b16 %v722
  %v1298 = vunpack.c.l.b16 %v723
  %v1299 = vunpack.c.h.b16 %v723
  %v1300 = vunpack.c.l.b16 %v724
  %v1301 = vunpack.c.h.b16 %v724
  %v1302 = vunpack.c.l.b16 %v725
  %v1303 = vunpack.c.h.b16 %v725
  %v1304 = vunpack.c.l.b16 %v726
  %v1305 = vunpack.c.h.b16 %v726
  %v1306 = vunpack.c.l.b16 %v727
  %v1307 = vunpack.c.h.b16 %v727
  %v1308 = vunpack.c.l.b16 %v728
  %v1309 = vunpack.c.h.b16 %v728
  %v1310 = vunpack.c.l.b16 %v729
  %v1311 = vunpack.c.h.b16 %v729
  %v1312 = vunpack.c.l.b16 %v730
  %v1313 = vunpack.c.h.b16 %v730
  %v1314 = vunpack.c.l.b16 %v731
  %v1315 = vunpack.c.h.b16 %v731
  %v1316 = vunpack.c.l.b16 %v732
  %v1317 = vunpack.c.h.b16 %v732
  %v1318 = vunpack.c.l.b16 %v733
  %v1319 = vunpack.c.h.b16 %v733
  %v1320 = vunpack.c.l.b16 %v734
  %v1321 = vunpack.c.h.b16 %v734
  %v1322 = vunpack.c.l.b16 %v735
  %v1323 = vunpack.c.h.b16 %v735
  %v1324 = vunpack.c.l.b16 %v736
  %v1325 = vunpack.c.h.b16 %v736
  %v1326 = vunpack.c.l.b16 %v737
  %v1327 = vunpack.c.h.b16 %v737
  %v1328 = vunpack.c.l.b16 %v738
  %v1329 = vunpack.c.h.b16 %v738
  %v1330 = vunpack.c.l.b16 %v739
  %v1331 = vunpack.c.h.b16 %v739
  %v1332 = vunpack.c.l.b16 %v740
  %v1333 = vunpack.c.h.b16 %v740
  %v1334 = vunpack.c.l.b16 %v741
  %v1335 = vunpack.c.h.b16 %v741
  %v1336 = vunpack.c.l.b16 %v742
  %v1337 = vunpack.c.h.b16 %v742
  %v1338 = vunpack.c.l.b16 %v743
  %v1339 = vunpack.c.h.b16 %v743
  %v1340 = vunpack.c.l.b16 %v744
  %v1341 = vunpack.c.h.b16 %v744
  %v1342 = vunpack.c.l.b16 %v745
  %v1343 = vunpack.c.h.b16 %v745
  %v1344 = vunpack.c.l.b16 %v746
  %v1345 = vunpack.c.h.b16 %v746
  %v1346 = vunpack.c.l.b16 %v747
  %v1347 = vunpack.c.h.b16 %v747
  %v1348 = vunpack.c.l.b16 %v748
  %v1349 = vunpack.c.h.b16 %v748
  %v1350 = vunpack.c.l.b16 %v749
  %v1351 = vunpack.c.h.b16 %v749
  %v1352 = vunpack.c.l.b16 %v750
  %v1353 = vunpack.c.h.b16 %v750
  %v1354 = vunpack.c.l.b16 %v751
  %v1355 = vunpack.c.h.b16 %v751
  %v1356 = vunpack.c.l.b16 %v752
  %v1357 = vunpack.c.h.b16 %v752
  %v1358 = vunpack.c.l.b16 %v753
  %v1359 = vunpack.c.h.b16 %v753
  %v1360 = vunpack.c.l.b16 %v754
  %v1361 = vunpack.c.h.b16 %v754
  %v1362 = vunpack.c.l.b16 %v755
  %v1363 = vunpack.c.h.b16 %v755
  %v1364 = vunpack.c.l.b16 %v756
  %v1365 = vunpack.c.h.b16 %v756
  %v1366 = vunpack.c.l.b16 %v757
  %v1367 = vunpack.c.h.b16 %v757
  %v1368 = vunpack.c.l.b16 %v758
  %v1369 = vunpack.c.h.b16 %v758
  %v1370 = vunpack.c.l.b16 %v759
  %v1371 = vunpack.c.h.b16 %v759
  %v1372 = vunpack.c.l.b16 %v760
  %v1373 = vunpack.c.h.b16 %v760
  %v1374 = vunpack.c.l.b16 %v761
  %v1375 = vunpack.c.h.b16 %v761
  %v1376 = vunpack.c.l.b16 %v762
  %v1377 = vunpack.c.h.b16 %v762
  %v1378 = vunpack.c.l.b16 %v763
  %v1379 = vunpack.c.h.b16 %v763
  %v1380 = vunpack.c.l.b16 %v764
  %v1381 = vunpack.c.h.b16 %v764
  %v1382 = vunpack.c.l.b16 %v765
  %v1383 = vunpack.c.h.b16 %v765
  %v1384 = vunpack.c.l.b16 %v766
  %v1385 = vunpack.c.h.b16 %v766
  %v1386 = vunpack.c.l.b16 %v767
  %v1387 = vunpack.c.h.b16 %v767
  %v1388 = vunpack.c.l.b16 %v768
  %v1389 = vunpack.c.h.b16 %v768
  %v1390 = vunpack.c.l.b16 %v769
  %v1391 = vunpack.c.h.b16 %v769
  %v1392 = vunpack.c.l.b16 %v770
  %v1393 = vunpack.c.h.b16 %v770
  %v1394 = vunpack.c.l.b16 %v771
  %v1395 = vunpack.c.h.b16 %v771
  %v1396 = vunpack.c.l.b16 %v772
  %v1397 = vunpack.c.h.b16 %v772
  %v1398 = vunpack.c.l.b16 %v773
  %v1399 = vunpack.c.h.b16 %v773
  %v1400 = vunpack.c.l.b16 %v774
  %v1401 = vunpack.c.h.b16 %v774
  %v1402 = vunpack.c.l.b16 %v775
  %v1403 = vunpack.c.h.b16 %v775
  %v1404 = vunpack.c.l.b16 %v776
  %v1405 = vunpack.c.h.b16 %v776
  %v1406 = vunpack.c.l.b16 %v777
  %v1407 = vunpack.c.h.b16 %v777
  %v1408 = vunpack.c.l.b16 %v778
  %v1409 = vunpack.c.h.b16 %v778
  %v1410 = vunpack.c.l.b16 %v779
  %v1411 = vunpack.c.h.b16 %v779
  %v1412 = vunpack.c.l.b16 %v780
  %v1413 = vunpack.c.h.b16 %v780
  %v1414 = vunpack.c.l.b16 %v781
  %v1415 = vunpack.c.h.b16 %v781
  %v1416 = vunpack.c.l.b16 %v782
  %v1417 = vunpack.c.h.b16 %v782
  %v1418 = vunpack.c.l.b16 %v783
  %v1419 = vunpack.c.h.b16 %v783
  %v1420 = vunpack.c.l.b16 %v784
  %v1421 = vunpack.c.h.b16 %v784
  %v1422 = vunpack.c.l.b16 %v785
  %v1423 = vunpack.c.h.b16 %v785
  %v1424 = vunpack.c.l.b16 %v786
  %v1425 = vunpack.c.h.b16 %v786
  %v1426 = vunpack.c.l.b16 %v787
  %v1427 = vunpack.c.h.b16 %v787
  %v1428 = vunpack.c.l.b16 %v788
  %v1429 = vunpack.c.h.b16 %v788
  %v1430 = vunpack.c.l.b16 %v789
  %v1431 = vunpack.c.h.b16 %v789
  %v1432 = vunpack.c.l.b16 %v790
  %v1433 = vunpack.c.h.b16 %v790
  %v1434 = vunpack.c.l.b16 %v791
  %v1435 = vunpack.c.h.b16 %v791
  %v1436 = vunpack.c.l.b16 %v792
  %v1437 = vunpack.c.h.b16 %v792
  %v1438 = vunpack.c.l.b16 %v793
  %v1439 = vunpack.c.h.b16 %v793
  %v1440 = vunpack.c.l.b16 %v794
  %v1441 = vunpack.c.h.b16 %v794
  %v1442 = vunpack.c.l.b16 %v795
  %v1443 = vunpack.c.h.b16 %v795
  %v1444 = vunpack.c.l.b16 %v796
  %v1445 = vunpack.c.h.b16 %v796
  %v1446 = vunpack.c.l.b16 %v797
  %v1447 = vunpack.c.h.b16 %v797
  %v1448 = vunpack.c.l.b16 %v798
  %v1449 = vunpack.c.h.b16 %v798
  %v1450 = vunpack.c.l.b16 %v799
  %v1451 = vunpack.c.h.b16 %v799
  %v1452 = vunpack.c.l.b16 %v800
  %v1453 = vunpack.c.h.b16 %v800
  %v1454 = vunpack.c.l.b16 %v801
  %v1455 = vunpack.c.h.b16 %v801
  %v1456 = vunpack.c.l.b16 %v802
  %v1457 = vunpack.c.h.b16 %v802
  %v1458 = vunpack.c.l.b16 %v803
  %v1459 = vunpack.c.h.b16 %v803
  %v1460 = vunpack.c.l.b16 %v804
  %v1461 = vunpack.c.h.b16 %v804
  %v1462 = vunpack.c.l.b16 %v805
  %v1463 = vunpack.c.h.b16 %v805
  %v1464 = vunpack.c.l.b16 %v806
  %v1465 = vunpack.c.h.b16 %v806
  %v1466 = vunpack.c.l.b16 %v807
  %v1467 = vunpack.c.h.b16 %v807
  %v1468 = vunpack.c.l.b16 %v808
  %v1469 = vunpack.c.h.b16 %v808
  %v1470 = vunpack.c.l.b16 %v809
  %v1471 = vunpack.c.h.b16 %v809
  %v1472 = vunpack.c.l.b16 %v810
  %v1473 = vunpack.c.h.b16 %v810
  %v1474 = vunpack.c.l.b16 %v811
  %v1475 = vunpack.c.h.b16 %v811
  %v1476 = vunpack.c.l.b16 %v812
  %v1477 = vunpack.c.h.b16 %v812
  %v1478 = vunpack.c.l.b16 %v813
  %v1479 = vunpack.c.h.b16 %v813
  %v1480 = vunpack.c.l.b16 %v814
  %v1481 = vunpack.c.h.b16 %v814
  %v1482 = vunpack.c.l.b16 %v815
  %v1483 = vunpack.c.h.b16 %v815
  %v1484 = vunpack.c.l.b16 %v816
  %v1485 = vunpack.c.h.b16 %v816
  %v1486 = vunpack.c.l.b16 %v817
  %v1487 = vunpack.c.h.b16 %v817
  %v1488 = vunpack.c.l.b16 %v818
  %v1489 = vunpack.c.h.b16 %v818
  %v1490 = vunpack.c.l.b16 %v819
  %v1491 = vunpack.c.h.b16 %v819
  %v1492 = vunpack.c.l.b16 %v820
  %v1493 = vunpack.c.h.b16 %v820
  %v1494 = vunpack.c.l.b16 %v821
  %v1495 = vunpack.c.h.b16 %v821
  %v1496 = vunpack.c.l.b16 %v822
  %v1497 = vunpack.c.h.b16 %v822
  %v1498 = vunpack.c.l.b16 %v823
  %v1499 = vunpack.c.h.b16 %v823
  %v1500 = vunpack.c.l.b16 %v824
  %v1501 = vunpack.c.h.b16 %v824
  %v1502 = vunpack.c.l.b16 %v825
  %v1503 = vunpack.c.h.b16 %v825
  %v1504 = vunpack.c.l.b16 %v826
  %v1505 = vunpack.c.h.b16 %v826
  %v1506 = vunpack.c.l.b16 %v827
  %v1507 = vunpack.c.h.b16 %v827
  %v1508 = vunpack.c.l.b16 %v828
  %v1509 = vunpack.c.h.b16 %v828
  %v1510 = vunpack.c.l.b16 %v829
  %v1511 = vunpack.c.h.b16 %v829
  %v1512 = vunpack.c.l.b16 %v830
  %v1513 = vunpack.c.h.b16 %v830
  %v1514 = vunpack.c.l.b16 %v831
  %v1515 = vunpack.c.h.b16 %v831
  %v1516 = vunpack.c.l.b16 %v832
  %v1517 = vunpack.c.h.b16 %v832
  %v1518 = vunpack.c.l.b16 %v833
  %v1519 = vunpack.c.h.b16 %v833
  %v1520 = vunpack.c.l.b16 %v834
  %v1521 = vunpack.c.h.b16 %v834
  %v1522 = vunpack.c.l.b16 %v835
  %v1523 = vunpack.c.h.b16 %v835
  %v1524 = vunpack.c.l.b16 %v836
  %v1525 = vunpack.c.h.b16 %v836
  %v1526 = vunpack.c.l.b16 %v837
  %v1527 = vunpack.c.h.b16 %v837
  %v1528 = vunpack.c.l.b16 %v838
  %v1529 = vunpack.c.h.b16 %v838
  %v1530 = vunpack.c.l.b16 %v839
  %v1531 = vunpack.c.h.b16 %v839
  %v1532 = vunpack.c.l.b16 %v840
  %v1533 = vunpack.c.h.b16 %v840
  %v1534 = vunpack.c.l.b16 %v841
  %v1535 = vunpack.c.h.b16 %v841
  %v1536 = vunpack.c.l.b16 %v842
  %v1537 = vunpack.c.h.b16 %v842
  %v1538 = vunpack.c.l.b16 %v843
  %v1539 = vunpack.c.h.b16 %v843
  %v1540 = vunpack.c.l.b16 %v844
  %v1541 = vunpack.c.h.b16 %v844
  %v1542 = vunpack.c.l.b16 %v845
  %v1543 = vunpack.c.h.b16 %v845
  %v1544 = vunpack.c.l.b16 %v846
  %v1545 = vunpack.c.h.b16 %v846
  %v1546 = vunpack.c.l.b16 %v847
  %v1547 = vunpack.c.h.b16 %v847
  %v1548 = vunpack.c.l.b16 %v848
  %v1549 = vunpack.c.h.b16 %v848
  %v1550 = vunpack.c.l.b16 %v849
  %v1551 = vunpack.c.h.b16 %v849
  %v1552 = vunpack.c.l.b16 %v850
  %v1553 = vunpack.c.h.b16 %v850
  %v1554 = vunpack.c.l.b16 %v851
  %v1555 = vunpack.c.h.b16 %v851
  %v1556 = vunpack.c.l.b16 %v852
  %v1557 = vunpack.c.h.b16 %v852
  %v1558 = vunpack.c.l.b16 %v853
  %v1559 = vunpack.c.h.b16 %v853
  %v1560 = vunpack.c.l.b16 %v854
  %v1561 = vunpack.c.h.b16 %v854
  %v1562 = vunpack.c.l.b16 %v855
  %v1563 = vunpack.c.h.b16 %v855
  %v1564 = vunpack.c.l.b16 %v856
  %v1565 = vunpack.c.h.b16 %v856
  %v1566 = vunpack.c.l.b16 %v857
  %v1567 = vunpack.c.h.b16 %v857
  %v1568 = vunpack.c.l.b16 %v858
  %v1569 = vunpack.c.h.b16 %v858
  %v1570 = vunpack.c.l.b16 %v859
  %v1571 = vunpack.c.h.b16 %v859
  %v1572 = vunpack.c.l.b16 %v860
  %v1573 = vunpack.c.h.b16 %v860
  %v1574 = vunpack.c.l.b16 %v861
  %v1575 = vunpack.c.h.b16 %v861
  %v1576 = vunpack.c.l.b16 %v862
  %v1577 = vunpack.c.h.b16 %v862
  %v1578 = vunpack.c.l.b16 %v863
  %v1579 = vunpack.c.h.b16 %v863
  %v1580 = vunpack.c.l.b16 %v864
  %v1581 = vunpack.c.h.b16 %v864
  %v1582 = vunpack.c.l.b16 %v865
  %v1583 = vunpack.c.h.b16 %v865
  %v1584 = vunpack.c.l.b16 %v866
  %v1585 = vunpack.c.h.b16 %v866
  %v1586 = vunpack.c.l.b16 %v867
  %v1587 = vunpack.c.h.b16 %v867
  %v1588 = vunpack.c.l.b16 %v868
  %v1589 = vunpack.c.h.b16 %v868
  %v1590 = vunpack.c.l.b16 %v869
  %v1591 = vunpack.c.h.b16 %v869
  %v1592 = vunpack.c.l.b16 %v870
  %v1593 = vunpack.c.h.b16 %v870
  %v1594 = vunpack.c.l.b16 %v871
  %v1595 = vunpack.c.h.b16 %v871
  %v1596 = vunpack.c.l.b16 %v872
  %v1597 = vunpack.c.h.b16 %v872
  %v1598 = vunpack.c.l.b16 %v873
  %v1599 = vunpack.c.h.b16 %v873
  %v1600 = vunpack.c.l.b16 %v874
  %v1601 = vunpack.c.h.b16 %v874
  %v1602 = vunpack.c.l.b16 %v875
  %v1603 = vunpack.c.h.b16 %v875
  %v1604 = vunpack.c.l.b16 %v876
  %v1605 = vunpack.c.h.b16 %v876
  %v1606 = vunpack.c.l.b16 %v877
  %v1607 = vunpack.c.h.b16 %v877
  %v1608 = vunpack.c.l.b16 %v878
  %v1609 = vunpack.c.h.b16 %v878
  %v1610 = vunpack.c.l.b16 %v879
  %v1611 = vunpack.c.h.b16 %v879
  %v1612 = vunpack.c.l.b16 %v880
  %v1613 = vunpack.c.h.b16 %v880
  %v1614 = vunpack.c.l.b16 %v881
  %v1615 = vunpack.c.h.b16 %v881
  %v1616 = vunpack.c.l.b16 %v882
  %v1617 = vunpack.c.h.b16 %v882
  %v1618 = vunpack.c.l.b16 %v883
  %v1619 = vunpack.c.h.b16 %v883
  %v1620 = vunpack.c.l.b16 %v884
  %v1621 = vunpack.c.h.b16 %v884
  %v1622 = vunpack.c.l.b16 %v885
  %v1623 = vunpack.c.h.b16 %v885
  %v1624 = vunpack.c.l.b16 %v886
  %v1625 = vunpack.c.h.b16 %v886
  %v1626 = vunpack.c.l.b16 %v887
  %v1627 = vunpack.c.h.b16 %v887
  %v1628 = vunpack.c.l.b16 %v888
  %v1629 = vunpack.c.h.b16 %v888
  %v1630 = vunpack.c.l.b16 %v889
  %v1631 = vunpack.c.h.b16 %v889
  %v1632 = vunpack.c.l.b16 %v890
  %v1633 = vunpack.c.h.b16 %v890
  %v1634 = vunpack.c.l.b16 %v891
  %v1635 = vunpack.c.h.b16 %v891
  %v1636 = vunpack.c.l.b16 %v892
  %v1637 = vunpack.c.h.b16 %v892
  %v1638 = vunpack.c.l.b16 %v893
  %v1639 = vunpack.c.h.b16 %v893
  %v1640 = vunpack.c.l.b16 %v894
  %v1641 = vunpack.c.h.b16 %v894
  %v1642 = vunpack.c.l.b16 %v895
  %v1643 = vunpack.c.h.b16 %v895
  %v1644 = vunpack.c.l.b16 %v896
  %v1645 = vunpack.c.h.b16 %v896
  %v1646 = vunpack.c.l.b16 %v897
  %v1647 = vunpack.c.h.b16 %v897
  %v1648 = vunpack.c.l.b16 %v898
  %v1649 = vunpack.c.h.b16 %v898
  %v1650 = vunpack.c.l.b16 %v899
  %v1651 = vunpack.c.h.b16 %v899
  %v1652 = vunpack.c.l.b16 %v900
  %v1653 = vunpack.c.h.b16 %v900
  %v1654 = vunpack.c.l.b16 %v901
  %v1655 = vunpack.c.h.b16 %v901
  %v1656 = vunpack.c.l.b16 %v902
  %v1657 = vunpack.c.h.b16 %v902
  %v1658 = vunpack.c.l.b16 %v903
  %v1659 = vunpack.c.h.b16 %v903
  %v1660 = vunpack.c.l.b16 %v904
  %v1661 = vunpack.c.h.b16 %v904
  %v1662 = vunpack.c.l.b16 %v905
  %v1663 = vunpack.c.h.b16 %v905
  %v1664 = vunpack.c.l.b16 %v906
  %v1665 = vunpack.c.h.b16 %v906
  %v1666 = vunpack.c.l.b16 %v907
  %v1667 = vunpack.c.h.b16 %v907
  %v1668 = vunpack.c.l.b16 %v908
  %v1669 = vunpack.c.h.b16 %v908
  %v1670 = vunpack.c.l.b16 %v909
  %v1671 = vunpack.c.h.b16 %v909
  %v1672 = vunpack.c.l.b16 %v910
  %v1673 = vunpack.c.h.b16 %v910
  %v1674 = vunpack.c.l.b16 %v911
  %v1675 = vunpack.c.h.b16 %v911
  %v1676 = vunpack.c.l.b16 %v912
  %v1677 = vunpack.c.h.b16 %v912
  %v1678 = vunpack.c.l.b16 %v913
  %v1679 = vunpack.c.h.b16 %v913
  %v1680 = vunpack.c.l.b16 %v914
  %v1681 = vunpack.c.h.b16 %v914
  %v1682 = vunpack.c.l.b16 %v915
  %v1683 = vunpack.c.h.b16 %v915
  %v1684 = vunpack.c.l.b16 %v916
  %v1685 = vunpack.c.h.b16 %v916
  %v1686 = vunpack.c.l.b16 %v917
  %v1687 = vunpack.c.h.b16 %v917
  %v1688 = vunpack.c.l.b16 %v918
  %v1689 = vunpack.c.h.b16 %v918
  %v1690 = vunpack.c.l.b16 %v919
  %v1691 = vunpack.c.h.b16 %v919
  %v1692 = vunpack.c.l.b16 %v920
  %v1693 = vunpack.c.h.b16 %v920
  %v1694 = vunpack.c.l.b16 %v921
  %v1695 = vunpack.c.h.b16 %v921
  %v1696 = vunpack.c.l.b16 %v922
  %v1697 = vunpack.c.h.b16 %v922
  %v1698 = vunpack.c.l.b16 %v923
  %v1699 = vunpack.c.h.b16 %v923
  %v1700 = vunpack.c.l.b16 %v924
  %v1701 = vunpack.c.h.b16 %v924
  %v1702 = vunpack.c.l.b16 %v925
  %v1703 = vunpack.c.h.b16 %v925
  %v1704 = vunpack.c.l.b16 %v926
  %v1705 = vunpack.c.h.b16 %v926
  %v1706 = vunpack.c.l.b16 %v927
  %v1707 = vunpack.c.h.b16 %v927
  %v1708 = vunpack.c.l.b16 %v928
  %v1709 = vunpack.c.h.b16 %v928
  %v1710 = vunpack.c.l.b16 %v929
  %v1711 = vunpack.c.h.b16 %v929
  %v1712 = vunpack.c.l.b16 %v930
  %v1713 = vunpack.c.h.b16 %v930
  %v1714 = vunpack.c.l.b16 %v931
  %v1715 = vunpack.c.h.b16 %v931
  %v1716 = vunpack.c.l.b16 %v932
  %v1717 = vunpack.c.h.b16 %v932
  %v1718 = vunpack.c.l.b16 %v933
  %v1719 = vunpack.c.h.b16 %v933
  %v1720 = vunpack.c.l.b16 %v934
  %v1721 = vunpack.c.h.b16 %v934
  %v1722 = vunpack.c.l.b16 %v935
  %v1723 = vunpack.c.h.b16 %v935
  %v1724 = vunpack.c.l.b16 %v936
  %v1725 = vunpack.c.h.b16 %v936
  %v1726 = vunpack.c.l.b16 %v937
  %v1727 = vunpack.c.h.b16 %v937
  %v1728 = vunpack.c.l.b16 %v938
  %v1729 = vunpack.c.h.b16 %v938
  %v1730 = vunpack.c.l.b16 %v939
  %v1731 = vunpack.c.h.b16 %v939
  %v1732 = vunpack.c.l.b16 %v940
  %v1733 = vunpack.c.h.b16 %v940
  %v1734 = vunpack.c.l.b16 %v941
  %v1735 = vunpack.c.h.b16 %v941
  %v1736 = vunpack.c.l.b16 %v942
  %v1737 = vunpack.c.h.b16 %v942
  %v1738 = vunpack.c.l.b16 %v943
  %v1739 = vunpack.c.h.b16 %v943
  %v1740 = vunpack.c.l.b16 %v944
  %v1741 = vunpack.c.h.b16 %v944
  %v1742 = vunpack.c.l.b16 %v945
  %v1743 = vunpack.c.h.b16 %v945
  %v1744 = vunpack.c.l.b16 %v946
  %v1745 = vunpack.c.h.b16 %v946
  %v1746 = vunpack.c.l.b16 %v947
  %v1747 = vunpack.c.h.b16 %v947
  %v1748 = vunpack.c.l.b16 %v948
  %v1749 = vunpack.c.h.b16 %v948
  %v1750 = vunpack.c.l.b16 %v949
  %v1751 = vunpack.c.h.b16 %v949
  %v1752 = vunpack.c.l.b16 %v950
  %v1753 = vunpack.c.h.b16 %v950
  %v1754 = vunpack.c.l.b16 %v951
  %v1755 = vunpack.c.h.b16 %v951
  %v1756 = vunpack.c.l.b16 %v952
  %v1757 = vunpack.c.h.b16 %v952
  %v1758 = vunpack.c.l.b16 %v953
  %v1759 = vunpack.c.h.b16 %v953
  %v1760 = vunpack.c.l.b16 %v954
  %v1761 = vunpack.c.h.b16 %v954
  %v1762 = vunpack.c.l.b16 %v955
  %v1763 = vunpack.c.h.b16 %v955
  %v1764 = vunpack.c.l.b16 %v956
  %v1765 = vunpack.c.h.b16 %v956
  %v1766 = vunpack.c.l.b16 %v957
  %v1767 = vunpack.c.h.b16 %v957
  %v1768 = vpack.c.b16 %v1264, %v1256
  %v1769 = vpack.c.b16 %v1265, %v1257
  %v1770 = vpack.c.b16 %v1266, %v1258
  %v1771 = vpack.c.b16 %v1267, %v1259
  %v1772 = vpack.c.b16 %v1268, %v1260
  %v1773 = vpack.c.b16 %v1269, %v1261
  %v1774 = vpack.c.b16 %v1270, %v1262
  %v1775 = vpack.c.b16 %v1271, %v1263
  %v1776 = vpack.c.b16 %v1280, %v1272
  %v1777 = vpack.c.b16 %v1281, %v1273
  %v1778 = vpack.c.b16 %v1282, %v1274
  %v1779 = vpack.c.b16 %v1283, %v1275
  %v1780 = vpack.c.b16 %v1284, %v1276
  %v1781 = vpack.c.b16 %v1285, %v1277
  %v1782 = vpack.c.b16 %v1286, %v1278
  %v1783 = vpack.c.b16 %v1287, %v1279
  %v1784 = vpack.c.b16 %v1296, %v1288
  %v1785 = vpack.c.b16 %v1297, %v1289
  %v1786 = vpack.c.b16 %v1298, %v1290
  %v1787 = vpack.c.b16 %v1299, %v1291
  %v1788 = vpack.c.b16 %v1300, %v1292
  %v1789 = vpack.c.b16 %v1301, %v1293
  %v1790 = vpack.c.b16 %v1302, %v1294
  %v1791 = vpack.c.b16 %v1303, %v1295
  %v1792 = vpack.c.b16 %v1312, %v1304
  %v1793 = vpack.c.b16 %v1313, %v1305
  %v1794 = vpack.c.b16 %v1314, %v1306
  %v1795 = vpack.c.b16 %v1315, %v1307
  %v1796 = vpack.c.b16 %v1316, %v1308
  %v1797 = vpack.c.b16 %v1317, %v1309
  %v1798 = vpack.c.b16 %v1318, %v1310
  %v1799 = vpack.c.b16 %v1319, %v1311
  %v1800 = vpack.c.b16 %v1328, %v1320
  %v1801 = vpack.c.b16 %v1329, %v1321
  %v1802 = vpack.c.b16 %v1330, %v1322
  %v1803 = vpack.c.b16 %v1331, %v1323
  %v1804 = vpack.c.b16 %v1332, %v1324
  %v1805 = vpack.c.b16 %v1333, %v1325
  %v1806 = vpack.c.b16 %v1334, %v1326
  %v1807 = vpack.c.b16 %v1335, %v1327
  %v1808 = vpack.c.b16 %v1344, %v1336
  %v1809 = vpack.c.b16 %v1345, %v1337
  %v1810 = vpack.c.b16 %v1346, %v1338
  %v1811 = vpack.c.b16 %v1347, %v1339
  %v1812 = vpack.c.b16 %v1348, %v1340
  %v1813 = vpack.c.b16 %v1349, %v1341
  %v1814 = vpack.c.b16 %v1350, %v1342
  %v1815 = vpack.c.b16 %v1351, %v1343
  %v1816 = vpack.c.b16 %v1360, %v1352
  %v1817 = vpack.c.b16 %v1361, %v1353
  %v1818 = vpack.c.b16 %v1362, %v1354
  %v1819 = vpack.c.b16 %v1363, %v1355
  %v1820 = vpack.c.b16 %v1364, %v1356
  %v1821 = vpack.c.b16 %v1365, %v1357
  %v1822 = vpack.c.b16 %v1366, %v1358
  %v1823 = vpack.c.b16 %v1367, %v1359
  %v1824 = vpack.c.b16 %v1376, %v1368
  %v1825 = vpack.c.b16 %v1377, %v1369
  %v1826 = vpack.c.b16 %v1378, %v1370
  %v1827 = vpack.c.b16 %v1379, %v1371
  %v1828 = vpack.c.b16 %v1380, %v1372
  %v1829 = vpack.c.b16 %v1381, %v1373
  %v1830 = vpack.c.b16 %v1382, %v1374
  %v1831 = vpack.c.b16 %v1383, %v1375
  %v1832 = vpack.c.b16 %v1392, %v1384
  %v1833 = vpack.c.b16 %v1393, %v1385
  %v1834 = vpack.c.b16 %v1394, %v1386
  %v1835 = vpack.c.b16 %v1395, %v1387
  %v1836 = vpack.c.b16 %v1396, %v1388
  %v1837 = vpack.c.b16 %v1397, %v1389
  %v1838 = vpack.c.b16 %v1398, %v1390
  %v1839 = vpack.c.b16 %v1399, %v1391
  %v1840 = vpack.c.b16 %v1408, %v1400
  %v1841 = vpack.c.b16 %v1409, %v1401
  %v1842 = vpack.c.b16 %v1410, %v1402
  %v1843 = vpack.c.b16 %v1411, %v1403
  %v1844 = vpack.c.b16 %v1412, %v1404
  %v1845 = vpack.c.b16 %v1413, %v1405
  %v1846 = vpack.c.b16 %v1414, %v1406
  %v1847 = vpack.c.b16 %v1415, %v1407
  %v1848 = vpack.c.b16 %v1424, %v1416
  %v1849 = vpack.c.b16 %v1425, %v1417
  %v1850 = vpack.c.b16 %v1426, %v1418
  %v1851 = vpack.c.b16 %v1427, %v1419
  %v1852 = vpack.c.b16 %v1428, %v1420
  %v1853 = vpack.c.b16 %v1429, %v1421
  %v1854 = vpack.c.b16 %v1430, %v1422
  %v1855 = vpack.c.b16 %v1431, %v1423
  %v1856 = vpack.c.b16 %v1440, %v1432
  %v1857 = vpack.c.b16 %v1441, %v1433
  %v1858 = vpack.c.b16 %v1442, %v1434
  %v1859 = vpack.c.b16 %v1443, %v1435
  %v1860 = vpack.c.b16 %v1444, %v1436
  %v1861 = vpack.c.b16 %v1445, %v1437
  %v1862 = vpack.c.b16 %v1446, %v1438
  %v1863 = vpack.c.b16 %v1447, %v1439
  %v1864 = vpack.c.b16 %v1456, %v1448
  %v1865 = vpack.c.b16 %v1457, %v1449
  %v1866 = vpack.c.b16 %v1458, %v1450
  %v1867 = vpack.c.b16 %v1459, %v1451
  %v1868 = vpack.c.b16 %v1460, %v1452
  %v1869 = vpack.c.b16 %v1461, %v1453
  %v1870 = vpack.c.b16 %v1462, %v1454
  %v1871 = vpack.c.b16 %v1463, %v1455
  %v1872 = vpack.c.b16 %v1472, %v1464
  %v1873 = vpack.c.b16 %v1473, %v1465
  %v1874 = vpack.c.b16 %v1474, %v1466
  %v1875 = vpack.c.b16 %v1475, %v1467
  %v1876 = vpack.c.b16 %v1476, %v1468
  %v1877 = vpack.c.b16 %v1477, %v1469
  %v1878 = vpack.c.b16 %v1478, %v1470
  %v1879 = vpack.c.b16 %v1479, %v1471
  %v1880 = vpack.c.b16 %v1488, %v1480
  %v1881 = vpack.c.b16 %v1489, %v1481
  %v1882 = vpack.c.b16 %v1490, %v1482
  %v1883 = vpack.c.b16 %v1491, %v1483
  %v1884 = vpack.c.b16 %v1492, %v1484
  %v1885 = vpack.c.b16 %v1493, %v1485
  %v1886 = vpack.c.b16 %v1494, %v1486
  %v1887 = vpack.c.b16 %v1495, %v1487
  %v1888 = vpack.c.b16 %v1504, %v1496
  %v1889 = vpack.c.b16 %v1505, %v1497
  %v1890 = vpack.c.b16 %v1506, %v1498
  %v1891 = vpack.c.b16 %v1507, %v1499
  %v1892 = vpack.c.b16 %v1508, %v1500
  %v1893 = vpack.c.b16 %v1509, %v1501
  %v1894 = vpack.c.b16 %v1510, %v1502
  %v1895 = vpack.c.b16 %v1511, %v1503
  %v1896 = vpack.c.b16 %v1520, %v1512
  %v1897 = vpack.c.b16 %v1521, %v1513
  %v1898 = vpack.c.b16 %v1522, %v1514
  %v1899 = vpack.c.b16 %v1523, %v1515
  %v1900 = vpack.c.b16 %v1524, %v1516
  %v1901 = vpack.c.b16 %v1525, %v1517
  %v1902 = vpack.c.b16 %v1526, %v1518
  %v1903 = vpack.c.b16 %v1527, %v1519
  %v1904 = vpack.c.b16 %v1536, %v1528
  %v1905 = vpack.c.b16 %v1537, %v1529
  %v1906 = vpack.c.b16 %v1538, %v1530
  %v1907 = vpack.c.b16 %v1539, %v1531
  %v1908 = vpack.c.b16 %v1540, %v1532
  %v1909 = vpack.c.b16 %v1541, %v1533
  %v1910 = vpack.c.b16 %v1542, %v1534
  %v1911 = vpack.c.b16 %v1543, %v1535
  %v1912 = vpack.c.b16 %v1552, %v1544
  %v1913 = vpack.c.b16 %v1553, %v1545
  %v1914 = vpack.c.b16 %v1554, %v1546
  %v1915 = vpack.c.b16 %v1555, %v1547
  %v1916 = vpack.c.b16 %v1556, %v1548
  %v1917 = vpack.c.b16 %v1557, %v1549
  %v1918 = vpack.c.b16 %v1558, %v1550
  %v1919 = vpack.c.b16 %v1559, %v1551
  %v1920 = vpack.c.b16 %v1568, %v1560
  %v1921 = vpack.c.b16 %v1569, %v1561
  %v1922 = vpack.c.b16 %v1570, %v1562
  %v1923 = vpack.c.b16 %v1571, %v1563
  %v1924 = vpack.c.b16 %v1572, %v1564
  %v1925 = vpack.c.b16 %v1573, %v1565
  %v1926 = vpack.c.b16 %v1574, %v1566
  %v1927 = vpack.c.b16 %v1575, %v1567
  %v1928 = vpack.c.b16 %v1584, %v1576
  %v1929 = vpack.c.b16 %v1585, %v1577
  %v1930 = vpack.c.b16 %v1586, %v1578
  %v1931 = vpack.c.b16 %v1587, %v1579
  %v1932 = vpack.c.b16 %v1588, %v1580
  %v1933 = vpack.c.b16 %v1589, %v1581
  %v1934 = vpack.c.b16 %v1590, %v1582
  %v1935 = vpack.c.b16 %v1591, %v1583
  %v1936 = vpack.c.b16 %v1600, %v1592
  %v1937 = vpack.c.b16 %v1601, %v1593
  %v1938 = vpack.c.b16 %v1602, %v1594
  %v1939 = vpack.c.b16 %v1603, %v1595
  %v1940 = vpack.c.b16 %v1604, %v1596
  %v1941 = vpack.c.b16 %v1605, %v1597
  %v1942 = vpack.c.b16 %v1606, %v1598
  %v1943 = vpack.c.b16 %v1607, %v1599
  %v1944 = vpack.c.b16 %v1616, %v1608
  %v1945 = vpack.c.b16 %v1617, %v1609
  %v1946 = vpack.c.b16 %v1618, %v1610
  %v1947 = vpack.c.b16 %v1619, %v1611
  %v1948 = vpack.c.b16 %v1620, %v1612
  %v1949 = vpack.c.b16 %v1621, %v1613
  %v1950 = vpack.c.b16 %v1622, %v1614
  %v1951 = vpack.c.b16 %v1623, %v1615
  %v1952 = vpack.c.b16 %v1632, %v1624
  %v1953 = vpack.c.b16 %v1633, %v1625
  %v1954 = vpack.c.b16 %v1634, %v1626
  %v1955 = vpack.c.b16 %v1635, %v1627
  %v1956 = vpack.c.b16 %v1636, %v1628
  %v1957 = vpack.c.b16 %v1637, %v1629
  %v1958 = vpack.c.b16 %v1638, %v1630
  %v1959 = vpack.c.b16 %v1639, %v1631
  %v1960 = vpack.c.b16 %v1648, %v1640
  %v1961 = vpack.c.b16 %v1649, %v1641
  %v1962 = vpack.c.b16 %v1650, %v1642
  %v1963 = vpack.c.b16 %v1651, %v1643
  %v1964 = vpack.c.b16 %v1652, %v1644
  %v1965 = vpack.c.b16 %v1653, %v1645
  %v1966 = vpack.c.b16 %v1654, %v1646
  %v1967 = vpack.c.b16 %v1655, %v1647
  %v1968 = vpack.c.b16 %v1664, %v1656
  %v1969 = vpack.c.b16 %v1665, %v1657
  %v1970 = vpack.c.b16 %v1666, %v1658
  %v1971 = vpack.c.b16 %v1667, %v1659
  %v1972 = vpack.c.b16 %v1668, %v1660
  %v1973 = vpack.c.b16 %v1669, %v1661
  %v1974 = vpack.c.b16 %v1670, %v1662
  %v1975 = vpack.c.b16 %v1671, %v1663
  %v1976 = vpack.c.b16 %v1680, %v1672
  %v1977 = vpack.c.b16 %v1681, %v1673
  %v1978 = vpack.c.b16 %v1682, %v1674
  %v1979 = vpack.c.b16 %v1683, %v1675
  %v1980 = vpack.c.b16 %v1684, %v1676
  %v1981 = vpack.c.b16 %v1685, %v1677
  %v1982 = vpack.c.b16 %v1686, %v1678
  %v1983 = vpack.c.b16 %v1687, %v1679
  %v1984 = vpack.c.b16 %v1696, %v1688
  %v1985 = vpack.c.b16 %v1697, %v1689
  %v1986 = vpack.c.b16 %v1698, %v1690
  %v1987 = vpack.c.b16 %v1699, %v1691
  %v1988 = vpack.c.b16 %v1700, %v1692
  %v1989 = vpack.c.b16 %v1701, %v1693
  %v1990 = vpack.c.b16 %v1702, %v1694
  %v1991 = vpack.c.b16 %v1703, %v1695
  %v1992 = vpack.c.b16 %v1712, %v1704
  %v1993 = vpack.c.b16 %v1713, %v1705
  %v1994 = vpack.c.b16 %v1714, %v1706
  %v1995 = vpack.c.b16 %v1715, %v1707
  %v1996 = vpack.c.b16 %v1716, %v1708
  %v1997 = vpack.c.b16 %v1717, %v1709
  %v1998 = vpack.c.b16 %v1718, %v1710
  %v1999 = vpack.c.b16 %v1719, %v1711
  %v2000 = vpack.c.b16 %v1728, %v1720
  %v2001 = vpack.c.b16 %v1729, %v1721
  %v2002 = vpack.c.b16 %v1730, %v1722
  %v2003 = vpack.c.b16 %v1731, %v1723
  %v2004 = vpack.c.b16 %v1732, %v1724
  %v2005 = vpack.c.b16 %v1733, %v1725
  %v2006 = vpack.c.b16 %v1734, %v1726
  %v2007 = vpack.c.b16 %v1735, %v1727
  %v2008 = vpack.c.b16 %v1744, %v1736
  %v2009 = vpack.c.b16 %v1745, %v1737
  %v2010 = vpack.c.b16 %v1746, %v1738
  %v2011 = vpack.c.b16 %v1747, %v1739
  %v2012 = vpack.c.b16 %v1748, %v1740
  %v2013 = vpack.c.b16 %v1749, %v1741
  %v2014 = vpack.c.b16 %v1750, %v1742
  %v2015 = vpack.c.b16 %v1751, %v1743
  %v2016 = vpack.c.b16 %v1760, %v1752
  %v2017 = vpack.c.b16 %v1761, %v1753
  %v2018 = vpack.c.b16 %v1762, %v1754
  %v2019 = vpack.c.b16 %v1763, %v1755
  %v2020 = vpack.c.b16 %v1764, %v1756
  %v2021 = vpack.c.b16 %v1765, %v1757
  %v2022 = vpack.c.b16 %v1766, %v1758
  %v2023 = vpack.c.b16 %v1767, %v1759
  %2280 = vmatprep.subr.bf16.mxu0 %v1825
  %2281 = vmatpush1.bf16.msra.mxu0 %v1824
  %2282 = vmatprep.subr.bf16.mxu0 %v1817
  %2283 = vmatpush1.bf16.msra.mxu0 %v1816
  %2284 = vmatprep.subr.bf16.mxu0 %v1809
  %2285 = vmatpush1.bf16.msra.mxu0 %v1808
  %2286 = vmatprep.subr.bf16.mxu0 %v1801
  %2287 = vmatpush1.bf16.msra.mxu0 %v1800
  %2288 = vmatprep.subr.bf16.mxu0 %v1793
  %2289 = vmatpush1.bf16.msra.mxu0 %v1792
  %2290 = vmatprep.subr.bf16.mxu0 %v1785
  %2291 = vmatpush1.bf16.msra.mxu0 %v1784
  %2292 = vmatprep.subr.bf16.mxu0 %v1777
  %2293 = vmatpush1.bf16.msra.mxu0 %v1776
  %2294 = vmatprep.subr.bf16.mxu0 %v1769
  %2295 = vmatpush1.bf16.msra.mxu0 %v1768
  %2296 = vmatprep.subr.bf16.mxu0 %v1889
  %2297 = vmatpush2.bf16.msra.mxu0 %v1888
  %2298 = vmatprep.subr.bf16.mxu0 %v1881
  %2299 = vmatpush2.bf16.msra.mxu0 %v1880
  %2300 = vmatprep.subr.bf16.mxu0 %v1873
  %2301 = vmatpush2.bf16.msra.mxu0 %v1872
  %2302 = vmatprep.subr.bf16.mxu0 %v1865
  %2303 = vmatpush2.bf16.msra.mxu0 %v1864
  %2304 = vmatprep.subr.bf16.mxu0 %v1857
  %2305 = vmatpush2.bf16.msra.mxu0 %v1856
  %2306 = vmatprep.subr.bf16.mxu0 %v1849
  %2307 = vmatpush2.bf16.msra.mxu0 %v1848
  %2308 = vmatprep.subr.bf16.mxu0 %v1841
  %2309 = vmatpush2.bf16.msra.mxu0 %v1840
  %2310 = vmatprep.subr.bf16.mxu0 %v1833
  %2311 = vmatpush2.bf16.msra.mxu0 %v1832
  %2312 = vmatprep.mubr.bf16.mxu0 %v699
  %2313 = vmatmul.mubr.bf16.gmra.mxu0 %v698
  %v2314 = vpop.f32.mrf.mxu0
  %v2315 = vadd.f32 %v963, %v2314
  %v2316 = vpop.f32.mrf.mxu0
  %v2317 = vadd.f32 %v967, %v2316
  %v2318 = vpop.f32.mrf.mxu0
  %v2319 = vadd.f32 %v963, %v2318
  %v2320 = vpop.f32.mrf.mxu0
  %v2321 = vadd.f32 %v967, %v2320
  %2322 = vdwg.mxu0
  %2323 = vmatprep.subr.bf16.mxu0 %v1953
  %2324 = vmatpush1.bf16.msra.mxu0 %v1952
  %2325 = vmatprep.subr.bf16.mxu0 %v1945
  %2326 = vmatpush1.bf16.msra.mxu0 %v1944
  %2327 = vmatprep.subr.bf16.mxu0 %v1937
  %2328 = vmatpush1.bf16.msra.mxu0 %v1936
  %2329 = vmatprep.subr.bf16.mxu0 %v1929
  %2330 = vmatpush1.bf16.msra.mxu0 %v1928
  %2331 = vmatprep.subr.bf16.mxu0 %v1921
  %2332 = vmatpush1.bf16.msra.mxu0 %v1920
  %2333 = vmatprep.subr.bf16.mxu0 %v1913
  %2334 = vmatpush1.bf16.msra.mxu0 %v1912
  %2335 = vmatprep.subr.bf16.mxu0 %v1905
  %2336 = vmatpush1.bf16.msra.mxu0 %v1904
  %2337 = vmatprep.subr.bf16.mxu0 %v1897
  %2338 = vmatpush1.bf16.msra.mxu0 %v1896
  %2339 = vmatprep.subr.bf16.mxu0 %v2017
  %2340 = vmatpush2.bf16.msra.mxu0 %v2016
  %2341 = vmatprep.subr.bf16.mxu0 %v2009
  %2342 = vmatpush2.bf16.msra.mxu0 %v2008
  %2343 = vmatprep.subr.bf16.mxu0 %v2001
  %2344 = vmatpush2.bf16.msra.mxu0 %v2000
  %2345 = vmatprep.subr.bf16.mxu0 %v1993
  %2346 = vmatpush2.bf16.msra.mxu0 %v1992
  %2347 = vmatprep.subr.bf16.mxu0 %v1985
  %2348 = vmatpush2.bf16.msra.mxu0 %v1984
  %2349 = vmatprep.subr.bf16.mxu0 %v1977
  %2350 = vmatpush2.bf16.msra.mxu0 %v1976
  %2351 = vmatprep.subr.bf16.mxu0 %v1969
  %2352 = vmatpush2.bf16.msra.mxu0 %v1968
  %2353 = vmatprep.subr.bf16.mxu0 %v1961
  %2354 = vmatpush2.bf16.msra.mxu0 %v1960
  %2355 = vmatprep.mubr.bf16.mxu0 %v701
  %2356 = vmatmul.mubr.bf16.gmra.mxu0 %v700
  %v2357 = vpop.f32.mrf.mxu0
  %v2358 = vadd.f32 %v2315, %v2357
  %v2359 = vpop.f32.mrf.mxu0
  %v2360 = vadd.f32 %v2317, %v2359
  %v2361 = vpop.f32.mrf.mxu0
  %v2362 = vadd.f32 %v2319, %v2361
  %v2363 = vpop.f32.mrf.mxu0
  %v2364 = vadd.f32 %v2321, %v2363
  %2365 = vdwg.mxu0
  %2366 = vmatprep.subr.bf16.mxu0 %v1827
  %2367 = vmatpush1.bf16.msra.mxu0 %v1826
  %2368 = vmatprep.subr.bf16.mxu0 %v1819
  %2369 = vmatpush1.bf16.msra.mxu0 %v1818
  %2370 = vmatprep.subr.bf16.mxu0 %v1811
  %2371 = vmatpush1.bf16.msra.mxu0 %v1810
  %2372 = vmatprep.subr.bf16.mxu0 %v1803
  %2373 = vmatpush1.bf16.msra.mxu0 %v1802
  %2374 = vmatprep.subr.bf16.mxu0 %v1795
  %2375 = vmatpush1.bf16.msra.mxu0 %v1794
  %2376 = vmatprep.subr.bf16.mxu0 %v1787
  %2377 = vmatpush1.bf16.msra.mxu0 %v1786
  %2378 = vmatprep.subr.bf16.mxu0 %v1779
  %2379 = vmatpush1.bf16.msra.mxu0 %v1778
  %2380 = vmatprep.subr.bf16.mxu0 %v1771
  %2381 = vmatpush1.bf16.msra.mxu0 %v1770
  %2382 = vmatprep.subr.bf16.mxu0 %v1891
  %2383 = vmatpush2.bf16.msra.mxu0 %v1890
  %2384 = vmatprep.subr.bf16.mxu0 %v1883
  %2385 = vmatpush2.bf16.msra.mxu0 %v1882
  %2386 = vmatprep.subr.bf16.mxu0 %v1875
  %2387 = vmatpush2.bf16.msra.mxu0 %v1874
  %2388 = vmatprep.subr.bf16.mxu0 %v1867
  %2389 = vmatpush2.bf16.msra.mxu0 %v1866
  %2390 = vmatprep.subr.bf16.mxu0 %v1859
  %2391 = vmatpush2.bf16.msra.mxu0 %v1858
  %2392 = vmatprep.subr.bf16.mxu0 %v1851
  %2393 = vmatpush2.bf16.msra.mxu0 %v1850
  %2394 = vmatprep.subr.bf16.mxu0 %v1843
  %2395 = vmatpush2.bf16.msra.mxu0 %v1842
  %2396 = vmatprep.subr.bf16.mxu0 %v1835
  %2397 = vmatpush2.bf16.msra.mxu0 %v1834
  %2398 = vmatprep.mubr.bf16.mxu0 %v699
  %2399 = vmatmul.mubr.bf16.gmra.mxu0 %v698
  %v2400 = vpop.f32.mrf.mxu0
  %v2401 = vadd.f32 %v971, %v2400
  %v2402 = vpop.f32.mrf.mxu0
  %v2403 = vadd.f32 %v975, %v2402
  %v2404 = vpop.f32.mrf.mxu0
  %v2405 = vadd.f32 %v971, %v2404
  %v2406 = vpop.f32.mrf.mxu0
  %v2407 = vadd.f32 %v975, %v2406
  %2408 = vdwg.mxu0
  %2409 = vmatprep.subr.bf16.mxu0 %v1955
  %2410 = vmatpush1.bf16.msra.mxu0 %v1954
  %2411 = vmatprep.subr.bf16.mxu0 %v1947
  %2412 = vmatpush1.bf16.msra.mxu0 %v1946
  %2413 = vmatprep.subr.bf16.mxu0 %v1939
  %2414 = vmatpush1.bf16.msra.mxu0 %v1938
  %2415 = vmatprep.subr.bf16.mxu0 %v1931
  %2416 = vmatpush1.bf16.msra.mxu0 %v1930
  %2417 = vmatprep.subr.bf16.mxu0 %v1923
  %2418 = vmatpush1.bf16.msra.mxu0 %v1922
  %2419 = vmatprep.subr.bf16.mxu0 %v1915
  %2420 = vmatpush1.bf16.msra.mxu0 %v1914
  %2421 = vmatprep.subr.bf16.mxu0 %v1907
  %2422 = vmatpush1.bf16.msra.mxu0 %v1906
  %2423 = vmatprep.subr.bf16.mxu0 %v1899
  %2424 = vmatpush1.bf16.msra.mxu0 %v1898
  %2425 = vmatprep.subr.bf16.mxu0 %v2019
  %2426 = vmatpush2.bf16.msra.mxu0 %v2018
  %2427 = vmatprep.subr.bf16.mxu0 %v2011
  %2428 = vmatpush2.bf16.msra.mxu0 %v2010
  %2429 = vmatprep.subr.bf16.mxu0 %v2003
  %2430 = vmatpush2.bf16.msra.mxu0 %v2002
  %2431 = vmatprep.subr.bf16.mxu0 %v1995
  %2432 = vmatpush2.bf16.msra.mxu0 %v1994
  %2433 = vmatprep.subr.bf16.mxu0 %v1987
  %2434 = vmatpush2.bf16.msra.mxu0 %v1986
  %2435 = vmatprep.subr.bf16.mxu0 %v1979
  %2436 = vmatpush2.bf16.msra.mxu0 %v1978
  %2437 = vmatprep.subr.bf16.mxu0 %v1971
  %2438 = vmatpush2.bf16.msra.mxu0 %v1970
  %2439 = vmatprep.subr.bf16.mxu0 %v1963
  %2440 = vmatpush2.bf16.msra.mxu0 %v1962
  %2441 = vmatprep.mubr.bf16.mxu0 %v701
  %2442 = vmatmul.mubr.bf16.gmra.mxu0 %v700
  %v2443 = vpop.f32.mrf.mxu0
  %v2444 = vadd.f32 %v2401, %v2443
  %v2445 = vpop.f32.mrf.mxu0
  %v2446 = vadd.f32 %v2403, %v2445
  %v2447 = vpop.f32.mrf.mxu0
  %v2448 = vadd.f32 %v2405, %v2447
  %v2449 = vpop.f32.mrf.mxu0
  %v2450 = vadd.f32 %v2407, %v2449
  %2451 = vdwg.mxu0
  %2452 = vmatprep.subr.bf16.mxu0 %v1829
  %2453 = vmatpush1.bf16.msra.mxu0 %v1828
  %2454 = vmatprep.subr.bf16.mxu0 %v1821
  %2455 = vmatpush1.bf16.msra.mxu0 %v1820
  %2456 = vmatprep.subr.bf16.mxu0 %v1813
  %2457 = vmatpush1.bf16.msra.mxu0 %v1812
  %2458 = vmatprep.subr.bf16.mxu0 %v1805
  %2459 = vmatpush1.bf16.msra.mxu0 %v1804
  %2460 = vmatprep.subr.bf16.mxu0 %v1797
  %2461 = vmatpush1.bf16.msra.mxu0 %v1796
  %2462 = vmatprep.subr.bf16.mxu0 %v1789
  %2463 = vmatpush1.bf16.msra.mxu0 %v1788
  %2464 = vmatprep.subr.bf16.mxu0 %v1781
  %2465 = vmatpush1.bf16.msra.mxu0 %v1780
  %2466 = vmatprep.subr.bf16.mxu0 %v1773
  %2467 = vmatpush1.bf16.msra.mxu0 %v1772
  %2468 = vmatprep.subr.bf16.mxu0 %v1893
  %2469 = vmatpush2.bf16.msra.mxu0 %v1892
  %2470 = vmatprep.subr.bf16.mxu0 %v1885
  %2471 = vmatpush2.bf16.msra.mxu0 %v1884
  %2472 = vmatprep.subr.bf16.mxu0 %v1877
  %2473 = vmatpush2.bf16.msra.mxu0 %v1876
  %2474 = vmatprep.subr.bf16.mxu0 %v1869
  %2475 = vmatpush2.bf16.msra.mxu0 %v1868
  %2476 = vmatprep.subr.bf16.mxu0 %v1861
  %2477 = vmatpush2.bf16.msra.mxu0 %v1860
  %2478 = vmatprep.subr.bf16.mxu0 %v1853
  %2479 = vmatpush2.bf16.msra.mxu0 %v1852
  %2480 = vmatprep.subr.bf16.mxu0 %v1845
  %2481 = vmatpush2.bf16.msra.mxu0 %v1844
  %2482 = vmatprep.subr.bf16.mxu0 %v1837
  %2483 = vmatpush2.bf16.msra.mxu0 %v1836
  %2484 = vmatprep.mubr.bf16.mxu0 %v699
  %2485 = vmatmul.mubr.bf16.gmra.mxu0 %v698
  %v2486 = vpop.f32.mrf.mxu0
  %v2487 = vadd.f32 %v979, %v2486
  %v2488 = vpop.f32.mrf.mxu0
  %v2489 = vadd.f32 %v983, %v2488
  %v2490 = vpop.f32.mrf.mxu0
  %v2491 = vadd.f32 %v979, %v2490
  %v2492 = vpop.f32.mrf.mxu0
  %v2493 = vadd.f32 %v983, %v2492
  %2494 = vdwg.mxu0
  %2495 = vmatprep.subr.bf16.mxu0 %v1957
  %2496 = vmatpush1.bf16.msra.mxu0 %v1956
  %2497 = vmatprep.subr.bf16.mxu0 %v1949
  %2498 = vmatpush1.bf16.msra.mxu0 %v1948
  %2499 = vmatprep.subr.bf16.mxu0 %v1941
  %2500 = vmatpush1.bf16.msra.mxu0 %v1940
  %2501 = vmatprep.subr.bf16.mxu0 %v1933
  %2502 = vmatpush1.bf16.msra.mxu0 %v1932
  %2503 = vmatprep.subr.bf16.mxu0 %v1925
  %2504 = vmatpush1.bf16.msra.mxu0 %v1924
  %2505 = vmatprep.subr.bf16.mxu0 %v1917
  %2506 = vmatpush1.bf16.msra.mxu0 %v1916
  %2507 = vmatprep.subr.bf16.mxu0 %v1909
  %2508 = vmatpush1.bf16.msra.mxu0 %v1908
  %2509 = vmatprep.subr.bf16.mxu0 %v1901
  %2510 = vmatpush1.bf16.msra.mxu0 %v1900
  %2511 = vmatprep.subr.bf16.mxu0 %v2021
  %2512 = vmatpush2.bf16.msra.mxu0 %v2020
  %2513 = vmatprep.subr.bf16.mxu0 %v2013
  %2514 = vmatpush2.bf16.msra.mxu0 %v2012
  %2515 = vmatprep.subr.bf16.mxu0 %v2005
  %2516 = vmatpush2.bf16.msra.mxu0 %v2004
  %2517 = vmatprep.subr.bf16.mxu0 %v1997
  %2518 = vmatpush2.bf16.msra.mxu0 %v1996
  %2519 = vmatprep.subr.bf16.mxu0 %v1989
  %2520 = vmatpush2.bf16.msra.mxu0 %v1988
  %2521 = vmatprep.subr.bf16.mxu0 %v1981
  %2522 = vmatpush2.bf16.msra.mxu0 %v1980
  %2523 = vmatprep.subr.bf16.mxu0 %v1973
  %2524 = vmatpush2.bf16.msra.mxu0 %v1972
  %2525 = vmatprep.subr.bf16.mxu0 %v1965
  %2526 = vmatpush2.bf16.msra.mxu0 %v1964
  %2527 = vmatprep.mubr.bf16.mxu0 %v701
  %2528 = vmatmul.mubr.bf16.gmra.mxu0 %v700
  %v2529 = vpop.f32.mrf.mxu0
  %v2530 = vadd.f32 %v2487, %v2529
  %v2531 = vpop.f32.mrf.mxu0
  %v2532 = vadd.f32 %v2489, %v2531
  %v2533 = vpop.f32.mrf.mxu0
  %v2534 = vadd.f32 %v2491, %v2533
  %v2535 = vpop.f32.mrf.mxu0
  %v2536 = vadd.f32 %v2493, %v2535
  %2537 = vdwg.mxu0
  %2538 = vmatprep.subr.bf16.mxu0 %v1831
  %2539 = vmatpush1.bf16.msra.mxu0 %v1830
  %2540 = vmatprep.subr.bf16.mxu0 %v1823
  %2541 = vmatpush1.bf16.msra.mxu0 %v1822
  %2542 = vmatprep.subr.bf16.mxu0 %v1815
  %2543 = vmatpush1.bf16.msra.mxu0 %v1814
  %2544 = vmatprep.subr.bf16.mxu0 %v1807
  %2545 = vmatpush1.bf16.msra.mxu0 %v1806
  %2546 = vmatprep.subr.bf16.mxu0 %v1799
  %2547 = vmatpush1.bf16.msra.mxu0 %v1798
  %2548 = vmatprep.subr.bf16.mxu0 %v1791
  %2549 = vmatpush1.bf16.msra.mxu0 %v1790
  %2550 = vmatprep.subr.bf16.mxu0 %v1783
  %2551 = vmatpush1.bf16.msra.mxu0 %v1782
  %2552 = vmatprep.subr.bf16.mxu0 %v1775
  %2553 = vmatpush1.bf16.msra.mxu0 %v1774
  %2554 = vmatprep.subr.bf16.mxu0 %v1895
  %2555 = vmatpush2.bf16.msra.mxu0 %v1894
  %2556 = vmatprep.subr.bf16.mxu0 %v1887
  %2557 = vmatpush2.bf16.msra.mxu0 %v1886
  %2558 = vmatprep.subr.bf16.mxu0 %v1879
  %2559 = vmatpush2.bf16.msra.mxu0 %v1878
  %2560 = vmatprep.subr.bf16.mxu0 %v1871
  %2561 = vmatpush2.bf16.msra.mxu0 %v1870
  %2562 = vmatprep.subr.bf16.mxu0 %v1863
  %2563 = vmatpush2.bf16.msra.mxu0 %v1862
  %2564 = vmatprep.subr.bf16.mxu0 %v1855
  %2565 = vmatpush2.bf16.msra.mxu0 %v1854
  %2566 = vmatprep.subr.bf16.mxu0 %v1847
  %2567 = vmatpush2.bf16.msra.mxu0 %v1846
  %2568 = vmatprep.subr.bf16.mxu0 %v1839
  %2569 = vmatpush2.bf16.msra.mxu0 %v1838
  %2570 = vmatprep.mubr.bf16.mxu0 %v699
  %2571 = vmatmul.mubr.bf16.gmra.mxu0 %v698
  %v2572 = vpop.f32.mrf.mxu0
  %v2573 = vadd.f32 %v987, %v2572
  %v2574 = vpop.f32.mrf.mxu0
  %v2575 = vadd.f32 %v991, %v2574
  %v2576 = vpop.f32.mrf.mxu0
  %v2577 = vadd.f32 %v987, %v2576
  %v2578 = vpop.f32.mrf.mxu0
  %v2579 = vadd.f32 %v991, %v2578
  %2580 = vdwg.mxu0
  %2581 = vmatprep.subr.bf16.mxu0 %v1959
  %2582 = vmatpush1.bf16.msra.mxu0 %v1958
  %2583 = vmatprep.subr.bf16.mxu0 %v1951
  %2584 = vmatpush1.bf16.msra.mxu0 %v1950
  %2585 = vmatprep.subr.bf16.mxu0 %v1943
  %2586 = vmatpush1.bf16.msra.mxu0 %v1942
  %2587 = vmatprep.subr.bf16.mxu0 %v1935
  %2588 = vmatpush1.bf16.msra.mxu0 %v1934
  %2589 = vmatprep.subr.bf16.mxu0 %v1927
  %2590 = vmatpush1.bf16.msra.mxu0 %v1926
  %2591 = vmatprep.subr.bf16.mxu0 %v1919
  %2592 = vmatpush1.bf16.msra.mxu0 %v1918
  %2593 = vmatprep.subr.bf16.mxu0 %v1911
  %2594 = vmatpush1.bf16.msra.mxu0 %v1910
  %2595 = vmatprep.subr.bf16.mxu0 %v1903
  %2596 = vmatpush1.bf16.msra.mxu0 %v1902
  %2597 = vmatprep.subr.bf16.mxu0 %v2023
  %2598 = vmatpush2.bf16.msra.mxu0 %v2022
  %2599 = vmatprep.subr.bf16.mxu0 %v2015
  %2600 = vmatpush2.bf16.msra.mxu0 %v2014
  %2601 = vmatprep.subr.bf16.mxu0 %v2007
  %2602 = vmatpush2.bf16.msra.mxu0 %v2006
  %2603 = vmatprep.subr.bf16.mxu0 %v1999
  %2604 = vmatpush2.bf16.msra.mxu0 %v1998
  %2605 = vmatprep.subr.bf16.mxu0 %v1991
  %2606 = vmatpush2.bf16.msra.mxu0 %v1990
  %2607 = vmatprep.subr.bf16.mxu0 %v1983
  %2608 = vmatpush2.bf16.msra.mxu0 %v1982
  %2609 = vmatprep.subr.bf16.mxu0 %v1975
  %2610 = vmatpush2.bf16.msra.mxu0 %v1974
  %2611 = vmatprep.subr.bf16.mxu0 %v1967
  %2612 = vmatpush2.bf16.msra.mxu0 %v1966
  %2613 = vmatprep.mubr.bf16.mxu0 %v701
  %2614 = vmatmul.mubr.bf16.gmra.mxu0 %v700
  %v2615 = vpop.f32.mrf.mxu0
  %v2616 = vadd.f32 %v2573, %v2615
  %v2617 = vpop.f32.mrf.mxu0
  %v2618 = vadd.f32 %v2575, %v2617
  %v2619 = vpop.f32.mrf.mxu0
  %v2620 = vadd.f32 %v2577, %v2619
  %v2621 = vpop.f32.mrf.mxu0
  %v2622 = vadd.f32 %v2579, %v2621
  %2623 = vdwg.mxu0
  %v2624 = vmax.f32 %v2358, 0.0
  %v2625 = vmax.f32 %v2360, 0.0
  %v2626 = vmax.f32 %v2444, 0.0
  %v2627 = vmax.f32 %v2446, 0.0
  %v2628 = vmax.f32 %v2530, 0.0
  %v2629 = vmax.f32 %v2532, 0.0
  %v2630 = vmax.f32 %v2616, 0.0
  %v2631 = vmax.f32 %v2618, 0.0
  %v2632 = vmax.f32 %v2362, 0.0
  %v2633 = vmax.f32 %v2364, 0.0
  %v2634 = vmax.f32 %v2448, 0.0
  %v2635 = vmax.f32 %v2450, 0.0
  %v2636 = vmax.f32 %v2534, 0.0
  %v2637 = vmax.f32 %v2536, 0.0
  %v2638 = vmax.f32 %v2620, 0.0
  %v2639 = vmax.f32 %v2622, 0.0
  %v2640 = vpack.c.bf16 %v2632, %v2624
  %v2641 = vpack.c.bf16 %v2633, %v2625
  %v2642 = vpack.c.bf16 %v2634, %v2626
  %v2643 = vpack.c.bf16 %v2635, %v2627
  %v2644 = vpack.c.bf16 %v2636, %v2628
  %v2645 = vpack.c.bf16 %v2637, %v2629
  %v2646 = vpack.c.bf16 %v2638, %v2630
  %v2647 = vpack.c.bf16 %v2639, %v2631
  %v2648 = vld [vmem:[%s7] sm:$0xff]
  %v2649 = vld [vmem:[%s7 + $0x8] sm:$0xff]
  %v2650 = vld [vmem:[%s7 + $0x10] sm:$0xf]
  %v2651 = vld [vmem:[%s7 + $0x14] sm:$0xff]
  %v2652 = vld [vmem:[%s7 + $0x1c] sm:$0xff]
  %v2653 = vld [vmem:[%s7 + $0x24] sm:$0xf]
  %v2654 = vld [vmem:[%s7 + $0x28] sm:$0xff]
  %v2655 = vld [vmem:[%s7 + $0x30] sm:$0xff]
  %v2656 = vld [vmem:[%s7 + $0x38] sm:$0xf]
  %v2657 = vld [vmem:[%s7 + $0x3c] sm:$0xff]
  %v2658 = vld [vmem:[%s7 + $0x44] sm:$0xff]
  %v2659 = vld [vmem:[%s7 + $0x4c] sm:$0xf]
  %v2660 = vld [vmem:[%s7 + $0x50] sm:$0xff]
  %v2661 = vld [vmem:[%s7 + $0x58] sm:$0xff]
  %v2662 = vld [vmem:[%s7 + $0x60] sm:$0xf]
  %v2663 = vld [vmem:[%s7 + $0x64] sm:$0xff]
  %v2664 = vld [vmem:[%s7 + $0x6c] sm:$0xff]
  %v2665 = vld [vmem:[%s7 + $0x74] sm:$0xf]
  %v2666 = vld [vmem:[%s7 + $0x78] sm:$0xff]
  %v2667 = vld [vmem:[%s7 + $0x80] sm:$0xff]
  %v2668 = vld [vmem:[%s7 + $0x88] sm:$0xf]
  %v2669 = vld [vmem:[%s7 + $0x8c] sm:$0xff]
  %v2670 = vld [vmem:[%s7 + $0x94] sm:$0xff]
  %v2671 = vld [vmem:[%s7 + $0x9c] sm:$0xf]
  %v2672 = vld [vmem:[%s7 + $0xa0] sm:$0xff]
  %v2673 = vld [vmem:[%s7 + $0xa8] sm:$0xff]
  %v2674 = vld [vmem:[%s7 + $0xb0] sm:$0xf]
  %v2675 = vld [vmem:[%s7 + $0xb4] sm:$0xff]
  %v2676 = vld [vmem:[%s7 + $0xbc] sm:$0xff]
  %v2677 = vld [vmem:[%s7 + $0xc4] sm:$0xf]
  %v2678 = vld [vmem:[%s7 + $0xc8] sm:$0xff]
  %v2679 = vld [vmem:[%s7 + $0xd0] sm:$0xff]
  %v2680 = vld [vmem:[%s7 + $0xd8] sm:$0xf]
  %v2681 = vld [vmem:[%s7 + $0xdc] sm:$0xff]
  %v2682 = vld [vmem:[%s7 + $0xe4] sm:$0xff]
  %v2683 = vld [vmem:[%s7 + $0xec] sm:$0xf]
  %v2684 = vld [vmem:[%s7 + $0xf0] sm:$0xff]
  %v2685 = vld [vmem:[%s7 + $0xf8] sm:$0xff]
  %v2686 = vld [vmem:[%s7 + $0x100] sm:$0xf]
  %v2687 = vld [vmem:[%s7 + $0x104] sm:$0xff]
  %v2688 = vld [vmem:[%s7 + $0x10c] sm:$0xff]
  %v2689 = vld [vmem:[%s7 + $0x114] sm:$0xf]
  %v2690 = vld [vmem:[%s7 + $0x118] sm:$0xff]
  %v2691 = vld [vmem:[%s7 + $0x120] sm:$0xff]
  %v2692 = vld [vmem:[%s7 + $0x128] sm:$0xf]
  %v2693 = vld [vmem:[%s7 + $0x12c] sm:$0xff]
  %v2694 = vld [vmem:[%s7 + $0x134] sm:$0xff]
  %v2695 = vld [vmem:[%s7 + $0x13c] sm:$0xf]
  %v2696 = vld [vmem:[%s7 + $0x140] sm:$0xff]
  %v2697 = vld [vmem:[%s7 + $0x148] sm:$0xff]
  %v2698 = vld [vmem:[%s7 + $0x150] sm:$0xf]
  %v2699 = vld [vmem:[%s7 + $0x154] sm:$0xff]
  %v2700 = vld [vmem:[%s7 + $0x15c] sm:$0xff]
  %v2701 = vld [vmem:[%s7 + $0x164] sm:$0xf]
  %v2702 = vld [vmem:[%s7 + $0x168] sm:$0xff]
  %v2703 = vld [vmem:[%s7 + $0x170] sm:$0xff]
  %v2704 = vld [vmem:[%s7 + $0x178] sm:$0xf]
  %v2705 = vld [vmem:[%s7 + $0x17c] sm:$0xff]
  %v2706 = vld [vmem:[%s7 + $0x184] sm:$0xff]
  %v2707 = vld [vmem:[%s7 + $0x18c] sm:$0xf]
  %v2708 = vld [vmem:[%s7 + $0x190] sm:$0xff]
  %v2709 = vld [vmem:[%s7 + $0x198] sm:$0xff]
  %v2710 = vld [vmem:[%s7 + $0x1a0] sm:$0xf]
  %v2711 = vld [vmem:[%s7 + $0x1a4] sm:$0xff]
  %v2712 = vld [vmem:[%s7 + $0x1ac] sm:$0xff]
  %v2713 = vld [vmem:[%s7 + $0x1b4] sm:$0xf]
  %v2714 = vld [vmem:[%s7 + $0x1b8] sm:$0xff]
  %v2715 = vld [vmem:[%s7 + $0x1c0] sm:$0xff]
  %v2716 = vld [vmem:[%s7 + $0x1c8] sm:$0xf]
  %v2717 = vld [vmem:[%s7 + $0x1cc] sm:$0xff]
  %v2718 = vld [vmem:[%s7 + $0x1d4] sm:$0xff]
  %v2719 = vld [vmem:[%s7 + $0x1dc] sm:$0xf]
  %v2720 = vld [vmem:[%s7 + $0x1e0] sm:$0xff]
  %v2721 = vld [vmem:[%s7 + $0x1e8] sm:$0xff]
  %v2722 = vld [vmem:[%s7 + $0x1f0] sm:$0xf]
  %v2723 = vld [vmem:[%s7 + $0x1f4] sm:$0xff]
  %v2724 = vld [vmem:[%s7 + $0x1fc] sm:$0xff]
  %v2725 = vld [vmem:[%s7 + $0x204] sm:$0xf]
  %v2726 = vld [vmem:[%s7 + $0x208] sm:$0xff]
  %v2727 = vld [vmem:[%s7 + $0x210] sm:$0xff]
  %v2728 = vld [vmem:[%s7 + $0x218] sm:$0xf]
  %v2729 = vld [vmem:[%s7 + $0x21c] sm:$0xff]
  %v2730 = vld [vmem:[%s7 + $0x224] sm:$0xff]
  %v2731 = vld [vmem:[%s7 + $0x22c] sm:$0xf]
  %v2732 = vld [vmem:[%s7 + $0x230] sm:$0xff]
  %v2733 = vld [vmem:[%s7 + $0x238] sm:$0xff]
  %v2734 = vld [vmem:[%s7 + $0x240] sm:$0xf]
  %v2735 = vld [vmem:[%s7 + $0x244] sm:$0xff]
  %v2736 = vld [vmem:[%s7 + $0x24c] sm:$0xff]
  %v2737 = vld [vmem:[%s7 + $0x254] sm:$0xf]
  %v2738 = vld [vmem:[%s7 + $0x258] sm:$0xff]
  %v2739 = vld [vmem:[%s7 + $0x260] sm:$0xff]
  %v2740 = vld [vmem:[%s7 + $0x268] sm:$0xf]
  %v2741 = vld [vmem:[%s7 + $0x26c] sm:$0xff]
  %v2742 = vld [vmem:[%s7 + $0x274] sm:$0xff]
  %v2743 = vld [vmem:[%s7 + $0x27c] sm:$0xf]
  %v2744 = vld [vmem:[%s7 + $0x280] sm:$0xff]
  %v2745 = vld [vmem:[%s7 + $0x288] sm:$0xff]
  %v2746 = vld [vmem:[%s7 + $0x290] sm:$0xf]
  %v2747 = vld [vmem:[%s7 + $0x294] sm:$0xff]
  %v2748 = vld [vmem:[%s7 + $0x29c] sm:$0xff]
  %v2749 = vld [vmem:[%s7 + $0x2a4] sm:$0xf]
  %v2750 = vld [vmem:[%s7 + $0x2a8] sm:$0xff]
  %v2751 = vld [vmem:[%s7 + $0x2b0] sm:$0xff]
  %v2752 = vld [vmem:[%s7 + $0x2b8] sm:$0xf]
  %v2753 = vld [vmem:[%s7 + $0x2bc] sm:$0xff]
  %v2754 = vld [vmem:[%s7 + $0x2c4] sm:$0xff]
  %v2755 = vld [vmem:[%s7 + $0x2cc] sm:$0xf]
  %v2756 = vld [vmem:[%s7 + $0x2d0] sm:$0xff]
  %v2757 = vld [vmem:[%s7 + $0x2d8] sm:$0xff]
  %v2758 = vld [vmem:[%s7 + $0x2e0] sm:$0xf]
  %v2759 = vld [vmem:[%s7 + $0x2e4] sm:$0xff]
  %v2760 = vld [vmem:[%s7 + $0x2ec] sm:$0xff]
  %v2761 = vld [vmem:[%s7 + $0x2f4] sm:$0xf]
  %v2762 = vld [vmem:[%s7 + $0x2f8] sm:$0xff]
  %v2763 = vld [vmem:[%s7 + $0x300] sm:$0xff]
  %v2764 = vld [vmem:[%s7 + $0x308] sm:$0xf]
  %v2765 = vld [vmem:[%s7 + $0x30c] sm:$0xff]
  %v2766 = vld [vmem:[%s7 + $0x314] sm:$0xff]
  %v2767 = vld [vmem:[%s7 + $0x31c] sm:$0xf]
  %v2768 = vld [vmem:[%s7 + $0x320] sm:$0xff]
  %v2769 = vld [vmem:[%s7 + $0x328] sm:$0xff]
  %v2770 = vld [vmem:[%s7 + $0x330] sm:$0xf]
  %v2771 = vld [vmem:[%s7 + $0x334] sm:$0xff]
  %v2772 = vld [vmem:[%s7 + $0x33c] sm:$0xff]
  %v2773 = vld [vmem:[%s7 + $0x344] sm:$0xf]
  %v2774 = vld [vmem:[%s7 + $0x348] sm:$0xff]
  %v2775 = vld [vmem:[%s7 + $0x350] sm:$0xff]
  %v2776 = vld [vmem:[%s7 + $0x358] sm:$0xf]
  %v2777 = vld [vmem:[%s7 + $0x35c] sm:$0xff]
  %v2778 = vld [vmem:[%s7 + $0x364] sm:$0xff]
  %v2779 = vld [vmem:[%s7 + $0x36c] sm:$0xf]
  %v2780 = vld [vmem:[%s7 + $0x370] sm:$0xff]
  %v2781 = vld [vmem:[%s7 + $0x378] sm:$0xff]
  %v2782 = vld [vmem:[%s7 + $0x380] sm:$0xf]
  %v2783 = vld [vmem:[%s7 + $0x384] sm:$0xff]
  %v2784 = vld [vmem:[%s7 + $0x38c] sm:$0xff]
  %v2785 = vld [vmem:[%s7 + $0x394] sm:$0xf]
  %v2786 = vld [vmem:[%s7 + $0x398] sm:$0xff]
  %v2787 = vld [vmem:[%s7 + $0x3a0] sm:$0xff]
  %v2788 = vld [vmem:[%s7 + $0x3a8] sm:$0xf]
  %v2789 = vld [vmem:[%s7 + $0x3ac] sm:$0xff]
  %v2790 = vld [vmem:[%s7 + $0x3b4] sm:$0xff]
  %v2791 = vld [vmem:[%s7 + $0x3bc] sm:$0xf]
  %v2792 = vld [vmem:[%s7 + $0x3c0] sm:$0xff]
  %v2793 = vld [vmem:[%s7 + $0x3c8] sm:$0xff]
  %v2794 = vld [vmem:[%s7 + $0x3d0] sm:$0xf]
  %v2795 = vld [vmem:[%s7 + $0x3d4] sm:$0xff]
  %v2796 = vld [vmem:[%s7 + $0x3dc] sm:$0xff]
  %v2797 = vld [vmem:[%s7 + $0x3e4] sm:$0xf]
  %v2798 = vld [vmem:[%s7 + $0x3e8] sm:$0xff]
  %v2799 = vld [vmem:[%s7 + $0x3f0] sm:$0xff]
  %v2800 = vld [vmem:[%s7 + $0x3f8] sm:$0xf]
  %v2801 = vld [vmem:[%s7 + $0x3fc] sm:$0xff]
  %v2802 = vld [vmem:[%s7 + $0x404] sm:$0xff]
  %v2803 = vld [vmem:[%s7 + $0x40c] sm:$0xf]
  %v2804 = vld [vmem:[%s7 + $0x410] sm:$0xff]
  %v2805 = vld [vmem:[%s7 + $0x418] sm:$0xff]
  %v2806 = vld [vmem:[%s7 + $0x420] sm:$0xf]
  %v2807 = vld [vmem:[%s7 + $0x424] sm:$0xff]
  %v2808 = vld [vmem:[%s7 + $0x42c] sm:$0xff]
  %v2809 = vld [vmem:[%s7 + $0x434] sm:$0xf]
  %v2810 = vld [vmem:[%s7 + $0x438] sm:$0xff]
  %v2811 = vld [vmem:[%s7 + $0x440] sm:$0xff]
  %v2812 = vld [vmem:[%s7 + $0x448] sm:$0xf]
  %v2813 = vld [vmem:[%s7 + $0x44c] sm:$0xff]
  %v2814 = vld [vmem:[%s7 + $0x454] sm:$0xff]
  %v2815 = vld [vmem:[%s7 + $0x45c] sm:$0xf]
  %v2816 = vld [vmem:[%s7 + $0x460] sm:$0xff]
  %v2817 = vld [vmem:[%s7 + $0x468] sm:$0xff]
  %v2818 = vld [vmem:[%s7 + $0x470] sm:$0xf]
  %v2819 = vld [vmem:[%s7 + $0x474] sm:$0xff]
  %v2820 = vld [vmem:[%s7 + $0x47c] sm:$0xff]
  %v2821 = vld [vmem:[%s7 + $0x484] sm:$0xf]
  %v2822 = vld [vmem:[%s7 + $0x488] sm:$0xff]
  %v2823 = vld [vmem:[%s7 + $0x490] sm:$0xff]
  %v2824 = vld [vmem:[%s7 + $0x498] sm:$0xf]
  %v2825 = vld [vmem:[%s7 + $0x49c] sm:$0xff]
  %v2826 = vld [vmem:[%s7 + $0x4a4] sm:$0xff]
  %v2827 = vld [vmem:[%s7 + $0x4ac] sm:$0xf]
  %v2828 = vld [vmem:[%s7 + $0x4b0] sm:$0xff]
  %v2829 = vld [vmem:[%s7 + $0x4b8] sm:$0xff]
  %v2830 = vld [vmem:[%s7 + $0x4c0] sm:$0xf]
  %v2831 = vld [vmem:[%s7 + $0x4c4] sm:$0xff]
  %v2832 = vld [vmem:[%s7 + $0x4cc] sm:$0xff]
  %v2833 = vld [vmem:[%s7 + $0x4d4] sm:$0xf]
  %v2834 = vld [vmem:[%s7 + $0x4d8] sm:$0xff]
  %v2835 = vld [vmem:[%s7 + $0x4e0] sm:$0xff]
  %v2836 = vld [vmem:[%s7 + $0x4e8] sm:$0xf]
  %v2837 = vld [vmem:[%s7 + $0x4ec] sm:$0xff]
  %v2838 = vld [vmem:[%s7 + $0x4f4] sm:$0xff]
  %v2839 = vld [vmem:[%s7 + $0x4fc] sm:$0xf]
  %v2840 = vld [vmem:[%s7 + $0x500] sm:$0xff]
  %v2841 = vld [vmem:[%s7 + $0x508] sm:$0xff]
  %v2842 = vld [vmem:[%s7 + $0x510] sm:$0xf]
  %v2843 = vld [vmem:[%s7 + $0x514] sm:$0xff]
  %v2844 = vld [vmem:[%s7 + $0x51c] sm:$0xff]
  %v2845 = vld [vmem:[%s7 + $0x524] sm:$0xf]
  %v2846 = vld [vmem:[%s7 + $0x528] sm:$0xff]
  %v2847 = vld [vmem:[%s7 + $0x530] sm:$0xff]
  %v2848 = vld [vmem:[%s7 + $0x538] sm:$0xf]
  %v2849 = vld [vmem:[%s7 + $0x53c] sm:$0xff]
  %v2850 = vld [vmem:[%s7 + $0x544] sm:$0xff]
  %v2851 = vld [vmem:[%s7 + $0x54c] sm:$0xf]
  %v2852 = vld [vmem:[%s7 + $0x550] sm:$0xff]
  %v2853 = vld [vmem:[%s7 + $0x558] sm:$0xff]
  %v2854 = vld [vmem:[%s7 + $0x560] sm:$0xf]
  %v2855 = vld [vmem:[%s7 + $0x564] sm:$0xff]
  %v2856 = vld [vmem:[%s7 + $0x56c] sm:$0xff]
  %v2857 = vld [vmem:[%s7 + $0x574] sm:$0xf]
  %v2858 = vld [vmem:[%s7 + $0x578] sm:$0xff]
  %v2859 = vld [vmem:[%s7 + $0x580] sm:$0xff]
  %v2860 = vld [vmem:[%s7 + $0x588] sm:$0xf]
  %v2861 = vld [vmem:[%s7 + $0x58c] sm:$0xff]
  %v2862 = vld [vmem:[%s7 + $0x594] sm:$0xff]
  %v2863 = vld [vmem:[%s7 + $0x59c] sm:$0xf]
  %v2864 = vld [vmem:[%s7 + $0x5a0] sm:$0xff]
  %v2865 = vld [vmem:[%s7 + $0x5a8] sm:$0xff]
  %v2866 = vld [vmem:[%s7 + $0x5b0] sm:$0xf]
  %v2867 = vld [vmem:[%s7 + $0x5b4] sm:$0xff]
  %v2868 = vld [vmem:[%s7 + $0x5bc] sm:$0xff]
  %v2869 = vld [vmem:[%s7 + $0x5c4] sm:$0xf]
  %v2870 = vld [vmem:[%s7 + $0x5c8] sm:$0xff]
  %v2871 = vld [vmem:[%s7 + $0x5d0] sm:$0xff]
  %v2872 = vld [vmem:[%s7 + $0x5d8] sm:$0xf]
  %v2873 = vld [vmem:[%s7 + $0x5dc] sm:$0xff]
  %v2874 = vld [vmem:[%s7 + $0x5e4] sm:$0xff]
  %v2875 = vld [vmem:[%s7 + $0x5ec] sm:$0xf]
  %v2876 = vld [vmem:[%s7 + $0x5f0] sm:$0xff]
  %v2877 = vld [vmem:[%s7 + $0x5f8] sm:$0xff]
  %v2878 = vld [vmem:[%s7 + $0x600] sm:$0xf]
  %v2879 = vld [vmem:[%s7 + $0x604] sm:$0xff]
  %v2880 = vld [vmem:[%s7 + $0x60c] sm:$0xff]
  %v2881 = vld [vmem:[%s7 + $0x614] sm:$0xf]
  %v2882 = vld [vmem:[%s7 + $0x618] sm:$0xff]
  %v2883 = vld [vmem:[%s7 + $0x620] sm:$0xff]
  %v2884 = vld [vmem:[%s7 + $0x628] sm:$0xf]
  %v2885 = vld [vmem:[%s7 + $0x62c] sm:$0xff]
  %v2886 = vld [vmem:[%s7 + $0x634] sm:$0xff]
  %v2887 = vld [vmem:[%s7 + $0x63c] sm:$0xf]
  %v2888 = vld [vmem:[%s7 + $0x640] sm:$0xff]
  %v2889 = vld [vmem:[%s7 + $0x648] sm:$0xff]
  %v2890 = vld [vmem:[%s7 + $0x650] sm:$0xf]
  %v2891 = vld [vmem:[%s7 + $0x654] sm:$0xff]
  %v2892 = vld [vmem:[%s7 + $0x65c] sm:$0xff]
  %v2893 = vld [vmem:[%s7 + $0x664] sm:$0xf]
  %v2894 = vld [vmem:[%s7 + $0x668] sm:$0xff]
  %v2895 = vld [vmem:[%s7 + $0x670] sm:$0xff]
  %v2896 = vld [vmem:[%s7 + $0x678] sm:$0xf]
  %v2897 = vld [vmem:[%s7 + $0x67c] sm:$0xff]
  %v2898 = vld [vmem:[%s7 + $0x684] sm:$0xff]
  %v2899 = vld [vmem:[%s7 + $0x68c] sm:$0xf]
  %v2900 = vld [vmem:[%s7 + $0x690] sm:$0xff]
  %v2901 = vld [vmem:[%s7 + $0x698] sm:$0xff]
  %v2902 = vld [vmem:[%s7 + $0x6a0] sm:$0xf]
  %v2903 = vld [vmem:[%s7 + $0x6a4] sm:$0xff]
  %v2904 = vld [vmem:[%s7 + $0x6ac] sm:$0xff]
  %v2905 = vld [vmem:[%s7 + $0x6b4] sm:$0xf]
  %v2906 = vld [vmem:[%s7 + $0x6b8] sm:$0xff]
  %v2907 = vld [vmem:[%s7 + $0x6c0] sm:$0xff]
  %v2908 = vld [vmem:[%s7 + $0x6c8] sm:$0xf]
  %v2909 = vld [vmem:[%s7 + $0x6cc] sm:$0xff]
  %v2910 = vld [vmem:[%s7 + $0x6d4] sm:$0xff]
  %v2911 = vld [vmem:[%s7 + $0x6dc] sm:$0xf]
  %v2912 = vld [vmem:[%s7 + $0x6e0] sm:$0xff]
  %v2913 = vld [vmem:[%s7 + $0x6e8] sm:$0xff]
  %v2914 = vld [vmem:[%s7 + $0x6f0] sm:$0xf]
  %v2915 = vld [vmem:[%s7 + $0x6f4] sm:$0xff]
  %v2916 = vld [vmem:[%s7 + $0x6fc] sm:$0xff]
  %v2917 = vld [vmem:[%s7 + $0x704] sm:$0xf]
  %v2918 = vld [vmem:[%s7 + $0x708] sm:$0xff]
  %v2919 = vld [vmem:[%s7 + $0x710] sm:$0xff]
  %v2920 = vld [vmem:[%s7 + $0x718] sm:$0xf]
  %v2921 = vld [vmem:[%s7 + $0x71c] sm:$0xff]
  %v2922 = vld [vmem:[%s7 + $0x724] sm:$0xff]
  %v2923 = vld [vmem:[%s7 + $0x72c] sm:$0xf]
  %v2924 = vld [vmem:[%s7 + $0x730] sm:$0xff]
  %v2925 = vld [vmem:[%s7 + $0x738] sm:$0xff]
  %v2926 = vld [vmem:[%s7 + $0x740] sm:$0xf]
  %v2927 = vld [vmem:[%s7 + $0x744] sm:$0xff]
  %v2928 = vld [vmem:[%s7 + $0x74c] sm:$0xff]
  %v2929 = vld [vmem:[%s7 + $0x754] sm:$0xf]
  %v2930 = vld [vmem:[%s7 + $0x758] sm:$0xff]
  %v2931 = vld [vmem:[%s7 + $0x760] sm:$0xff]
  %v2932 = vld [vmem:[%s7 + $0x768] sm:$0xf]
  %v2933 = vld [vmem:[%s7 + $0x76c] sm:$0xff]
  %v2934 = vld [vmem:[%s7 + $0x774] sm:$0xff]
  %v2935 = vld [vmem:[%s7 + $0x77c] sm:$0xf]
  %v2936 = vld [vmem:[%s7 + $0x780] sm:$0xff]
  %v2937 = vld [vmem:[%s7 + $0x788] sm:$0xff]
  %v2938 = vld [vmem:[%s7 + $0x790] sm:$0xf]
  %v2939 = vld [vmem:[%s7 + $0x794] sm:$0xff]
  %v2940 = vld [vmem:[%s7 + $0x79c] sm:$0xff]
  %v2941 = vld [vmem:[%s7 + $0x7a4] sm:$0xf]
  %v2942 = vld [vmem:[%s7 + $0x7a8] sm:$0xff]
  %v2943 = vld [vmem:[%s7 + $0x7b0] sm:$0xff]
  %v2944 = vld [vmem:[%s7 + $0x7b8] sm:$0xf]
  %v2945 = vld [vmem:[%s7 + $0x7bc] sm:$0xff]
  %v2946 = vld [vmem:[%s7 + $0x7c4] sm:$0xff]
  %v2947 = vld [vmem:[%s7 + $0x7cc] sm:$0xf]
  %v2948 = vld [vmem:[%s7 + $0x7d0] sm:$0xff]
  %v2949 = vld [vmem:[%s7 + $0x7d8] sm:$0xff]
  %v2950 = vld [vmem:[%s7 + $0x7e0] sm:$0xf]
  %v2951 = vld [vmem:[%s7 + $0x7e4] sm:$0xff]
  %v2952 = vld [vmem:[%s7 + $0x7ec] sm:$0xff]
  %v2953 = vld [vmem:[%s7 + $0x7f4] sm:$0xf]
  %v2954 = vld [vmem:[%s7 + $0x7f8] sm:$0xff]
  %v2955 = vld [vmem:[%s7 + $0x800] sm:$0xff]
  %v2956 = vld [vmem:[%s7 + $0x808] sm:$0xf]
  %v2957 = vld [vmem:[%s7 + $0x80c] sm:$0xff]
  %v2958 = vld [vmem:[%s7 + $0x814] sm:$0xff]
  %v2959 = vld [vmem:[%s7 + $0x81c] sm:$0xf]
  %v2960 = vld [vmem:[%s7 + $0x820] sm:$0xff]
  %v2961 = vld [vmem:[%s7 + $0x828] sm:$0xff]
  %v2962 = vld [vmem:[%s7 + $0x830] sm:$0xf]
  %v2963 = vld [vmem:[%s7 + $0x834] sm:$0xff]
  %v2964 = vld [vmem:[%s7 + $0x83c] sm:$0xff]
  %v2965 = vld [vmem:[%s7 + $0x844] sm:$0xf]
  %v2966 = vld [vmem:[%s7 + $0x848] sm:$0xff]
  %v2967 = vld [vmem:[%s7 + $0x850] sm:$0xff]
  %v2968 = vld [vmem:[%s7 + $0x858] sm:$0xf]
  %v2969 = vld [vmem:[%s7 + $0x85c] sm:$0xff]
  %v2970 = vld [vmem:[%s7 + $0x864] sm:$0xff]
  %v2971 = vld [vmem:[%s7 + $0x86c] sm:$0xf]
  %v2972 = vld [vmem:[%s7 + $0x870] sm:$0xff]
  %v2973 = vld [vmem:[%s7 + $0x878] sm:$0xff]
  %v2974 = vld [vmem:[%s7 + $0x880] sm:$0xf]
  %v2975 = vld [vmem:[%s7 + $0x884] sm:$0xff]
  %v2976 = vld [vmem:[%s7 + $0x88c] sm:$0xff]
  %v2977 = vld [vmem:[%s7 + $0x894] sm:$0xf]
  %v2978 = vld [vmem:[%s7 + $0x898] sm:$0xff]
  %v2979 = vld [vmem:[%s7 + $0x8a0] sm:$0xff]
  %v2980 = vld [vmem:[%s7 + $0x8a8] sm:$0xf]
  %v2981 = vld [vmem:[%s7 + $0x8ac] sm:$0xff]
  %v2982 = vld [vmem:[%s7 + $0x8b4] sm:$0xff]
  %v2983 = vld [vmem:[%s7 + $0x8bc] sm:$0xf]
  %v2984 = vld [vmem:[%s7 + $0x8c0] sm:$0xff]
  %v2985 = vld [vmem:[%s7 + $0x8c8] sm:$0xff]
  %v2986 = vld [vmem:[%s7 + $0x8d0] sm:$0xf]
  %v2987 = vld [vmem:[%s7 + $0x8d4] sm:$0xff]
  %v2988 = vld [vmem:[%s7 + $0x8dc] sm:$0xff]
  %v2989 = vld [vmem:[%s7 + $0x8e4] sm:$0xf]
  %v2990 = vld [vmem:[%s7 + $0x8e8] sm:$0xff]
  %v2991 = vld [vmem:[%s7 + $0x8f0] sm:$0xff]
  %v2992 = vld [vmem:[%s7 + $0x8f8] sm:$0xf]
  %v2993 = vld [vmem:[%s7 + $0x8fc] sm:$0xff]
  %v2994 = vld [vmem:[%s7 + $0x904] sm:$0xff]
  %v2995 = vld [vmem:[%s7 + $0x90c] sm:$0xf]
  %v2996 = vld [vmem:[%s7 + $0x910] sm:$0xff]
  %v2997 = vld [vmem:[%s7 + $0x918] sm:$0xff]
  %v2998 = vld [vmem:[%s7 + $0x920] sm:$0xf]
  %v2999 = vld [vmem:[%s7 + $0x924] sm:$0xff]
  %v3000 = vld [vmem:[%s7 + $0x92c] sm:$0xff]
  %v3001 = vld [vmem:[%s7 + $0x934] sm:$0xf]
  %v3002 = vld [vmem:[%s7 + $0x938] sm:$0xff]
  %v3003 = vld [vmem:[%s7 + $0x940] sm:$0xff]
  %v3004 = vld [vmem:[%s7 + $0x948] sm:$0xf]
  %v3005 = vld [vmem:[%s7 + $0x94c] sm:$0xff]
  %v3006 = vld [vmem:[%s7 + $0x954] sm:$0xff]
  %v3007 = vld [vmem:[%s7 + $0x95c] sm:$0xf]
  %v3008 = vld [vmem:[%s7 + $0x960] sm:$0xff]
  %v3009 = vld [vmem:[%s7 + $0x968] sm:$0xff]
  %v3010 = vld [vmem:[%s7 + $0x970] sm:$0xf]
  %v3011 = vld [vmem:[%s7 + $0x974] sm:$0xff]
  %v3012 = vld [vmem:[%s7 + $0x97c] sm:$0xff]
  %v3013 = vld [vmem:[%s7 + $0x984] sm:$0xf]
  %v3014 = vld [vmem:[%s7 + $0x988] sm:$0xff]
  %v3015 = vld [vmem:[%s7 + $0x990] sm:$0xff]
  %v3016 = vld [vmem:[%s7 + $0x998] sm:$0xf]
  %v3017 = vld [vmem:[%s7 + $0x99c] sm:$0xff]
  %v3018 = vld [vmem:[%s7 + $0x9a4] sm:$0xff]
  %v3019 = vld [vmem:[%s7 + $0x9ac] sm:$0xf]
  %v3020 = vld [vmem:[%s7 + $0x9b0] sm:$0xff]
  %v3021 = vld [vmem:[%s7 + $0x9b8] sm:$0xff]
  %v3022 = vld [vmem:[%s7 + $0x9c0] sm:$0xf]
  %v3023 = vld [vmem:[%s7 + $0x9c4] sm:$0xff]
  %v3024 = vld [vmem:[%s7 + $0x9cc] sm:$0xff]
  %v3025 = vld [vmem:[%s7 + $0x9d4] sm:$0xf]
  %v3026 = vld [vmem:[%s7 + $0x9d8] sm:$0xff]
  %v3027 = vld [vmem:[%s7 + $0x9e0] sm:$0xff]
  %v3028 = vld [vmem:[%s7 + $0x9e8] sm:$0xf]
  %v3029 = vld [vmem:[%s7 + $0x9ec] sm:$0xff]
  %v3030 = vld [vmem:[%s7 + $0x9f4] sm:$0xff]
  %v3031 = vld [vmem:[%s7 + $0x9fc] sm:$0xf]
  %v3032 = vld [vmem:[%s8] sm:$0x1f]
  %v3034 = vlaneseq
  %v3035 = vshrl.u32 %v3034, 7
  %v3036 = vsub.s32 0, %v3035
  %v3037 = vrot.slane %v3032, %v3036
  %v3038 = vlaneseq
  %v3039 = vshrl.u32 %v3038, 7
  %v3040 = vsub.s32 1, %v3039
  %v3041 = vrot.slane %v3032, %v3040
  %v3042 = vlaneseq
  %v3043 = vshrl.u32 %v3042, 7
  %v3044 = vsub.s32 2, %v3043
  %v3045 = vrot.slane %v3032, %v3044
  %v3046 = vlaneseq
  %v3047 = vshrl.u32 %v3046, 7
  %v3048 = vsub.s32 3, %v3047
  %v3049 = vrot.slane %v3032, %v3048
  %v3050 = vlaneseq
  %v3051 = vshrl.u32 %v3050, 7
  %v3052 = vsub.s32 4, %v3051
  %v3053 = vrot.slane %v3032, %v3052
  %v3443 = vunpack.c.l.b16 %v2648
  %v3444 = vunpack.c.h.b16 %v2648
  %v3445 = vunpack.c.l.b16 %v2649
  %v3446 = vunpack.c.h.b16 %v2649
  %v3447 = vunpack.c.l.b16 %v2650
  %v3448 = vunpack.c.l.b16 %v2651
  %v3449 = vunpack.c.h.b16 %v2651
  %v3450 = vunpack.c.l.b16 %v2652
  %v3451 = vunpack.c.h.b16 %v2652
  %v3452 = vunpack.c.l.b16 %v2653
  %v3453 = vunpack.c.l.b16 %v2654
  %v3454 = vunpack.c.h.b16 %v2654
  %v3455 = vunpack.c.l.b16 %v2655
  %v3456 = vunpack.c.h.b16 %v2655
  %v3457 = vunpack.c.l.b16 %v2656
  %v3458 = vunpack.c.l.b16 %v2657
  %v3459 = vunpack.c.h.b16 %v2657
  %v3460 = vunpack.c.l.b16 %v2658
  %v3461 = vunpack.c.h.b16 %v2658
  %v3462 = vunpack.c.l.b16 %v2659
  %v3463 = vunpack.c.l.b16 %v2660
  %v3464 = vunpack.c.h.b16 %v2660
  %v3465 = vunpack.c.l.b16 %v2661
  %v3466 = vunpack.c.h.b16 %v2661
  %v3467 = vunpack.c.l.b16 %v2662
  %v3468 = vunpack.c.l.b16 %v2663
  %v3469 = vunpack.c.h.b16 %v2663
  %v3470 = vunpack.c.l.b16 %v2664
  %v3471 = vunpack.c.h.b16 %v2664
  %v3472 = vunpack.c.l.b16 %v2665
  %v3473 = vunpack.c.l.b16 %v2666
  %v3474 = vunpack.c.h.b16 %v2666
  %v3475 = vunpack.c.l.b16 %v2667
  %v3476 = vunpack.c.h.b16 %v2667
  %v3477 = vunpack.c.l.b16 %v2668
  %v3478 = vunpack.c.l.b16 %v2669
  %v3479 = vunpack.c.h.b16 %v2669
  %v3480 = vunpack.c.l.b16 %v2670
  %v3481 = vunpack.c.h.b16 %v2670
  %v3482 = vunpack.c.l.b16 %v2671
  %v3483 = vunpack.c.l.b16 %v2672
  %v3484 = vunpack.c.h.b16 %v2672
  %v3485 = vunpack.c.l.b16 %v2673
  %v3486 = vunpack.c.h.b16 %v2673
  %v3487 = vunpack.c.l.b16 %v2674
  %v3488 = vunpack.c.l.b16 %v2675
  %v3489 = vunpack.c.h.b16 %v2675
  %v3490 = vunpack.c.l.b16 %v2676
  %v3491 = vunpack.c.h.b16 %v2676
  %v3492 = vunpack.c.l.b16 %v2677
  %v3493 = vunpack.c.l.b16 %v2678
  %v3494 = vunpack.c.h.b16 %v2678
  %v3495 = vunpack.c.l.b16 %v2679
  %v3496 = vunpack.c.h.b16 %v2679
  %v3497 = vunpack.c.l.b16 %v2680
  %v3498 = vunpack.c.l.b16 %v2681
  %v3499 = vunpack.c.h.b16 %v2681
  %v3500 = vunpack.c.l.b16 %v2682
  %v3501 = vunpack.c.h.b16 %v2682
  %v3502 = vunpack.c.l.b16 %v2683
  %v3503 = vunpack.c.l.b16 %v2684
  %v3504 = vunpack.c.h.b16 %v2684
  %v3505 = vunpack.c.l.b16 %v2685
  %v3506 = vunpack.c.h.b16 %v2685
  %v3507 = vunpack.c.l.b16 %v2686
  %v3508 = vunpack.c.l.b16 %v2687
  %v3509 = vunpack.c.h.b16 %v2687
  %v3510 = vunpack.c.l.b16 %v2688
  %v3511 = vunpack.c.h.b16 %v2688
  %v3512 = vunpack.c.l.b16 %v2689
  %v3513 = vunpack.c.l.b16 %v2690
  %v3514 = vunpack.c.h.b16 %v2690
  %v3515 = vunpack.c.l.b16 %v2691
  %v3516 = vunpack.c.h.b16 %v2691
  %v3517 = vunpack.c.l.b16 %v2692
  %v3518 = vunpack.c.l.b16 %v2693
  %v3519 = vunpack.c.h.b16 %v2693
  %v3520 = vunpack.c.l.b16 %v2694
  %v3521 = vunpack.c.h.b16 %v2694
  %v3522 = vunpack.c.l.b16 %v2695
  %v3523 = vunpack.c.l.b16 %v2696
  %v3524 = vunpack.c.h.b16 %v2696
  %v3525 = vunpack.c.l.b16 %v2697
  %v3526 = vunpack.c.h.b16 %v2697
  %v3527 = vunpack.c.l.b16 %v2698
  %v3528 = vunpack.c.l.b16 %v2699
  %v3529 = vunpack.c.h.b16 %v2699
  %v3530 = vunpack.c.l.b16 %v2700
  %v3531 = vunpack.c.h.b16 %v2700
  %v3532 = vunpack.c.l.b16 %v2701
  %v3533 = vunpack.c.l.b16 %v2702
  %v3534 = vunpack.c.h.b16 %v2702
  %v3535 = vunpack.c.l.b16 %v2703
  %v3536 = vunpack.c.h.b16 %v2703
  %v3537 = vunpack.c.l.b16 %v2704
  %v3538 = vunpack.c.l.b16 %v2705
  %v3539 = vunpack.c.h.b16 %v2705
  %v3540 = vunpack.c.l.b16 %v2706
  %v3541 = vunpack.c.h.b16 %v2706
  %v3542 = vunpack.c.l.b16 %v2707
  %v3543 = vunpack.c.l.b16 %v2708
  %v3544 = vunpack.c.h.b16 %v2708
  %v3545 = vunpack.c.l.b16 %v2709
  %v3546 = vunpack.c.h.b16 %v2709
  %v3547 = vunpack.c.l.b16 %v2710
  %v3548 = vunpack.c.l.b16 %v2711
  %v3549 = vunpack.c.h.b16 %v2711
  %v3550 = vunpack.c.l.b16 %v2712
  %v3551 = vunpack.c.h.b16 %v2712
  %v3552 = vunpack.c.l.b16 %v2713
  %v3553 = vunpack.c.l.b16 %v2714
  %v3554 = vunpack.c.h.b16 %v2714
  %v3555 = vunpack.c.l.b16 %v2715
  %v3556 = vunpack.c.h.b16 %v2715
  %v3557 = vunpack.c.l.b16 %v2716
  %v3558 = vunpack.c.l.b16 %v2717
  %v3559 = vunpack.c.h.b16 %v2717
  %v3560 = vunpack.c.l.b16 %v2718
  %v3561 = vunpack.c.h.b16 %v2718
  %v3562 = vunpack.c.l.b16 %v2719
  %v3563 = vunpack.c.l.b16 %v2720
  %v3564 = vunpack.c.h.b16 %v2720
  %v3565 = vunpack.c.l.b16 %v2721
  %v3566 = vunpack.c.h.b16 %v2721
  %v3567 = vunpack.c.l.b16 %v2722
  %v3568 = vunpack.c.l.b16 %v2723
  %v3569 = vunpack.c.h.b16 %v2723
  %v3570 = vunpack.c.l.b16 %v2724
  %v3571 = vunpack.c.h.b16 %v2724
  %v3572 = vunpack.c.l.b16 %v2725
  %v3573 = vunpack.c.l.b16 %v2726
  %v3574 = vunpack.c.h.b16 %v2726
  %v3575 = vunpack.c.l.b16 %v2727
  %v3576 = vunpack.c.h.b16 %v2727
  %v3577 = vunpack.c.l.b16 %v2728
  %v3578 = vunpack.c.l.b16 %v2729
  %v3579 = vunpack.c.h.b16 %v2729
  %v3580 = vunpack.c.l.b16 %v2730
  %v3581 = vunpack.c.h.b16 %v2730
  %v3582 = vunpack.c.l.b16 %v2731
  %v3583 = vunpack.c.l.b16 %v2732
  %v3584 = vunpack.c.h.b16 %v2732
  %v3585 = vunpack.c.l.b16 %v2733
  %v3586 = vunpack.c.h.b16 %v2733
  %v3587 = vunpack.c.l.b16 %v2734
  %v3588 = vunpack.c.l.b16 %v2735
  %v3589 = vunpack.c.h.b16 %v2735
  %v3590 = vunpack.c.l.b16 %v2736
  %v3591 = vunpack.c.h.b16 %v2736
  %v3592 = vunpack.c.l.b16 %v2737
  %v3593 = vunpack.c.l.b16 %v2738
  %v3594 = vunpack.c.h.b16 %v2738
  %v3595 = vunpack.c.l.b16 %v2739
  %v3596 = vunpack.c.h.b16 %v2739
  %v3597 = vunpack.c.l.b16 %v2740
  %v3598 = vunpack.c.l.b16 %v2741
  %v3599 = vunpack.c.h.b16 %v2741
  %v3600 = vunpack.c.l.b16 %v2742
  %v3601 = vunpack.c.h.b16 %v2742
  %v3602 = vunpack.c.l.b16 %v2743
  %v3603 = vunpack.c.l.b16 %v2744
  %v3604 = vunpack.c.h.b16 %v2744
  %v3605 = vunpack.c.l.b16 %v2745
  %v3606 = vunpack.c.h.b16 %v2745
  %v3607 = vunpack.c.l.b16 %v2746
  %v3608 = vunpack.c.l.b16 %v2747
  %v3609 = vunpack.c.h.b16 %v2747
  %v3610 = vunpack.c.l.b16 %v2748
  %v3611 = vunpack.c.h.b16 %v2748
  %v3612 = vunpack.c.l.b16 %v2749
  %v3613 = vunpack.c.l.b16 %v2750
  %v3614 = vunpack.c.h.b16 %v2750
  %v3615 = vunpack.c.l.b16 %v2751
  %v3616 = vunpack.c.h.b16 %v2751
  %v3617 = vunpack.c.l.b16 %v2752
  %v3618 = vunpack.c.l.b16 %v2753
  %v3619 = vunpack.c.h.b16 %v2753
  %v3620 = vunpack.c.l.b16 %v2754
  %v3621 = vunpack.c.h.b16 %v2754
  %v3622 = vunpack.c.l.b16 %v2755
  %v3623 = vunpack.c.l.b16 %v2756
  %v3624 = vunpack.c.h.b16 %v2756
  %v3625 = vunpack.c.l.b16 %v2757
  %v3626 = vunpack.c.h.b16 %v2757
  %v3627 = vunpack.c.l.b16 %v2758
  %v3628 = vunpack.c.l.b16 %v2759
  %v3629 = vunpack.c.h.b16 %v2759
  %v3630 = vunpack.c.l.b16 %v2760
  %v3631 = vunpack.c.h.b16 %v2760
  %v3632 = vunpack.c.l.b16 %v2761
  %v3633 = vunpack.c.l.b16 %v2762
  %v3634 = vunpack.c.h.b16 %v2762
  %v3635 = vunpack.c.l.b16 %v2763
  %v3636 = vunpack.c.h.b16 %v2763
  %v3637 = vunpack.c.l.b16 %v2764
  %v3638 = vunpack.c.l.b16 %v2765
  %v3639 = vunpack.c.h.b16 %v2765
  %v3640 = vunpack.c.l.b16 %v2766
  %v3641 = vunpack.c.h.b16 %v2766
  %v3642 = vunpack.c.l.b16 %v2767
  %v3643 = vunpack.c.l.b16 %v2768
  %v3644 = vunpack.c.h.b16 %v2768
  %v3645 = vunpack.c.l.b16 %v2769
  %v3646 = vunpack.c.h.b16 %v2769
  %v3647 = vunpack.c.l.b16 %v2770
  %v3648 = vunpack.c.l.b16 %v2771
  %v3649 = vunpack.c.h.b16 %v2771
  %v3650 = vunpack.c.l.b16 %v2772
  %v3651 = vunpack.c.h.b16 %v2772
  %v3652 = vunpack.c.l.b16 %v2773
  %v3653 = vunpack.c.l.b16 %v2774
  %v3654 = vunpack.c.h.b16 %v2774
  %v3655 = vunpack.c.l.b16 %v2775
  %v3656 = vunpack.c.h.b16 %v2775
  %v3657 = vunpack.c.l.b16 %v2776
  %v3658 = vunpack.c.l.b16 %v2777
  %v3659 = vunpack.c.h.b16 %v2777
  %v3660 = vunpack.c.l.b16 %v2778
  %v3661 = vunpack.c.h.b16 %v2778
  %v3662 = vunpack.c.l.b16 %v2779
  %v3663 = vunpack.c.l.b16 %v2780
  %v3664 = vunpack.c.h.b16 %v2780
  %v3665 = vunpack.c.l.b16 %v2781
  %v3666 = vunpack.c.h.b16 %v2781
  %v3667 = vunpack.c.l.b16 %v2782
  %v3668 = vunpack.c.l.b16 %v2783
  %v3669 = vunpack.c.h.b16 %v2783
  %v3670 = vunpack.c.l.b16 %v2784
  %v3671 = vunpack.c.h.b16 %v2784
  %v3672 = vunpack.c.l.b16 %v2785
  %v3673 = vunpack.c.l.b16 %v2786
  %v3674 = vunpack.c.h.b16 %v2786
  %v3675 = vunpack.c.l.b16 %v2787
  %v3676 = vunpack.c.h.b16 %v2787
  %v3677 = vunpack.c.l.b16 %v2788
  %v3678 = vunpack.c.l.b16 %v2789
  %v3679 = vunpack.c.h.b16 %v2789
  %v3680 = vunpack.c.l.b16 %v2790
  %v3681 = vunpack.c.h.b16 %v2790
  %v3682 = vunpack.c.l.b16 %v2791
  %v3683 = vunpack.c.l.b16 %v2792
  %v3684 = vunpack.c.h.b16 %v2792
  %v3685 = vunpack.c.l.b16 %v2793
  %v3686 = vunpack.c.h.b16 %v2793
  %v3687 = vunpack.c.l.b16 %v2794
  %v3688 = vunpack.c.l.b16 %v2795
  %v3689 = vunpack.c.h.b16 %v2795
  %v3690 = vunpack.c.l.b16 %v2796
  %v3691 = vunpack.c.h.b16 %v2796
  %v3692 = vunpack.c.l.b16 %v2797
  %v3693 = vunpack.c.l.b16 %v2798
  %v3694 = vunpack.c.h.b16 %v2798
  %v3695 = vunpack.c.l.b16 %v2799
  %v3696 = vunpack.c.h.b16 %v2799
  %v3697 = vunpack.c.l.b16 %v2800
  %v3698 = vunpack.c.l.b16 %v2801
  %v3699 = vunpack.c.h.b16 %v2801
  %v3700 = vunpack.c.l.b16 %v2802
  %v3701 = vunpack.c.h.b16 %v2802
  %v3702 = vunpack.c.l.b16 %v2803
  %v3703 = vunpack.c.l.b16 %v2804
  %v3704 = vunpack.c.h.b16 %v2804
  %v3705 = vunpack.c.l.b16 %v2805
  %v3706 = vunpack.c.h.b16 %v2805
  %v3707 = vunpack.c.l.b16 %v2806
  %v3708 = vunpack.c.l.b16 %v2807
  %v3709 = vunpack.c.h.b16 %v2807
  %v3710 = vunpack.c.l.b16 %v2808
  %v3711 = vunpack.c.h.b16 %v2808
  %v3712 = vunpack.c.l.b16 %v2809
  %v3713 = vunpack.c.l.b16 %v2810
  %v3714 = vunpack.c.h.b16 %v2810
  %v3715 = vunpack.c.l.b16 %v2811
  %v3716 = vunpack.c.h.b16 %v2811
  %v3717 = vunpack.c.l.b16 %v2812
  %v3718 = vunpack.c.l.b16 %v2813
  %v3719 = vunpack.c.h.b16 %v2813
  %v3720 = vunpack.c.l.b16 %v2814
  %v3721 = vunpack.c.h.b16 %v2814
  %v3722 = vunpack.c.l.b16 %v2815
  %v3723 = vunpack.c.l.b16 %v2816
  %v3724 = vunpack.c.h.b16 %v2816
  %v3725 = vunpack.c.l.b16 %v2817
  %v3726 = vunpack.c.h.b16 %v2817
  %v3727 = vunpack.c.l.b16 %v2818
  %v3728 = vunpack.c.l.b16 %v2819
  %v3729 = vunpack.c.h.b16 %v2819
  %v3730 = vunpack.c.l.b16 %v2820
  %v3731 = vunpack.c.h.b16 %v2820
  %v3732 = vunpack.c.l.b16 %v2821
  %v3733 = vunpack.c.l.b16 %v2822
  %v3734 = vunpack.c.h.b16 %v2822
  %v3735 = vunpack.c.l.b16 %v2823
  %v3736 = vunpack.c.h.b16 %v2823
  %v3737 = vunpack.c.l.b16 %v2824
  %v3738 = vunpack.c.l.b16 %v2825
  %v3739 = vunpack.c.h.b16 %v2825
  %v3740 = vunpack.c.l.b16 %v2826
  %v3741 = vunpack.c.h.b16 %v2826
  %v3742 = vunpack.c.l.b16 %v2827
  %v3743 = vunpack.c.l.b16 %v2828
  %v3744 = vunpack.c.h.b16 %v2828
  %v3745 = vunpack.c.l.b16 %v2829
  %v3746 = vunpack.c.h.b16 %v2829
  %v3747 = vunpack.c.l.b16 %v2830
  %v3748 = vunpack.c.l.b16 %v2831
  %v3749 = vunpack.c.h.b16 %v2831
  %v3750 = vunpack.c.l.b16 %v2832
  %v3751 = vunpack.c.h.b16 %v2832
  %v3752 = vunpack.c.l.b16 %v2833
  %v3753 = vunpack.c.l.b16 %v2834
  %v3754 = vunpack.c.h.b16 %v2834
  %v3755 = vunpack.c.l.b16 %v2835
  %v3756 = vunpack.c.h.b16 %v2835
  %v3757 = vunpack.c.l.b16 %v2836
  %v3758 = vunpack.c.l.b16 %v2837
  %v3759 = vunpack.c.h.b16 %v2837
  %v3760 = vunpack.c.l.b16 %v2838
  %v3761 = vunpack.c.h.b16 %v2838
  %v3762 = vunpack.c.l.b16 %v2839
  %v3763 = vunpack.c.l.b16 %v2840
  %v3764 = vunpack.c.h.b16 %v2840
  %v3765 = vunpack.c.l.b16 %v2841
  %v3766 = vunpack.c.h.b16 %v2841
  %v3767 = vunpack.c.l.b16 %v2842
  %v3768 = vunpack.c.l.b16 %v2843
  %v3769 = vunpack.c.h.b16 %v2843
  %v3770 = vunpack.c.l.b16 %v2844
  %v3771 = vunpack.c.h.b16 %v2844
  %v3772 = vunpack.c.l.b16 %v2845
  %v3773 = vunpack.c.l.b16 %v2846
  %v3774 = vunpack.c.h.b16 %v2846
  %v3775 = vunpack.c.l.b16 %v2847
  %v3776 = vunpack.c.h.b16 %v2847
  %v3777 = vunpack.c.l.b16 %v2848
  %v3778 = vunpack.c.l.b16 %v2849
  %v3779 = vunpack.c.h.b16 %v2849
  %v3780 = vunpack.c.l.b16 %v2850
  %v3781 = vunpack.c.h.b16 %v2850
  %v3782 = vunpack.c.l.b16 %v2851
  %v3783 = vunpack.c.l.b16 %v2852
  %v3784 = vunpack.c.h.b16 %v2852
  %v3785 = vunpack.c.l.b16 %v2853
  %v3786 = vunpack.c.h.b16 %v2853
  %v3787 = vunpack.c.l.b16 %v2854
  %v3788 = vunpack.c.l.b16 %v2855
  %v3789 = vunpack.c.h.b16 %v2855
  %v3790 = vunpack.c.l.b16 %v2856
  %v3791 = vunpack.c.h.b16 %v2856
  %v3792 = vunpack.c.l.b16 %v2857
  %v3793 = vunpack.c.l.b16 %v2858
  %v3794 = vunpack.c.h.b16 %v2858
  %v3795 = vunpack.c.l.b16 %v2859
  %v3796 = vunpack.c.h.b16 %v2859
  %v3797 = vunpack.c.l.b16 %v2860
  %v3798 = vunpack.c.l.b16 %v2861
  %v3799 = vunpack.c.h.b16 %v2861
  %v3800 = vunpack.c.l.b16 %v2862
  %v3801 = vunpack.c.h.b16 %v2862
  %v3802 = vunpack.c.l.b16 %v2863
  %v3803 = vunpack.c.l.b16 %v2864
  %v3804 = vunpack.c.h.b16 %v2864
  %v3805 = vunpack.c.l.b16 %v2865
  %v3806 = vunpack.c.h.b16 %v2865
  %v3807 = vunpack.c.l.b16 %v2866
  %v3808 = vunpack.c.l.b16 %v2867
  %v3809 = vunpack.c.h.b16 %v2867
  %v3810 = vunpack.c.l.b16 %v2868
  %v3811 = vunpack.c.h.b16 %v2868
  %v3812 = vunpack.c.l.b16 %v2869
  %v3813 = vunpack.c.l.b16 %v2870
  %v3814 = vunpack.c.h.b16 %v2870
  %v3815 = vunpack.c.l.b16 %v2871
  %v3816 = vunpack.c.h.b16 %v2871
  %v3817 = vunpack.c.l.b16 %v2872
  %v3818 = vunpack.c.l.b16 %v2873
  %v3819 = vunpack.c.h.b16 %v2873
  %v3820 = vunpack.c.l.b16 %v2874
  %v3821 = vunpack.c.h.b16 %v2874
  %v3822 = vunpack.c.l.b16 %v2875
  %v3823 = vunpack.c.l.b16 %v2876
  %v3824 = vunpack.c.h.b16 %v2876
  %v3825 = vunpack.c.l.b16 %v2877
  %v3826 = vunpack.c.h.b16 %v2877
  %v3827 = vunpack.c.l.b16 %v2878
  %v3828 = vunpack.c.l.b16 %v2879
  %v3829 = vunpack.c.h.b16 %v2879
  %v3830 = vunpack.c.l.b16 %v2880
  %v3831 = vunpack.c.h.b16 %v2880
  %v3832 = vunpack.c.l.b16 %v2881
  %v3833 = vunpack.c.l.b16 %v2882
  %v3834 = vunpack.c.h.b16 %v2882
  %v3835 = vunpack.c.l.b16 %v2883
  %v3836 = vunpack.c.h.b16 %v2883
  %v3837 = vunpack.c.l.b16 %v2884
  %v3838 = vunpack.c.l.b16 %v2885
  %v3839 = vunpack.c.h.b16 %v2885
  %v3840 = vunpack.c.l.b16 %v2886
  %v3841 = vunpack.c.h.b16 %v2886
  %v3842 = vunpack.c.l.b16 %v2887
  %v3843 = vunpack.c.l.b16 %v2888
  %v3844 = vunpack.c.h.b16 %v2888
  %v3845 = vunpack.c.l.b16 %v2889
  %v3846 = vunpack.c.h.b16 %v2889
  %v3847 = vunpack.c.l.b16 %v2890
  %v3848 = vunpack.c.l.b16 %v2891
  %v3849 = vunpack.c.h.b16 %v2891
  %v3850 = vunpack.c.l.b16 %v2892
  %v3851 = vunpack.c.h.b16 %v2892
  %v3852 = vunpack.c.l.b16 %v2893
  %v3853 = vunpack.c.l.b16 %v2894
  %v3854 = vunpack.c.h.b16 %v2894
  %v3855 = vunpack.c.l.b16 %v2895
  %v3856 = vunpack.c.h.b16 %v2895
  %v3857 = vunpack.c.l.b16 %v2896
  %v3858 = vunpack.c.l.b16 %v2897
  %v3859 = vunpack.c.h.b16 %v2897
  %v3860 = vunpack.c.l.b16 %v2898
  %v3861 = vunpack.c.h.b16 %v2898
  %v3862 = vunpack.c.l.b16 %v2899
  %v3863 = vunpack.c.l.b16 %v2900
  %v3864 = vunpack.c.h.b16 %v2900
  %v3865 = vunpack.c.l.b16 %v2901
  %v3866 = vunpack.c.h.b16 %v2901
  %v3867 = vunpack.c.l.b16 %v2902
  %v3868 = vunpack.c.l.b16 %v2903
  %v3869 = vunpack.c.h.b16 %v2903
  %v3870 = vunpack.c.l.b16 %v2904
  %v3871 = vunpack.c.h.b16 %v2904
  %v3872 = vunpack.c.l.b16 %v2905
  %v3873 = vunpack.c.l.b16 %v2906
  %v3874 = vunpack.c.h.b16 %v2906
  %v3875 = vunpack.c.l.b16 %v2907
  %v3876 = vunpack.c.h.b16 %v2907
  %v3877 = vunpack.c.l.b16 %v2908
  %v3878 = vunpack.c.l.b16 %v2909
  %v3879 = vunpack.c.h.b16 %v2909
  %v3880 = vunpack.c.l.b16 %v2910
  %v3881 = vunpack.c.h.b16 %v2910
  %v3882 = vunpack.c.l.b16 %v2911
  %v3883 = vunpack.c.l.b16 %v2912
  %v3884 = vunpack.c.h.b16 %v2912
  %v3885 = vunpack.c.l.b16 %v2913
  %v3886 = vunpack.c.h.b16 %v2913
  %v3887 = vunpack.c.l.b16 %v2914
  %v3888 = vunpack.c.l.b16 %v2915
  %v3889 = vunpack.c.h.b16 %v2915
  %v3890 = vunpack.c.l.b16 %v2916
  %v3891 = vunpack.c.h.b16 %v2916
  %v3892 = vunpack.c.l.b16 %v2917
  %v3893 = vunpack.c.l.b16 %v2918
  %v3894 = vunpack.c.h.b16 %v2918
  %v3895 = vunpack.c.l.b16 %v2919
  %v3896 = vunpack.c.h.b16 %v2919
  %v3897 = vunpack.c.l.b16 %v2920
  %v3898 = vunpack.c.l.b16 %v2921
  %v3899 = vunpack.c.h.b16 %v2921
  %v3900 = vunpack.c.l.b16 %v2922
  %v3901 = vunpack.c.h.b16 %v2922
  %v3902 = vunpack.c.l.b16 %v2923
  %v3903 = vunpack.c.l.b16 %v2924
  %v3904 = vunpack.c.h.b16 %v2924
  %v3905 = vunpack.c.l.b16 %v2925
  %v3906 = vunpack.c.h.b16 %v2925
  %v3907 = vunpack.c.l.b16 %v2926
  %v3908 = vunpack.c.l.b16 %v2927
  %v3909 = vunpack.c.h.b16 %v2927
  %v3910 = vunpack.c.l.b16 %v2928
  %v3911 = vunpack.c.h.b16 %v2928
  %v3912 = vunpack.c.l.b16 %v2929
  %v3913 = vunpack.c.l.b16 %v2930
  %v3914 = vunpack.c.h.b16 %v2930
  %v3915 = vunpack.c.l.b16 %v2931
  %v3916 = vunpack.c.h.b16 %v2931
  %v3917 = vunpack.c.l.b16 %v2932
  %v3918 = vunpack.c.l.b16 %v2933
  %v3919 = vunpack.c.h.b16 %v2933
  %v3920 = vunpack.c.l.b16 %v2934
  %v3921 = vunpack.c.h.b16 %v2934
  %v3922 = vunpack.c.l.b16 %v2935
  %v3923 = vunpack.c.l.b16 %v2936
  %v3924 = vunpack.c.h.b16 %v2936
  %v3925 = vunpack.c.l.b16 %v2937
  %v3926 = vunpack.c.h.b16 %v2937
  %v3927 = vunpack.c.l.b16 %v2938
  %v3928 = vunpack.c.l.b16 %v2939
  %v3929 = vunpack.c.h.b16 %v2939
  %v3930 = vunpack.c.l.b16 %v2940
  %v3931 = vunpack.c.h.b16 %v2940
  %v3932 = vunpack.c.l.b16 %v2941
  %v3933 = vunpack.c.l.b16 %v2942
  %v3934 = vunpack.c.h.b16 %v2942
  %v3935 = vunpack.c.l.b16 %v2943
  %v3936 = vunpack.c.h.b16 %v2943
  %v3937 = vunpack.c.l.b16 %v2944
  %v3938 = vunpack.c.l.b16 %v2945
  %v3939 = vunpack.c.h.b16 %v2945
  %v3940 = vunpack.c.l.b16 %v2946
  %v3941 = vunpack.c.h.b16 %v2946
  %v3942 = vunpack.c.l.b16 %v2947
  %v3943 = vunpack.c.l.b16 %v2948
  %v3944 = vunpack.c.h.b16 %v2948
  %v3945 = vunpack.c.l.b16 %v2949
  %v3946 = vunpack.c.h.b16 %v2949
  %v3947 = vunpack.c.l.b16 %v2950
  %v3948 = vunpack.c.l.b16 %v2951
  %v3949 = vunpack.c.h.b16 %v2951
  %v3950 = vunpack.c.l.b16 %v2952
  %v3951 = vunpack.c.h.b16 %v2952
  %v3952 = vunpack.c.l.b16 %v2953
  %v3953 = vunpack.c.l.b16 %v2954
  %v3954 = vunpack.c.h.b16 %v2954
  %v3955 = vunpack.c.l.b16 %v2955
  %v3956 = vunpack.c.h.b16 %v2955
  %v3957 = vunpack.c.l.b16 %v2956
  %v3958 = vunpack.c.l.b16 %v2957
  %v3959 = vunpack.c.h.b16 %v2957
  %v3960 = vunpack.c.l.b16 %v2958
  %v3961 = vunpack.c.h.b16 %v2958
  %v3962 = vunpack.c.l.b16 %v2959
  %v3963 = vunpack.c.l.b16 %v2960
  %v3964 = vunpack.c.h.b16 %v2960
  %v3965 = vunpack.c.l.b16 %v2961
  %v3966 = vunpack.c.h.b16 %v2961
  %v3967 = vunpack.c.l.b16 %v2962
  %v3968 = vunpack.c.l.b16 %v2963
  %v3969 = vunpack.c.h.b16 %v2963
  %v3970 = vunpack.c.l.b16 %v2964
  %v3971 = vunpack.c.h.b16 %v2964
  %v3972 = vunpack.c.l.b16 %v2965
  %v3973 = vunpack.c.l.b16 %v2966
  %v3974 = vunpack.c.h.b16 %v2966
  %v3975 = vunpack.c.l.b16 %v2967
  %v3976 = vunpack.c.h.b16 %v2967
  %v3977 = vunpack.c.l.b16 %v2968
  %v3978 = vunpack.c.l.b16 %v2969
  %v3979 = vunpack.c.h.b16 %v2969
  %v3980 = vunpack.c.l.b16 %v2970
  %v3981 = vunpack.c.h.b16 %v2970
  %v3982 = vunpack.c.l.b16 %v2971
  %v3983 = vunpack.c.l.b16 %v2972
  %v3984 = vunpack.c.h.b16 %v2972
  %v3985 = vunpack.c.l.b16 %v2973
  %v3986 = vunpack.c.h.b16 %v2973
  %v3987 = vunpack.c.l.b16 %v2974
  %v3988 = vunpack.c.l.b16 %v2975
  %v3989 = vunpack.c.h.b16 %v2975
  %v3990 = vunpack.c.l.b16 %v2976
  %v3991 = vunpack.c.h.b16 %v2976
  %v3992 = vunpack.c.l.b16 %v2977
  %v3993 = vunpack.c.l.b16 %v2978
  %v3994 = vunpack.c.h.b16 %v2978
  %v3995 = vunpack.c.l.b16 %v2979
  %v3996 = vunpack.c.h.b16 %v2979
  %v3997 = vunpack.c.l.b16 %v2980
  %v3998 = vunpack.c.l.b16 %v2981
  %v3999 = vunpack.c.h.b16 %v2981
  %v4000 = vunpack.c.l.b16 %v2982
  %v4001 = vunpack.c.h.b16 %v2982
  %v4002 = vunpack.c.l.b16 %v2983
  %v4003 = vunpack.c.l.b16 %v2984
  %v4004 = vunpack.c.h.b16 %v2984
  %v4005 = vunpack.c.l.b16 %v2985
  %v4006 = vunpack.c.h.b16 %v2985
  %v4007 = vunpack.c.l.b16 %v2986
  %v4008 = vunpack.c.l.b16 %v2987
  %v4009 = vunpack.c.h.b16 %v2987
  %v4010 = vunpack.c.l.b16 %v2988
  %v4011 = vunpack.c.h.b16 %v2988
  %v4012 = vunpack.c.l.b16 %v2989
  %v4013 = vunpack.c.l.b16 %v2990
  %v4014 = vunpack.c.h.b16 %v2990
  %v4015 = vunpack.c.l.b16 %v2991
  %v4016 = vunpack.c.h.b16 %v2991
  %v4017 = vunpack.c.l.b16 %v2992
  %v4018 = vunpack.c.l.b16 %v2993
  %v4019 = vunpack.c.h.b16 %v2993
  %v4020 = vunpack.c.l.b16 %v2994
  %v4021 = vunpack.c.h.b16 %v2994
  %v4022 = vunpack.c.l.b16 %v2995
  %v4023 = vunpack.c.l.b16 %v2996
  %v4024 = vunpack.c.h.b16 %v2996
  %v4025 = vunpack.c.l.b16 %v2997
  %v4026 = vunpack.c.h.b16 %v2997
  %v4027 = vunpack.c.l.b16 %v2998
  %v4028 = vunpack.c.l.b16 %v2999
  %v4029 = vunpack.c.h.b16 %v2999
  %v4030 = vunpack.c.l.b16 %v3000
  %v4031 = vunpack.c.h.b16 %v3000
  %v4032 = vunpack.c.l.b16 %v3001
  %v4033 = vunpack.c.l.b16 %v3002
  %v4034 = vunpack.c.h.b16 %v3002
  %v4035 = vunpack.c.l.b16 %v3003
  %v4036 = vunpack.c.h.b16 %v3003
  %v4037 = vunpack.c.l.b16 %v3004
  %v4038 = vunpack.c.l.b16 %v3005
  %v4039 = vunpack.c.h.b16 %v3005
  %v4040 = vunpack.c.l.b16 %v3006
  %v4041 = vunpack.c.h.b16 %v3006
  %v4042 = vunpack.c.l.b16 %v3007
  %v4043 = vunpack.c.l.b16 %v3008
  %v4044 = vunpack.c.h.b16 %v3008
  %v4045 = vunpack.c.l.b16 %v3009
  %v4046 = vunpack.c.h.b16 %v3009
  %v4047 = vunpack.c.l.b16 %v3010
  %v4048 = vunpack.c.l.b16 %v3011
  %v4049 = vunpack.c.h.b16 %v3011
  %v4050 = vunpack.c.l.b16 %v3012
  %v4051 = vunpack.c.h.b16 %v3012
  %v4052 = vunpack.c.l.b16 %v3013
  %v4053 = vunpack.c.l.b16 %v3014
  %v4054 = vunpack.c.h.b16 %v3014
  %v4055 = vunpack.c.l.b16 %v3015
  %v4056 = vunpack.c.h.b16 %v3015
  %v4057 = vunpack.c.l.b16 %v3016
  %v4058 = vunpack.c.l.b16 %v3017
  %v4059 = vunpack.c.h.b16 %v3017
  %v4060 = vunpack.c.l.b16 %v3018
  %v4061 = vunpack.c.h.b16 %v3018
  %v4062 = vunpack.c.l.b16 %v3019
  %v4063 = vunpack.c.l.b16 %v3020
  %v4064 = vunpack.c.h.b16 %v3020
  %v4065 = vunpack.c.l.b16 %v3021
  %v4066 = vunpack.c.h.b16 %v3021
  %v4067 = vunpack.c.l.b16 %v3022
  %v4068 = vunpack.c.l.b16 %v3023
  %v4069 = vunpack.c.h.b16 %v3023
  %v4070 = vunpack.c.l.b16 %v3024
  %v4071 = vunpack.c.h.b16 %v3024
  %v4072 = vunpack.c.l.b16 %v3025
  %v4073 = vunpack.c.l.b16 %v3026
  %v4074 = vunpack.c.h.b16 %v3026
  %v4075 = vunpack.c.l.b16 %v3027
  %v4076 = vunpack.c.h.b16 %v3027
  %v4077 = vunpack.c.l.b16 %v3028
  %v4078 = vunpack.c.l.b16 %v3029
  %v4079 = vunpack.c.h.b16 %v3029
  %v4080 = vunpack.c.l.b16 %v3030
  %v4081 = vunpack.c.h.b16 %v3030
  %v4082 = vunpack.c.l.b16 %v3031
  %v4083 = vpack.c.b16 %v3448, %v3443
  %v4084 = vpack.c.b16 %v3449, %v3444
  %v4085 = vpack.c.b16 %v3450, %v3445
  %v4086 = vpack.c.b16 %v3451, %v3446
  %v4087 = vpack.c.b16 %v3452, %v3447
  %v4088 = vpack.c.b16 %v3458, %v3453
  %v4089 = vpack.c.b16 %v3459, %v3454
  %v4090 = vpack.c.b16 %v3460, %v3455
  %v4091 = vpack.c.b16 %v3461, %v3456
  %v4092 = vpack.c.b16 %v3462, %v3457
  %v4093 = vpack.c.b16 %v3468, %v3463
  %v4094 = vpack.c.b16 %v3469, %v3464
  %v4095 = vpack.c.b16 %v3470, %v3465
  %v4096 = vpack.c.b16 %v3471, %v3466
  %v4097 = vpack.c.b16 %v3472, %v3467
  %v4098 = vpack.c.b16 %v3478, %v3473
  %v4099 = vpack.c.b16 %v3479, %v3474
  %v4100 = vpack.c.b16 %v3480, %v3475
  %v4101 = vpack.c.b16 %v3481, %v3476
  %v4102 = vpack.c.b16 %v3482, %v3477
  %v4103 = vpack.c.b16 %v3488, %v3483
  %v4104 = vpack.c.b16 %v3489, %v3484
  %v4105 = vpack.c.b16 %v3490, %v3485
  %v4106 = vpack.c.b16 %v3491, %v3486
  %v4107 = vpack.c.b16 %v3492, %v3487
  %v4108 = vpack.c.b16 %v3498, %v3493
  %v4109 = vpack.c.b16 %v3499, %v3494
  %v4110 = vpack.c.b16 %v3500, %v3495
  %v4111 = vpack.c.b16 %v3501, %v3496
  %v4112 = vpack.c.b16 %v3502, %v3497
  %v4113 = vpack.c.b16 %v3508, %v3503
  %v4114 = vpack.c.b16 %v3509, %v3504
  %v4115 = vpack.c.b16 %v3510, %v3505
  %v4116 = vpack.c.b16 %v3511, %v3506
  %v4117 = vpack.c.b16 %v3512, %v3507
  %v4118 = vpack.c.b16 %v3518, %v3513
  %v4119 = vpack.c.b16 %v3519, %v3514
  %v4120 = vpack.c.b16 %v3520, %v3515
  %v4121 = vpack.c.b16 %v3521, %v3516
  %v4122 = vpack.c.b16 %v3522, %v3517
  %v4123 = vpack.c.b16 %v3528, %v3523
  %v4124 = vpack.c.b16 %v3529, %v3524
  %v4125 = vpack.c.b16 %v3530, %v3525
  %v4126 = vpack.c.b16 %v3531, %v3526
  %v4127 = vpack.c.b16 %v3532, %v3527
  %v4128 = vpack.c.b16 %v3538, %v3533
  %v4129 = vpack.c.b16 %v3539, %v3534
  %v4130 = vpack.c.b16 %v3540, %v3535
  %v4131 = vpack.c.b16 %v3541, %v3536
  %v4132 = vpack.c.b16 %v3542, %v3537
  %v4133 = vpack.c.b16 %v3548, %v3543
  %v4134 = vpack.c.b16 %v3549, %v3544
  %v4135 = vpack.c.b16 %v3550, %v3545
  %v4136 = vpack.c.b16 %v3551, %v3546
  %v4137 = vpack.c.b16 %v3552, %v3547
  %v4138 = vpack.c.b16 %v3558, %v3553
  %v4139 = vpack.c.b16 %v3559, %v3554
  %v4140 = vpack.c.b16 %v3560, %v3555
  %v4141 = vpack.c.b16 %v3561, %v3556
  %v4142 = vpack.c.b16 %v3562, %v3557
  %v4143 = vpack.c.b16 %v3568, %v3563
  %v4144 = vpack.c.b16 %v3569, %v3564
  %v4145 = vpack.c.b16 %v3570, %v3565
  %v4146 = vpack.c.b16 %v3571, %v3566
  %v4147 = vpack.c.b16 %v3572, %v3567
  %v4148 = vpack.c.b16 %v3578, %v3573
  %v4149 = vpack.c.b16 %v3579, %v3574
  %v4150 = vpack.c.b16 %v3580, %v3575
  %v4151 = vpack.c.b16 %v3581, %v3576
  %v4152 = vpack.c.b16 %v3582, %v3577
  %v4153 = vpack.c.b16 %v3588, %v3583
  %v4154 = vpack.c.b16 %v3589, %v3584
  %v4155 = vpack.c.b16 %v3590, %v3585
  %v4156 = vpack.c.b16 %v3591, %v3586
  %v4157 = vpack.c.b16 %v3592, %v3587
  %v4158 = vpack.c.b16 %v3598, %v3593
  %v4159 = vpack.c.b16 %v3599, %v3594
  %v4160 = vpack.c.b16 %v3600, %v3595
  %v4161 = vpack.c.b16 %v3601, %v3596
  %v4162 = vpack.c.b16 %v3602, %v3597
  %v4163 = vpack.c.b16 %v3608, %v3603
  %v4164 = vpack.c.b16 %v3609, %v3604
  %v4165 = vpack.c.b16 %v3610, %v3605
  %v4166 = vpack.c.b16 %v3611, %v3606
  %v4167 = vpack.c.b16 %v3612, %v3607
  %v4168 = vpack.c.b16 %v3618, %v3613
  %v4169 = vpack.c.b16 %v3619, %v3614
  %v4170 = vpack.c.b16 %v3620, %v3615
  %v4171 = vpack.c.b16 %v3621, %v3616
  %v4172 = vpack.c.b16 %v3622, %v3617
  %v4173 = vpack.c.b16 %v3628, %v3623
  %v4174 = vpack.c.b16 %v3629, %v3624
  %v4175 = vpack.c.b16 %v3630, %v3625
  %v4176 = vpack.c.b16 %v3631, %v3626
  %v4177 = vpack.c.b16 %v3632, %v3627
  %v4178 = vpack.c.b16 %v3638, %v3633
  %v4179 = vpack.c.b16 %v3639, %v3634
  %v4180 = vpack.c.b16 %v3640, %v3635
  %v4181 = vpack.c.b16 %v3641, %v3636
  %v4182 = vpack.c.b16 %v3642, %v3637
  %v4183 = vpack.c.b16 %v3648, %v3643
  %v4184 = vpack.c.b16 %v3649, %v3644
  %v4185 = vpack.c.b16 %v3650, %v3645
  %v4186 = vpack.c.b16 %v3651, %v3646
  %v4187 = vpack.c.b16 %v3652, %v3647
  %v4188 = vpack.c.b16 %v3658, %v3653
  %v4189 = vpack.c.b16 %v3659, %v3654
  %v4190 = vpack.c.b16 %v3660, %v3655
  %v4191 = vpack.c.b16 %v3661, %v3656
  %v4192 = vpack.c.b16 %v3662, %v3657
  %v4193 = vpack.c.b16 %v3668, %v3663
  %v4194 = vpack.c.b16 %v3669, %v3664
  %v4195 = vpack.c.b16 %v3670, %v3665
  %v4196 = vpack.c.b16 %v3671, %v3666
  %v4197 = vpack.c.b16 %v3672, %v3667
  %v4198 = vpack.c.b16 %v3678, %v3673
  %v4199 = vpack.c.b16 %v3679, %v3674
  %v4200 = vpack.c.b16 %v3680, %v3675
  %v4201 = vpack.c.b16 %v3681, %v3676
  %v4202 = vpack.c.b16 %v3682, %v3677
  %v4203 = vpack.c.b16 %v3688, %v3683
  %v4204 = vpack.c.b16 %v3689, %v3684
  %v4205 = vpack.c.b16 %v3690, %v3685
  %v4206 = vpack.c.b16 %v3691, %v3686
  %v4207 = vpack.c.b16 %v3692, %v3687
  %v4208 = vpack.c.b16 %v3698, %v3693
  %v4209 = vpack.c.b16 %v3699, %v3694
  %v4210 = vpack.c.b16 %v3700, %v3695
  %v4211 = vpack.c.b16 %v3701, %v3696
  %v4212 = vpack.c.b16 %v3702, %v3697
  %v4213 = vpack.c.b16 %v3708, %v3703
  %v4214 = vpack.c.b16 %v3709, %v3704
  %v4215 = vpack.c.b16 %v3710, %v3705
  %v4216 = vpack.c.b16 %v3711, %v3706
  %v4217 = vpack.c.b16 %v3712, %v3707
  %v4218 = vpack.c.b16 %v3718, %v3713
  %v4219 = vpack.c.b16 %v3719, %v3714
  %v4220 = vpack.c.b16 %v3720, %v3715
  %v4221 = vpack.c.b16 %v3721, %v3716
  %v4222 = vpack.c.b16 %v3722, %v3717
  %v4223 = vpack.c.b16 %v3728, %v3723
  %v4224 = vpack.c.b16 %v3729, %v3724
  %v4225 = vpack.c.b16 %v3730, %v3725
  %v4226 = vpack.c.b16 %v3731, %v3726
  %v4227 = vpack.c.b16 %v3732, %v3727
  %v4228 = vpack.c.b16 %v3738, %v3733
  %v4229 = vpack.c.b16 %v3739, %v3734
  %v4230 = vpack.c.b16 %v3740, %v3735
  %v4231 = vpack.c.b16 %v3741, %v3736
  %v4232 = vpack.c.b16 %v3742, %v3737
  %v4233 = vpack.c.b16 %v3748, %v3743
  %v4234 = vpack.c.b16 %v3749, %v3744
  %v4235 = vpack.c.b16 %v3750, %v3745
  %v4236 = vpack.c.b16 %v3751, %v3746
  %v4237 = vpack.c.b16 %v3752, %v3747
  %v4238 = vpack.c.b16 %v3758, %v3753
  %v4239 = vpack.c.b16 %v3759, %v3754
  %v4240 = vpack.c.b16 %v3760, %v3755
  %v4241 = vpack.c.b16 %v3761, %v3756
  %v4242 = vpack.c.b16 %v3762, %v3757
  %v4243 = vpack.c.b16 %v3768, %v3763
  %v4244 = vpack.c.b16 %v3769, %v3764
  %v4245 = vpack.c.b16 %v3770, %v3765
  %v4246 = vpack.c.b16 %v3771, %v3766
  %v4247 = vpack.c.b16 %v3772, %v3767
  %v4248 = vpack.c.b16 %v3778, %v3773
  %v4249 = vpack.c.b16 %v3779, %v3774
  %v4250 = vpack.c.b16 %v3780, %v3775
  %v4251 = vpack.c.b16 %v3781, %v3776
  %v4252 = vpack.c.b16 %v3782, %v3777
  %v4253 = vpack.c.b16 %v3788, %v3783
  %v4254 = vpack.c.b16 %v3789, %v3784
  %v4255 = vpack.c.b16 %v3790, %v3785
  %v4256 = vpack.c.b16 %v3791, %v3786
  %v4257 = vpack.c.b16 %v3792, %v3787
  %v4258 = vpack.c.b16 %v3798, %v3793
  %v4259 = vpack.c.b16 %v3799, %v3794
  %v4260 = vpack.c.b16 %v3800, %v3795
  %v4261 = vpack.c.b16 %v3801, %v3796
  %v4262 = vpack.c.b16 %v3802, %v3797
  %v4263 = vpack.c.b16 %v3808, %v3803
  %v4264 = vpack.c.b16 %v3809, %v3804
  %v4265 = vpack.c.b16 %v3810, %v3805
  %v4266 = vpack.c.b16 %v3811, %v3806
  %v4267 = vpack.c.b16 %v3812, %v3807
  %v4268 = vpack.c.b16 %v3818, %v3813
  %v4269 = vpack.c.b16 %v3819, %v3814
  %v4270 = vpack.c.b16 %v3820, %v3815
  %v4271 = vpack.c.b16 %v3821, %v3816
  %v4272 = vpack.c.b16 %v3822, %v3817
  %v4273 = vpack.c.b16 %v3828, %v3823
  %v4274 = vpack.c.b16 %v3829, %v3824
  %v4275 = vpack.c.b16 %v3830, %v3825
  %v4276 = vpack.c.b16 %v3831, %v3826
  %v4277 = vpack.c.b16 %v3832, %v3827
  %v4278 = vpack.c.b16 %v3838, %v3833
  %v4279 = vpack.c.b16 %v3839, %v3834
  %v4280 = vpack.c.b16 %v3840, %v3835
  %v4281 = vpack.c.b16 %v3841, %v3836
  %v4282 = vpack.c.b16 %v3842, %v3837
  %v4283 = vpack.c.b16 %v3848, %v3843
  %v4284 = vpack.c.b16 %v3849, %v3844
  %v4285 = vpack.c.b16 %v3850, %v3845
  %v4286 = vpack.c.b16 %v3851, %v3846
  %v4287 = vpack.c.b16 %v3852, %v3847
  %v4288 = vpack.c.b16 %v3858, %v3853
  %v4289 = vpack.c.b16 %v3859, %v3854
  %v4290 = vpack.c.b16 %v3860, %v3855
  %v4291 = vpack.c.b16 %v3861, %v3856
  %v4292 = vpack.c.b16 %v3862, %v3857
  %v4293 = vpack.c.b16 %v3868, %v3863
  %v4294 = vpack.c.b16 %v3869, %v3864
  %v4295 = vpack.c.b16 %v3870, %v3865
  %v4296 = vpack.c.b16 %v3871, %v3866
  %v4297 = vpack.c.b16 %v3872, %v3867
  %v4298 = vpack.c.b16 %v3878, %v3873
  %v4299 = vpack.c.b16 %v3879, %v3874
  %v4300 = vpack.c.b16 %v3880, %v3875
  %v4301 = vpack.c.b16 %v3881, %v3876
  %v4302 = vpack.c.b16 %v3882, %v3877
  %v4303 = vpack.c.b16 %v3888, %v3883
  %v4304 = vpack.c.b16 %v3889, %v3884
  %v4305 = vpack.c.b16 %v3890, %v3885
  %v4306 = vpack.c.b16 %v3891, %v3886
  %v4307 = vpack.c.b16 %v3892, %v3887
  %v4308 = vpack.c.b16 %v3898, %v3893
  %v4309 = vpack.c.b16 %v3899, %v3894
  %v4310 = vpack.c.b16 %v3900, %v3895
  %v4311 = vpack.c.b16 %v3901, %v3896
  %v4312 = vpack.c.b16 %v3902, %v3897
  %v4313 = vpack.c.b16 %v3908, %v3903
  %v4314 = vpack.c.b16 %v3909, %v3904
  %v4315 = vpack.c.b16 %v3910, %v3905
  %v4316 = vpack.c.b16 %v3911, %v3906
  %v4317 = vpack.c.b16 %v3912, %v3907
  %v4318 = vpack.c.b16 %v3918, %v3913
  %v4319 = vpack.c.b16 %v3919, %v3914
  %v4320 = vpack.c.b16 %v3920, %v3915
  %v4321 = vpack.c.b16 %v3921, %v3916
  %v4322 = vpack.c.b16 %v3922, %v3917
  %v4323 = vpack.c.b16 %v3928, %v3923
  %v4324 = vpack.c.b16 %v3929, %v3924
  %v4325 = vpack.c.b16 %v3930, %v3925
  %v4326 = vpack.c.b16 %v3931, %v3926
  %v4327 = vpack.c.b16 %v3932, %v3927
  %v4328 = vpack.c.b16 %v3938, %v3933
  %v4329 = vpack.c.b16 %v3939, %v3934
  %v4330 = vpack.c.b16 %v3940, %v3935
  %v4331 = vpack.c.b16 %v3941, %v3936
  %v4332 = vpack.c.b16 %v3942, %v3937
  %v4333 = vpack.c.b16 %v3948, %v3943
  %v4334 = vpack.c.b16 %v3949, %v3944
  %v4335 = vpack.c.b16 %v3950, %v3945
  %v4336 = vpack.c.b16 %v3951, %v3946
  %v4337 = vpack.c.b16 %v3952, %v3947
  %v4338 = vpack.c.b16 %v3958, %v3953
  %v4339 = vpack.c.b16 %v3959, %v3954
  %v4340 = vpack.c.b16 %v3960, %v3955
  %v4341 = vpack.c.b16 %v3961, %v3956
  %v4342 = vpack.c.b16 %v3962, %v3957
  %v4343 = vpack.c.b16 %v3968, %v3963
  %v4344 = vpack.c.b16 %v3969, %v3964
  %v4345 = vpack.c.b16 %v3970, %v3965
  %v4346 = vpack.c.b16 %v3971, %v3966
  %v4347 = vpack.c.b16 %v3972, %v3967
  %v4348 = vpack.c.b16 %v3978, %v3973
  %v4349 = vpack.c.b16 %v3979, %v3974
  %v4350 = vpack.c.b16 %v3980, %v3975
  %v4351 = vpack.c.b16 %v3981, %v3976
  %v4352 = vpack.c.b16 %v3982, %v3977
  %v4353 = vpack.c.b16 %v3988, %v3983
  %v4354 = vpack.c.b16 %v3989, %v3984
  %v4355 = vpack.c.b16 %v3990, %v3985
  %v4356 = vpack.c.b16 %v3991, %v3986
  %v4357 = vpack.c.b16 %v3992, %v3987
  %v4358 = vpack.c.b16 %v3998, %v3993
  %v4359 = vpack.c.b16 %v3999, %v3994
  %v4360 = vpack.c.b16 %v4000, %v3995
  %v4361 = vpack.c.b16 %v4001, %v3996
  %v4362 = vpack.c.b16 %v4002, %v3997
  %v4363 = vpack.c.b16 %v4008, %v4003
  %v4364 = vpack.c.b16 %v4009, %v4004
  %v4365 = vpack.c.b16 %v4010, %v4005
  %v4366 = vpack.c.b16 %v4011, %v4006
  %v4367 = vpack.c.b16 %v4012, %v4007
  %v4368 = vpack.c.b16 %v4018, %v4013
  %v4369 = vpack.c.b16 %v4019, %v4014
  %v4370 = vpack.c.b16 %v4020, %v4015
  %v4371 = vpack.c.b16 %v4021, %v4016
  %v4372 = vpack.c.b16 %v4022, %v4017
  %v4373 = vpack.c.b16 %v4028, %v4023
  %v4374 = vpack.c.b16 %v4029, %v4024
  %v4375 = vpack.c.b16 %v4030, %v4025
  %v4376 = vpack.c.b16 %v4031, %v4026
  %v4377 = vpack.c.b16 %v4032, %v4027
  %v4378 = vpack.c.b16 %v4038, %v4033
  %v4379 = vpack.c.b16 %v4039, %v4034
  %v4380 = vpack.c.b16 %v4040, %v4035
  %v4381 = vpack.c.b16 %v4041, %v4036
  %v4382 = vpack.c.b16 %v4042, %v4037
  %v4383 = vpack.c.b16 %v4048, %v4043
  %v4384 = vpack.c.b16 %v4049, %v4044
  %v4385 = vpack.c.b16 %v4050, %v4045
  %v4386 = vpack.c.b16 %v4051, %v4046
  %v4387 = vpack.c.b16 %v4052, %v4047
  %v4388 = vpack.c.b16 %v4058, %v4053
  %v4389 = vpack.c.b16 %v4059, %v4054
  %v4390 = vpack.c.b16 %v4060, %v4055
  %v4391 = vpack.c.b16 %v4061, %v4056
  %v4392 = vpack.c.b16 %v4062, %v4057
  %v4393 = vpack.c.b16 %v4068, %v4063
  %v4394 = vpack.c.b16 %v4069, %v4064
  %v4395 = vpack.c.b16 %v4070, %v4065
  %v4396 = vpack.c.b16 %v4071, %v4066
  %v4397 = vpack.c.b16 %v4072, %v4067
  %v4398 = vpack.c.b16 %v4078, %v4073
  %v4399 = vpack.c.b16 %v4079, %v4074
  %v4400 = vpack.c.b16 %v4080, %v4075
  %v4401 = vpack.c.b16 %v4081, %v4076
  %v4402 = vpack.c.b16 %v4082, %v4077
  %4723 = vmatprep.subr.bf16.mxu0 %v4119
  %4724 = vmatpush1.bf16.msra.mxu0 %v4118
  %4725 = vmatprep.subr.bf16.mxu0 %v4114
  %4726 = vmatpush1.bf16.msra.mxu0 %v4113
  %4727 = vmatprep.subr.bf16.mxu0 %v4109
  %4728 = vmatpush1.bf16.msra.mxu0 %v4108
  %4729 = vmatprep.subr.bf16.mxu0 %v4104
  %4730 = vmatpush1.bf16.msra.mxu0 %v4103
  %4731 = vmatprep.subr.bf16.mxu0 %v4099
  %4732 = vmatpush1.bf16.msra.mxu0 %v4098
  %4733 = vmatprep.subr.bf16.mxu0 %v4094
  %4734 = vmatpush1.bf16.msra.mxu0 %v4093
  %4735 = vmatprep.subr.bf16.mxu0 %v4089
  %4736 = vmatpush1.bf16.msra.mxu0 %v4088
  %4737 = vmatprep.subr.bf16.mxu0 %v4084
  %4738 = vmatpush1.bf16.msra.mxu0 %v4083
  %4739 = vmatprep.subr.bf16.mxu0 %v4159
  %4740 = vmatpush2.bf16.msra.mxu0 %v4158
  %4741 = vmatprep.subr.bf16.mxu0 %v4154
  %4742 = vmatpush2.bf16.msra.mxu0 %v4153
  %4743 = vmatprep.subr.bf16.mxu0 %v4149
  %4744 = vmatpush2.bf16.msra.mxu0 %v4148
  %4745 = vmatprep.subr.bf16.mxu0 %v4144
  %4746 = vmatpush2.bf16.msra.mxu0 %v4143
  %4747 = vmatprep.subr.bf16.mxu0 %v4139
  %4748 = vmatpush2.bf16.msra.mxu0 %v4138
  %4749 = vmatprep.subr.bf16.mxu0 %v4134
  %4750 = vmatpush2.bf16.msra.mxu0 %v4133
  %4751 = vmatprep.subr.bf16.mxu0 %v4129
  %4752 = vmatpush2.bf16.msra.mxu0 %v4128
  %4753 = vmatprep.subr.bf16.mxu0 %v4124
  %4754 = vmatpush2.bf16.msra.mxu0 %v4123
  %4755 = vmatprep.mubr.bf16.mxu0 %v2641
  %4756 = vmatmul.mubr.bf16.gmra.mxu0 %v2640
  %v4757 = vpop.f32.mrf.mxu0
  %v4758 = vadd.f32 %v3037, %v4757
  %v4759 = vpop.f32.mrf.mxu0
  %v4760 = vadd.f32 %v3041, %v4759
  %v4761 = vpop.f32.mrf.mxu0
  %v4762 = vadd.f32 %v3037, %v4761
  %v4763 = vpop.f32.mrf.mxu0
  %v4764 = vadd.f32 %v3041, %v4763
  %4765 = vdwg.mxu0
  %4766 = vmatprep.subr.bf16.mxu0 %v4199
  %4767 = vmatpush1.bf16.msra.mxu0 %v4198
  %4768 = vmatprep.subr.bf16.mxu0 %v4194
  %4769 = vmatpush1.bf16.msra.mxu0 %v4193
  %4770 = vmatprep.subr.bf16.mxu0 %v4189
  %4771 = vmatpush1.bf16.msra.mxu0 %v4188
  %4772 = vmatprep.subr.bf16.mxu0 %v4184
  %4773 = vmatpush1.bf16.msra.mxu0 %v4183
  %4774 = vmatprep.subr.bf16.mxu0 %v4179
  %4775 = vmatpush1.bf16.msra.mxu0 %v4178
  %4776 = vmatprep.subr.bf16.mxu0 %v4174
  %4777 = vmatpush1.bf16.msra.mxu0 %v4173
  %4778 = vmatprep.subr.bf16.mxu0 %v4169
  %4779 = vmatpush1.bf16.msra.mxu0 %v4168
  %4780 = vmatprep.subr.bf16.mxu0 %v4164
  %4781 = vmatpush1.bf16.msra.mxu0 %v4163
  %4782 = vmatprep.subr.bf16.mxu0 %v4239
  %4783 = vmatpush2.bf16.msra.mxu0 %v4238
  %4784 = vmatprep.subr.bf16.mxu0 %v4234
  %4785 = vmatpush2.bf16.msra.mxu0 %v4233
  %4786 = vmatprep.subr.bf16.mxu0 %v4229
  %4787 = vmatpush2.bf16.msra.mxu0 %v4228
  %4788 = vmatprep.subr.bf16.mxu0 %v4224
  %4789 = vmatpush2.bf16.msra.mxu0 %v4223
  %4790 = vmatprep.subr.bf16.mxu0 %v4219
  %4791 = vmatpush2.bf16.msra.mxu0 %v4218
  %4792 = vmatprep.subr.bf16.mxu0 %v4214
  %4793 = vmatpush2.bf16.msra.mxu0 %v4213
  %4794 = vmatprep.subr.bf16.mxu0 %v4209
  %4795 = vmatpush2.bf16.msra.mxu0 %v4208
  %4796 = vmatprep.subr.bf16.mxu0 %v4204
  %4797 = vmatpush2.bf16.msra.mxu0 %v4203
  %4798 = vmatprep.mubr.bf16.mxu0 %v2643
  %4799 = vmatmul.mubr.bf16.gmra.mxu0 %v2642
  %v4800 = vpop.f32.mrf.mxu0
  %v4801 = vadd.f32 %v4758, %v4800
  %v4802 = vpop.f32.mrf.mxu0
  %v4803 = vadd.f32 %v4760, %v4802
  %v4804 = vpop.f32.mrf.mxu0
  %v4805 = vadd.f32 %v4762, %v4804
  %v4806 = vpop.f32.mrf.mxu0
  %v4807 = vadd.f32 %v4764, %v4806
  %4808 = vdwg.mxu0
  %4809 = vmatprep.subr.bf16.mxu0 %v4279
  %4810 = vmatpush1.bf16.msra.mxu0 %v4278
  %4811 = vmatprep.subr.bf16.mxu0 %v4274
  %4812 = vmatpush1.bf16.msra.mxu0 %v4273
  %4813 = vmatprep.subr.bf16.mxu0 %v4269
  %4814 = vmatpush1.bf16.msra.mxu0 %v4268
  %4815 = vmatprep.subr.bf16.mxu0 %v4264
  %4816 = vmatpush1.bf16.msra.mxu0 %v4263
  %4817 = vmatprep.subr.bf16.mxu0 %v4259
  %4818 = vmatpush1.bf16.msra.mxu0 %v4258
  %4819 = vmatprep.subr.bf16.mxu0 %v4254
  %4820 = vmatpush1.bf16.msra.mxu0 %v4253
  %4821 = vmatprep.subr.bf16.mxu0 %v4249
  %4822 = vmatpush1.bf16.msra.mxu0 %v4248
  %4823 = vmatprep.subr.bf16.mxu0 %v4244
  %4824 = vmatpush1.bf16.msra.mxu0 %v4243
  %4825 = vmatprep.subr.bf16.mxu0 %v4319
  %4826 = vmatpush2.bf16.msra.mxu0 %v4318
  %4827 = vmatprep.subr.bf16.mxu0 %v4314
  %4828 = vmatpush2.bf16.msra.mxu0 %v4313
  %4829 = vmatprep.subr.bf16.mxu0 %v4309
  %4830 = vmatpush2.bf16.msra.mxu0 %v4308
  %4831 = vmatprep.subr.bf16.mxu0 %v4304
  %4832 = vmatpush2.bf16.msra.mxu0 %v4303
  %4833 = vmatprep.subr.bf16.mxu0 %v4299
  %4834 = vmatpush2.bf16.msra.mxu0 %v4298
  %4835 = vmatprep.subr.bf16.mxu0 %v4294
  %4836 = vmatpush2.bf16.msra.mxu0 %v4293
  %4837 = vmatprep.subr.bf16.mxu0 %v4289
  %4838 = vmatpush2.bf16.msra.mxu0 %v4288
  %4839 = vmatprep.subr.bf16.mxu0 %v4284
  %4840 = vmatpush2.bf16.msra.mxu0 %v4283
  %4841 = vmatprep.mubr.bf16.mxu0 %v2645
  %4842 = vmatmul.mubr.bf16.gmra.mxu0 %v2644
  %v4843 = vpop.f32.mrf.mxu0
  %v4844 = vadd.f32 %v4801, %v4843
  %v4845 = vpop.f32.mrf.mxu0
  %v4846 = vadd.f32 %v4803, %v4845
  %v4847 = vpop.f32.mrf.mxu0
  %v4848 = vadd.f32 %v4805, %v4847
  %v4849 = vpop.f32.mrf.mxu0
  %v4850 = vadd.f32 %v4807, %v4849
  %4851 = vdwg.mxu0
  %4852 = vmatprep.subr.bf16.mxu0 %v4359
  %4853 = vmatpush1.bf16.msra.mxu0 %v4358
  %4854 = vmatprep.subr.bf16.mxu0 %v4354
  %4855 = vmatpush1.bf16.msra.mxu0 %v4353
  %4856 = vmatprep.subr.bf16.mxu0 %v4349
  %4857 = vmatpush1.bf16.msra.mxu0 %v4348
  %4858 = vmatprep.subr.bf16.mxu0 %v4344
  %4859 = vmatpush1.bf16.msra.mxu0 %v4343
  %4860 = vmatprep.subr.bf16.mxu0 %v4339
  %4861 = vmatpush1.bf16.msra.mxu0 %v4338
  %4862 = vmatprep.subr.bf16.mxu0 %v4334
  %4863 = vmatpush1.bf16.msra.mxu0 %v4333
  %4864 = vmatprep.subr.bf16.mxu0 %v4329
  %4865 = vmatpush1.bf16.msra.mxu0 %v4328
  %4866 = vmatprep.subr.bf16.mxu0 %v4324
  %4867 = vmatpush1.bf16.msra.mxu0 %v4323
  %4868 = vmatprep.subr.bf16.mxu0 %v4399
  %4869 = vmatpush2.bf16.msra.mxu0 %v4398
  %4870 = vmatprep.subr.bf16.mxu0 %v4394
  %4871 = vmatpush2.bf16.msra.mxu0 %v4393
  %4872 = vmatprep.subr.bf16.mxu0 %v4389
  %4873 = vmatpush2.bf16.msra.mxu0 %v4388
  %4874 = vmatprep.subr.bf16.mxu0 %v4384
  %4875 = vmatpush2.bf16.msra.mxu0 %v4383
  %4876 = vmatprep.subr.bf16.mxu0 %v4379
  %4877 = vmatpush2.bf16.msra.mxu0 %v4378
  %4878 = vmatprep.subr.bf16.mxu0 %v4374
  %4879 = vmatpush2.bf16.msra.mxu0 %v4373
  %4880 = vmatprep.subr.bf16.mxu0 %v4369
  %4881 = vmatpush2.bf16.msra.mxu0 %v4368
  %4882 = vmatprep.subr.bf16.mxu0 %v4364
  %4883 = vmatpush2.bf16.msra.mxu0 %v4363
  %4884 = vmatprep.mubr.bf16.mxu0 %v2647
  %4885 = vmatmul.mubr.bf16.gmra.mxu0 %v2646
  %v4886 = vpop.f32.mrf.mxu0
  %v4887 = vadd.f32 %v4844, %v4886
  %v4888 = vpop.f32.mrf.mxu0
  %v4889 = vadd.f32 %v4846, %v4888
  %v4890 = vpop.f32.mrf.mxu0
  %v4891 = vadd.f32 %v4848, %v4890
  %v4892 = vpop.f32.mrf.mxu0
  %v4893 = vadd.f32 %v4850, %v4892
  %4894 = vdwg.mxu0
  %4895 = vmatprep.subr.bf16.mxu0 %v4121
  %4896 = vmatpush1.bf16.msra.mxu0 %v4120
  %4897 = vmatprep.subr.bf16.mxu0 %v4116
  %4898 = vmatpush1.bf16.msra.mxu0 %v4115
  %4899 = vmatprep.subr.bf16.mxu0 %v4111
  %4900 = vmatpush1.bf16.msra.mxu0 %v4110
  %4901 = vmatprep.subr.bf16.mxu0 %v4106
  %4902 = vmatpush1.bf16.msra.mxu0 %v4105
  %4903 = vmatprep.subr.bf16.mxu0 %v4101
  %4904 = vmatpush1.bf16.msra.mxu0 %v4100
  %4905 = vmatprep.subr.bf16.mxu0 %v4096
  %4906 = vmatpush1.bf16.msra.mxu0 %v4095
  %4907 = vmatprep.subr.bf16.mxu0 %v4091
  %4908 = vmatpush1.bf16.msra.mxu0 %v4090
  %4909 = vmatprep.subr.bf16.mxu0 %v4086
  %4910 = vmatpush1.bf16.msra.mxu0 %v4085
  %4911 = vmatprep.subr.bf16.mxu0 %v4161
  %4912 = vmatpush2.bf16.msra.mxu0 %v4160
  %4913 = vmatprep.subr.bf16.mxu0 %v4156
  %4914 = vmatpush2.bf16.msra.mxu0 %v4155
  %4915 = vmatprep.subr.bf16.mxu0 %v4151
  %4916 = vmatpush2.bf16.msra.mxu0 %v4150
  %4917 = vmatprep.subr.bf16.mxu0 %v4146
  %4918 = vmatpush2.bf16.msra.mxu0 %v4145
  %4919 = vmatprep.subr.bf16.mxu0 %v4141
  %4920 = vmatpush2.bf16.msra.mxu0 %v4140
  %4921 = vmatprep.subr.bf16.mxu0 %v4136
  %4922 = vmatpush2.bf16.msra.mxu0 %v4135
  %4923 = vmatprep.subr.bf16.mxu0 %v4131
  %4924 = vmatpush2.bf16.msra.mxu0 %v4130
  %4925 = vmatprep.subr.bf16.mxu0 %v4126
  %4926 = vmatpush2.bf16.msra.mxu0 %v4125
  %4927 = vmatprep.mubr.bf16.mxu0 %v2641
  %4928 = vmatmul.mubr.bf16.gmra.mxu0 %v2640
  %v4929 = vpop.f32.mrf.mxu0
  %v4930 = vadd.f32 %v3045, %v4929
  %v4931 = vpop.f32.mrf.mxu0
  %v4932 = vadd.f32 %v3049, %v4931
  %v4933 = vpop.f32.mrf.mxu0
  %v4934 = vadd.f32 %v3045, %v4933
  %v4935 = vpop.f32.mrf.mxu0
  %v4936 = vadd.f32 %v3049, %v4935
  %4937 = vdwg.mxu0
  %4938 = vmatprep.subr.bf16.mxu0 %v4201
  %4939 = vmatpush1.bf16.msra.mxu0 %v4200
  %4940 = vmatprep.subr.bf16.mxu0 %v4196
  %4941 = vmatpush1.bf16.msra.mxu0 %v4195
  %4942 = vmatprep.subr.bf16.mxu0 %v4191
  %4943 = vmatpush1.bf16.msra.mxu0 %v4190
  %4944 = vmatprep.subr.bf16.mxu0 %v4186
  %4945 = vmatpush1.bf16.msra.mxu0 %v4185
  %4946 = vmatprep.subr.bf16.mxu0 %v4181
  %4947 = vmatpush1.bf16.msra.mxu0 %v4180
  %4948 = vmatprep.subr.bf16.mxu0 %v4176
  %4949 = vmatpush1.bf16.msra.mxu0 %v4175
  %4950 = vmatprep.subr.bf16.mxu0 %v4171
  %4951 = vmatpush1.bf16.msra.mxu0 %v4170
  %4952 = vmatprep.subr.bf16.mxu0 %v4166
  %4953 = vmatpush1.bf16.msra.mxu0 %v4165
  %4954 = vmatprep.subr.bf16.mxu0 %v4241
  %4955 = vmatpush2.bf16.msra.mxu0 %v4240
  %4956 = vmatprep.subr.bf16.mxu0 %v4236
  %4957 = vmatpush2.bf16.msra.mxu0 %v4235
  %4958 = vmatprep.subr.bf16.mxu0 %v4231
  %4959 = vmatpush2.bf16.msra.mxu0 %v4230
  %4960 = vmatprep.subr.bf16.mxu0 %v4226
  %4961 = vmatpush2.bf16.msra.mxu0 %v4225
  %4962 = vmatprep.subr.bf16.mxu0 %v4221
  %4963 = vmatpush2.bf16.msra.mxu0 %v4220
  %4964 = vmatprep.subr.bf16.mxu0 %v4216
  %4965 = vmatpush2.bf16.msra.mxu0 %v4215
  %4966 = vmatprep.subr.bf16.mxu0 %v4211
  %4967 = vmatpush2.bf16.msra.mxu0 %v4210
  %4968 = vmatprep.subr.bf16.mxu0 %v4206
  %4969 = vmatpush2.bf16.msra.mxu0 %v4205
  %4970 = vmatprep.mubr.bf16.mxu0 %v2643
  %4971 = vmatmul.mubr.bf16.gmra.mxu0 %v2642
  %v4972 = vpop.f32.mrf.mxu0
  %v4973 = vadd.f32 %v4930, %v4972
  %v4974 = vpop.f32.mrf.mxu0
  %v4975 = vadd.f32 %v4932, %v4974
  %v4976 = vpop.f32.mrf.mxu0
  %v4977 = vadd.f32 %v4934, %v4976
  %v4978 = vpop.f32.mrf.mxu0
  %v4979 = vadd.f32 %v4936, %v4978
  %4980 = vdwg.mxu0
  %4981 = vmatprep.subr.bf16.mxu0 %v4281
  %4982 = vmatpush1.bf16.msra.mxu0 %v4280
  %4983 = vmatprep.subr.bf16.mxu0 %v4276
  %4984 = vmatpush1.bf16.msra.mxu0 %v4275
  %4985 = vmatprep.subr.bf16.mxu0 %v4271
  %4986 = vmatpush1.bf16.msra.mxu0 %v4270
  %4987 = vmatprep.subr.bf16.mxu0 %v4266
  %4988 = vmatpush1.bf16.msra.mxu0 %v4265
  %4989 = vmatprep.subr.bf16.mxu0 %v4261
  %4990 = vmatpush1.bf16.msra.mxu0 %v4260
  %4991 = vmatprep.subr.bf16.mxu0 %v4256
  %4992 = vmatpush1.bf16.msra.mxu0 %v4255
  %4993 = vmatprep.subr.bf16.mxu0 %v4251
  %4994 = vmatpush1.bf16.msra.mxu0 %v4250
  %4995 = vmatprep.subr.bf16.mxu0 %v4246
  %4996 = vmatpush1.bf16.msra.mxu0 %v4245
  %4997 = vmatprep.subr.bf16.mxu0 %v4321
  %4998 = vmatpush2.bf16.msra.mxu0 %v4320
  %4999 = vmatprep.subr.bf16.mxu0 %v4316
  %5000 = vmatpush2.bf16.msra.mxu0 %v4315
  %5001 = vmatprep.subr.bf16.mxu0 %v4311
  %5002 = vmatpush2.bf16.msra.mxu0 %v4310
  %5003 = vmatprep.subr.bf16.mxu0 %v4306
  %5004 = vmatpush2.bf16.msra.mxu0 %v4305
  %5005 = vmatprep.subr.bf16.mxu0 %v4301
  %5006 = vmatpush2.bf16.msra.mxu0 %v4300
  %5007 = vmatprep.subr.bf16.mxu0 %v4296
  %5008 = vmatpush2.bf16.msra.mxu0 %v4295
  %5009 = vmatprep.subr.bf16.mxu0 %v4291
  %5010 = vmatpush2.bf16.msra.mxu0 %v4290
  %5011 = vmatprep.subr.bf16.mxu0 %v4286
  %5012 = vmatpush2.bf16.msra.mxu0 %v4285
  %5013 = vmatprep.mubr.bf16.mxu0 %v2645
  %5014 = vmatmul.mubr.bf16.gmra.mxu0 %v2644
  %v5015 = vpop.f32.mrf.mxu0
  %v5016 = vadd.f32 %v4973, %v5015
  %v5017 = vpop.f32.mrf.mxu0
  %v5018 = vadd.f32 %v4975, %v5017
  %v5019 = vpop.f32.mrf.mxu0
  %v5020 = vadd.f32 %v4977, %v5019
  %v5021 = vpop.f32.mrf.mxu0
  %v5022 = vadd.f32 %v4979, %v5021
  %5023 = vdwg.mxu0
  %5024 = vmatprep.subr.bf16.mxu0 %v4361
  %5025 = vmatpush1.bf16.msra.mxu0 %v4360
  %5026 = vmatprep.subr.bf16.mxu0 %v4356
  %5027 = vmatpush1.bf16.msra.mxu0 %v4355
  %5028 = vmatprep.subr.bf16.mxu0 %v4351
  %5029 = vmatpush1.bf16.msra.mxu0 %v4350
  %5030 = vmatprep.subr.bf16.mxu0 %v4346
  %5031 = vmatpush1.bf16.msra.mxu0 %v4345
  %5032 = vmatprep.subr.bf16.mxu0 %v4341
  %5033 = vmatpush1.bf16.msra.mxu0 %v4340
  %5034 = vmatprep.subr.bf16.mxu0 %v4336
  %5035 = vmatpush1.bf16.msra.mxu0 %v4335
  %5036 = vmatprep.subr.bf16.mxu0 %v4331
  %5037 = vmatpush1.bf16.msra.mxu0 %v4330
  %5038 = vmatprep.subr.bf16.mxu0 %v4326
  %5039 = vmatpush1.bf16.msra.mxu0 %v4325
  %5040 = vmatprep.subr.bf16.mxu0 %v4401
  %5041 = vmatpush2.bf16.msra.mxu0 %v4400
  %5042 = vmatprep.subr.bf16.mxu0 %v4396
  %5043 = vmatpush2.bf16.msra.mxu0 %v4395
  %5044 = vmatprep.subr.bf16.mxu0 %v4391
  %5045 = vmatpush2.bf16.msra.mxu0 %v4390
  %5046 = vmatprep.subr.bf16.mxu0 %v4386
  %5047 = vmatpush2.bf16.msra.mxu0 %v4385
  %5048 = vmatprep.subr.bf16.mxu0 %v4381
  %5049 = vmatpush2.bf16.msra.mxu0 %v4380
  %5050 = vmatprep.subr.bf16.mxu0 %v4376
  %5051 = vmatpush2.bf16.msra.mxu0 %v4375
  %5052 = vmatprep.subr.bf16.mxu0 %v4371
  %5053 = vmatpush2.bf16.msra.mxu0 %v4370
  %5054 = vmatprep.subr.bf16.mxu0 %v4366
  %5055 = vmatpush2.bf16.msra.mxu0 %v4365
  %5056 = vmatprep.mubr.bf16.mxu0 %v2647
  %5057 = vmatmul.mubr.bf16.gmra.mxu0 %v2646
  %v5058 = vpop.f32.mrf.mxu0
  %v5059 = vadd.f32 %v5016, %v5058
  %v5060 = vpop.f32.mrf.mxu0
  %v5061 = vadd.f32 %v5018, %v5060
  %v5062 = vpop.f32.mrf.mxu0
  %v5063 = vadd.f32 %v5020, %v5062
  %v5064 = vpop.f32.mrf.mxu0
  %v5065 = vadd.f32 %v5022, %v5064
  %5066 = vdwg.mxu0
  %5067 = vmatprep.subr.bf16.mxu0 0
  %5068 = vmatpush1.bf16.msra.mxu0 %v4122
  %5069 = vmatprep.subr.bf16.mxu0 0
  %5070 = vmatpush1.bf16.msra.mxu0 %v4117
  %5071 = vmatprep.subr.bf16.mxu0 0
  %5072 = vmatpush1.bf16.msra.mxu0 %v4112
  %5073 = vmatprep.subr.bf16.mxu0 0
  %5074 = vmatpush1.bf16.msra.mxu0 %v4107
  %5075 = vmatprep.subr.bf16.mxu0 0
  %5076 = vmatpush1.bf16.msra.mxu0 %v4102
  %5077 = vmatprep.subr.bf16.mxu0 0
  %5078 = vmatpush1.bf16.msra.mxu0 %v4097
  %5079 = vmatprep.subr.bf16.mxu0 0
  %5080 = vmatpush1.bf16.msra.mxu0 %v4092
  %5081 = vmatprep.subr.bf16.mxu0 0
  %5082 = vmatpush1.bf16.msra.mxu0 %v4087
  %5083 = vmatprep.subr.bf16.mxu0 0
  %5084 = vmatpush2.bf16.msra.mxu0 %v4162
  %5085 = vmatprep.subr.bf16.mxu0 0
  %5086 = vmatpush2.bf16.msra.mxu0 %v4157
  %5087 = vmatprep.subr.bf16.mxu0 0
  %5088 = vmatpush2.bf16.msra.mxu0 %v4152
  %5089 = vmatprep.subr.bf16.mxu0 0
  %5090 = vmatpush2.bf16.msra.mxu0 %v4147
  %5091 = vmatprep.subr.bf16.mxu0 0
  %5092 = vmatpush2.bf16.msra.mxu0 %v4142
  %5093 = vmatprep.subr.bf16.mxu0 0
  %5094 = vmatpush2.bf16.msra.mxu0 %v4137
  %5095 = vmatprep.subr.bf16.mxu0 0
  %5096 = vmatpush2.bf16.msra.mxu0 %v4132
  %5097 = vmatprep.subr.bf16.mxu0 0
  %5098 = vmatpush2.bf16.msra.mxu0 %v4127
  %5099 = vmatprep.mubr.bf16.mxu0 %v2641
  %5100 = vmatmul.mubr.bf16.gmra.mxu0 %v2640
  %v5101 = vpop.f32.mrf.mxu0
  %v5102 = vadd.f32 %v3053, %v5101
  %v5103 = vpop.f32.mrf.mxu0
  %v5104 = vpop.f32.mrf.mxu0
  %v5105 = vadd.f32 %v3053, %v5104
  %v5106 = vpop.f32.mrf.mxu0
  %5107 = vdwg.mxu0
  %5108 = vmatprep.subr.bf16.mxu0 0
  %5109 = vmatpush1.bf16.msra.mxu0 %v4202
  %5110 = vmatprep.subr.bf16.mxu0 0
  %5111 = vmatpush1.bf16.msra.mxu0 %v4197
  %5112 = vmatprep.subr.bf16.mxu0 0
  %5113 = vmatpush1.bf16.msra.mxu0 %v4192
  %5114 = vmatprep.subr.bf16.mxu0 0
  %5115 = vmatpush1.bf16.msra.mxu0 %v4187
  %5116 = vmatprep.subr.bf16.mxu0 0
  %5117 = vmatpush1.bf16.msra.mxu0 %v4182
  %5118 = vmatprep.subr.bf16.mxu0 0
  %5119 = vmatpush1.bf16.msra.mxu0 %v4177
  %5120 = vmatprep.subr.bf16.mxu0 0
  %5121 = vmatpush1.bf16.msra.mxu0 %v4172
  %5122 = vmatprep.subr.bf16.mxu0 0
  %5123 = vmatpush1.bf16.msra.mxu0 %v4167
  %5124 = vmatprep.subr.bf16.mxu0 0
  %5125 = vmatpush2.bf16.msra.mxu0 %v4242
  %5126 = vmatprep.subr.bf16.mxu0 0
  %5127 = vmatpush2.bf16.msra.mxu0 %v4237
  %5128 = vmatprep.subr.bf16.mxu0 0
  %5129 = vmatpush2.bf16.msra.mxu0 %v4232
  %5130 = vmatprep.subr.bf16.mxu0 0
  %5131 = vmatpush2.bf16.msra.mxu0 %v4227
  %5132 = vmatprep.subr.bf16.mxu0 0
  %5133 = vmatpush2.bf16.msra.mxu0 %v4222
  %5134 = vmatprep.subr.bf16.mxu0 0
  %5135 = vmatpush2.bf16.msra.mxu0 %v4217
  %5136 = vmatprep.subr.bf16.mxu0 0
  %5137 = vmatpush2.bf16.msra.mxu0 %v4212
  %5138 = vmatprep.subr.bf16.mxu0 0
  %5139 = vmatpush2.bf16.msra.mxu0 %v4207
  %5140 = vmatprep.mubr.bf16.mxu0 %v2643
  %5141 = vmatmul.mubr.bf16.gmra.mxu0 %v2642
  %v5142 = vpop.f32.mrf.mxu0
  %v5143 = vadd.f32 %v5102, %v5142
  %v5144 = vpop.f32.mrf.mxu0
  %v5145 = vpop.f32.mrf.mxu0
  %v5146 = vadd.f32 %v5105, %v5145
  %v5147 = vpop.f32.mrf.mxu0
  %5148 = vdwg.mxu0
  %5149 = vmatprep.subr.bf16.mxu0 0
  %5150 = vmatpush1.bf16.msra.mxu0 %v4282
  %5151 = vmatprep.subr.bf16.mxu0 0
  %5152 = vmatpush1.bf16.msra.mxu0 %v4277
  %5153 = vmatprep.subr.bf16.mxu0 0
  %5154 = vmatpush1.bf16.msra.mxu0 %v4272
  %5155 = vmatprep.subr.bf16.mxu0 0
  %5156 = vmatpush1.bf16.msra.mxu0 %v4267
  %5157 = vmatprep.subr.bf16.mxu0 0
  %5158 = vmatpush1.bf16.msra.mxu0 %v4262
  %5159 = vmatprep.subr.bf16.mxu0 0
  %5160 = vmatpush1.bf16.msra.mxu0 %v4257
  %5161 = vmatprep.subr.bf16.mxu0 0
  %5162 = vmatpush1.bf16.msra.mxu0 %v4252
  %5163 = vmatprep.subr.bf16.mxu0 0
  %5164 = vmatpush1.bf16.msra.mxu0 %v4247
  %5165 = vmatprep.subr.bf16.mxu0 0
  %5166 = vmatpush2.bf16.msra.mxu0 %v4322
  %5167 = vmatprep.subr.bf16.mxu0 0
  %5168 = vmatpush2.bf16.msra.mxu0 %v4317
  %5169 = vmatprep.subr.bf16.mxu0 0
  %5170 = vmatpush2.bf16.msra.mxu0 %v4312
  %5171 = vmatprep.subr.bf16.mxu0 0
  %5172 = vmatpush2.bf16.msra.mxu0 %v4307
  %5173 = vmatprep.subr.bf16.mxu0 0
  %5174 = vmatpush2.bf16.msra.mxu0 %v4302
  %5175 = vmatprep.subr.bf16.mxu0 0
  %5176 = vmatpush2.bf16.msra.mxu0 %v4297
  %5177 = vmatprep.subr.bf16.mxu0 0
  %5178 = vmatpush2.bf16.msra.mxu0 %v4292
  %5179 = vmatprep.subr.bf16.mxu0 0
  %5180 = vmatpush2.bf16.msra.mxu0 %v4287
  %5181 = vmatprep.mubr.bf16.mxu0 %v2645
  %5182 = vmatmul.mubr.bf16.gmra.mxu0 %v2644
  %v5183 = vpop.f32.mrf.mxu0
  %v5184 = vadd.f32 %v5143, %v5183
  %v5185 = vpop.f32.mrf.mxu0
  %v5186 = vpop.f32.mrf.mxu0
  %v5187 = vadd.f32 %v5146, %v5186
  %v5188 = vpop.f32.mrf.mxu0
  %5189 = vdwg.mxu0
  %5190 = vmatprep.subr.bf16.mxu0 0
  %5191 = vmatpush1.bf16.msra.mxu0 %v4362
  %5192 = vmatprep.subr.bf16.mxu0 0
  %5193 = vmatpush1.bf16.msra.mxu0 %v4357
  %5194 = vmatprep.subr.bf16.mxu0 0
  %5195 = vmatpush1.bf16.msra.mxu0 %v4352
  %5196 = vmatprep.subr.bf16.mxu0 0
  %5197 = vmatpush1.bf16.msra.mxu0 %v4347
  %5198 = vmatprep.subr.bf16.mxu0 0
  %5199 = vmatpush1.bf16.msra.mxu0 %v4342
  %5200 = vmatprep.subr.bf16.mxu0 0
  %5201 = vmatpush1.bf16.msra.mxu0 %v4337
  %5202 = vmatprep.subr.bf16.mxu0 0
  %5203 = vmatpush1.bf16.msra.mxu0 %v4332
  %5204 = vmatprep.subr.bf16.mxu0 0
  %5205 = vmatpush1.bf16.msra.mxu0 %v4327
  %5206 = vmatprep.subr.bf16.mxu0 0
  %5207 = vmatpush2.bf16.msra.mxu0 %v4402
  %5208 = vmatprep.subr.bf16.mxu0 0
  %5209 = vmatpush2.bf16.msra.mxu0 %v4397
  %5210 = vmatprep.subr.bf16.mxu0 0
  %5211 = vmatpush2.bf16.msra.mxu0 %v4392
  %5212 = vmatprep.subr.bf16.mxu0 0
  %5213 = vmatpush2.bf16.msra.mxu0 %v4387
  %5214 = vmatprep.subr.bf16.mxu0 0
  %5215 = vmatpush2.bf16.msra.mxu0 %v4382
  %5216 = vmatprep.subr.bf16.mxu0 0
  %5217 = vmatpush2.bf16.msra.mxu0 %v4377
  %5218 = vmatprep.subr.bf16.mxu0 0
  %5219 = vmatpush2.bf16.msra.mxu0 %v4372
  %5220 = vmatprep.subr.bf16.mxu0 0
  %5221 = vmatpush2.bf16.msra.mxu0 %v4367
  %5222 = vmatprep.mubr.bf16.mxu0 %v2647
  %5223 = vmatmul.mubr.bf16.gmra.mxu0 %v2646
  %v5224 = vpop.f32.mrf.mxu0
  %v5225 = vadd.f32 %v5184, %v5224
  %v5226 = vpop.f32.mrf.mxu0
  %v5227 = vpop.f32.mrf.mxu0
  %v5228 = vadd.f32 %v5187, %v5227
  %v5229 = vpop.f32.mrf.mxu0
  %5230 = vdwg.mxu0
  %5231 = vst [vmem:[%s9] sm:$0xff] %v4887
  %5232 = vst [vmem:[%s9 + $0x8] sm:$0xff] %v4889
  %5233 = vst [vmem:[%s9 + $0x10] sm:$0xff] %v5059
  %5234 = vst [vmem:[%s9 + $0x18] sm:$0xff] %v5061
  %vm5235 = vcmask 523264
  %5236 = vst.msk [vmem:[%s9 + $0x20] sm:$0xff] %vm5235, %v5225
  %5237 = vst [vmem:[%s9 + $0x28] sm:$0xff] %v4891
  %5238 = vst [vmem:[%s9 + $0x30] sm:$0xff] %v4893
  %5239 = vst [vmem:[%s9 + $0x38] sm:$0xff] %v5063
  %5240 = vst [vmem:[%s9 + $0x40] sm:$0xff] %v5065
  %5241 = vst.msk [vmem:[%s9 + $0x48] sm:$0xff] %vm5235, %v5228
  // Predicated region
  $region38: #{cnn_segmentation_forward.7} parent=0 // pred_check
    _
  $region39: #{cnn_segmentation_forward.7} parent=0 // pred_check_branch
    %5243 = sbr.rel (0) target = $region41
  $region40: #{cnn_segmentation_forward.7} parent=0 // pred_region
    _
  $region41: #{cnn_segmentation_forward.7} parent=0 // pred_fallthru
    _
  // Predicated region
  $region42: #{cnn_segmentation_forward.7} parent=0 // pred_check
    _
  $region43: #{cnn_segmentation_forward.7} parent=0 // pred_check_branch
    %5245 = sbr.rel (0) target = $region45
  $region44: #{cnn_segmentation_forward.7} parent=0 // pred_region
    _
  $region45: #{cnn_segmentation_forward.7} parent=0 // pred_fallthru
    _

</llo_original>
